<compile_context>
chip_gen: v5e
topology: v5e:2x2
jax: 0.10.0
libtpu: 0.0.40
codegen_flags: <defaults>
</compile_context>

<pallas_src>
import math
from functools import partial

import jax
import jax.numpy as jnp
from jax import lax
from jax.experimental import pallas as pl
from jax.experimental.pallas import tpu as pltpu

# ---- Module hyperparameters (from the PyTorch file) ----
N_EMBED = 384
NUM_HEADS = 6
HEAD_DIM = N_EMBED // NUM_HEADS  # 64


# ------------------------------------------------------------------
# Fused kernel: c_attn -> per-head causal attention -> c_proj
# One (batch_tile) slab of batches per grid step; everything stays in VMEM.
# ------------------------------------------------------------------
def _mha_fused_kernel(x_ref, mask_ref, wqkv_ref, wproj_ref, o_ref, y_ref, *, num_heads):
    bt, T, C = x_ref.shape          # (batch_tile, T, C)
    H = num_heads
    D = C // H
    M = bt * T                      # matmul M dim (batch folded into rows)

    # Inputs arrive already in bf16 (weights pre-scaled); no in-kernel weight casts.
    x = x_ref[...].reshape(M, C)            # (M, C)   bf16
    wqkv = wqkv_ref[...]                    # (3C, C)  bf16, q rows pre-scaled by 1/sqrt(D)
    wproj = wproj_ref[...]                  # (C, C)   bf16
    mask = mask_ref[...]                    # (T, T)   f32 additive causal bias (0 / -1e30)

    # qkv = x @ W_attn^T : contract last dims of both operands (no transpose materialized).
    qkv = lax.dot_general(
        x, wqkv,
        dimension_numbers=(((1,), (1,)), ((), ())),
        preferred_element_type=jnp.float32,
    )                                       # (M, 3C) f32
    qkv = qkv.astype(jnp.bfloat16)          # single cast; all per-head slices reuse it

    # Static (unrolled) loop over batch rows in the tile and heads.
    for b in range(bt):
        r0 = b * T
        for h in range(H):
            qh = qkv[r0:r0 + T, h * D:(h + 1) * D]                    # (T, D) bf16 (scaled)
            kh = qkv[r0:r0 + T, C + h * D:C + (h + 1) * D]            # (T, D) bf16
            vh = qkv[r0:r0 + T, 2 * C + h * D:2 * C + (h + 1) * D]    # (T, D) bf16

            # s = (q/sqrt(D)) @ k^T  — scale already folded into W_attn q rows.
            s = lax.dot_general(
                qh, kh,
                dimension_numbers=(((1,), (1,)), ((), ())),
                preferred_element_type=jnp.float32,
            )                                                         # (T, T) f32
            s = s + mask

            # Softmax statistics in f32 (no bf16 VPU/EUP on v5e; keeps -1e30 mask safe).
            m = jnp.max(s, axis=-1, keepdims=True)
            p = jnp.exp(s - m)
            l = jnp.sum(p, axis=-1, keepdims=True)

            yh = jnp.dot(p.astype(jnp.bfloat16), vh,
                         preferred_element_type=jnp.float32)          # (T, D) f32
            yh = yh * pl.reciprocal(l, approx=True)

            # Write directly into the lane-dense (M, C) bf16 scratch (no f32 concat buffer).
            y_ref[r0:r0 + T, h * D:(h + 1) * D] = yh.astype(jnp.bfloat16)

    # out = y @ W_proj^T, again contracting on last dims.
    out = lax.dot_general(
        y_ref[...], wproj,
        dimension_numbers=(((1,), (1,)), ((), ())),
        preferred_element_type=jnp.float32,
    )                                                                 # (M, C) f32
    o_ref[...] = out.reshape(bt, T, C).astype(o_ref.dtype)


# ------------------------------------------------------------------
# Wrapper
# ------------------------------------------------------------------
def multi_head_attention(x, w_attn, w_proj, num_heads=NUM_HEADS, batch_tile=1):
    """
    x:      (B, T, C)
    w_attn: (3C, C)  — PyTorch nn.Linear weight layout (out, in)
    w_proj: (C, C)   — PyTorch nn.Linear weight layout (out, in)

    batch_tile: batches folded into the matmul M dim per grid step.
      * 1 (default): grid=(B,), one batch per step — keeps >=2 parallel steps for v7x's 2 TCs.
      * 2 on v6e:    M = 2*T = 256 fills the 256-row MXU and halves grid-step overhead.
    """
    B, T, C = x.shape
    H = num_heads
    D = C // H
    assert C % H == 0
    assert B % batch_tile == 0

    # ---- One-time parameter/activation prep outside the kernel ----
    # Fold 1/sqrt(D) (= 1/8 exactly, no rounding) into the q rows of w_attn, then bf16.
    inv_scale = jnp.float32(1.0 / math.sqrt(D))
    w_attn_b = w_attn.astype(jnp.float32).at[:C, :].multiply(inv_scale).astype(jnp.bfloat16)
    w_proj_b = w_proj.astype(jnp.bfloat16)
    x_b = x.astype(jnp.bfloat16)

    # Causal mask as an additive f32 bias, built once per call (resident input).
    rows = jnp.arange(T, dtype=jnp.int32)
    mask_bias = jnp.where(rows[:, None] >= rows[None, :], 0.0, -1e30).astype(jnp.float32)

    grid = (B // batch_tile,)

    # Advisory cost estimate for the XLA scheduler (bf16 inputs, f32 output).
    flops = (2 * B * T * C * (3 * C)          # c_attn
             + 4 * B * H * T * T * D          # q k^T and p v
             + 2 * B * T * C * C)             # c_proj
    transcendentals = B * H * T * T           # exp in softmax
    bytes_accessed = (2 * x_b.size            # bf16 x
                      + 2 * w_attn_b.size     # bf16 weights
                      + 2 * w_proj_b.size
                      + 4 * mask_bias.size    # f32 mask
                      + 4 * B * T * C)        # f32 output

    kernel = partial(_mha_fused_kernel, num_heads=H)

    return pl.pallas_call(
        kernel,
        out_shape=jax.ShapeDtypeStruct((B, T, C), x.dtype),
        grid_spec=pltpu.PrefetchScalarGridSpec(
            num_scalar_prefetch=0,
            grid=grid,
            in_specs=[
                pl.BlockSpec((batch_tile, T, C), lambda i: (i, 0, 0)),  # x tile
                pl.BlockSpec((T, T), lambda i: (0, 0)),                 # causal mask (resident)
                pl.BlockSpec((3 * C, C), lambda i: (0, 0)),             # w_attn (resident)
                pl.BlockSpec((C, C), lambda i: (0, 0)),                 # w_proj (resident)
            ],
            out_specs=pl.BlockSpec((batch_tile, T, C), lambda i: (i, 0, 0)),
            scratch_shapes=[pltpu.VMEM((batch_tile * T, C), jnp.bfloat16)],  # packed y
        ),
        compiler_params=pltpu.CompilerParams(
            dimension_semantics=("parallel",),   # grid steps shard across v7x TensorCores
            vmem_limit_bytes=32 * 1024 * 1024,
        ),
        cost_estimate=pl.CostEstimate(
            flops=flops,
            transcendentals=transcendentals,
            bytes_accessed=bytes_accessed,
        ),
    )(x_b, mask_bias, w_attn_b, w_proj_b)


# ------------------------------------------------------------------
# Pure-JAX (f32) reference for verification
# ------------------------------------------------------------------
def reference(x, w_attn, w_proj, num_heads=NUM_HEADS):
    B, T, C = x.shape
    H = num_heads
    D = C // H
    qkv = x @ w_attn.T
    q, k, v = jnp.split(qkv, 3, axis=2)
    q = q.reshape(B, T, H, D).transpose(0, 2, 1, 3)
    k = k.reshape(B, T, H, D).transpose(0, 2, 1, 3)
    v = v.reshape(B, T, H, D).transpose(0, 2, 1, 3)
    s = jnp.einsum("bhqd,bhkd->bhqk", q, k) / math.sqrt(D)
    mask = jnp.tril(jnp.ones((T, T), dtype=bool))
    s = jnp.where(mask[None, None], s, -jnp.inf)
    p = jax.nn.softmax(s, axis=-1)
    y = jnp.einsum("bhqk,bhkd->bhqd", p, v)
    y = y.transpose(0, 2, 1, 3).reshape(B, T, C)
    return y @ w_proj.T


if __name__ == "__main__":
    B, T, C = 2, 128, N_EMBED

    key = jax.random.PRNGKey(0)
    kx, kw1, kw2 = jax.random.split(key, 3)

    x = jax.random.normal(kx, (B, T, C), dtype=jnp.float32)
    # Deterministic parameter init (nn.Linear-like scale), PyTorch (out, in) layout.
    w_attn = jax.random.normal(kw1, (3 * C, C), dtype=jnp.float32) * (1.0 / math.sqrt(C))
    w_proj = jax.random.normal(kw2, (C, C), dtype=jnp.float32) * (1.0 / math.sqrt(C))

    ref = reference(x, w_attn, w_proj)

    # Default path: one batch per grid step (2 parallel steps -> both v7x TCs busy).
    out1 = jax.block_until_ready(multi_head_attention(x, w_attn, w_proj, batch_tile=1))
    # Batch-folded path (v6e MXU fill): M = 2*T = 256 per step, grid of 1.
    out2 = jax.block_until_ready(multi_head_attention(x, w_attn, w_proj, batch_tile=2))

    assert out1.shape == (B, T, C) and out2.shape == (B, T, C)
    # Kernel uses bf16 MXU inputs with f32 accumulation; reference is pure f32,
    # so the tolerance reflects bf16 input rounding (not accumulation error).
    err1 = float(jnp.max(jnp.abs(out1 - ref)))
    err2 = float(jnp.max(jnp.abs(out2 - ref)))
    assert jnp.allclose(out1, ref, atol=5e-2, rtol=5e-2), err1
    assert jnp.allclose(out2, ref, atol=5e-2, rtol=5e-2), err2

    print("KERNEL_OK")
</pallas_src>

<mosaic_0001>
module attributes {stable_mosaic.version = 11 : i64} {
  func.func @_mha_fused_kernel(%arg0: i32, %arg1: memref<1x128x384xbf16, #tpu.memory_space<vmem>>, %arg2: memref<128x128xf32, #tpu.memory_space<vmem>>, %arg3: memref<1152x384xbf16, #tpu.memory_space<vmem>>, %arg4: memref<384x384xbf16, #tpu.memory_space<vmem>>, %arg5: memref<1x128x384xf32, #tpu.memory_space<vmem>>, %arg6: memref<128x384xbf16, #tpu.memory_space<vmem>>) attributes {dimension_semantics = [#tpu.dimension_semantics<parallel>], iteration_bounds = array<i64: 2>, scalar_prefetch = 0 : i64, scratch_operands = 1 : i64, tpu.core_type = #tpu.core_type<tc>, window_params = [{transform_indices = @transform_0, window_bounds = array<i64: 1, 128, 384>}, {pipeline_mode = #tpu.pipeline_mode<synchronous>, transform_indices = @transform_1, window_bounds = array<i64: 128, 128>}, {pipeline_mode = #tpu.pipeline_mode<synchronous>, transform_indices = @transform_2, window_bounds = array<i64: 1152, 384>}, {pipeline_mode = #tpu.pipeline_mode<synchronous>, transform_indices = @transform_3, window_bounds = array<i64: 384, 384>}, {transform_indices = @transform_4, window_bounds = array<i64: 1, 128, 384>}]} {
    %c0 = arith.constant 0 : index
    %c0_0 = arith.constant 0 : index
    %c0_1 = arith.constant 0 : index
    %0 = vector.load %arg1[%c0, %c0_0, %c0_1] : memref<1x128x384xbf16, #tpu.memory_space<vmem>>, vector<1x128x384xbf16>
    %1 = vector.shape_cast %0 : vector<1x128x384xbf16> to vector<128x384xbf16>
    %c0_2 = arith.constant 0 : index
    %c0_3 = arith.constant 0 : index
    %2 = vector.load %arg3[%c0_2, %c0_3] : memref<1152x384xbf16, #tpu.memory_space<vmem>>, vector<1152x384xbf16>
    %c0_4 = arith.constant 0 : index
    %c0_5 = arith.constant 0 : index
    %3 = vector.load %arg4[%c0_4, %c0_5] : memref<384x384xbf16, #tpu.memory_space<vmem>>, vector<384x384xbf16>
    %c0_6 = arith.constant 0 : index
    %c0_7 = arith.constant 0 : index
    %4 = vector.load %arg2[%c0_6, %c0_7] : memref<128x128xf32, #tpu.memory_space<vmem>>, vector<128x128xf32>
    %cst = arith.constant dense<0.000000e+00> : vector<128x1152xf32>
    %5 = tpu.matmul %1, %2, %cst {dimension_numbers = #tpu.dot_dimension_numbers<[1], [1], [0], [0], [0, 0, 1, 0], [], []>} : vector<128x384xbf16>, vector<1152x384xbf16>, vector<128x1152xf32> -> vector<128x1152xf32>
    %6 = arith.truncf %5 : vector<128x1152xf32> to vector<128x1152xbf16>
    %7 = vector.extract_strided_slice %6 {offsets = [0, 0], sizes = [128, 64], strides = [1, 1]} : vector<128x1152xbf16> to vector<128x64xbf16>
    %8 = vector.extract_strided_slice %6 {offsets = [0, 384], sizes = [128, 64], strides = [1, 1]} : vector<128x1152xbf16> to vector<128x64xbf16>
    %9 = vector.extract_strided_slice %6 {offsets = [0, 768], sizes = [128, 64], strides = [1, 1]} : vector<128x1152xbf16> to vector<128x64xbf16>
    %cst_8 = arith.constant dense<0.000000e+00> : vector<128x128xf32>
    %10 = tpu.matmul %7, %8, %cst_8 {dimension_numbers = #tpu.dot_dimension_numbers<[1], [1], [0], [0], [0, 0, 1, 0], [], []>} : vector<128x64xbf16>, vector<128x64xbf16>, vector<128x128xf32> -> vector<128x128xf32>
    %11 = arith.addf %10, %4 : vector<128x128xf32>
    %cst_9 = arith.constant dense<0xFF800000> : vector<128xf32>
    %12 = vector.multi_reduction <maximumf>, %11, %cst_9 [1] : vector<128x128xf32> to vector<128xf32>
    %13 = vector.shape_cast %12 : vector<128xf32> to vector<128x1xf32>
    %14 = vector.broadcast %13 : vector<128x1xf32> to vector<128x128xf32>
    %15 = arith.subf %11, %14 : vector<128x128xf32>
    %16 = math.exp %15 : vector<128x128xf32>
    %cst_10 = arith.constant dense<0.000000e+00> : vector<128xf32>
    %17 = vector.multi_reduction <add>, %16, %cst_10 [1] : vector<128x128xf32> to vector<128xf32>
    %18 = vector.shape_cast %17 : vector<128xf32> to vector<128x1xf32>
    %19 = arith.truncf %16 : vector<128x128xf32> to vector<128x128xbf16>
    %cst_11 = arith.constant dense<0.000000e+00> : vector<128x64xf32>
    %20 = tpu.matmul %19, %9, %cst_11 {dimension_numbers = #tpu.dot_dimension_numbers<[1], [0], [0], [1], [0, 0, 1, 1], [], []>} : vector<128x128xbf16>, vector<128x64xbf16>, vector<128x64xf32> -> vector<128x64xf32>
    %21 = tpu.reciprocal %18 {approx = true} : vector<128x1xf32> -> vector<128x1xf32>
    %22 = vector.broadcast %21 : vector<128x1xf32> to vector<128x64xf32>
    %23 = arith.mulf %20, %22 : vector<128x64xf32>
    %24 = arith.truncf %23 : vector<128x64xf32> to vector<128x64xbf16>
    %c0_12 = arith.constant 0 : index
    %c0_13 = arith.constant 0 : index
    %25 = vector.load %arg6[%c0_12, %c0_13] : memref<128x384xbf16, #tpu.memory_space<vmem>>, vector<128x64xbf16>
    tpu.vector_store %arg6[%c0_12, %c0_13], %24 {strides = array<i32>} : memref<128x384xbf16, #tpu.memory_space<vmem>>, vector<128x64xbf16>,
    %26 = vector.extract_strided_slice %6 {offsets = [0, 64], sizes = [128, 64], strides = [1, 1]} : vector<128x1152xbf16> to vector<128x64xbf16>
    %27 = vector.extract_strided_slice %6 {offsets = [0, 448], sizes = [128, 64], strides = [1, 1]} : vector<128x1152xbf16> to vector<128x64xbf16>
    %28 = vector.extract_strided_slice %6 {offsets = [0, 832], sizes = [128, 64], strides = [1, 1]} : vector<128x1152xbf16> to vector<128x64xbf16>
    %cst_14 = arith.constant dense<0.000000e+00> : vector<128x128xf32>
    %29 = tpu.matmul %26, %27, %cst_14 {dimension_numbers = #tpu.dot_dimension_numbers<[1], [1], [0], [0], [0, 0, 1, 0], [], []>} : vector<128x64xbf16>, vector<128x64xbf16>, vector<128x128xf32> -> vector<128x128xf32>
    %30 = arith.addf %29, %4 : vector<128x128xf32>
    %cst_15 = arith.constant dense<0xFF800000> : vector<128xf32>
    %31 = vector.multi_reduction <maximumf>, %30, %cst_15 [1] : vector<128x128xf32> to vector<128xf32>
    %32 = vector.shape_cast %31 : vector<128xf32> to vector<128x1xf32>
    %33 = vector.broadcast %32 : vector<128x1xf32> to vector<128x128xf32>
    %34 = arith.subf %30, %33 : vector<128x128xf32>
    %35 = math.exp %34 : vector<128x128xf32>
    %cst_16 = arith.constant dense<0.000000e+00> : vector<128xf32>
    %36 = vector.multi_reduction <add>, %35, %cst_16 [1] : vector<128x128xf32> to vector<128xf32>
    %37 = vector.shape_cast %36 : vector<128xf32> to vector<128x1xf32>
    %38 = arith.truncf %35 : vector<128x128xf32> to vector<128x128xbf16>
    %cst_17 = arith.constant dense<0.000000e+00> : vector<128x64xf32>
    %39 = tpu.matmul %38, %28, %cst_17 {dimension_numbers = #tpu.dot_dimension_numbers<[1], [0], [0], [1], [0, 0, 1, 1], [], []>} : vector<128x128xbf16>, vector<128x64xbf16>, vector<128x64xf32> -> vector<128x64xf32>
    %40 = tpu.reciprocal %37 {approx = true} : vector<128x1xf32> -> vector<128x1xf32>
    %41 = vector.broadcast %40 : vector<128x1xf32> to vector<128x64xf32>
    %42 = arith.mulf %39, %41 : vector<128x64xf32>
    %43 = arith.truncf %42 : vector<128x64xf32> to vector<128x64xbf16>
    %c0_18 = arith.constant 0 : index
    %c64 = arith.constant 64 : index
    %44 = vector.load %arg6[%c0_18, %c64] : memref<128x384xbf16, #tpu.memory_space<vmem>>, vector<128x64xbf16>
    tpu.vector_store %arg6[%c0_18, %c64], %43 {strides = array<i32>} : memref<128x384xbf16, #tpu.memory_space<vmem>>, vector<128x64xbf16>,
    %45 = vector.extract_strided_slice %6 {offsets = [0, 128], sizes = [128, 64], strides = [1, 1]} : vector<128x1152xbf16> to vector<128x64xbf16>
    %46 = vector.extract_strided_slice %6 {offsets = [0, 512], sizes = [128, 64], strides = [1, 1]} : vector<128x1152xbf16> to vector<128x64xbf16>
    %47 = vector.extract_strided_slice %6 {offsets = [0, 896], sizes = [128, 64], strides = [1, 1]} : vector<128x1152xbf16> to vector<128x64xbf16>
    %cst_19 = arith.constant dense<0.000000e+00> : vector<128x128xf32>
    %48 = tpu.matmul %45, %46, %cst_19 {dimension_numbers = #tpu.dot_dimension_numbers<[1], [1], [0], [0], [0, 0, 1, 0], [], []>} : vector<128x64xbf16>, vector<128x64xbf16>, vector<128x128xf32> -> vector<128x128xf32>
    %49 = arith.addf %48, %4 : vector<128x128xf32>
    %cst_20 = arith.constant dense<0xFF800000> : vector<128xf32>
    %50 = vector.multi_reduction <maximumf>, %49, %cst_20 [1] : vector<128x128xf32> to vector<128xf32>
    %51 = vector.shape_cast %50 : vector<128xf32> to vector<128x1xf32>
    %52 = vector.broadcast %51 : vector<128x1xf32> to vector<128x128xf32>
    %53 = arith.subf %49, %52 : vector<128x128xf32>
    %54 = math.exp %53 : vector<128x128xf32>
    %cst_21 = arith.constant dense<0.000000e+00> : vector<128xf32>
    %55 = vector.multi_reduction <add>, %54, %cst_21 [1] : vector<128x128xf32> to vector<128xf32>
    %56 = vector.shape_cast %55 : vector<128xf32> to vector<128x1xf32>
    %57 = arith.truncf %54 : vector<128x128xf32> to vector<128x128xbf16>
    %cst_22 = arith.constant dense<0.000000e+00> : vector<128x64xf32>
    %58 = tpu.matmul %57, %47, %cst_22 {dimension_numbers = #tpu.dot_dimension_numbers<[1], [0], [0], [1], [0, 0, 1, 1], [], []>} : vector<128x128xbf16>, vector<128x64xbf16>, vector<128x64xf32> -> vector<128x64xf32>
    %59 = tpu.reciprocal %56 {approx = true} : vector<128x1xf32> -> vector<128x1xf32>
    %60 = vector.broadcast %59 : vector<128x1xf32> to vector<128x64xf32>
    %61 = arith.mulf %58, %60 : vector<128x64xf32>
    %62 = arith.truncf %61 : vector<128x64xf32> to vector<128x64xbf16>
    %c0_23 = arith.constant 0 : index
    %c128 = arith.constant 128 : index
    %63 = vector.load %arg6[%c0_23, %c128] : memref<128x384xbf16, #tpu.memory_space<vmem>>, vector<128x64xbf16>
    tpu.vector_store %arg6[%c0_23, %c128], %62 {strides = array<i32>} : memref<128x384xbf16, #tpu.memory_space<vmem>>, vector<128x64xbf16>,
    %64 = vector.extract_strided_slice %6 {offsets = [0, 192], sizes = [128, 64], strides = [1, 1]} : vector<128x1152xbf16> to vector<128x64xbf16>
    %65 = vector.extract_strided_slice %6 {offsets = [0, 576], sizes = [128, 64], strides = [1, 1]} : vector<128x1152xbf16> to vector<128x64xbf16>
    %66 = vector.extract_strided_slice %6 {offsets = [0, 960], sizes = [128, 64], strides = [1, 1]} : vector<128x1152xbf16> to vector<128x64xbf16>
    %cst_24 = arith.constant dense<0.000000e+00> : vector<128x128xf32>
    %67 = tpu.matmul %64, %65, %cst_24 {dimension_numbers = #tpu.dot_dimension_numbers<[1], [1], [0], [0], [0, 0, 1, 0], [], []>} : vector<128x64xbf16>, vector<128x64xbf16>, vector<128x128xf32> -> vector<128x128xf32>
    %68 = arith.addf %67, %4 : vector<128x128xf32>
    %cst_25 = arith.constant dense<0xFF800000> : vector<128xf32>
    %69 = vector.multi_reduction <maximumf>, %68, %cst_25 [1] : vector<128x128xf32> to vector<128xf32>
    %70 = vector.shape_cast %69 : vector<128xf32> to vector<128x1xf32>
    %71 = vector.broadcast %70 : vector<128x1xf32> to vector<128x128xf32>
    %72 = arith.subf %68, %71 : vector<128x128xf32>
    %73 = math.exp %72 : vector<128x128xf32>
    %cst_26 = arith.constant dense<0.000000e+00> : vector<128xf32>
    %74 = vector.multi_reduction <add>, %73, %cst_26 [1] : vector<128x128xf32> to vector<128xf32>
    %75 = vector.shape_cast %74 : vector<128xf32> to vector<128x1xf32>
    %76 = arith.truncf %73 : vector<128x128xf32> to vector<128x128xbf16>
    %cst_27 = arith.constant dense<0.000000e+00> : vector<128x64xf32>
    %77 = tpu.matmul %76, %66, %cst_27 {dimension_numbers = #tpu.dot_dimension_numbers<[1], [0], [0], [1], [0, 0, 1, 1], [], []>} : vector<128x128xbf16>, vector<128x64xbf16>, vector<128x64xf32> -> vector<128x64xf32>
    %78 = tpu.reciprocal %75 {approx = true} : vector<128x1xf32> -> vector<128x1xf32>
    %79 = vector.broadcast %78 : vector<128x1xf32> to vector<128x64xf32>
    %80 = arith.mulf %77, %79 : vector<128x64xf32>
    %81 = arith.truncf %80 : vector<128x64xf32> to vector<128x64xbf16>
    %c0_28 = arith.constant 0 : index
    %c192 = arith.constant 192 : index
    %82 = vector.load %arg6[%c0_28, %c192] : memref<128x384xbf16, #tpu.memory_space<vmem>>, vector<128x64xbf16>
    tpu.vector_store %arg6[%c0_28, %c192], %81 {strides = array<i32>} : memref<128x384xbf16, #tpu.memory_space<vmem>>, vector<128x64xbf16>,
    %83 = vector.extract_strided_slice %6 {offsets = [0, 256], sizes = [128, 64], strides = [1, 1]} : vector<128x1152xbf16> to vector<128x64xbf16>
    %84 = vector.extract_strided_slice %6 {offsets = [0, 640], sizes = [128, 64], strides = [1, 1]} : vector<128x1152xbf16> to vector<128x64xbf16>
    %85 = vector.extract_strided_slice %6 {offsets = [0, 1024], sizes = [128, 64], strides = [1, 1]} : vector<128x1152xbf16> to vector<128x64xbf16>
    %cst_29 = arith.constant dense<0.000000e+00> : vector<128x128xf32>
    %86 = tpu.matmul %83, %84, %cst_29 {dimension_numbers = #tpu.dot_dimension_numbers<[1], [1], [0], [0], [0, 0, 1, 0], [], []>} : vector<128x64xbf16>, vector<128x64xbf16>, vector<128x128xf32> -> vector<128x128xf32>
    %87 = arith.addf %86, %4 : vector<128x128xf32>
    %cst_30 = arith.constant dense<0xFF800000> : vector<128xf32>
    %88 = vector.multi_reduction <maximumf>, %87, %cst_30 [1] : vector<128x128xf32> to vector<128xf32>
    %89 = vector.shape_cast %88 : vector<128xf32> to vector<128x1xf32>
    %90 = vector.broadcast %89 : vector<128x1xf32> to vector<128x128xf32>
    %91 = arith.subf %87, %90 : vector<128x128xf32>
    %92 = math.exp %91 : vector<128x128xf32>
    %cst_31 = arith.constant dense<0.000000e+00> : vector<128xf32>
    %93 = vector.multi_reduction <add>, %92, %cst_31 [1] : vector<128x128xf32> to vector<128xf32>
    %94 = vector.shape_cast %93 : vector<128xf32> to vector<128x1xf32>
    %95 = arith.truncf %92 : vector<128x128xf32> to vector<128x128xbf16>
    %cst_32 = arith.constant dense<0.000000e+00> : vector<128x64xf32>
    %96 = tpu.matmul %95, %85, %cst_32 {dimension_numbers = #tpu.dot_dimension_numbers<[1], [0], [0], [1], [0, 0, 1, 1], [], []>} : vector<128x128xbf16>, vector<128x64xbf16>, vector<128x64xf32> -> vector<128x64xf32>
    %97 = tpu.reciprocal %94 {approx = true} : vector<128x1xf32> -> vector<128x1xf32>
    %98 = vector.broadcast %97 : vector<128x1xf32> to vector<128x64xf32>
    %99 = arith.mulf %96, %98 : vector<128x64xf32>
    %100 = arith.truncf %99 : vector<128x64xf32> to vector<128x64xbf16>
    %c0_33 = arith.constant 0 : index
    %c256 = arith.constant 256 : index
    %101 = vector.load %arg6[%c0_33, %c256] : memref<128x384xbf16, #tpu.memory_space<vmem>>, vector<128x64xbf16>
    tpu.vector_store %arg6[%c0_33, %c256], %100 {strides = array<i32>} : memref<128x384xbf16, #tpu.memory_space<vmem>>, vector<128x64xbf16>,
    %102 = vector.extract_strided_slice %6 {offsets = [0, 320], sizes = [128, 64], strides = [1, 1]} : vector<128x1152xbf16> to vector<128x64xbf16>
    %103 = vector.extract_strided_slice %6 {offsets = [0, 704], sizes = [128, 64], strides = [1, 1]} : vector<128x1152xbf16> to vector<128x64xbf16>
    %104 = vector.extract_strided_slice %6 {offsets = [0, 1088], sizes = [128, 64], strides = [1, 1]} : vector<128x1152xbf16> to vector<128x64xbf16>
    %cst_34 = arith.constant dense<0.000000e+00> : vector<128x128xf32>
    %105 = tpu.matmul %102, %103, %cst_34 {dimension_numbers = #tpu.dot_dimension_numbers<[1], [1], [0], [0], [0, 0, 1, 0], [], []>} : vector<128x64xbf16>, vector<128x64xbf16>, vector<128x128xf32> -> vector<128x128xf32>
    %106 = arith.addf %105, %4 : vector<128x128xf32>
    %cst_35 = arith.constant dense<0xFF800000> : vector<128xf32>
    %107 = vector.multi_reduction <maximumf>, %106, %cst_35 [1] : vector<128x128xf32> to vector<128xf32>
    %108 = vector.shape_cast %107 : vector<128xf32> to vector<128x1xf32>
    %109 = vector.broadcast %108 : vector<128x1xf32> to vector<128x128xf32>
    %110 = arith.subf %106, %109 : vector<128x128xf32>
    %111 = math.exp %110 : vector<128x128xf32>
    %cst_36 = arith.constant dense<0.000000e+00> : vector<128xf32>
    %112 = vector.multi_reduction <add>, %111, %cst_36 [1] : vector<128x128xf32> to vector<128xf32>
    %113 = vector.shape_cast %112 : vector<128xf32> to vector<128x1xf32>
    %114 = arith.truncf %111 : vector<128x128xf32> to vector<128x128xbf16>
    %cst_37 = arith.constant dense<0.000000e+00> : vector<128x64xf32>
    %115 = tpu.matmul %114, %104, %cst_37 {dimension_numbers = #tpu.dot_dimension_numbers<[1], [0], [0], [1], [0, 0, 1, 1], [], []>} : vector<128x128xbf16>, vector<128x64xbf16>, vector<128x64xf32> -> vector<128x64xf32>
    %116 = tpu.reciprocal %113 {approx = true} : vector<128x1xf32> -> vector<128x1xf32>
    %117 = vector.broadcast %116 : vector<128x1xf32> to vector<128x64xf32>
    %118 = arith.mulf %115, %117 : vector<128x64xf32>
    %119 = arith.truncf %118 : vector<128x64xf32> to vector<128x64xbf16>
    %c0_38 = arith.constant 0 : index
    %c320 = arith.constant 320 : index
    %120 = vector.load %arg6[%c0_38, %c320] : memref<128x384xbf16, #tpu.memory_space<vmem>>, vector<128x64xbf16>
    tpu.vector_store %arg6[%c0_38, %c320], %119 {strides = array<i32>} : memref<128x384xbf16, #tpu.memory_space<vmem>>, vector<128x64xbf16>,
    %c0_39 = arith.constant 0 : index
    %c0_40 = arith.constant 0 : index
    %121 = vector.load %arg6[%c0_39, %c0_40] : memref<128x384xbf16, #tpu.memory_space<vmem>>, vector<128x384xbf16>
    %cst_41 = arith.constant dense<0.000000e+00> : vector<128x384xf32>
    %122 = tpu.matmul %121, %3, %cst_41 {dimension_numbers = #tpu.dot_dimension_numbers<[1], [1], [0], [0], [0, 0, 1, 0], [], []>} : vector<128x384xbf16>, vector<384x384xbf16>, vector<128x384xf32> -> vector<128x384xf32>
    %123 = vector.shape_cast %122 : vector<128x384xf32> to vector<1x128x384xf32>
    %c0_42 = arith.constant 0 : index
    %c0_43 = arith.constant 0 : index
    %c0_44 = arith.constant 0 : index
    %124 = vector.load %arg5[%c0_42, %c0_43, %c0_44] : memref<1x128x384xf32, #tpu.memory_space<vmem>>, vector<1x128x384xf32>
    tpu.vector_store %arg5[%c0_42, %c0_43, %c0_44], %123 {strides = array<i32>} : memref<1x128x384xf32, #tpu.memory_space<vmem>>, vector<1x128x384xf32>,
    return
  }
  func.func @transform_0(%arg0: i32) -> (i32, i32, i32) {
    %c0_i32 = arith.constant 0 : i32
    %c0_i32_0 = arith.constant 0 : i32
    %c0_i32_1 = arith.constant 0 : i32
    return %arg0, %c0_i32, %c0_i32_0 : i32, i32, i32
  }
  func.func @transform_1(%arg0: i32) -> (i32, i32) {
    %c0_i32 = arith.constant 0 : i32
    %c0_i32_0 = arith.constant 0 : i32
    %c0_i32_1 = arith.constant 0 : i32
    return %c0_i32, %c0_i32_0 : i32, i32
  }
  func.func @transform_2(%arg0: i32) -> (i32, i32) {
    %c0_i32 = arith.constant 0 : i32
    %c0_i32_0 = arith.constant 0 : i32
    %c0_i32_1 = arith.constant 0 : i32
    return %c0_i32, %c0_i32_0 : i32, i32
  }
  func.func @transform_3(%arg0: i32) -> (i32, i32) {
    %c0_i32 = arith.constant 0 : i32
    %c0_i32_0 = arith.constant 0 : i32
    %c0_i32_1 = arith.constant 0 : i32
    return %c0_i32, %c0_i32_0 : i32, i32
  }
  func.func @transform_4(%arg0: i32) -> (i32, i32, i32) {
    %c0_i32 = arith.constant 0 : i32
    %c0_i32_0 = arith.constant 0 : i32
    %c0_i32_1 = arith.constant 0 : i32
    return %arg0, %c0_i32, %c0_i32_0 : i32, i32, i32
  }
}

</mosaic_0001>

<llo_original>
// kernel: tpu_custom_call.1
$region0: #{tpu_custom_call.1}
  #allocation0 [shape = 'u32[]', space=smem, size = 0x4, offset = 0x4, fixed_abs, tag = 'smem constant byte address 0x4 - core index']
  #allocation1 [shape = 'u32[72,128]{1,0:T(1,128)}', space=vmem, size = 0x9000, scoped, tag = 'internal scratch']
  #allocation2 [shape = 'bf16[128,384]{1,0:T(8,128)(2,1)}', space=vmem, size = 0x18000, scoped, tag = 'scratch operand']
  %s0 = inlined_call_operand.hbm [shape: bf16[2,128,384], index: 0, kind: input, shape index: {}]
  %s1 = inlined_call_operand.hbm [shape: f32[128,128], index: 1, kind: input, shape index: {}]
  %s2 = inlined_call_operand.hbm [shape: bf16[1152,384], index: 2, kind: input, shape index: {}]
  %s3 = inlined_call_operand.hbm [shape: bf16[384,384], index: 3, kind: input, shape index: {}]
  %s4 = inlined_call_operand.hbm [shape: f32[2,128,384], index: 4, kind: output, shape index: {}]
  %s5 = sld [smem:[#allocation0]]
  $region65: #{tpu_custom_call.1} parent=0
    _
  %s7 = ssub.s32 1, %s5
  %s8 = scalar_select 0, %s7, %s5
  $region1: #{tpu_custom_call.1} parent=0
    #allocation3 [shape = 'u8[196608]{0}', space=vmem, size = 0x30000, scoped, tag = 'input window, operand 0']
    #allocation4 [shape = 's32[2]{0}', space=sflag, size = 0x8, scoped, tag = 'scoped memory for tpu_custom_call.1']
    #allocation5 [shape = 's32[2]{0}', space=sflag, size = 0x8, scoped, tag = 'scoped memory for tpu_custom_call.1']
    #allocation6 [shape = 'u8[65536]{0}', space=vmem, size = 0x10000, scoped, tag = 'input window, operand 1, single buffered']
    #allocation7 [shape = 's32[1]{0}', space=sflag, size = 0x4, scoped, tag = 'scoped memory for tpu_custom_call.1']
    #allocation8 [shape = 'u8[884736]{0}', space=vmem, size = 0xd8000, scoped, tag = 'input window, operand 2, single buffered']
    #allocation9 [shape = 'u8[294912]{0}', space=vmem, size = 0x48000, scoped, tag = 'input window, operand 3, single buffered']
    #allocation10 [shape = 's32[1]{0}', space=sflag, size = 0x4, scoped, tag = 'scoped memory for tpu_custom_call.1']
    #allocation11 [shape = 'u8[393216]{0}', space=vmem, size = 0x60000, scoped, tag = 'output window, operand 0']
    %9 = vsyncpa [#allocation4], 0
    %s10 = scalar_lea.sflag [#allocation4], 1
    %11 = vsyncpa %s10, 0
    %12 = vsyncpa [#allocation7], 0
    %13 = vsyncpa [#allocation10], 0
    %14 = vsyncpa [#allocation5], 0
    %s15 = scalar_lea.sflag [#allocation5], 1
    %16 = vsyncpa %s15, 0
    loop: start=0, step=1, limit=4
    $region2: #{tpu_custom_call.1} parent=1 // loop_pre_header
      _
    $region3: #{tpu_custom_call.1} parent=1 // loop_header
      %s18 = sphi 0, %s22
      %p19 = scmp.ge.s32.totalorder %s18, 4
      %s28 = sphi 0, %s30
      %s31 = sphi 0, %s28
      %s32 = sphi 0, %s31
      %s48 = sphi 0, %s32
      %s52 = sphi 0, %s52
      %s54 = sphi 0, %s52
      %s55 = sphi 0, %s54
      %s69 = sphi 0, %s55
      %s73 = sphi 0, %s73
      %s75 = sphi 0, %s73
      %s76 = sphi 0, %s75
      %s90 = sphi 0, %s76
      %s94 = sphi 0, %s94
      %s96 = sphi 0, %s94
      %s97 = sphi 0, %s96
      %s111 = sphi 0, %s97
      %s117 = sphi 0, %s119
      %s120 = sphi 0, %s117
      %s121 = sphi 0, %s120
      %s137 = sphi 0, %s121
    $region4: #{tpu_custom_call.1} parent=1 // loop_header_branch
      %21 = sbr.rel (%p19) target = $region8
    $region5: #{tpu_custom_call.1} parent=1 // loop_body
      %s23 = ssub.s32 %s18, 1
      %s24 = ssub.s32 %s18, 2
      %s25 = sadd.s32 %s18, 1
      %s26 = ssub.s32 %s18, %s25
      %p27 = scmp.eq.s32.totalorder %s26, 0
      %s29 = sadd.s32 %s28, 1
      %s30 = scalar_select %p27, %s28, %s29
      %p33 = pneg %p27
      %p34 = scmp.eq.s32.totalorder %s18, 1
      %p35 = por %p33, %p34
      %p36 = scmp.ne.s32.totalorder %s28, %s31
      %p37 = scmp.eq.s32.totalorder %s18, 0
      %p38 = por %p36, %p37
      %p39 = scmp.ne.s32.totalorder %s28, %s31
      %p40 = scmp.eq.s32.totalorder %s23, 1
      %p41 = por %p39, %p40
      %p42 = scmp.ne.s32.totalorder %s31, %s32
      %p43 = scmp.eq.s32.totalorder %s23, 0
      %p44 = por %p42, %p43
      %p45 = scmp.ne.s32.totalorder %s31, %s32
      %p46 = scmp.eq.s32.totalorder %s24, 1
      %p47 = por %p45, %p46
      %p49 = scmp.ne.s32.totalorder %s32, %s48
      %p50 = scmp.eq.s32.totalorder %s24, 0
      %p51 = por %p49, %p50
      %s53 = sadd.s32 %s52, 1
      %p56 = scmp.eq.s32.totalorder %s18, 1
      %p57 = scmp.ne.s32.totalorder %s52, %s54
      %p58 = scmp.eq.s32.totalorder %s18, 0
      %p59 = por %p57, %p58
      %p60 = scmp.ne.s32.totalorder %s52, %s54
      %p61 = scmp.eq.s32.totalorder %s23, 1
      %p62 = por %p60, %p61
      %p63 = scmp.ne.s32.totalorder %s54, %s55
      %p64 = scmp.eq.s32.totalorder %s23, 0
      %p65 = por %p63, %p64
      %p66 = scmp.ne.s32.totalorder %s54, %s55
      %p67 = scmp.eq.s32.totalorder %s24, 1
      %p68 = por %p66, %p67
      %p70 = scmp.ne.s32.totalorder %s55, %s69
      %p71 = scmp.eq.s32.totalorder %s24, 0
      %p72 = por %p70, %p71
      %s74 = sadd.s32 %s73, 1
      %p77 = scmp.eq.s32.totalorder %s18, 1
      %p78 = scmp.ne.s32.totalorder %s73, %s75
      %p79 = scmp.eq.s32.totalorder %s18, 0
      %p80 = por %p78, %p79
      %p81 = scmp.ne.s32.totalorder %s73, %s75
      %p82 = scmp.eq.s32.totalorder %s23, 1
      %p83 = por %p81, %p82
      %p84 = scmp.ne.s32.totalorder %s75, %s76
      %p85 = scmp.eq.s32.totalorder %s23, 0
      %p86 = por %p84, %p85
      %p87 = scmp.ne.s32.totalorder %s75, %s76
      %p88 = scmp.eq.s32.totalorder %s24, 1
      %p89 = por %p87, %p88
      %p91 = scmp.ne.s32.totalorder %s76, %s90
      %p92 = scmp.eq.s32.totalorder %s24, 0
      %p93 = por %p91, %p92
      %s95 = sadd.s32 %s94, 1
      %p98 = scmp.eq.s32.totalorder %s18, 1
      %p99 = scmp.ne.s32.totalorder %s94, %s96
      %p100 = scmp.eq.s32.totalorder %s18, 0
      %p101 = por %p99, %p100
      %p102 = scmp.ne.s32.totalorder %s94, %s96
      %p103 = scmp.eq.s32.totalorder %s23, 1
      %p104 = por %p102, %p103
      %p105 = scmp.ne.s32.totalorder %s96, %s97
      %p106 = scmp.eq.s32.totalorder %s23, 0
      %p107 = por %p105, %p106
      %p108 = scmp.ne.s32.totalorder %s96, %s97
      %p109 = scmp.eq.s32.totalorder %s24, 1
      %p110 = por %p108, %p109
      %p112 = scmp.ne.s32.totalorder %s97, %s111
      %p113 = scmp.eq.s32.totalorder %s24, 0
      %p114 = por %p112, %p113
      %s115 = ssub.s32 %s18, %s25
      %p116 = scmp.eq.s32.totalorder %s115, 0
      %s118 = sadd.s32 %s117, 1
      %s119 = scalar_select %p116, %s117, %s118
      %p122 = pneg %p116
      %p123 = scmp.eq.s32.totalorder %s18, 1
      %p124 = por %p122, %p123
      %p125 = scmp.ne.s32.totalorder %s117, %s120
      %p126 = scmp.eq.s32.totalorder %s18, 0
      %p127 = por %p125, %p126
      %p128 = scmp.ne.s32.totalorder %s117, %s120
      %p129 = scmp.eq.s32.totalorder %s23, 1
      %p130 = por %p128, %p129
      %p131 = scmp.ne.s32.totalorder %s120, %s121
      %p132 = scmp.eq.s32.totalorder %s23, 0
      %p133 = por %p131, %p132
      %p134 = scmp.ne.s32.totalorder %s120, %s121
      %p135 = scmp.eq.s32.totalorder %s24, 1
      %p136 = por %p134, %p135
      %p138 = scmp.ne.s32.totalorder %s121, %s137
      %p139 = scmp.eq.s32.totalorder %s24, 0
      %p140 = por %p138, %p139
      %p141 = scmp.le.s32.totalorder 1, %s18
      %p142 = scmp.lt.s32.totalorder %s18, 3
      %p143 = pnand %p141, %p142
      %p144 = pneg %p143
      // Predicated region
      $region9: #{tpu_custom_call.1} parent=5 // pred_check
        _
      $region10: #{tpu_custom_call.1} parent=5 // pred_check_branch
        %146 = sbr.rel (%p143) target = $region12
      $region11: #{tpu_custom_call.1} parent=5 // pred_region
        %s147 = ssub.s32 %s18, 1
        // Predicated region
        $region13: #{tpu_custom_call.1} parent=11 // pred_check
          %p148 = pneg %p65
        $region14: #{tpu_custom_call.1} parent=11 // pred_check_branch
          %150 = sbr.rel (%p148) target = $region16
        $region15: #{tpu_custom_call.1} parent=11 // pred_region
          %152 = vsyncadd [#allocation7], 0
          %s153 = sshll.u32 %s1, 4
          %s154 = int_to_ptr.hbm [resolvable:$true] %s153
          %s155 = sshll.u32 [#allocation6], 4
          %s156 = int_to_ptr.vmem [resolvable:$true] %s155
          %161 = dma.hbm_to_vmem [thread:$0]  %s154, 2048, %s156, [#allocation7], 128, 128, 8
        $region16: #{tpu_custom_call.1} parent=11 // pred_fallthru
          _
        // Predicated region
        $region17: #{tpu_custom_call.1} parent=11 // pred_check
          %p162 = pneg %p86
        $region18: #{tpu_custom_call.1} parent=11 // pred_check_branch
          %164 = sbr.rel (%p162) target = $region20
        $region19: #{tpu_custom_call.1} parent=11 // pred_region
          %166 = vsyncadd [#allocation7], 0
          %s167 = sshll.u32 %s2, 4
          %s168 = int_to_ptr.hbm [resolvable:$true] %s167
          %s169 = sshll.u32 [#allocation8], 4
          %s170 = int_to_ptr.vmem [resolvable:$true] %s169
          %175 = dma.hbm_to_vmem [thread:$0]  %s168, 27648, %s170, [#allocation7], 192, 192, 12
        $region20: #{tpu_custom_call.1} parent=11 // pred_fallthru
          _
        // Predicated region
        $region21: #{tpu_custom_call.1} parent=11 // pred_check
          %p176 = pneg %p107
        $region22: #{tpu_custom_call.1} parent=11 // pred_check_branch
          %178 = sbr.rel (%p176) target = $region24
        $region23: #{tpu_custom_call.1} parent=11 // pred_region
          %180 = vsyncadd [#allocation10], 0
          %s181 = sshll.u32 %s3, 4
          %s182 = int_to_ptr.hbm [resolvable:$true] %s181
          %s183 = sshll.u32 [#allocation9], 4
          %s184 = int_to_ptr.vmem [resolvable:$true] %s183
          %189 = dma.hbm_to_vmem [thread:$0]  %s182, 9216, %s184, [#allocation10], 192, 192, 12
        $region24: #{tpu_custom_call.1} parent=11 // pred_fallthru
          _
      $region12: #{tpu_custom_call.1} parent=5 // pred_fallthru
        _
      %p190 = scmp.lt.s32.totalorder %s18, 2
      // Predicated region
      $region25: #{tpu_custom_call.1} parent=5 // pred_check
        %p191 = pneg %p190
      $region26: #{tpu_custom_call.1} parent=5 // pred_check_branch
        %193 = sbr.rel (%p191) target = $region28
      $region27: #{tpu_custom_call.1} parent=5 // pred_region
        // Predicated region
        $region29: #{tpu_custom_call.1} parent=27 // pred_check
          %p194 = pneg %p38
        $region30: #{tpu_custom_call.1} parent=27 // pred_check_branch
          %196 = sbr.rel (%p194) target = $region32
        $region31: #{tpu_custom_call.1} parent=27 // pred_region
          %s197 = sand.u32 %s28, 1
          %s198 = scalar_lea.sflag [#allocation4], %s197
          %s199 = sand.u32 %s28, 1
          %s200 = smul.addr %s199, 192
          %s201 = scalar_lea.vmem [#allocation3], %s200
          %203 = vsyncadd %s198, 0
          %s204 = smul.addr %s18, 48
          %s205 = smul.addr %s204, 4
          %s206 = scalar_lea.hbm %s0, %s205
          %s207 = sshll.u32 %s206, 4
          %s208 = int_to_ptr.hbm [resolvable:$true] %s207
          %s209 = sshll.u32 %s201, 4
          %s210 = int_to_ptr.vmem [resolvable:$true] %s209
          %215 = dma.hbm_to_vmem [thread:$0]  %s208, 3072, %s210, %s198, 192, 192, 12
        $region32: #{tpu_custom_call.1} parent=27 // pred_fallthru
          _
      $region28: #{tpu_custom_call.1} parent=5 // pred_fallthru
        _
      %p216 = scmp.le.s32.totalorder 1, %s18
      %p217 = scmp.lt.s32.totalorder %s18, 3
      %p218 = pnand %p216, %p217
      %p219 = pneg %p218
      // Predicated region
      $region33: #{tpu_custom_call.1} parent=5 // pred_check
        _
      $region34: #{tpu_custom_call.1} parent=5 // pred_check_branch
        %221 = sbr.rel (%p218) target = $region36
      $region35: #{tpu_custom_call.1} parent=5 // pred_region
        %s222 = ssub.s32 %s18, 1
        %s223 = sand.u32 %s31, 1
        %s224 = scalar_lea.sflag [#allocation4], %s223
        %s225 = sand.u32 %s31, 1
        %s226 = smul.addr %s225, 192
        %s227 = scalar_lea.vmem [#allocation3], %s226
        // Predicated region
        $region37: #{tpu_custom_call.1} parent=35 // pred_check
          %p228 = pneg %p44
        $region38: #{tpu_custom_call.1} parent=35 // pred_check_branch
          %230 = sbr.rel (%p228) target = $region40
        $region39: #{tpu_custom_call.1} parent=35 // pred_region
          %232 = dma.done %s224, 3072
        $region40: #{tpu_custom_call.1} parent=35 // pred_fallthru
          _
        // Predicated region
        $region41: #{tpu_custom_call.1} parent=35 // pred_check
          %p233 = pneg %p65
        $region42: #{tpu_custom_call.1} parent=35 // pred_check_branch
          %235 = sbr.rel (%p233) target = $region44
        $region43: #{tpu_custom_call.1} parent=35 // pred_region
          %237 = dma.done [#allocation7], 2048
        $region44: #{tpu_custom_call.1} parent=35 // pred_fallthru
          _
        // Predicated region
        $region45: #{tpu_custom_call.1} parent=35 // pred_check
          %p238 = pneg %p86
        $region46: #{tpu_custom_call.1} parent=35 // pred_check_branch
          %240 = sbr.rel (%p238) target = $region48
        $region47: #{tpu_custom_call.1} parent=35 // pred_region
          %242 = dma.done [#allocation7], 27648
        $region48: #{tpu_custom_call.1} parent=35 // pred_fallthru
          _
        // Predicated region
        $region49: #{tpu_custom_call.1} parent=35 // pred_check
          %p243 = pneg %p107
        $region50: #{tpu_custom_call.1} parent=35 // pred_check_branch
          %245 = sbr.rel (%p243) target = $region52
        $region51: #{tpu_custom_call.1} parent=35 // pred_region
          %247 = dma.done [#allocation10], 9216
        $region52: #{tpu_custom_call.1} parent=35 // pred_fallthru
          _
        %s248 = sand.u32 %s31, 1
        %s249 = scalar_lea.sflag [#allocation4], %s248
        %s250 = sand.u32 %s31, 1
        %s251 = smul.addr %s250, 192
        %s252 = scalar_lea.vmem [#allocation3], %s251
        %p253 = pneg %p44
        %p254 = pneg %p41
        %p255 = pneg %p65
        %p256 = pneg %p62
        %p257 = pneg %p86
        %p258 = pneg %p83
        %p259 = pneg %p107
        %p260 = pneg %p104
        %p261 = pneg %p133
        %p262 = pneg %p130
        %s263 = sand.u32 %s120, 1
        %s264 = scalar_lea.sflag [#allocation5], %s263
        %s265 = sand.u32 %s120, 1
        %s266 = smul.addr %s265, 384
        %s267 = scalar_lea.vmem [#allocation11], %s266
        %v268 = vld [vmem:[%s227] sm:$0xff]
        %v269 = vld [vmem:[%s227 + $0x8] sm:$0xf]
        %v270 = vld [vmem:[%s227 + $0xc] sm:$0xff]
        %v271 = vld [vmem:[%s227 + $0x14] sm:$0xf]
        %v272 = vld [vmem:[%s227 + $0x18] sm:$0xff]
        %v273 = vld [vmem:[%s227 + $0x20] sm:$0xf]
        %v274 = vld [vmem:[%s227 + $0x24] sm:$0xff]
        %v275 = vld [vmem:[%s227 + $0x2c] sm:$0xf]
        %v276 = vld [vmem:[%s227 + $0x30] sm:$0xff]
        %v277 = vld [vmem:[%s227 + $0x38] sm:$0xf]
        %v278 = vld [vmem:[%s227 + $0x3c] sm:$0xff]
        %v279 = vld [vmem:[%s227 + $0x44] sm:$0xf]
        %v280 = vld [vmem:[%s227 + $0x48] sm:$0xff]
        %v281 = vld [vmem:[%s227 + $0x50] sm:$0xf]
        %v282 = vld [vmem:[%s227 + $0x54] sm:$0xff]
        %v283 = vld [vmem:[%s227 + $0x5c] sm:$0xf]
        %v284 = vld [vmem:[%s227 + $0x60] sm:$0xff]
        %v285 = vld [vmem:[%s227 + $0x68] sm:$0xf]
        %v286 = vld [vmem:[%s227 + $0x6c] sm:$0xff]
        %v287 = vld [vmem:[%s227 + $0x74] sm:$0xf]
        %v288 = vld [vmem:[%s227 + $0x78] sm:$0xff]
        %v289 = vld [vmem:[%s227 + $0x80] sm:$0xf]
        %v290 = vld [vmem:[%s227 + $0x84] sm:$0xff]
        %v291 = vld [vmem:[%s227 + $0x8c] sm:$0xf]
        %v292 = vld [vmem:[%s227 + $0x90] sm:$0xff]
        %v293 = vld [vmem:[%s227 + $0x98] sm:$0xf]
        %v294 = vld [vmem:[%s227 + $0x9c] sm:$0xff]
        %v295 = vld [vmem:[%s227 + $0xa4] sm:$0xf]
        %v296 = vld [vmem:[%s227 + $0xa8] sm:$0xff]
        %v297 = vld [vmem:[%s227 + $0xb0] sm:$0xf]
        %v298 = vld [vmem:[%s227 + $0xb4] sm:$0xff]
        %v299 = vld [vmem:[%s227 + $0xbc] sm:$0xf]
        %v300 = vld [vmem:[#allocation8] sm:$0xff]
        %v301 = vld [vmem:[#allocation8 + $0x8] sm:$0xf]
        %v302 = vld [vmem:[#allocation8 + $0xc] sm:$0xff]
        %v303 = vld [vmem:[#allocation8 + $0x14] sm:$0xf]
        %v304 = vld [vmem:[#allocation8 + $0x18] sm:$0xff]
        %v305 = vld [vmem:[#allocation8 + $0x20] sm:$0xf]
        %v306 = vld [vmem:[#allocation8 + $0x24] sm:$0xff]
        %v307 = vld [vmem:[#allocation8 + $0x2c] sm:$0xf]
        %v308 = vld [vmem:[#allocation8 + $0x30] sm:$0xff]
        %v309 = vld [vmem:[#allocation8 + $0x38] sm:$0xf]
        %v310 = vld [vmem:[#allocation8 + $0x3c] sm:$0xff]
        %v311 = vld [vmem:[#allocation8 + $0x44] sm:$0xf]
        %v312 = vld [vmem:[#allocation8 + $0x48] sm:$0xff]
        %v313 = vld [vmem:[#allocation8 + $0x50] sm:$0xf]
        %v314 = vld [vmem:[#allocation8 + $0x54] sm:$0xff]
        %v315 = vld [vmem:[#allocation8 + $0x5c] sm:$0xf]
        %v316 = vld [vmem:[#allocation8 + $0x60] sm:$0xff]
        %v317 = vld [vmem:[#allocation8 + $0x68] sm:$0xf]
        %v318 = vld [vmem:[#allocation8 + $0x6c] sm:$0xff]
        %v319 = vld [vmem:[#allocation8 + $0x74] sm:$0xf]
        %v320 = vld [vmem:[#allocation8 + $0x78] sm:$0xff]
        %v321 = vld [vmem:[#allocation8 + $0x80] sm:$0xf]
        %v322 = vld [vmem:[#allocation8 + $0x84] sm:$0xff]
        %v323 = vld [vmem:[#allocation8 + $0x8c] sm:$0xf]
        %v324 = vld [vmem:[#allocation8 + $0x90] sm:$0xff]
        %v325 = vld [vmem:[#allocation8 + $0x98] sm:$0xf]
        %v326 = vld [vmem:[#allocation8 + $0x9c] sm:$0xff]
        %v327 = vld [vmem:[#allocation8 + $0xa4] sm:$0xf]
        %v328 = vld [vmem:[#allocation8 + $0xa8] sm:$0xff]
        %v329 = vld [vmem:[#allocation8 + $0xb0] sm:$0xf]
        %v330 = vld [vmem:[#allocation8 + $0xb4] sm:$0xff]
        %v331 = vld [vmem:[#allocation8 + $0xbc] sm:$0xf]
        %v332 = vld [vmem:[#allocation8 + $0xc0] sm:$0xff]
        %v333 = vld [vmem:[#allocation8 + $0xc8] sm:$0xf]
        %v334 = vld [vmem:[#allocation8 + $0xcc] sm:$0xff]
        %v335 = vld [vmem:[#allocation8 + $0xd4] sm:$0xf]
        %v336 = vld [vmem:[#allocation8 + $0xd8] sm:$0xff]
        %v337 = vld [vmem:[#allocation8 + $0xe0] sm:$0xf]
        %v338 = vld [vmem:[#allocation8 + $0xe4] sm:$0xff]
        %v339 = vld [vmem:[#allocation8 + $0xec] sm:$0xf]
        %v340 = vld [vmem:[#allocation8 + $0xf0] sm:$0xff]
        %v341 = vld [vmem:[#allocation8 + $0xf8] sm:$0xf]
        %v342 = vld [vmem:[#allocation8 + $0xfc] sm:$0xff]
        %v343 = vld [vmem:[#allocation8 + $0x104] sm:$0xf]
        %v344 = vld [vmem:[#allocation8 + $0x108] sm:$0xff]
        %v345 = vld [vmem:[#allocation8 + $0x110] sm:$0xf]
        %v346 = vld [vmem:[#allocation8 + $0x114] sm:$0xff]
        %v347 = vld [vmem:[#allocation8 + $0x11c] sm:$0xf]
        %v348 = vld [vmem:[#allocation8 + $0x120] sm:$0xff]
        %v349 = vld [vmem:[#allocation8 + $0x128] sm:$0xf]
        %v350 = vld [vmem:[#allocation8 + $0x12c] sm:$0xff]
        %v351 = vld [vmem:[#allocation8 + $0x134] sm:$0xf]
        %v352 = vld [vmem:[#allocation8 + $0x138] sm:$0xff]
        %v353 = vld [vmem:[#allocation8 + $0x140] sm:$0xf]
        %v354 = vld [vmem:[#allocation8 + $0x144] sm:$0xff]
        %v355 = vld [vmem:[#allocation8 + $0x14c] sm:$0xf]
        %v356 = vld [vmem:[#allocation8 + $0x150] sm:$0xff]
        %v357 = vld [vmem:[#allocation8 + $0x158] sm:$0xf]
        %v358 = vld [vmem:[#allocation8 + $0x15c] sm:$0xff]
        %v359 = vld [vmem:[#allocation8 + $0x164] sm:$0xf]
        %v360 = vld [vmem:[#allocation8 + $0x168] sm:$0xff]
        %v361 = vld [vmem:[#allocation8 + $0x170] sm:$0xf]
        %v362 = vld [vmem:[#allocation8 + $0x174] sm:$0xff]
        %v363 = vld [vmem:[#allocation8 + $0x17c] sm:$0xf]
        %v364 = vld [vmem:[#allocation8 + $0x180] sm:$0xff]
        %v365 = vld [vmem:[#allocation8 + $0x188] sm:$0xf]
        %v366 = vld [vmem:[#allocation8 + $0x18c] sm:$0xff]
        %v367 = vld [vmem:[#allocation8 + $0x194] sm:$0xf]
        %v368 = vld [vmem:[#allocation8 + $0x198] sm:$0xff]
        %v369 = vld [vmem:[#allocation8 + $0x1a0] sm:$0xf]
        %v370 = vld [vmem:[#allocation8 + $0x1a4] sm:$0xff]
        %v371 = vld [vmem:[#allocation8 + $0x1ac] sm:$0xf]
        %v372 = vld [vmem:[#allocation8 + $0x1b0] sm:$0xff]
        %v373 = vld [vmem:[#allocation8 + $0x1b8] sm:$0xf]
        %v374 = vld [vmem:[#allocation8 + $0x1bc] sm:$0xff]
        %v375 = vld [vmem:[#allocation8 + $0x1c4] sm:$0xf]
        %v376 = vld [vmem:[#allocation8 + $0x1c8] sm:$0xff]
        %v377 = vld [vmem:[#allocation8 + $0x1d0] sm:$0xf]
        %v378 = vld [vmem:[#allocation8 + $0x1d4] sm:$0xff]
        %v379 = vld [vmem:[#allocation8 + $0x1dc] sm:$0xf]
        %v380 = vld [vmem:[#allocation8 + $0x1e0] sm:$0xff]
        %v381 = vld [vmem:[#allocation8 + $0x1e8] sm:$0xf]
        %v382 = vld [vmem:[#allocation8 + $0x1ec] sm:$0xff]
        %v383 = vld [vmem:[#allocation8 + $0x1f4] sm:$0xf]
        %v384 = vld [vmem:[#allocation8 + $0x1f8] sm:$0xff]
        %v385 = vld [vmem:[#allocation8 + $0x200] sm:$0xf]
        %v386 = vld [vmem:[#allocation8 + $0x204] sm:$0xff]
        %v387 = vld [vmem:[#allocation8 + $0x20c] sm:$0xf]
        %v388 = vld [vmem:[#allocation8 + $0x210] sm:$0xff]
        %v389 = vld [vmem:[#allocation8 + $0x218] sm:$0xf]
        %v390 = vld [vmem:[#allocation8 + $0x21c] sm:$0xff]
        %v391 = vld [vmem:[#allocation8 + $0x224] sm:$0xf]
        %v392 = vld [vmem:[#allocation8 + $0x228] sm:$0xff]
        %v393 = vld [vmem:[#allocation8 + $0x230] sm:$0xf]
        %v394 = vld [vmem:[#allocation8 + $0x234] sm:$0xff]
        %v395 = vld [vmem:[#allocation8 + $0x23c] sm:$0xf]
        %v396 = vld [vmem:[#allocation8 + $0x240] sm:$0xff]
        %v397 = vld [vmem:[#allocation8 + $0x248] sm:$0xf]
        %v398 = vld [vmem:[#allocation8 + $0x24c] sm:$0xff]
        %v399 = vld [vmem:[#allocation8 + $0x254] sm:$0xf]
        %v400 = vld [vmem:[#allocation8 + $0x258] sm:$0xff]
        %v401 = vld [vmem:[#allocation8 + $0x260] sm:$0xf]
        %v402 = vld [vmem:[#allocation8 + $0x264] sm:$0xff]
        %v403 = vld [vmem:[#allocation8 + $0x26c] sm:$0xf]
        %v404 = vld [vmem:[#allocation8 + $0x270] sm:$0xff]
        %v405 = vld [vmem:[#allocation8 + $0x278] sm:$0xf]
        %v406 = vld [vmem:[#allocation8 + $0x27c] sm:$0xff]
        %v407 = vld [vmem:[#allocation8 + $0x284] sm:$0xf]
        %v408 = vld [vmem:[#allocation8 + $0x288] sm:$0xff]
        %v409 = vld [vmem:[#allocation8 + $0x290] sm:$0xf]
        %v410 = vld [vmem:[#allocation8 + $0x294] sm:$0xff]
        %v411 = vld [vmem:[#allocation8 + $0x29c] sm:$0xf]
        %v412 = vld [vmem:[#allocation8 + $0x2a0] sm:$0xff]
        %v413 = vld [vmem:[#allocation8 + $0x2a8] sm:$0xf]
        %v414 = vld [vmem:[#allocation8 + $0x2ac] sm:$0xff]
        %v415 = vld [vmem:[#allocation8 + $0x2b4] sm:$0xf]
        %v416 = vld [vmem:[#allocation8 + $0x2b8] sm:$0xff]
        %v417 = vld [vmem:[#allocation8 + $0x2c0] sm:$0xf]
        %v418 = vld [vmem:[#allocation8 + $0x2c4] sm:$0xff]
        %v419 = vld [vmem:[#allocation8 + $0x2cc] sm:$0xf]
        %v420 = vld [vmem:[#allocation8 + $0x2d0] sm:$0xff]
        %v421 = vld [vmem:[#allocation8 + $0x2d8] sm:$0xf]
        %v422 = vld [vmem:[#allocation8 + $0x2dc] sm:$0xff]
        %v423 = vld [vmem:[#allocation8 + $0x2e4] sm:$0xf]
        %v424 = vld [vmem:[#allocation8 + $0x2e8] sm:$0xff]
        %v425 = vld [vmem:[#allocation8 + $0x2f0] sm:$0xf]
        %v426 = vld [vmem:[#allocation8 + $0x2f4] sm:$0xff]
        %v427 = vld [vmem:[#allocation8 + $0x2fc] sm:$0xf]
        %v428 = vld [vmem:[#allocation8 + $0x300] sm:$0xff]
        %v429 = vld [vmem:[#allocation8 + $0x308] sm:$0xf]
        %v430 = vld [vmem:[#allocation8 + $0x30c] sm:$0xff]
        %v431 = vld [vmem:[#allocation8 + $0x314] sm:$0xf]
        %v432 = vld [vmem:[#allocation8 + $0x318] sm:$0xff]
        %v433 = vld [vmem:[#allocation8 + $0x320] sm:$0xf]
        %v434 = vld [vmem:[#allocation8 + $0x324] sm:$0xff]
        %v435 = vld [vmem:[#allocation8 + $0x32c] sm:$0xf]
        %v436 = vld [vmem:[#allocation8 + $0x330] sm:$0xff]
        %v437 = vld [vmem:[#allocation8 + $0x338] sm:$0xf]
        %v438 = vld [vmem:[#allocation8 + $0x33c] sm:$0xff]
        %v439 = vld [vmem:[#allocation8 + $0x344] sm:$0xf]
        %v440 = vld [vmem:[#allocation8 + $0x348] sm:$0xff]
        %v441 = vld [vmem:[#allocation8 + $0x350] sm:$0xf]
        %v442 = vld [vmem:[#allocation8 + $0x354] sm:$0xff]
        %v443 = vld [vmem:[#allocation8 + $0x35c] sm:$0xf]
        %v444 = vld [vmem:[#allocation8 + $0x360] sm:$0xff]
        %v445 = vld [vmem:[#allocation8 + $0x368] sm:$0xf]
        %v446 = vld [vmem:[#allocation8 + $0x36c] sm:$0xff]
        %v447 = vld [vmem:[#allocation8 + $0x374] sm:$0xf]
        %v448 = vld [vmem:[#allocation8 + $0x378] sm:$0xff]
        %v449 = vld [vmem:[#allocation8 + $0x380] sm:$0xf]
        %v450 = vld [vmem:[#allocation8 + $0x384] sm:$0xff]
        %v451 = vld [vmem:[#allocation8 + $0x38c] sm:$0xf]
        %v452 = vld [vmem:[#allocation8 + $0x390] sm:$0xff]
        %v453 = vld [vmem:[#allocation8 + $0x398] sm:$0xf]
        %v454 = vld [vmem:[#allocation8 + $0x39c] sm:$0xff]
        %v455 = vld [vmem:[#allocation8 + $0x3a4] sm:$0xf]
        %v456 = vld [vmem:[#allocation8 + $0x3a8] sm:$0xff]
        %v457 = vld [vmem:[#allocation8 + $0x3b0] sm:$0xf]
        %v458 = vld [vmem:[#allocation8 + $0x3b4] sm:$0xff]
        %v459 = vld [vmem:[#allocation8 + $0x3bc] sm:$0xf]
        %v460 = vld [vmem:[#allocation8 + $0x3c0] sm:$0xff]
        %v461 = vld [vmem:[#allocation8 + $0x3c8] sm:$0xf]
        %v462 = vld [vmem:[#allocation8 + $0x3cc] sm:$0xff]
        %v463 = vld [vmem:[#allocation8 + $0x3d4] sm:$0xf]
        %v464 = vld [vmem:[#allocation8 + $0x3d8] sm:$0xff]
        %v465 = vld [vmem:[#allocation8 + $0x3e0] sm:$0xf]
        %v466 = vld [vmem:[#allocation8 + $0x3e4] sm:$0xff]
        %v467 = vld [vmem:[#allocation8 + $0x3ec] sm:$0xf]
        %v468 = vld [vmem:[#allocation8 + $0x3f0] sm:$0xff]
        %v469 = vld [vmem:[#allocation8 + $0x3f8] sm:$0xf]
        %v470 = vld [vmem:[#allocation8 + $0x3fc] sm:$0xff]
        %v471 = vld [vmem:[#allocation8 + $0x404] sm:$0xf]
        %v472 = vld [vmem:[#allocation8 + $0x408] sm:$0xff]
        %v473 = vld [vmem:[#allocation8 + $0x410] sm:$0xf]
        %v474 = vld [vmem:[#allocation8 + $0x414] sm:$0xff]
        %v475 = vld [vmem:[#allocation8 + $0x41c] sm:$0xf]
        %v476 = vld [vmem:[#allocation8 + $0x420] sm:$0xff]
        %v477 = vld [vmem:[#allocation8 + $0x428] sm:$0xf]
        %v478 = vld [vmem:[#allocation8 + $0x42c] sm:$0xff]
        %v479 = vld [vmem:[#allocation8 + $0x434] sm:$0xf]
        %v480 = vld [vmem:[#allocation8 + $0x438] sm:$0xff]
        %v481 = vld [vmem:[#allocation8 + $0x440] sm:$0xf]
        %v482 = vld [vmem:[#allocation8 + $0x444] sm:$0xff]
        %v483 = vld [vmem:[#allocation8 + $0x44c] sm:$0xf]
        %v484 = vld [vmem:[#allocation8 + $0x450] sm:$0xff]
        %v485 = vld [vmem:[#allocation8 + $0x458] sm:$0xf]
        %v486 = vld [vmem:[#allocation8 + $0x45c] sm:$0xff]
        %v487 = vld [vmem:[#allocation8 + $0x464] sm:$0xf]
        %v488 = vld [vmem:[#allocation8 + $0x468] sm:$0xff]
        %v489 = vld [vmem:[#allocation8 + $0x470] sm:$0xf]
        %v490 = vld [vmem:[#allocation8 + $0x474] sm:$0xff]
        %v491 = vld [vmem:[#allocation8 + $0x47c] sm:$0xf]
        %v492 = vld [vmem:[#allocation8 + $0x480] sm:$0xff]
        %v493 = vld [vmem:[#allocation8 + $0x488] sm:$0xf]
        %v494 = vld [vmem:[#allocation8 + $0x48c] sm:$0xff]
        %v495 = vld [vmem:[#allocation8 + $0x494] sm:$0xf]
        %v496 = vld [vmem:[#allocation8 + $0x498] sm:$0xff]
        %v497 = vld [vmem:[#allocation8 + $0x4a0] sm:$0xf]
        %v498 = vld [vmem:[#allocation8 + $0x4a4] sm:$0xff]
        %v499 = vld [vmem:[#allocation8 + $0x4ac] sm:$0xf]
        %v500 = vld [vmem:[#allocation8 + $0x4b0] sm:$0xff]
        %v501 = vld [vmem:[#allocation8 + $0x4b8] sm:$0xf]
        %v502 = vld [vmem:[#allocation8 + $0x4bc] sm:$0xff]
        %v503 = vld [vmem:[#allocation8 + $0x4c4] sm:$0xf]
        %v504 = vld [vmem:[#allocation8 + $0x4c8] sm:$0xff]
        %v505 = vld [vmem:[#allocation8 + $0x4d0] sm:$0xf]
        %v506 = vld [vmem:[#allocation8 + $0x4d4] sm:$0xff]
        %v507 = vld [vmem:[#allocation8 + $0x4dc] sm:$0xf]
        %v508 = vld [vmem:[#allocation8 + $0x4e0] sm:$0xff]
        %v509 = vld [vmem:[#allocation8 + $0x4e8] sm:$0xf]
        %v510 = vld [vmem:[#allocation8 + $0x4ec] sm:$0xff]
        %v511 = vld [vmem:[#allocation8 + $0x4f4] sm:$0xf]
        %v512 = vld [vmem:[#allocation8 + $0x4f8] sm:$0xff]
        %v513 = vld [vmem:[#allocation8 + $0x500] sm:$0xf]
        %v514 = vld [vmem:[#allocation8 + $0x504] sm:$0xff]
        %v515 = vld [vmem:[#allocation8 + $0x50c] sm:$0xf]
        %v516 = vld [vmem:[#allocation8 + $0x510] sm:$0xff]
        %v517 = vld [vmem:[#allocation8 + $0x518] sm:$0xf]
        %v518 = vld [vmem:[#allocation8 + $0x51c] sm:$0xff]
        %v519 = vld [vmem:[#allocation8 + $0x524] sm:$0xf]
        %v520 = vld [vmem:[#allocation8 + $0x528] sm:$0xff]
        %v521 = vld [vmem:[#allocation8 + $0x530] sm:$0xf]
        %v522 = vld [vmem:[#allocation8 + $0x534] sm:$0xff]
        %v523 = vld [vmem:[#allocation8 + $0x53c] sm:$0xf]
        %v524 = vld [vmem:[#allocation8 + $0x540] sm:$0xff]
        %v525 = vld [vmem:[#allocation8 + $0x548] sm:$0xf]
        %v526 = vld [vmem:[#allocation8 + $0x54c] sm:$0xff]
        %v527 = vld [vmem:[#allocation8 + $0x554] sm:$0xf]
        %v528 = vld [vmem:[#allocation8 + $0x558] sm:$0xff]
        %v529 = vld [vmem:[#allocation8 + $0x560] sm:$0xf]
        %v530 = vld [vmem:[#allocation8 + $0x564] sm:$0xff]
        %v531 = vld [vmem:[#allocation8 + $0x56c] sm:$0xf]
        %v532 = vld [vmem:[#allocation8 + $0x570] sm:$0xff]
        %v533 = vld [vmem:[#allocation8 + $0x578] sm:$0xf]
        %v534 = vld [vmem:[#allocation8 + $0x57c] sm:$0xff]
        %v535 = vld [vmem:[#allocation8 + $0x584] sm:$0xf]
        %v536 = vld [vmem:[#allocation8 + $0x588] sm:$0xff]
        %v537 = vld [vmem:[#allocation8 + $0x590] sm:$0xf]
        %v538 = vld [vmem:[#allocation8 + $0x594] sm:$0xff]
        %v539 = vld [vmem:[#allocation8 + $0x59c] sm:$0xf]
        %v540 = vld [vmem:[#allocation8 + $0x5a0] sm:$0xff]
        %v541 = vld [vmem:[#allocation8 + $0x5a8] sm:$0xf]
        %v542 = vld [vmem:[#allocation8 + $0x5ac] sm:$0xff]
        %v543 = vld [vmem:[#allocation8 + $0x5b4] sm:$0xf]
        %v544 = vld [vmem:[#allocation8 + $0x5b8] sm:$0xff]
        %v545 = vld [vmem:[#allocation8 + $0x5c0] sm:$0xf]
        %v546 = vld [vmem:[#allocation8 + $0x5c4] sm:$0xff]
        %v547 = vld [vmem:[#allocation8 + $0x5cc] sm:$0xf]
        %v548 = vld [vmem:[#allocation8 + $0x5d0] sm:$0xff]
        %v549 = vld [vmem:[#allocation8 + $0x5d8] sm:$0xf]
        %v550 = vld [vmem:[#allocation8 + $0x5dc] sm:$0xff]
        %v551 = vld [vmem:[#allocation8 + $0x5e4] sm:$0xf]
        %v552 = vld [vmem:[#allocation8 + $0x5e8] sm:$0xff]
        %v553 = vld [vmem:[#allocation8 + $0x5f0] sm:$0xf]
        %v554 = vld [vmem:[#allocation8 + $0x5f4] sm:$0xff]
        %v555 = vld [vmem:[#allocation8 + $0x5fc] sm:$0xf]
        %v556 = vld [vmem:[#allocation8 + $0x600] sm:$0xff]
        %v557 = vld [vmem:[#allocation8 + $0x608] sm:$0xf]
        %v558 = vld [vmem:[#allocation8 + $0x60c] sm:$0xff]
        %v559 = vld [vmem:[#allocation8 + $0x614] sm:$0xf]
        %v560 = vld [vmem:[#allocation8 + $0x618] sm:$0xff]
        %v561 = vld [vmem:[#allocation8 + $0x620] sm:$0xf]
        %v562 = vld [vmem:[#allocation8 + $0x624] sm:$0xff]
        %v563 = vld [vmem:[#allocation8 + $0x62c] sm:$0xf]
        %v564 = vld [vmem:[#allocation8 + $0x630] sm:$0xff]
        %v565 = vld [vmem:[#allocation8 + $0x638] sm:$0xf]
        %v566 = vld [vmem:[#allocation8 + $0x63c] sm:$0xff]
        %v567 = vld [vmem:[#allocation8 + $0x644] sm:$0xf]
        %v568 = vld [vmem:[#allocation8 + $0x648] sm:$0xff]
        %v569 = vld [vmem:[#allocation8 + $0x650] sm:$0xf]
        %v570 = vld [vmem:[#allocation8 + $0x654] sm:$0xff]
        %v571 = vld [vmem:[#allocation8 + $0x65c] sm:$0xf]
        %v572 = vld [vmem:[#allocation8 + $0x660] sm:$0xff]
        %v573 = vld [vmem:[#allocation8 + $0x668] sm:$0xf]
        %v574 = vld [vmem:[#allocation8 + $0x66c] sm:$0xff]
        %v575 = vld [vmem:[#allocation8 + $0x674] sm:$0xf]
        %v576 = vld [vmem:[#allocation8 + $0x678] sm:$0xff]
        %v577 = vld [vmem:[#allocation8 + $0x680] sm:$0xf]
        %v578 = vld [vmem:[#allocation8 + $0x684] sm:$0xff]
        %v579 = vld [vmem:[#allocation8 + $0x68c] sm:$0xf]
        %v580 = vld [vmem:[#allocation8 + $0x690] sm:$0xff]
        %v581 = vld [vmem:[#allocation8 + $0x698] sm:$0xf]
        %v582 = vld [vmem:[#allocation8 + $0x69c] sm:$0xff]
        %v583 = vld [vmem:[#allocation8 + $0x6a4] sm:$0xf]
        %v584 = vld [vmem:[#allocation8 + $0x6a8] sm:$0xff]
        %v585 = vld [vmem:[#allocation8 + $0x6b0] sm:$0xf]
        %v586 = vld [vmem:[#allocation8 + $0x6b4] sm:$0xff]
        %v587 = vld [vmem:[#allocation8 + $0x6bc] sm:$0xf]
        %v588 = vld [vmem:[#allocation9] sm:$0xff]
        %v589 = vld [vmem:[#allocation9 + $0x8] sm:$0xf]
        %v590 = vld [vmem:[#allocation9 + $0xc] sm:$0xff]
        %v591 = vld [vmem:[#allocation9 + $0x14] sm:$0xf]
        %v592 = vld [vmem:[#allocation9 + $0x18] sm:$0xff]
        %v593 = vld [vmem:[#allocation9 + $0x20] sm:$0xf]
        %v594 = vld [vmem:[#allocation9 + $0x24] sm:$0xff]
        %v595 = vld [vmem:[#allocation9 + $0x2c] sm:$0xf]
        %v596 = vld [vmem:[#allocation9 + $0x30] sm:$0xff]
        %v597 = vld [vmem:[#allocation9 + $0x38] sm:$0xf]
        %v598 = vld [vmem:[#allocation9 + $0x3c] sm:$0xff]
        %v599 = vld [vmem:[#allocation9 + $0x44] sm:$0xf]
        %v600 = vld [vmem:[#allocation9 + $0x48] sm:$0xff]
        %v601 = vld [vmem:[#allocation9 + $0x50] sm:$0xf]
        %v602 = vld [vmem:[#allocation9 + $0x54] sm:$0xff]
        %v603 = vld [vmem:[#allocation9 + $0x5c] sm:$0xf]
        %v604 = vld [vmem:[#allocation9 + $0x60] sm:$0xff]
        %v605 = vld [vmem:[#allocation9 + $0x68] sm:$0xf]
        %v606 = vld [vmem:[#allocation9 + $0x6c] sm:$0xff]
        %v607 = vld [vmem:[#allocation9 + $0x74] sm:$0xf]
        %v608 = vld [vmem:[#allocation9 + $0x78] sm:$0xff]
        %v609 = vld [vmem:[#allocation9 + $0x80] sm:$0xf]
        %v610 = vld [vmem:[#allocation9 + $0x84] sm:$0xff]
        %v611 = vld [vmem:[#allocation9 + $0x8c] sm:$0xf]
        %v612 = vld [vmem:[#allocation9 + $0x90] sm:$0xff]
        %v613 = vld [vmem:[#allocation9 + $0x98] sm:$0xf]
        %v614 = vld [vmem:[#allocation9 + $0x9c] sm:$0xff]
        %v615 = vld [vmem:[#allocation9 + $0xa4] sm:$0xf]
        %v616 = vld [vmem:[#allocation9 + $0xa8] sm:$0xff]
        %v617 = vld [vmem:[#allocation9 + $0xb0] sm:$0xf]
        %v618 = vld [vmem:[#allocation9 + $0xb4] sm:$0xff]
        %v619 = vld [vmem:[#allocation9 + $0xbc] sm:$0xf]
        %v620 = vld [vmem:[#allocation9 + $0xc0] sm:$0xff]
        %v621 = vld [vmem:[#allocation9 + $0xc8] sm:$0xf]
        %v622 = vld [vmem:[#allocation9 + $0xcc] sm:$0xff]
        %v623 = vld [vmem:[#allocation9 + $0xd4] sm:$0xf]
        %v624 = vld [vmem:[#allocation9 + $0xd8] sm:$0xff]
        %v625 = vld [vmem:[#allocation9 + $0xe0] sm:$0xf]
        %v626 = vld [vmem:[#allocation9 + $0xe4] sm:$0xff]
        %v627 = vld [vmem:[#allocation9 + $0xec] sm:$0xf]
        %v628 = vld [vmem:[#allocation9 + $0xf0] sm:$0xff]
        %v629 = vld [vmem:[#allocation9 + $0xf8] sm:$0xf]
        %v630 = vld [vmem:[#allocation9 + $0xfc] sm:$0xff]
        %v631 = vld [vmem:[#allocation9 + $0x104] sm:$0xf]
        %v632 = vld [vmem:[#allocation9 + $0x108] sm:$0xff]
        %v633 = vld [vmem:[#allocation9 + $0x110] sm:$0xf]
        %v634 = vld [vmem:[#allocation9 + $0x114] sm:$0xff]
        %v635 = vld [vmem:[#allocation9 + $0x11c] sm:$0xf]
        %v636 = vld [vmem:[#allocation9 + $0x120] sm:$0xff]
        %v637 = vld [vmem:[#allocation9 + $0x128] sm:$0xf]
        %v638 = vld [vmem:[#allocation9 + $0x12c] sm:$0xff]
        %v639 = vld [vmem:[#allocation9 + $0x134] sm:$0xf]
        %v640 = vld [vmem:[#allocation9 + $0x138] sm:$0xff]
        %v641 = vld [vmem:[#allocation9 + $0x140] sm:$0xf]
        %v642 = vld [vmem:[#allocation9 + $0x144] sm:$0xff]
        %v643 = vld [vmem:[#allocation9 + $0x14c] sm:$0xf]
        %v644 = vld [vmem:[#allocation9 + $0x150] sm:$0xff]
        %v645 = vld [vmem:[#allocation9 + $0x158] sm:$0xf]
        %v646 = vld [vmem:[#allocation9 + $0x15c] sm:$0xff]
        %v647 = vld [vmem:[#allocation9 + $0x164] sm:$0xf]
        %v648 = vld [vmem:[#allocation9 + $0x168] sm:$0xff]
        %v649 = vld [vmem:[#allocation9 + $0x170] sm:$0xf]
        %v650 = vld [vmem:[#allocation9 + $0x174] sm:$0xff]
        %v651 = vld [vmem:[#allocation9 + $0x17c] sm:$0xf]
        %v652 = vld [vmem:[#allocation9 + $0x180] sm:$0xff]
        %v653 = vld [vmem:[#allocation9 + $0x188] sm:$0xf]
        %v654 = vld [vmem:[#allocation9 + $0x18c] sm:$0xff]
        %v655 = vld [vmem:[#allocation9 + $0x194] sm:$0xf]
        %v656 = vld [vmem:[#allocation9 + $0x198] sm:$0xff]
        %v657 = vld [vmem:[#allocation9 + $0x1a0] sm:$0xf]
        %v658 = vld [vmem:[#allocation9 + $0x1a4] sm:$0xff]
        %v659 = vld [vmem:[#allocation9 + $0x1ac] sm:$0xf]
        %v660 = vld [vmem:[#allocation9 + $0x1b0] sm:$0xff]
        %v661 = vld [vmem:[#allocation9 + $0x1b8] sm:$0xf]
        %v662 = vld [vmem:[#allocation9 + $0x1bc] sm:$0xff]
        %v663 = vld [vmem:[#allocation9 + $0x1c4] sm:$0xf]
        %v664 = vld [vmem:[#allocation9 + $0x1c8] sm:$0xff]
        %v665 = vld [vmem:[#allocation9 + $0x1d0] sm:$0xf]
        %v666 = vld [vmem:[#allocation9 + $0x1d4] sm:$0xff]
        %v667 = vld [vmem:[#allocation9 + $0x1dc] sm:$0xf]
        %v668 = vld [vmem:[#allocation9 + $0x1e0] sm:$0xff]
        %v669 = vld [vmem:[#allocation9 + $0x1e8] sm:$0xf]
        %v670 = vld [vmem:[#allocation9 + $0x1ec] sm:$0xff]
        %v671 = vld [vmem:[#allocation9 + $0x1f4] sm:$0xf]
        %v672 = vld [vmem:[#allocation9 + $0x1f8] sm:$0xff]
        %v673 = vld [vmem:[#allocation9 + $0x200] sm:$0xf]
        %v674 = vld [vmem:[#allocation9 + $0x204] sm:$0xff]
        %v675 = vld [vmem:[#allocation9 + $0x20c] sm:$0xf]
        %v676 = vld [vmem:[#allocation9 + $0x210] sm:$0xff]
        %v677 = vld [vmem:[#allocation9 + $0x218] sm:$0xf]
        %v678 = vld [vmem:[#allocation9 + $0x21c] sm:$0xff]
        %v679 = vld [vmem:[#allocation9 + $0x224] sm:$0xf]
        %v680 = vld [vmem:[#allocation9 + $0x228] sm:$0xff]
        %v681 = vld [vmem:[#allocation9 + $0x230] sm:$0xf]
        %v682 = vld [vmem:[#allocation9 + $0x234] sm:$0xff]
        %v683 = vld [vmem:[#allocation9 + $0x23c] sm:$0xf]
        %v684 = vld [vmem:[#allocation6] sm:$0xff]
        %v685 = vld [vmem:[#allocation6 + $0x8] sm:$0xff]
        %v686 = vld [vmem:[#allocation6 + $0x10] sm:$0xff]
        %v687 = vld [vmem:[#allocation6 + $0x18] sm:$0xff]
        %v688 = vld [vmem:[#allocation6 + $0x20] sm:$0xff]
        %v689 = vld [vmem:[#allocation6 + $0x28] sm:$0xff]
        %v690 = vld [vmem:[#allocation6 + $0x30] sm:$0xff]
        %v691 = vld [vmem:[#allocation6 + $0x38] sm:$0xff]
        %v692 = vld [vmem:[#allocation6 + $0x40] sm:$0xff]
        %v693 = vld [vmem:[#allocation6 + $0x48] sm:$0xff]
        %v694 = vld [vmem:[#allocation6 + $0x50] sm:$0xff]
        %v695 = vld [vmem:[#allocation6 + $0x58] sm:$0xff]
        %v696 = vld [vmem:[#allocation6 + $0x60] sm:$0xff]
        %v697 = vld [vmem:[#allocation6 + $0x68] sm:$0xff]
        %v698 = vld [vmem:[#allocation6 + $0x70] sm:$0xff]
        %v699 = vld [vmem:[#allocation6 + $0x78] sm:$0xff]
        %v732 = vunpack.c.l.b16 %v268
        %v733 = vunpack.c.h.b16 %v268
        %v734 = vunpack.c.l.b16 %v269
        %v735 = vunpack.c.l.b16 %v270
        %v736 = vunpack.c.h.b16 %v270
        %v737 = vunpack.c.l.b16 %v271
        %v738 = vunpack.c.l.b16 %v272
        %v739 = vunpack.c.h.b16 %v272
        %v740 = vunpack.c.l.b16 %v273
        %v741 = vunpack.c.l.b16 %v274
        %v742 = vunpack.c.h.b16 %v274
        %v743 = vunpack.c.l.b16 %v275
        %v744 = vunpack.c.l.b16 %v276
        %v745 = vunpack.c.h.b16 %v276
        %v746 = vunpack.c.l.b16 %v277
        %v747 = vunpack.c.l.b16 %v278
        %v748 = vunpack.c.h.b16 %v278
        %v749 = vunpack.c.l.b16 %v279
        %v750 = vunpack.c.l.b16 %v280
        %v751 = vunpack.c.h.b16 %v280
        %v752 = vunpack.c.l.b16 %v281
        %v753 = vunpack.c.l.b16 %v282
        %v754 = vunpack.c.h.b16 %v282
        %v755 = vunpack.c.l.b16 %v283
        %v756 = vunpack.c.l.b16 %v284
        %v757 = vunpack.c.h.b16 %v284
        %v758 = vunpack.c.l.b16 %v285
        %v759 = vunpack.c.l.b16 %v286
        %v760 = vunpack.c.h.b16 %v286
        %v761 = vunpack.c.l.b16 %v287
        %v762 = vunpack.c.l.b16 %v288
        %v763 = vunpack.c.h.b16 %v288
        %v764 = vunpack.c.l.b16 %v289
        %v765 = vunpack.c.l.b16 %v290
        %v766 = vunpack.c.h.b16 %v290
        %v767 = vunpack.c.l.b16 %v291
        %v768 = vunpack.c.l.b16 %v292
        %v769 = vunpack.c.h.b16 %v292
        %v770 = vunpack.c.l.b16 %v293
        %v771 = vunpack.c.l.b16 %v294
        %v772 = vunpack.c.h.b16 %v294
        %v773 = vunpack.c.l.b16 %v295
        %v774 = vunpack.c.l.b16 %v296
        %v775 = vunpack.c.h.b16 %v296
        %v776 = vunpack.c.l.b16 %v297
        %v777 = vunpack.c.l.b16 %v298
        %v778 = vunpack.c.h.b16 %v298
        %v779 = vunpack.c.l.b16 %v299
        %v780 = vpack.c.b16 %v735, %v732
        %v781 = vpack.c.b16 %v736, %v733
        %v782 = vpack.c.b16 %v737, %v734
        %v783 = vpack.c.b16 %v741, %v738
        %v784 = vpack.c.b16 %v742, %v739
        %v785 = vpack.c.b16 %v743, %v740
        %v786 = vpack.c.b16 %v747, %v744
        %v787 = vpack.c.b16 %v748, %v745
        %v788 = vpack.c.b16 %v749, %v746
        %v789 = vpack.c.b16 %v753, %v750
        %v790 = vpack.c.b16 %v754, %v751
        %v791 = vpack.c.b16 %v755, %v752
        %v792 = vpack.c.b16 %v759, %v756
        %v793 = vpack.c.b16 %v760, %v757
        %v794 = vpack.c.b16 %v761, %v758
        %v795 = vpack.c.b16 %v765, %v762
        %v796 = vpack.c.b16 %v766, %v763
        %v797 = vpack.c.b16 %v767, %v764
        %v798 = vpack.c.b16 %v771, %v768
        %v799 = vpack.c.b16 %v772, %v769
        %v800 = vpack.c.b16 %v773, %v770
        %v801 = vpack.c.b16 %v777, %v774
        %v802 = vpack.c.b16 %v778, %v775
        %v803 = vpack.c.b16 %v779, %v776
        %v1116 = vunpack.c.l.b16 %v300
        %v1117 = vunpack.c.h.b16 %v300
        %v1118 = vunpack.c.l.b16 %v301
        %v1119 = vunpack.c.l.b16 %v302
        %v1120 = vunpack.c.h.b16 %v302
        %v1121 = vunpack.c.l.b16 %v303
        %v1122 = vunpack.c.l.b16 %v304
        %v1123 = vunpack.c.h.b16 %v304
        %v1124 = vunpack.c.l.b16 %v305
        %v1125 = vunpack.c.l.b16 %v306
        %v1126 = vunpack.c.h.b16 %v306
        %v1127 = vunpack.c.l.b16 %v307
        %v1128 = vunpack.c.l.b16 %v308
        %v1129 = vunpack.c.h.b16 %v308
        %v1130 = vunpack.c.l.b16 %v309
        %v1131 = vunpack.c.l.b16 %v310
        %v1132 = vunpack.c.h.b16 %v310
        %v1133 = vunpack.c.l.b16 %v311
        %v1134 = vunpack.c.l.b16 %v312
        %v1135 = vunpack.c.h.b16 %v312
        %v1136 = vunpack.c.l.b16 %v313
        %v1137 = vunpack.c.l.b16 %v314
        %v1138 = vunpack.c.h.b16 %v314
        %v1139 = vunpack.c.l.b16 %v315
        %v1140 = vunpack.c.l.b16 %v316
        %v1141 = vunpack.c.h.b16 %v316
        %v1142 = vunpack.c.l.b16 %v317
        %v1143 = vunpack.c.l.b16 %v318
        %v1144 = vunpack.c.h.b16 %v318
        %v1145 = vunpack.c.l.b16 %v319
        %v1146 = vunpack.c.l.b16 %v320
        %v1147 = vunpack.c.h.b16 %v320
        %v1148 = vunpack.c.l.b16 %v321
        %v1149 = vunpack.c.l.b16 %v322
        %v1150 = vunpack.c.h.b16 %v322
        %v1151 = vunpack.c.l.b16 %v323
        %v1152 = vunpack.c.l.b16 %v324
        %v1153 = vunpack.c.h.b16 %v324
        %v1154 = vunpack.c.l.b16 %v325
        %v1155 = vunpack.c.l.b16 %v326
        %v1156 = vunpack.c.h.b16 %v326
        %v1157 = vunpack.c.l.b16 %v327
        %v1158 = vunpack.c.l.b16 %v328
        %v1159 = vunpack.c.h.b16 %v328
        %v1160 = vunpack.c.l.b16 %v329
        %v1161 = vunpack.c.l.b16 %v330
        %v1162 = vunpack.c.h.b16 %v330
        %v1163 = vunpack.c.l.b16 %v331
        %v1164 = vunpack.c.l.b16 %v332
        %v1165 = vunpack.c.h.b16 %v332
        %v1166 = vunpack.c.l.b16 %v333
        %v1167 = vunpack.c.l.b16 %v334
        %v1168 = vunpack.c.h.b16 %v334
        %v1169 = vunpack.c.l.b16 %v335
        %v1170 = vunpack.c.l.b16 %v336
        %v1171 = vunpack.c.h.b16 %v336
        %v1172 = vunpack.c.l.b16 %v337
        %v1173 = vunpack.c.l.b16 %v338
        %v1174 = vunpack.c.h.b16 %v338
        %v1175 = vunpack.c.l.b16 %v339
        %v1176 = vunpack.c.l.b16 %v340
        %v1177 = vunpack.c.h.b16 %v340
        %v1178 = vunpack.c.l.b16 %v341
        %v1179 = vunpack.c.l.b16 %v342
        %v1180 = vunpack.c.h.b16 %v342
        %v1181 = vunpack.c.l.b16 %v343
        %v1182 = vunpack.c.l.b16 %v344
        %v1183 = vunpack.c.h.b16 %v344
        %v1184 = vunpack.c.l.b16 %v345
        %v1185 = vunpack.c.l.b16 %v346
        %v1186 = vunpack.c.h.b16 %v346
        %v1187 = vunpack.c.l.b16 %v347
        %v1188 = vunpack.c.l.b16 %v348
        %v1189 = vunpack.c.h.b16 %v348
        %v1190 = vunpack.c.l.b16 %v349
        %v1191 = vunpack.c.l.b16 %v350
        %v1192 = vunpack.c.h.b16 %v350
        %v1193 = vunpack.c.l.b16 %v351
        %v1194 = vunpack.c.l.b16 %v352
        %v1195 = vunpack.c.h.b16 %v352
        %v1196 = vunpack.c.l.b16 %v353
        %v1197 = vunpack.c.l.b16 %v354
        %v1198 = vunpack.c.h.b16 %v354
        %v1199 = vunpack.c.l.b16 %v355
        %v1200 = vunpack.c.l.b16 %v356
        %v1201 = vunpack.c.h.b16 %v356
        %v1202 = vunpack.c.l.b16 %v357
        %v1203 = vunpack.c.l.b16 %v358
        %v1204 = vunpack.c.h.b16 %v358
        %v1205 = vunpack.c.l.b16 %v359
        %v1206 = vunpack.c.l.b16 %v360
        %v1207 = vunpack.c.h.b16 %v360
        %v1208 = vunpack.c.l.b16 %v361
        %v1209 = vunpack.c.l.b16 %v362
        %v1210 = vunpack.c.h.b16 %v362
        %v1211 = vunpack.c.l.b16 %v363
        %v1212 = vunpack.c.l.b16 %v364
        %v1213 = vunpack.c.h.b16 %v364
        %v1214 = vunpack.c.l.b16 %v365
        %v1215 = vunpack.c.l.b16 %v366
        %v1216 = vunpack.c.h.b16 %v366
        %v1217 = vunpack.c.l.b16 %v367
        %v1218 = vunpack.c.l.b16 %v368
        %v1219 = vunpack.c.h.b16 %v368
        %v1220 = vunpack.c.l.b16 %v369
        %v1221 = vunpack.c.l.b16 %v370
        %v1222 = vunpack.c.h.b16 %v370
        %v1223 = vunpack.c.l.b16 %v371
        %v1224 = vunpack.c.l.b16 %v372
        %v1225 = vunpack.c.h.b16 %v372
        %v1226 = vunpack.c.l.b16 %v373
        %v1227 = vunpack.c.l.b16 %v374
        %v1228 = vunpack.c.h.b16 %v374
        %v1229 = vunpack.c.l.b16 %v375
        %v1230 = vunpack.c.l.b16 %v376
        %v1231 = vunpack.c.h.b16 %v376
        %v1232 = vunpack.c.l.b16 %v377
        %v1233 = vunpack.c.l.b16 %v378
        %v1234 = vunpack.c.h.b16 %v378
        %v1235 = vunpack.c.l.b16 %v379
        %v1236 = vunpack.c.l.b16 %v380
        %v1237 = vunpack.c.h.b16 %v380
        %v1238 = vunpack.c.l.b16 %v381
        %v1239 = vunpack.c.l.b16 %v382
        %v1240 = vunpack.c.h.b16 %v382
        %v1241 = vunpack.c.l.b16 %v383
        %v1242 = vunpack.c.l.b16 %v384
        %v1243 = vunpack.c.h.b16 %v384
        %v1244 = vunpack.c.l.b16 %v385
        %v1245 = vunpack.c.l.b16 %v386
        %v1246 = vunpack.c.h.b16 %v386
        %v1247 = vunpack.c.l.b16 %v387
        %v1248 = vunpack.c.l.b16 %v388
        %v1249 = vunpack.c.h.b16 %v388
        %v1250 = vunpack.c.l.b16 %v389
        %v1251 = vunpack.c.l.b16 %v390
        %v1252 = vunpack.c.h.b16 %v390
        %v1253 = vunpack.c.l.b16 %v391
        %v1254 = vunpack.c.l.b16 %v392
        %v1255 = vunpack.c.h.b16 %v392
        %v1256 = vunpack.c.l.b16 %v393
        %v1257 = vunpack.c.l.b16 %v394
        %v1258 = vunpack.c.h.b16 %v394
        %v1259 = vunpack.c.l.b16 %v395
        %v1260 = vunpack.c.l.b16 %v396
        %v1261 = vunpack.c.h.b16 %v396
        %v1262 = vunpack.c.l.b16 %v397
        %v1263 = vunpack.c.l.b16 %v398
        %v1264 = vunpack.c.h.b16 %v398
        %v1265 = vunpack.c.l.b16 %v399
        %v1266 = vunpack.c.l.b16 %v400
        %v1267 = vunpack.c.h.b16 %v400
        %v1268 = vunpack.c.l.b16 %v401
        %v1269 = vunpack.c.l.b16 %v402
        %v1270 = vunpack.c.h.b16 %v402
        %v1271 = vunpack.c.l.b16 %v403
        %v1272 = vunpack.c.l.b16 %v404
        %v1273 = vunpack.c.h.b16 %v404
        %v1274 = vunpack.c.l.b16 %v405
        %v1275 = vunpack.c.l.b16 %v406
        %v1276 = vunpack.c.h.b16 %v406
        %v1277 = vunpack.c.l.b16 %v407
        %v1278 = vunpack.c.l.b16 %v408
        %v1279 = vunpack.c.h.b16 %v408
        %v1280 = vunpack.c.l.b16 %v409
        %v1281 = vunpack.c.l.b16 %v410
        %v1282 = vunpack.c.h.b16 %v410
        %v1283 = vunpack.c.l.b16 %v411
        %v1284 = vunpack.c.l.b16 %v412
        %v1285 = vunpack.c.h.b16 %v412
        %v1286 = vunpack.c.l.b16 %v413
        %v1287 = vunpack.c.l.b16 %v414
        %v1288 = vunpack.c.h.b16 %v414
        %v1289 = vunpack.c.l.b16 %v415
        %v1290 = vunpack.c.l.b16 %v416
        %v1291 = vunpack.c.h.b16 %v416
        %v1292 = vunpack.c.l.b16 %v417
        %v1293 = vunpack.c.l.b16 %v418
        %v1294 = vunpack.c.h.b16 %v418
        %v1295 = vunpack.c.l.b16 %v419
        %v1296 = vunpack.c.l.b16 %v420
        %v1297 = vunpack.c.h.b16 %v420
        %v1298 = vunpack.c.l.b16 %v421
        %v1299 = vunpack.c.l.b16 %v422
        %v1300 = vunpack.c.h.b16 %v422
        %v1301 = vunpack.c.l.b16 %v423
        %v1302 = vunpack.c.l.b16 %v424
        %v1303 = vunpack.c.h.b16 %v424
        %v1304 = vunpack.c.l.b16 %v425
        %v1305 = vunpack.c.l.b16 %v426
        %v1306 = vunpack.c.h.b16 %v426
        %v1307 = vunpack.c.l.b16 %v427
        %v1308 = vunpack.c.l.b16 %v428
        %v1309 = vunpack.c.h.b16 %v428
        %v1310 = vunpack.c.l.b16 %v429
        %v1311 = vunpack.c.l.b16 %v430
        %v1312 = vunpack.c.h.b16 %v430
        %v1313 = vunpack.c.l.b16 %v431
        %v1314 = vunpack.c.l.b16 %v432
        %v1315 = vunpack.c.h.b16 %v432
        %v1316 = vunpack.c.l.b16 %v433
        %v1317 = vunpack.c.l.b16 %v434
        %v1318 = vunpack.c.h.b16 %v434
        %v1319 = vunpack.c.l.b16 %v435
        %v1320 = vunpack.c.l.b16 %v436
        %v1321 = vunpack.c.h.b16 %v436
        %v1322 = vunpack.c.l.b16 %v437
        %v1323 = vunpack.c.l.b16 %v438
        %v1324 = vunpack.c.h.b16 %v438
        %v1325 = vunpack.c.l.b16 %v439
        %v1326 = vunpack.c.l.b16 %v440
        %v1327 = vunpack.c.h.b16 %v440
        %v1328 = vunpack.c.l.b16 %v441
        %v1329 = vunpack.c.l.b16 %v442
        %v1330 = vunpack.c.h.b16 %v442
        %v1331 = vunpack.c.l.b16 %v443
        %v1332 = vunpack.c.l.b16 %v444
        %v1333 = vunpack.c.h.b16 %v444
        %v1334 = vunpack.c.l.b16 %v445
        %v1335 = vunpack.c.l.b16 %v446
        %v1336 = vunpack.c.h.b16 %v446
        %v1337 = vunpack.c.l.b16 %v447
        %v1338 = vunpack.c.l.b16 %v448
        %v1339 = vunpack.c.h.b16 %v448
        %v1340 = vunpack.c.l.b16 %v449
        %v1341 = vunpack.c.l.b16 %v450
        %v1342 = vunpack.c.h.b16 %v450
        %v1343 = vunpack.c.l.b16 %v451
        %v1344 = vunpack.c.l.b16 %v452
        %v1345 = vunpack.c.h.b16 %v452
        %v1346 = vunpack.c.l.b16 %v453
        %v1347 = vunpack.c.l.b16 %v454
        %v1348 = vunpack.c.h.b16 %v454
        %v1349 = vunpack.c.l.b16 %v455
        %v1350 = vunpack.c.l.b16 %v456
        %v1351 = vunpack.c.h.b16 %v456
        %v1352 = vunpack.c.l.b16 %v457
        %v1353 = vunpack.c.l.b16 %v458
        %v1354 = vunpack.c.h.b16 %v458
        %v1355 = vunpack.c.l.b16 %v459
        %v1356 = vunpack.c.l.b16 %v460
        %v1357 = vunpack.c.h.b16 %v460
        %v1358 = vunpack.c.l.b16 %v461
        %v1359 = vunpack.c.l.b16 %v462
        %v1360 = vunpack.c.h.b16 %v462
        %v1361 = vunpack.c.l.b16 %v463
        %v1362 = vunpack.c.l.b16 %v464
        %v1363 = vunpack.c.h.b16 %v464
        %v1364 = vunpack.c.l.b16 %v465
        %v1365 = vunpack.c.l.b16 %v466
        %v1366 = vunpack.c.h.b16 %v466
        %v1367 = vunpack.c.l.b16 %v467
        %v1368 = vunpack.c.l.b16 %v468
        %v1369 = vunpack.c.h.b16 %v468
        %v1370 = vunpack.c.l.b16 %v469
        %v1371 = vunpack.c.l.b16 %v470
        %v1372 = vunpack.c.h.b16 %v470
        %v1373 = vunpack.c.l.b16 %v471
        %v1374 = vunpack.c.l.b16 %v472
        %v1375 = vunpack.c.h.b16 %v472
        %v1376 = vunpack.c.l.b16 %v473
        %v1377 = vunpack.c.l.b16 %v474
        %v1378 = vunpack.c.h.b16 %v474
        %v1379 = vunpack.c.l.b16 %v475
        %v1380 = vunpack.c.l.b16 %v476
        %v1381 = vunpack.c.h.b16 %v476
        %v1382 = vunpack.c.l.b16 %v477
        %v1383 = vunpack.c.l.b16 %v478
        %v1384 = vunpack.c.h.b16 %v478
        %v1385 = vunpack.c.l.b16 %v479
        %v1386 = vunpack.c.l.b16 %v480
        %v1387 = vunpack.c.h.b16 %v480
        %v1388 = vunpack.c.l.b16 %v481
        %v1389 = vunpack.c.l.b16 %v482
        %v1390 = vunpack.c.h.b16 %v482
        %v1391 = vunpack.c.l.b16 %v483
        %v1392 = vunpack.c.l.b16 %v484
        %v1393 = vunpack.c.h.b16 %v484
        %v1394 = vunpack.c.l.b16 %v485
        %v1395 = vunpack.c.l.b16 %v486
        %v1396 = vunpack.c.h.b16 %v486
        %v1397 = vunpack.c.l.b16 %v487
        %v1398 = vunpack.c.l.b16 %v488
        %v1399 = vunpack.c.h.b16 %v488
        %v1400 = vunpack.c.l.b16 %v489
        %v1401 = vunpack.c.l.b16 %v490
        %v1402 = vunpack.c.h.b16 %v490
        %v1403 = vunpack.c.l.b16 %v491
        %v1404 = vunpack.c.l.b16 %v492
        %v1405 = vunpack.c.h.b16 %v492
        %v1406 = vunpack.c.l.b16 %v493
        %v1407 = vunpack.c.l.b16 %v494
        %v1408 = vunpack.c.h.b16 %v494
        %v1409 = vunpack.c.l.b16 %v495
        %v1410 = vunpack.c.l.b16 %v496
        %v1411 = vunpack.c.h.b16 %v496
        %v1412 = vunpack.c.l.b16 %v497
        %v1413 = vunpack.c.l.b16 %v498
        %v1414 = vunpack.c.h.b16 %v498
        %v1415 = vunpack.c.l.b16 %v499
        %v1416 = vunpack.c.l.b16 %v500
        %v1417 = vunpack.c.h.b16 %v500
        %v1418 = vunpack.c.l.b16 %v501
        %v1419 = vunpack.c.l.b16 %v502
        %v1420 = vunpack.c.h.b16 %v502
        %v1421 = vunpack.c.l.b16 %v503
        %v1422 = vunpack.c.l.b16 %v504
        %v1423 = vunpack.c.h.b16 %v504
        %v1424 = vunpack.c.l.b16 %v505
        %v1425 = vunpack.c.l.b16 %v506
        %v1426 = vunpack.c.h.b16 %v506
        %v1427 = vunpack.c.l.b16 %v507
        %v1428 = vunpack.c.l.b16 %v508
        %v1429 = vunpack.c.h.b16 %v508
        %v1430 = vunpack.c.l.b16 %v509
        %v1431 = vunpack.c.l.b16 %v510
        %v1432 = vunpack.c.h.b16 %v510
        %v1433 = vunpack.c.l.b16 %v511
        %v1434 = vunpack.c.l.b16 %v512
        %v1435 = vunpack.c.h.b16 %v512
        %v1436 = vunpack.c.l.b16 %v513
        %v1437 = vunpack.c.l.b16 %v514
        %v1438 = vunpack.c.h.b16 %v514
        %v1439 = vunpack.c.l.b16 %v515
        %v1440 = vunpack.c.l.b16 %v516
        %v1441 = vunpack.c.h.b16 %v516
        %v1442 = vunpack.c.l.b16 %v517
        %v1443 = vunpack.c.l.b16 %v518
        %v1444 = vunpack.c.h.b16 %v518
        %v1445 = vunpack.c.l.b16 %v519
        %v1446 = vunpack.c.l.b16 %v520
        %v1447 = vunpack.c.h.b16 %v520
        %v1448 = vunpack.c.l.b16 %v521
        %v1449 = vunpack.c.l.b16 %v522
        %v1450 = vunpack.c.h.b16 %v522
        %v1451 = vunpack.c.l.b16 %v523
        %v1452 = vunpack.c.l.b16 %v524
        %v1453 = vunpack.c.h.b16 %v524
        %v1454 = vunpack.c.l.b16 %v525
        %v1455 = vunpack.c.l.b16 %v526
        %v1456 = vunpack.c.h.b16 %v526
        %v1457 = vunpack.c.l.b16 %v527
        %v1458 = vunpack.c.l.b16 %v528
        %v1459 = vunpack.c.h.b16 %v528
        %v1460 = vunpack.c.l.b16 %v529
        %v1461 = vunpack.c.l.b16 %v530
        %v1462 = vunpack.c.h.b16 %v530
        %v1463 = vunpack.c.l.b16 %v531
        %v1464 = vunpack.c.l.b16 %v532
        %v1465 = vunpack.c.h.b16 %v532
        %v1466 = vunpack.c.l.b16 %v533
        %v1467 = vunpack.c.l.b16 %v534
        %v1468 = vunpack.c.h.b16 %v534
        %v1469 = vunpack.c.l.b16 %v535
        %v1470 = vunpack.c.l.b16 %v536
        %v1471 = vunpack.c.h.b16 %v536
        %v1472 = vunpack.c.l.b16 %v537
        %v1473 = vunpack.c.l.b16 %v538
        %v1474 = vunpack.c.h.b16 %v538
        %v1475 = vunpack.c.l.b16 %v539
        %v1476 = vunpack.c.l.b16 %v540
        %v1477 = vunpack.c.h.b16 %v540
        %v1478 = vunpack.c.l.b16 %v541
        %v1479 = vunpack.c.l.b16 %v542
        %v1480 = vunpack.c.h.b16 %v542
        %v1481 = vunpack.c.l.b16 %v543
        %v1482 = vunpack.c.l.b16 %v544
        %v1483 = vunpack.c.h.b16 %v544
        %v1484 = vunpack.c.l.b16 %v545
        %v1485 = vunpack.c.l.b16 %v546
        %v1486 = vunpack.c.h.b16 %v546
        %v1487 = vunpack.c.l.b16 %v547
        %v1488 = vunpack.c.l.b16 %v548
        %v1489 = vunpack.c.h.b16 %v548
        %v1490 = vunpack.c.l.b16 %v549
        %v1491 = vunpack.c.l.b16 %v550
        %v1492 = vunpack.c.h.b16 %v550
        %v1493 = vunpack.c.l.b16 %v551
        %v1494 = vunpack.c.l.b16 %v552
        %v1495 = vunpack.c.h.b16 %v552
        %v1496 = vunpack.c.l.b16 %v553
        %v1497 = vunpack.c.l.b16 %v554
        %v1498 = vunpack.c.h.b16 %v554
        %v1499 = vunpack.c.l.b16 %v555
        %v1500 = vunpack.c.l.b16 %v556
        %v1501 = vunpack.c.h.b16 %v556
        %v1502 = vunpack.c.l.b16 %v557
        %v1503 = vunpack.c.l.b16 %v558
        %v1504 = vunpack.c.h.b16 %v558
        %v1505 = vunpack.c.l.b16 %v559
        %v1506 = vunpack.c.l.b16 %v560
        %v1507 = vunpack.c.h.b16 %v560
        %v1508 = vunpack.c.l.b16 %v561
        %v1509 = vunpack.c.l.b16 %v562
        %v1510 = vunpack.c.h.b16 %v562
        %v1511 = vunpack.c.l.b16 %v563
        %v1512 = vunpack.c.l.b16 %v564
        %v1513 = vunpack.c.h.b16 %v564
        %v1514 = vunpack.c.l.b16 %v565
        %v1515 = vunpack.c.l.b16 %v566
        %v1516 = vunpack.c.h.b16 %v566
        %v1517 = vunpack.c.l.b16 %v567
        %v1518 = vunpack.c.l.b16 %v568
        %v1519 = vunpack.c.h.b16 %v568
        %v1520 = vunpack.c.l.b16 %v569
        %v1521 = vunpack.c.l.b16 %v570
        %v1522 = vunpack.c.h.b16 %v570
        %v1523 = vunpack.c.l.b16 %v571
        %v1524 = vunpack.c.l.b16 %v572
        %v1525 = vunpack.c.h.b16 %v572
        %v1526 = vunpack.c.l.b16 %v573
        %v1527 = vunpack.c.l.b16 %v574
        %v1528 = vunpack.c.h.b16 %v574
        %v1529 = vunpack.c.l.b16 %v575
        %v1530 = vunpack.c.l.b16 %v576
        %v1531 = vunpack.c.h.b16 %v576
        %v1532 = vunpack.c.l.b16 %v577
        %v1533 = vunpack.c.l.b16 %v578
        %v1534 = vunpack.c.h.b16 %v578
        %v1535 = vunpack.c.l.b16 %v579
        %v1536 = vunpack.c.l.b16 %v580
        %v1537 = vunpack.c.h.b16 %v580
        %v1538 = vunpack.c.l.b16 %v581
        %v1539 = vunpack.c.l.b16 %v582
        %v1540 = vunpack.c.h.b16 %v582
        %v1541 = vunpack.c.l.b16 %v583
        %v1542 = vunpack.c.l.b16 %v584
        %v1543 = vunpack.c.h.b16 %v584
        %v1544 = vunpack.c.l.b16 %v585
        %v1545 = vunpack.c.l.b16 %v586
        %v1546 = vunpack.c.h.b16 %v586
        %v1547 = vunpack.c.l.b16 %v587
        %v1548 = vpack.c.b16 %v1119, %v1116
        %v1549 = vpack.c.b16 %v1120, %v1117
        %v1550 = vpack.c.b16 %v1121, %v1118
        %v1551 = vpack.c.b16 %v1125, %v1122
        %v1552 = vpack.c.b16 %v1126, %v1123
        %v1553 = vpack.c.b16 %v1127, %v1124
        %v1554 = vpack.c.b16 %v1131, %v1128
        %v1555 = vpack.c.b16 %v1132, %v1129
        %v1556 = vpack.c.b16 %v1133, %v1130
        %v1557 = vpack.c.b16 %v1137, %v1134
        %v1558 = vpack.c.b16 %v1138, %v1135
        %v1559 = vpack.c.b16 %v1139, %v1136
        %v1560 = vpack.c.b16 %v1143, %v1140
        %v1561 = vpack.c.b16 %v1144, %v1141
        %v1562 = vpack.c.b16 %v1145, %v1142
        %v1563 = vpack.c.b16 %v1149, %v1146
        %v1564 = vpack.c.b16 %v1150, %v1147
        %v1565 = vpack.c.b16 %v1151, %v1148
        %v1566 = vpack.c.b16 %v1155, %v1152
        %v1567 = vpack.c.b16 %v1156, %v1153
        %v1568 = vpack.c.b16 %v1157, %v1154
        %v1569 = vpack.c.b16 %v1161, %v1158
        %v1570 = vpack.c.b16 %v1162, %v1159
        %v1571 = vpack.c.b16 %v1163, %v1160
        %v1572 = vpack.c.b16 %v1167, %v1164
        %v1573 = vpack.c.b16 %v1168, %v1165
        %v1574 = vpack.c.b16 %v1169, %v1166
        %v1575 = vpack.c.b16 %v1173, %v1170
        %v1576 = vpack.c.b16 %v1174, %v1171
        %v1577 = vpack.c.b16 %v1175, %v1172
        %v1578 = vpack.c.b16 %v1179, %v1176
        %v1579 = vpack.c.b16 %v1180, %v1177
        %v1580 = vpack.c.b16 %v1181, %v1178
        %v1581 = vpack.c.b16 %v1185, %v1182
        %v1582 = vpack.c.b16 %v1186, %v1183
        %v1583 = vpack.c.b16 %v1187, %v1184
        %v1584 = vpack.c.b16 %v1191, %v1188
        %v1585 = vpack.c.b16 %v1192, %v1189
        %v1586 = vpack.c.b16 %v1193, %v1190
        %v1587 = vpack.c.b16 %v1197, %v1194
        %v1588 = vpack.c.b16 %v1198, %v1195
        %v1589 = vpack.c.b16 %v1199, %v1196
        %v1590 = vpack.c.b16 %v1203, %v1200
        %v1591 = vpack.c.b16 %v1204, %v1201
        %v1592 = vpack.c.b16 %v1205, %v1202
        %v1593 = vpack.c.b16 %v1209, %v1206
        %v1594 = vpack.c.b16 %v1210, %v1207
        %v1595 = vpack.c.b16 %v1211, %v1208
        %v1596 = vpack.c.b16 %v1215, %v1212
        %v1597 = vpack.c.b16 %v1216, %v1213
        %v1598 = vpack.c.b16 %v1217, %v1214
        %v1599 = vpack.c.b16 %v1221, %v1218
        %v1600 = vpack.c.b16 %v1222, %v1219
        %v1601 = vpack.c.b16 %v1223, %v1220
        %v1602 = vpack.c.b16 %v1227, %v1224
        %v1603 = vpack.c.b16 %v1228, %v1225
        %v1604 = vpack.c.b16 %v1229, %v1226
        %v1605 = vpack.c.b16 %v1233, %v1230
        %v1606 = vpack.c.b16 %v1234, %v1231
        %v1607 = vpack.c.b16 %v1235, %v1232
        %v1608 = vpack.c.b16 %v1239, %v1236
        %v1609 = vpack.c.b16 %v1240, %v1237
        %v1610 = vpack.c.b16 %v1241, %v1238
        %v1611 = vpack.c.b16 %v1245, %v1242
        %v1612 = vpack.c.b16 %v1246, %v1243
        %v1613 = vpack.c.b16 %v1247, %v1244
        %v1614 = vpack.c.b16 %v1251, %v1248
        %v1615 = vpack.c.b16 %v1252, %v1249
        %v1616 = vpack.c.b16 %v1253, %v1250
        %v1617 = vpack.c.b16 %v1257, %v1254
        %v1618 = vpack.c.b16 %v1258, %v1255
        %v1619 = vpack.c.b16 %v1259, %v1256
        %v1620 = vpack.c.b16 %v1263, %v1260
        %v1621 = vpack.c.b16 %v1264, %v1261
        %v1622 = vpack.c.b16 %v1265, %v1262
        %v1623 = vpack.c.b16 %v1269, %v1266
        %v1624 = vpack.c.b16 %v1270, %v1267
        %v1625 = vpack.c.b16 %v1271, %v1268
        %v1626 = vpack.c.b16 %v1275, %v1272
        %v1627 = vpack.c.b16 %v1276, %v1273
        %v1628 = vpack.c.b16 %v1277, %v1274
        %v1629 = vpack.c.b16 %v1281, %v1278
        %v1630 = vpack.c.b16 %v1282, %v1279
        %v1631 = vpack.c.b16 %v1283, %v1280
        %v1632 = vpack.c.b16 %v1287, %v1284
        %v1633 = vpack.c.b16 %v1288, %v1285
        %v1634 = vpack.c.b16 %v1289, %v1286
        %v1635 = vpack.c.b16 %v1293, %v1290
        %v1636 = vpack.c.b16 %v1294, %v1291
        %v1637 = vpack.c.b16 %v1295, %v1292
        %v1638 = vpack.c.b16 %v1299, %v1296
        %v1639 = vpack.c.b16 %v1300, %v1297
        %v1640 = vpack.c.b16 %v1301, %v1298
        %v1641 = vpack.c.b16 %v1305, %v1302
        %v1642 = vpack.c.b16 %v1306, %v1303
        %v1643 = vpack.c.b16 %v1307, %v1304
        %v1644 = vpack.c.b16 %v1311, %v1308
        %v1645 = vpack.c.b16 %v1312, %v1309
        %v1646 = vpack.c.b16 %v1313, %v1310
        %v1647 = vpack.c.b16 %v1317, %v1314
        %v1648 = vpack.c.b16 %v1318, %v1315
        %v1649 = vpack.c.b16 %v1319, %v1316
        %v1650 = vpack.c.b16 %v1323, %v1320
        %v1651 = vpack.c.b16 %v1324, %v1321
        %v1652 = vpack.c.b16 %v1325, %v1322
        %v1653 = vpack.c.b16 %v1329, %v1326
        %v1654 = vpack.c.b16 %v1330, %v1327
        %v1655 = vpack.c.b16 %v1331, %v1328
        %v1656 = vpack.c.b16 %v1335, %v1332
        %v1657 = vpack.c.b16 %v1336, %v1333
        %v1658 = vpack.c.b16 %v1337, %v1334
        %v1659 = vpack.c.b16 %v1341, %v1338
        %v1660 = vpack.c.b16 %v1342, %v1339
        %v1661 = vpack.c.b16 %v1343, %v1340
        %v1662 = vpack.c.b16 %v1347, %v1344
        %v1663 = vpack.c.b16 %v1348, %v1345
        %v1664 = vpack.c.b16 %v1349, %v1346
        %v1665 = vpack.c.b16 %v1353, %v1350
        %v1666 = vpack.c.b16 %v1354, %v1351
        %v1667 = vpack.c.b16 %v1355, %v1352
        %v1668 = vpack.c.b16 %v1359, %v1356
        %v1669 = vpack.c.b16 %v1360, %v1357
        %v1670 = vpack.c.b16 %v1361, %v1358
        %v1671 = vpack.c.b16 %v1365, %v1362
        %v1672 = vpack.c.b16 %v1366, %v1363
        %v1673 = vpack.c.b16 %v1367, %v1364
        %v1674 = vpack.c.b16 %v1371, %v1368
        %v1675 = vpack.c.b16 %v1372, %v1369
        %v1676 = vpack.c.b16 %v1373, %v1370
        %v1677 = vpack.c.b16 %v1377, %v1374
        %v1678 = vpack.c.b16 %v1378, %v1375
        %v1679 = vpack.c.b16 %v1379, %v1376
        %v1680 = vpack.c.b16 %v1383, %v1380
        %v1681 = vpack.c.b16 %v1384, %v1381
        %v1682 = vpack.c.b16 %v1385, %v1382
        %v1683 = vpack.c.b16 %v1389, %v1386
        %v1684 = vpack.c.b16 %v1390, %v1387
        %v1685 = vpack.c.b16 %v1391, %v1388
        %v1686 = vpack.c.b16 %v1395, %v1392
        %v1687 = vpack.c.b16 %v1396, %v1393
        %v1688 = vpack.c.b16 %v1397, %v1394
        %v1689 = vpack.c.b16 %v1401, %v1398
        %v1690 = vpack.c.b16 %v1402, %v1399
        %v1691 = vpack.c.b16 %v1403, %v1400
        %v1692 = vpack.c.b16 %v1407, %v1404
        %v1693 = vpack.c.b16 %v1408, %v1405
        %v1694 = vpack.c.b16 %v1409, %v1406
        %v1695 = vpack.c.b16 %v1413, %v1410
        %v1696 = vpack.c.b16 %v1414, %v1411
        %v1697 = vpack.c.b16 %v1415, %v1412
        %v1698 = vpack.c.b16 %v1419, %v1416
        %v1699 = vpack.c.b16 %v1420, %v1417
        %v1700 = vpack.c.b16 %v1421, %v1418
        %v1701 = vpack.c.b16 %v1425, %v1422
        %v1702 = vpack.c.b16 %v1426, %v1423
        %v1703 = vpack.c.b16 %v1427, %v1424
        %v1704 = vpack.c.b16 %v1431, %v1428
        %v1705 = vpack.c.b16 %v1432, %v1429
        %v1706 = vpack.c.b16 %v1433, %v1430
        %v1707 = vpack.c.b16 %v1437, %v1434
        %v1708 = vpack.c.b16 %v1438, %v1435
        %v1709 = vpack.c.b16 %v1439, %v1436
        %v1710 = vpack.c.b16 %v1443, %v1440
        %v1711 = vpack.c.b16 %v1444, %v1441
        %v1712 = vpack.c.b16 %v1445, %v1442
        %v1713 = vpack.c.b16 %v1449, %v1446
        %v1714 = vpack.c.b16 %v1450, %v1447
        %v1715 = vpack.c.b16 %v1451, %v1448
        %v1716 = vpack.c.b16 %v1455, %v1452
        %v1717 = vpack.c.b16 %v1456, %v1453
        %v1718 = vpack.c.b16 %v1457, %v1454
        %v1719 = vpack.c.b16 %v1461, %v1458
        %v1720 = vpack.c.b16 %v1462, %v1459
        %v1721 = vpack.c.b16 %v1463, %v1460
        %v1722 = vpack.c.b16 %v1467, %v1464
        %v1723 = vpack.c.b16 %v1468, %v1465
        %v1724 = vpack.c.b16 %v1469, %v1466
        %v1725 = vpack.c.b16 %v1473, %v1470
        %v1726 = vpack.c.b16 %v1474, %v1471
        %v1727 = vpack.c.b16 %v1475, %v1472
        %v1728 = vpack.c.b16 %v1479, %v1476
        %v1729 = vpack.c.b16 %v1480, %v1477
        %v1730 = vpack.c.b16 %v1481, %v1478
        %v1731 = vpack.c.b16 %v1485, %v1482
        %v1732 = vpack.c.b16 %v1486, %v1483
        %v1733 = vpack.c.b16 %v1487, %v1484
        %v1734 = vpack.c.b16 %v1491, %v1488
        %v1735 = vpack.c.b16 %v1492, %v1489
        %v1736 = vpack.c.b16 %v1493, %v1490
        %v1737 = vpack.c.b16 %v1497, %v1494
        %v1738 = vpack.c.b16 %v1498, %v1495
        %v1739 = vpack.c.b16 %v1499, %v1496
        %v1740 = vpack.c.b16 %v1503, %v1500
        %v1741 = vpack.c.b16 %v1504, %v1501
        %v1742 = vpack.c.b16 %v1505, %v1502
        %v1743 = vpack.c.b16 %v1509, %v1506
        %v1744 = vpack.c.b16 %v1510, %v1507
        %v1745 = vpack.c.b16 %v1511, %v1508
        %v1746 = vpack.c.b16 %v1515, %v1512
        %v1747 = vpack.c.b16 %v1516, %v1513
        %v1748 = vpack.c.b16 %v1517, %v1514
        %v1749 = vpack.c.b16 %v1521, %v1518
        %v1750 = vpack.c.b16 %v1522, %v1519
        %v1751 = vpack.c.b16 %v1523, %v1520
        %v1752 = vpack.c.b16 %v1527, %v1524
        %v1753 = vpack.c.b16 %v1528, %v1525
        %v1754 = vpack.c.b16 %v1529, %v1526
        %v1755 = vpack.c.b16 %v1533, %v1530
        %v1756 = vpack.c.b16 %v1534, %v1531
        %v1757 = vpack.c.b16 %v1535, %v1532
        %v1758 = vpack.c.b16 %v1539, %v1536
        %v1759 = vpack.c.b16 %v1540, %v1537
        %v1760 = vpack.c.b16 %v1541, %v1538
        %v1761 = vpack.c.b16 %v1545, %v1542
        %v1762 = vpack.c.b16 %v1546, %v1543
        %v1763 = vpack.c.b16 %v1547, %v1544
        %1980 = vmatpush.bf16.xpose.msra.mxu0 %v1569
        %1981 = vmatpush.bf16.xpose.msra.mxu0 %v1566
        %1982 = vmatpush.bf16.xpose.msra.mxu0 %v1563
        %1983 = vmatpush.bf16.xpose.msra.mxu0 %v1560
        %1984 = vmatpush.bf16.xpose.msra.mxu0 %v1557
        %1985 = vmatpush.bf16.xpose.msra.mxu0 %v1554
        %1986 = vmatpush.bf16.xpose.msra.mxu0 %v1551
        %1987 = vmatpush.bf16.xpose.msra.mxu0 %v1548
        %1988 = vmatmul.bf16.gmra.mxu0 %v780
        %v1989 = vpop.f32.mrf.mxu0
        %v1990 = vadd.f32 0.0, %v1989
        %v1991 = vpop.f32.mrf.mxu0
        %v1992 = vadd.f32 0.0, %v1991
        %1993 = vmatmul.bf16.gmra.mxu0 %v783
        %v1994 = vpop.f32.mrf.mxu0
        %v1995 = vadd.f32 0.0, %v1994
        %v1996 = vpop.f32.mrf.mxu0
        %v1997 = vadd.f32 0.0, %v1996
        %1998 = vmatmul.bf16.gmra.mxu0 %v786
        %v1999 = vpop.f32.mrf.mxu0
        %v2000 = vadd.f32 0.0, %v1999
        %v2001 = vpop.f32.mrf.mxu0
        %v2002 = vadd.f32 0.0, %v2001
        %2003 = vmatmul.bf16.gmra.mxu0 %v789
        %v2004 = vpop.f32.mrf.mxu0
        %v2005 = vadd.f32 0.0, %v2004
        %v2006 = vpop.f32.mrf.mxu0
        %v2007 = vadd.f32 0.0, %v2006
        %2008 = vmatmul.bf16.gmra.mxu0 %v792
        %v2009 = vpop.f32.mrf.mxu0
        %v2010 = vadd.f32 0.0, %v2009
        %v2011 = vpop.f32.mrf.mxu0
        %v2012 = vadd.f32 0.0, %v2011
        %2013 = vmatmul.bf16.gmra.mxu0 %v795
        %v2014 = vpop.f32.mrf.mxu0
        %v2015 = vadd.f32 0.0, %v2014
        %v2016 = vpop.f32.mrf.mxu0
        %v2017 = vadd.f32 0.0, %v2016
        %2018 = vmatmul.bf16.gmra.mxu0 %v798
        %v2019 = vpop.f32.mrf.mxu0
        %v2020 = vadd.f32 0.0, %v2019
        %v2021 = vpop.f32.mrf.mxu0
        %v2022 = vadd.f32 0.0, %v2021
        %2023 = vmatmul.bf16.gmra.mxu0 %v801
        %v2024 = vpop.f32.mrf.mxu0
        %v2025 = vadd.f32 0.0, %v2024
        %v2026 = vpop.f32.mrf.mxu0
        %v2027 = vadd.f32 0.0, %v2026
        %2028 = vdwg.mxu0
        %2029 = vmatpush.bf16.xpose.msra.mxu0 %v1570
        %2030 = vmatpush.bf16.xpose.msra.mxu0 %v1567
        %2031 = vmatpush.bf16.xpose.msra.mxu0 %v1564
        %2032 = vmatpush.bf16.xpose.msra.mxu0 %v1561
        %2033 = vmatpush.bf16.xpose.msra.mxu0 %v1558
        %2034 = vmatpush.bf16.xpose.msra.mxu0 %v1555
        %2035 = vmatpush.bf16.xpose.msra.mxu0 %v1552
        %2036 = vmatpush.bf16.xpose.msra.mxu0 %v1549
        %2037 = vmatmul.bf16.gmra.mxu0 %v781
        %v2038 = vpop.f32.mrf.mxu0
        %v2039 = vadd.f32 %v1990, %v2038
        %v2040 = vpop.f32.mrf.mxu0
        %v2041 = vadd.f32 %v1992, %v2040
        %2042 = vmatmul.bf16.gmra.mxu0 %v784
        %v2043 = vpop.f32.mrf.mxu0
        %v2044 = vadd.f32 %v1995, %v2043
        %v2045 = vpop.f32.mrf.mxu0
        %v2046 = vadd.f32 %v1997, %v2045
        %2047 = vmatmul.bf16.gmra.mxu0 %v787
        %v2048 = vpop.f32.mrf.mxu0
        %v2049 = vadd.f32 %v2000, %v2048
        %v2050 = vpop.f32.mrf.mxu0
        %v2051 = vadd.f32 %v2002, %v2050
        %2052 = vmatmul.bf16.gmra.mxu0 %v790
        %v2053 = vpop.f32.mrf.mxu0
        %v2054 = vadd.f32 %v2005, %v2053
        %v2055 = vpop.f32.mrf.mxu0
        %v2056 = vadd.f32 %v2007, %v2055
        %2057 = vmatmul.bf16.gmra.mxu0 %v793
        %v2058 = vpop.f32.mrf.mxu0
        %v2059 = vadd.f32 %v2010, %v2058
        %v2060 = vpop.f32.mrf.mxu0
        %v2061 = vadd.f32 %v2012, %v2060
        %2062 = vmatmul.bf16.gmra.mxu0 %v796
        %v2063 = vpop.f32.mrf.mxu0
        %v2064 = vadd.f32 %v2015, %v2063
        %v2065 = vpop.f32.mrf.mxu0
        %v2066 = vadd.f32 %v2017, %v2065
        %2067 = vmatmul.bf16.gmra.mxu0 %v799
        %v2068 = vpop.f32.mrf.mxu0
        %v2069 = vadd.f32 %v2020, %v2068
        %v2070 = vpop.f32.mrf.mxu0
        %v2071 = vadd.f32 %v2022, %v2070
        %2072 = vmatmul.bf16.gmra.mxu0 %v802
        %v2073 = vpop.f32.mrf.mxu0
        %v2074 = vadd.f32 %v2025, %v2073
        %v2075 = vpop.f32.mrf.mxu0
        %v2076 = vadd.f32 %v2027, %v2075
        %2077 = vdwg.mxu0
        %2078 = vmatpush.bf16.xpose.msra.mxu0 %v1571
        %2079 = vmatpush.bf16.xpose.msra.mxu0 %v1568
        %2080 = vmatpush.bf16.xpose.msra.mxu0 %v1565
        %2081 = vmatpush.bf16.xpose.msra.mxu0 %v1562
        %2082 = vmatpush.bf16.xpose.msra.mxu0 %v1559
        %2083 = vmatpush.bf16.xpose.msra.mxu0 %v1556
        %2084 = vmatpush.bf16.xpose.msra.mxu0 %v1553
        %2085 = vmatpush.bf16.xpose.msra.mxu0 %v1550
        %2086 = vmatmul.bf16.gmra.mxu0 %v782
        %v2087 = vpop.f32.mrf.mxu0
        %v2088 = vadd.f32 %v2039, %v2087
        %v2089 = vpop.f32.mrf.mxu0
        %v2090 = vadd.f32 %v2041, %v2089
        %2091 = vmatmul.bf16.gmra.mxu0 %v785
        %v2092 = vpop.f32.mrf.mxu0
        %v2093 = vadd.f32 %v2044, %v2092
        %v2094 = vpop.f32.mrf.mxu0
        %v2095 = vadd.f32 %v2046, %v2094
        %2096 = vmatmul.bf16.gmra.mxu0 %v788
        %v2097 = vpop.f32.mrf.mxu0
        %v2098 = vadd.f32 %v2049, %v2097
        %v2099 = vpop.f32.mrf.mxu0
        %v2100 = vadd.f32 %v2051, %v2099
        %2101 = vmatmul.bf16.gmra.mxu0 %v791
        %v2102 = vpop.f32.mrf.mxu0
        %v2103 = vadd.f32 %v2054, %v2102
        %v2104 = vpop.f32.mrf.mxu0
        %v2105 = vadd.f32 %v2056, %v2104
        %2106 = vmatmul.bf16.gmra.mxu0 %v794
        %v2107 = vpop.f32.mrf.mxu0
        %v2108 = vadd.f32 %v2059, %v2107
        %v2109 = vpop.f32.mrf.mxu0
        %v2110 = vadd.f32 %v2061, %v2109
        %2111 = vmatmul.bf16.gmra.mxu0 %v797
        %v2112 = vpop.f32.mrf.mxu0
        %v2113 = vadd.f32 %v2064, %v2112
        %v2114 = vpop.f32.mrf.mxu0
        %v2115 = vadd.f32 %v2066, %v2114
        %2116 = vmatmul.bf16.gmra.mxu0 %v800
        %v2117 = vpop.f32.mrf.mxu0
        %v2118 = vadd.f32 %v2069, %v2117
        %v2119 = vpop.f32.mrf.mxu0
        %v2120 = vadd.f32 %v2071, %v2119
        %2121 = vmatmul.bf16.gmra.mxu0 %v803
        %v2122 = vpop.f32.mrf.mxu0
        %v2123 = vadd.f32 %v2074, %v2122
        %v2124 = vpop.f32.mrf.mxu0
        %v2125 = vadd.f32 %v2076, %v2124
        %2126 = vdwg.mxu0
        %2127 = vmatpush.bf16.xpose.msra.mxu0 %v1593
        %2128 = vmatpush.bf16.xpose.msra.mxu0 %v1590
        %2129 = vmatpush.bf16.xpose.msra.mxu0 %v1587
        %2130 = vmatpush.bf16.xpose.msra.mxu0 %v1584
        %2131 = vmatpush.bf16.xpose.msra.mxu0 %v1581
        %2132 = vmatpush.bf16.xpose.msra.mxu0 %v1578
        %2133 = vmatpush.bf16.xpose.msra.mxu0 %v1575
        %2134 = vmatpush.bf16.xpose.msra.mxu0 %v1572
        %2135 = vmatmul.bf16.gmra.mxu0 %v780
        %v2136 = vpop.f32.mrf.mxu0
        %v2137 = vadd.f32 0.0, %v2136
        %v2138 = vpop.f32.mrf.mxu0
        %v2139 = vadd.f32 0.0, %v2138
        %2140 = vmatmul.bf16.gmra.mxu0 %v783
        %v2141 = vpop.f32.mrf.mxu0
        %v2142 = vadd.f32 0.0, %v2141
        %v2143 = vpop.f32.mrf.mxu0
        %v2144 = vadd.f32 0.0, %v2143
        %2145 = vmatmul.bf16.gmra.mxu0 %v786
        %v2146 = vpop.f32.mrf.mxu0
        %v2147 = vadd.f32 0.0, %v2146
        %v2148 = vpop.f32.mrf.mxu0
        %v2149 = vadd.f32 0.0, %v2148
        %2150 = vmatmul.bf16.gmra.mxu0 %v789
        %v2151 = vpop.f32.mrf.mxu0
        %v2152 = vadd.f32 0.0, %v2151
        %v2153 = vpop.f32.mrf.mxu0
        %v2154 = vadd.f32 0.0, %v2153
        %2155 = vmatmul.bf16.gmra.mxu0 %v792
        %v2156 = vpop.f32.mrf.mxu0
        %v2157 = vadd.f32 0.0, %v2156
        %v2158 = vpop.f32.mrf.mxu0
        %v2159 = vadd.f32 0.0, %v2158
        %2160 = vmatmul.bf16.gmra.mxu0 %v795
        %v2161 = vpop.f32.mrf.mxu0
        %v2162 = vadd.f32 0.0, %v2161
        %v2163 = vpop.f32.mrf.mxu0
        %v2164 = vadd.f32 0.0, %v2163
        %2165 = vmatmul.bf16.gmra.mxu0 %v798
        %v2166 = vpop.f32.mrf.mxu0
        %v2167 = vadd.f32 0.0, %v2166
        %v2168 = vpop.f32.mrf.mxu0
        %v2169 = vadd.f32 0.0, %v2168
        %2170 = vmatmul.bf16.gmra.mxu0 %v801
        %v2171 = vpop.f32.mrf.mxu0
        %v2172 = vadd.f32 0.0, %v2171
        %v2173 = vpop.f32.mrf.mxu0
        %v2174 = vadd.f32 0.0, %v2173
        %2175 = vdwg.mxu0
        %2176 = vmatpush.bf16.xpose.msra.mxu0 %v1594
        %2177 = vmatpush.bf16.xpose.msra.mxu0 %v1591
        %2178 = vmatpush.bf16.xpose.msra.mxu0 %v1588
        %2179 = vmatpush.bf16.xpose.msra.mxu0 %v1585
        %2180 = vmatpush.bf16.xpose.msra.mxu0 %v1582
        %2181 = vmatpush.bf16.xpose.msra.mxu0 %v1579
        %2182 = vmatpush.bf16.xpose.msra.mxu0 %v1576
        %2183 = vmatpush.bf16.xpose.msra.mxu0 %v1573
        %2184 = vmatmul.bf16.gmra.mxu0 %v781
        %v2185 = vpop.f32.mrf.mxu0
        %v2186 = vadd.f32 %v2137, %v2185
        %v2187 = vpop.f32.mrf.mxu0
        %v2188 = vadd.f32 %v2139, %v2187
        %2189 = vmatmul.bf16.gmra.mxu0 %v784
        %v2190 = vpop.f32.mrf.mxu0
        %v2191 = vadd.f32 %v2142, %v2190
        %v2192 = vpop.f32.mrf.mxu0
        %v2193 = vadd.f32 %v2144, %v2192
        %2194 = vmatmul.bf16.gmra.mxu0 %v787
        %v2195 = vpop.f32.mrf.mxu0
        %v2196 = vadd.f32 %v2147, %v2195
        %v2197 = vpop.f32.mrf.mxu0
        %v2198 = vadd.f32 %v2149, %v2197
        %2199 = vmatmul.bf16.gmra.mxu0 %v790
        %v2200 = vpop.f32.mrf.mxu0
        %v2201 = vadd.f32 %v2152, %v2200
        %v2202 = vpop.f32.mrf.mxu0
        %v2203 = vadd.f32 %v2154, %v2202
        %2204 = vmatmul.bf16.gmra.mxu0 %v793
        %v2205 = vpop.f32.mrf.mxu0
        %v2206 = vadd.f32 %v2157, %v2205
        %v2207 = vpop.f32.mrf.mxu0
        %v2208 = vadd.f32 %v2159, %v2207
        %2209 = vmatmul.bf16.gmra.mxu0 %v796
        %v2210 = vpop.f32.mrf.mxu0
        %v2211 = vadd.f32 %v2162, %v2210
        %v2212 = vpop.f32.mrf.mxu0
        %v2213 = vadd.f32 %v2164, %v2212
        %2214 = vmatmul.bf16.gmra.mxu0 %v799
        %v2215 = vpop.f32.mrf.mxu0
        %v2216 = vadd.f32 %v2167, %v2215
        %v2217 = vpop.f32.mrf.mxu0
        %v2218 = vadd.f32 %v2169, %v2217
        %2219 = vmatmul.bf16.gmra.mxu0 %v802
        %v2220 = vpop.f32.mrf.mxu0
        %v2221 = vadd.f32 %v2172, %v2220
        %v2222 = vpop.f32.mrf.mxu0
        %v2223 = vadd.f32 %v2174, %v2222
        %2224 = vdwg.mxu0
        %2225 = vmatpush.bf16.xpose.msra.mxu0 %v1595
        %2226 = vmatpush.bf16.xpose.msra.mxu0 %v1592
        %2227 = vmatpush.bf16.xpose.msra.mxu0 %v1589
        %2228 = vmatpush.bf16.xpose.msra.mxu0 %v1586
        %2229 = vmatpush.bf16.xpose.msra.mxu0 %v1583
        %2230 = vmatpush.bf16.xpose.msra.mxu0 %v1580
        %2231 = vmatpush.bf16.xpose.msra.mxu0 %v1577
        %2232 = vmatpush.bf16.xpose.msra.mxu0 %v1574
        %2233 = vmatmul.bf16.gmra.mxu0 %v782
        %v2234 = vpop.f32.mrf.mxu0
        %v2235 = vadd.f32 %v2186, %v2234
        %v2236 = vpop.f32.mrf.mxu0
        %v2237 = vadd.f32 %v2188, %v2236
        %2238 = vmatmul.bf16.gmra.mxu0 %v785
        %v2239 = vpop.f32.mrf.mxu0
        %v2240 = vadd.f32 %v2191, %v2239
        %v2241 = vpop.f32.mrf.mxu0
        %v2242 = vadd.f32 %v2193, %v2241
        %2243 = vmatmul.bf16.gmra.mxu0 %v788
        %v2244 = vpop.f32.mrf.mxu0
        %v2245 = vadd.f32 %v2196, %v2244
        %v2246 = vpop.f32.mrf.mxu0
        %v2247 = vadd.f32 %v2198, %v2246
        %2248 = vmatmul.bf16.gmra.mxu0 %v791
        %v2249 = vpop.f32.mrf.mxu0
        %v2250 = vadd.f32 %v2201, %v2249
        %v2251 = vpop.f32.mrf.mxu0
        %v2252 = vadd.f32 %v2203, %v2251
        %2253 = vmatmul.bf16.gmra.mxu0 %v794
        %v2254 = vpop.f32.mrf.mxu0
        %v2255 = vadd.f32 %v2206, %v2254
        %v2256 = vpop.f32.mrf.mxu0
        %v2257 = vadd.f32 %v2208, %v2256
        %2258 = vmatmul.bf16.gmra.mxu0 %v797
        %v2259 = vpop.f32.mrf.mxu0
        %v2260 = vadd.f32 %v2211, %v2259
        %v2261 = vpop.f32.mrf.mxu0
        %v2262 = vadd.f32 %v2213, %v2261
        %2263 = vmatmul.bf16.gmra.mxu0 %v800
        %v2264 = vpop.f32.mrf.mxu0
        %v2265 = vadd.f32 %v2216, %v2264
        %v2266 = vpop.f32.mrf.mxu0
        %v2267 = vadd.f32 %v2218, %v2266
        %2268 = vmatmul.bf16.gmra.mxu0 %v803
        %v2269 = vpop.f32.mrf.mxu0
        %v2270 = vadd.f32 %v2221, %v2269
        %v2271 = vpop.f32.mrf.mxu0
        %v2272 = vadd.f32 %v2223, %v2271
        %2273 = vdwg.mxu0
        %2274 = vmatpush.bf16.xpose.msra.mxu0 %v1617
        %2275 = vmatpush.bf16.xpose.msra.mxu0 %v1614
        %2276 = vmatpush.bf16.xpose.msra.mxu0 %v1611
        %2277 = vmatpush.bf16.xpose.msra.mxu0 %v1608
        %2278 = vmatpush.bf16.xpose.msra.mxu0 %v1605
        %2279 = vmatpush.bf16.xpose.msra.mxu0 %v1602
        %2280 = vmatpush.bf16.xpose.msra.mxu0 %v1599
        %2281 = vmatpush.bf16.xpose.msra.mxu0 %v1596
        %2282 = vmatmul.bf16.gmra.mxu0 %v780
        %v2283 = vpop.f32.mrf.mxu0
        %v2284 = vadd.f32 0.0, %v2283
        %v2285 = vpop.f32.mrf.mxu0
        %v2286 = vadd.f32 0.0, %v2285
        %2287 = vmatmul.bf16.gmra.mxu0 %v783
        %v2288 = vpop.f32.mrf.mxu0
        %v2289 = vadd.f32 0.0, %v2288
        %v2290 = vpop.f32.mrf.mxu0
        %v2291 = vadd.f32 0.0, %v2290
        %2292 = vmatmul.bf16.gmra.mxu0 %v786
        %v2293 = vpop.f32.mrf.mxu0
        %v2294 = vadd.f32 0.0, %v2293
        %v2295 = vpop.f32.mrf.mxu0
        %v2296 = vadd.f32 0.0, %v2295
        %2297 = vmatmul.bf16.gmra.mxu0 %v789
        %v2298 = vpop.f32.mrf.mxu0
        %v2299 = vadd.f32 0.0, %v2298
        %v2300 = vpop.f32.mrf.mxu0
        %v2301 = vadd.f32 0.0, %v2300
        %2302 = vmatmul.bf16.gmra.mxu0 %v792
        %v2303 = vpop.f32.mrf.mxu0
        %v2304 = vadd.f32 0.0, %v2303
        %v2305 = vpop.f32.mrf.mxu0
        %v2306 = vadd.f32 0.0, %v2305
        %2307 = vmatmul.bf16.gmra.mxu0 %v795
        %v2308 = vpop.f32.mrf.mxu0
        %v2309 = vadd.f32 0.0, %v2308
        %v2310 = vpop.f32.mrf.mxu0
        %v2311 = vadd.f32 0.0, %v2310
        %2312 = vmatmul.bf16.gmra.mxu0 %v798
        %v2313 = vpop.f32.mrf.mxu0
        %v2314 = vadd.f32 0.0, %v2313
        %v2315 = vpop.f32.mrf.mxu0
        %v2316 = vadd.f32 0.0, %v2315
        %2317 = vmatmul.bf16.gmra.mxu0 %v801
        %v2318 = vpop.f32.mrf.mxu0
        %v2319 = vadd.f32 0.0, %v2318
        %v2320 = vpop.f32.mrf.mxu0
        %v2321 = vadd.f32 0.0, %v2320
        %2322 = vdwg.mxu0
        %2323 = vmatpush.bf16.xpose.msra.mxu0 %v1618
        %2324 = vmatpush.bf16.xpose.msra.mxu0 %v1615
        %2325 = vmatpush.bf16.xpose.msra.mxu0 %v1612
        %2326 = vmatpush.bf16.xpose.msra.mxu0 %v1609
        %2327 = vmatpush.bf16.xpose.msra.mxu0 %v1606
        %2328 = vmatpush.bf16.xpose.msra.mxu0 %v1603
        %2329 = vmatpush.bf16.xpose.msra.mxu0 %v1600
        %2330 = vmatpush.bf16.xpose.msra.mxu0 %v1597
        %2331 = vmatmul.bf16.gmra.mxu0 %v781
        %v2332 = vpop.f32.mrf.mxu0
        %v2333 = vadd.f32 %v2284, %v2332
        %v2334 = vpop.f32.mrf.mxu0
        %v2335 = vadd.f32 %v2286, %v2334
        %2336 = vmatmul.bf16.gmra.mxu0 %v784
        %v2337 = vpop.f32.mrf.mxu0
        %v2338 = vadd.f32 %v2289, %v2337
        %v2339 = vpop.f32.mrf.mxu0
        %v2340 = vadd.f32 %v2291, %v2339
        %2341 = vmatmul.bf16.gmra.mxu0 %v787
        %v2342 = vpop.f32.mrf.mxu0
        %v2343 = vadd.f32 %v2294, %v2342
        %v2344 = vpop.f32.mrf.mxu0
        %v2345 = vadd.f32 %v2296, %v2344
        %2346 = vmatmul.bf16.gmra.mxu0 %v790
        %v2347 = vpop.f32.mrf.mxu0
        %v2348 = vadd.f32 %v2299, %v2347
        %v2349 = vpop.f32.mrf.mxu0
        %v2350 = vadd.f32 %v2301, %v2349
        %2351 = vmatmul.bf16.gmra.mxu0 %v793
        %v2352 = vpop.f32.mrf.mxu0
        %v2353 = vadd.f32 %v2304, %v2352
        %v2354 = vpop.f32.mrf.mxu0
        %v2355 = vadd.f32 %v2306, %v2354
        %2356 = vmatmul.bf16.gmra.mxu0 %v796
        %v2357 = vpop.f32.mrf.mxu0
        %v2358 = vadd.f32 %v2309, %v2357
        %v2359 = vpop.f32.mrf.mxu0
        %v2360 = vadd.f32 %v2311, %v2359
        %2361 = vmatmul.bf16.gmra.mxu0 %v799
        %v2362 = vpop.f32.mrf.mxu0
        %v2363 = vadd.f32 %v2314, %v2362
        %v2364 = vpop.f32.mrf.mxu0
        %v2365 = vadd.f32 %v2316, %v2364
        %2366 = vmatmul.bf16.gmra.mxu0 %v802
        %v2367 = vpop.f32.mrf.mxu0
        %v2368 = vadd.f32 %v2319, %v2367
        %v2369 = vpop.f32.mrf.mxu0
        %v2370 = vadd.f32 %v2321, %v2369
        %2371 = vdwg.mxu0
        %2372 = vmatpush.bf16.xpose.msra.mxu0 %v1619
        %2373 = vmatpush.bf16.xpose.msra.mxu0 %v1616
        %2374 = vmatpush.bf16.xpose.msra.mxu0 %v1613
        %2375 = vmatpush.bf16.xpose.msra.mxu0 %v1610
        %2376 = vmatpush.bf16.xpose.msra.mxu0 %v1607
        %2377 = vmatpush.bf16.xpose.msra.mxu0 %v1604
        %2378 = vmatpush.bf16.xpose.msra.mxu0 %v1601
        %2379 = vmatpush.bf16.xpose.msra.mxu0 %v1598
        %2380 = vmatmul.bf16.gmra.mxu0 %v782
        %v2381 = vpop.f32.mrf.mxu0
        %v2382 = vadd.f32 %v2333, %v2381
        %v2383 = vpop.f32.mrf.mxu0
        %v2384 = vadd.f32 %v2335, %v2383
        %2385 = vmatmul.bf16.gmra.mxu0 %v785
        %v2386 = vpop.f32.mrf.mxu0
        %v2387 = vadd.f32 %v2338, %v2386
        %v2388 = vpop.f32.mrf.mxu0
        %v2389 = vadd.f32 %v2340, %v2388
        %2390 = vmatmul.bf16.gmra.mxu0 %v788
        %v2391 = vpop.f32.mrf.mxu0
        %v2392 = vadd.f32 %v2343, %v2391
        %v2393 = vpop.f32.mrf.mxu0
        %v2394 = vadd.f32 %v2345, %v2393
        %2395 = vmatmul.bf16.gmra.mxu0 %v791
        %v2396 = vpop.f32.mrf.mxu0
        %v2397 = vadd.f32 %v2348, %v2396
        %v2398 = vpop.f32.mrf.mxu0
        %v2399 = vadd.f32 %v2350, %v2398
        %2400 = vmatmul.bf16.gmra.mxu0 %v794
        %v2401 = vpop.f32.mrf.mxu0
        %v2402 = vadd.f32 %v2353, %v2401
        %v2403 = vpop.f32.mrf.mxu0
        %v2404 = vadd.f32 %v2355, %v2403
        %2405 = vmatmul.bf16.gmra.mxu0 %v797
        %v2406 = vpop.f32.mrf.mxu0
        %v2407 = vadd.f32 %v2358, %v2406
        %v2408 = vpop.f32.mrf.mxu0
        %v2409 = vadd.f32 %v2360, %v2408
        %2410 = vmatmul.bf16.gmra.mxu0 %v800
        %v2411 = vpop.f32.mrf.mxu0
        %v2412 = vadd.f32 %v2363, %v2411
        %v2413 = vpop.f32.mrf.mxu0
        %v2414 = vadd.f32 %v2365, %v2413
        %2415 = vmatmul.bf16.gmra.mxu0 %v803
        %v2416 = vpop.f32.mrf.mxu0
        %v2417 = vadd.f32 %v2368, %v2416
        %v2418 = vpop.f32.mrf.mxu0
        %v2419 = vadd.f32 %v2370, %v2418
        %2420 = vdwg.mxu0
        %2421 = vmatpush.bf16.xpose.msra.mxu0 %v1641
        %2422 = vmatpush.bf16.xpose.msra.mxu0 %v1638
        %2423 = vmatpush.bf16.xpose.msra.mxu0 %v1635
        %2424 = vmatpush.bf16.xpose.msra.mxu0 %v1632
        %2425 = vmatpush.bf16.xpose.msra.mxu0 %v1629
        %2426 = vmatpush.bf16.xpose.msra.mxu0 %v1626
        %2427 = vmatpush.bf16.xpose.msra.mxu0 %v1623
        %2428 = vmatpush.bf16.xpose.msra.mxu0 %v1620
        %2429 = vmatmul.bf16.gmra.mxu0 %v780
        %v2430 = vpop.f32.mrf.mxu0
        %v2431 = vadd.f32 0.0, %v2430
        %v2432 = vpop.f32.mrf.mxu0
        %v2433 = vadd.f32 0.0, %v2432
        %2434 = vmatmul.bf16.gmra.mxu0 %v783
        %v2435 = vpop.f32.mrf.mxu0
        %v2436 = vadd.f32 0.0, %v2435
        %v2437 = vpop.f32.mrf.mxu0
        %v2438 = vadd.f32 0.0, %v2437
        %2439 = vmatmul.bf16.gmra.mxu0 %v786
        %v2440 = vpop.f32.mrf.mxu0
        %v2441 = vadd.f32 0.0, %v2440
        %v2442 = vpop.f32.mrf.mxu0
        %v2443 = vadd.f32 0.0, %v2442
        %2444 = vmatmul.bf16.gmra.mxu0 %v789
        %v2445 = vpop.f32.mrf.mxu0
        %v2446 = vadd.f32 0.0, %v2445
        %v2447 = vpop.f32.mrf.mxu0
        %v2448 = vadd.f32 0.0, %v2447
        %2449 = vmatmul.bf16.gmra.mxu0 %v792
        %v2450 = vpop.f32.mrf.mxu0
        %v2451 = vadd.f32 0.0, %v2450
        %v2452 = vpop.f32.mrf.mxu0
        %v2453 = vadd.f32 0.0, %v2452
        %2454 = vmatmul.bf16.gmra.mxu0 %v795
        %v2455 = vpop.f32.mrf.mxu0
        %v2456 = vadd.f32 0.0, %v2455
        %v2457 = vpop.f32.mrf.mxu0
        %v2458 = vadd.f32 0.0, %v2457
        %2459 = vmatmul.bf16.gmra.mxu0 %v798
        %v2460 = vpop.f32.mrf.mxu0
        %v2461 = vadd.f32 0.0, %v2460
        %v2462 = vpop.f32.mrf.mxu0
        %v2463 = vadd.f32 0.0, %v2462
        %2464 = vmatmul.bf16.gmra.mxu0 %v801
        %v2465 = vpop.f32.mrf.mxu0
        %v2466 = vadd.f32 0.0, %v2465
        %v2467 = vpop.f32.mrf.mxu0
        %v2468 = vadd.f32 0.0, %v2467
        %2469 = vdwg.mxu0
        %2470 = vmatpush.bf16.xpose.msra.mxu0 %v1642
        %2471 = vmatpush.bf16.xpose.msra.mxu0 %v1639
        %2472 = vmatpush.bf16.xpose.msra.mxu0 %v1636
        %2473 = vmatpush.bf16.xpose.msra.mxu0 %v1633
        %2474 = vmatpush.bf16.xpose.msra.mxu0 %v1630
        %2475 = vmatpush.bf16.xpose.msra.mxu0 %v1627
        %2476 = vmatpush.bf16.xpose.msra.mxu0 %v1624
        %2477 = vmatpush.bf16.xpose.msra.mxu0 %v1621
        %2478 = vmatmul.bf16.gmra.mxu0 %v781
        %v2479 = vpop.f32.mrf.mxu0
        %v2480 = vadd.f32 %v2431, %v2479
        %v2481 = vpop.f32.mrf.mxu0
        %v2482 = vadd.f32 %v2433, %v2481
        %2483 = vmatmul.bf16.gmra.mxu0 %v784
        %v2484 = vpop.f32.mrf.mxu0
        %v2485 = vadd.f32 %v2436, %v2484
        %v2486 = vpop.f32.mrf.mxu0
        %v2487 = vadd.f32 %v2438, %v2486
        %2488 = vmatmul.bf16.gmra.mxu0 %v787
        %v2489 = vpop.f32.mrf.mxu0
        %v2490 = vadd.f32 %v2441, %v2489
        %v2491 = vpop.f32.mrf.mxu0
        %v2492 = vadd.f32 %v2443, %v2491
        %2493 = vmatmul.bf16.gmra.mxu0 %v790
        %v2494 = vpop.f32.mrf.mxu0
        %v2495 = vadd.f32 %v2446, %v2494
        %v2496 = vpop.f32.mrf.mxu0
        %v2497 = vadd.f32 %v2448, %v2496
        %2498 = vmatmul.bf16.gmra.mxu0 %v793
        %v2499 = vpop.f32.mrf.mxu0
        %v2500 = vadd.f32 %v2451, %v2499
        %v2501 = vpop.f32.mrf.mxu0
        %v2502 = vadd.f32 %v2453, %v2501
        %2503 = vmatmul.bf16.gmra.mxu0 %v796
        %v2504 = vpop.f32.mrf.mxu0
        %v2505 = vadd.f32 %v2456, %v2504
        %v2506 = vpop.f32.mrf.mxu0
        %v2507 = vadd.f32 %v2458, %v2506
        %2508 = vmatmul.bf16.gmra.mxu0 %v799
        %v2509 = vpop.f32.mrf.mxu0
        %v2510 = vadd.f32 %v2461, %v2509
        %v2511 = vpop.f32.mrf.mxu0
        %v2512 = vadd.f32 %v2463, %v2511
        %2513 = vmatmul.bf16.gmra.mxu0 %v802
        %v2514 = vpop.f32.mrf.mxu0
        %v2515 = vadd.f32 %v2466, %v2514
        %v2516 = vpop.f32.mrf.mxu0
        %v2517 = vadd.f32 %v2468, %v2516
        %2518 = vdwg.mxu0
        %2519 = vmatpush.bf16.xpose.msra.mxu0 %v1643
        %2520 = vmatpush.bf16.xpose.msra.mxu0 %v1640
        %2521 = vmatpush.bf16.xpose.msra.mxu0 %v1637
        %2522 = vmatpush.bf16.xpose.msra.mxu0 %v1634
        %2523 = vmatpush.bf16.xpose.msra.mxu0 %v1631
        %2524 = vmatpush.bf16.xpose.msra.mxu0 %v1628
        %2525 = vmatpush.bf16.xpose.msra.mxu0 %v1625
        %2526 = vmatpush.bf16.xpose.msra.mxu0 %v1622
        %2527 = vmatmul.bf16.gmra.mxu0 %v782
        %v2528 = vpop.f32.mrf.mxu0
        %v2529 = vadd.f32 %v2480, %v2528
        %v2530 = vpop.f32.mrf.mxu0
        %v2531 = vadd.f32 %v2482, %v2530
        %2532 = vmatmul.bf16.gmra.mxu0 %v785
        %v2533 = vpop.f32.mrf.mxu0
        %v2534 = vadd.f32 %v2485, %v2533
        %v2535 = vpop.f32.mrf.mxu0
        %v2536 = vadd.f32 %v2487, %v2535
        %2537 = vmatmul.bf16.gmra.mxu0 %v788
        %v2538 = vpop.f32.mrf.mxu0
        %v2539 = vadd.f32 %v2490, %v2538
        %v2540 = vpop.f32.mrf.mxu0
        %v2541 = vadd.f32 %v2492, %v2540
        %2542 = vmatmul.bf16.gmra.mxu0 %v791
        %v2543 = vpop.f32.mrf.mxu0
        %v2544 = vadd.f32 %v2495, %v2543
        %v2545 = vpop.f32.mrf.mxu0
        %v2546 = vadd.f32 %v2497, %v2545
        %2547 = vmatmul.bf16.gmra.mxu0 %v794
        %v2548 = vpop.f32.mrf.mxu0
        %v2549 = vadd.f32 %v2500, %v2548
        %v2550 = vpop.f32.mrf.mxu0
        %v2551 = vadd.f32 %v2502, %v2550
        %2552 = vmatmul.bf16.gmra.mxu0 %v797
        %v2553 = vpop.f32.mrf.mxu0
        %v2554 = vadd.f32 %v2505, %v2553
        %v2555 = vpop.f32.mrf.mxu0
        %v2556 = vadd.f32 %v2507, %v2555
        %2557 = vmatmul.bf16.gmra.mxu0 %v800
        %v2558 = vpop.f32.mrf.mxu0
        %v2559 = vadd.f32 %v2510, %v2558
        %v2560 = vpop.f32.mrf.mxu0
        %v2561 = vadd.f32 %v2512, %v2560
        %2562 = vmatmul.bf16.gmra.mxu0 %v803
        %v2563 = vpop.f32.mrf.mxu0
        %v2564 = vadd.f32 %v2515, %v2563
        %v2565 = vpop.f32.mrf.mxu0
        %v2566 = vadd.f32 %v2517, %v2565
        %2567 = vdwg.mxu0
        %2568 = vmatpush.bf16.xpose.msra.mxu0 %v1665
        %2569 = vmatpush.bf16.xpose.msra.mxu0 %v1662
        %2570 = vmatpush.bf16.xpose.msra.mxu0 %v1659
        %2571 = vmatpush.bf16.xpose.msra.mxu0 %v1656
        %2572 = vmatpush.bf16.xpose.msra.mxu0 %v1653
        %2573 = vmatpush.bf16.xpose.msra.mxu0 %v1650
        %2574 = vmatpush.bf16.xpose.msra.mxu0 %v1647
        %2575 = vmatpush.bf16.xpose.msra.mxu0 %v1644
        %2576 = vmatmul.bf16.gmra.mxu0 %v780
        %v2577 = vpop.f32.mrf.mxu0
        %v2578 = vadd.f32 0.0, %v2577
        %v2579 = vpop.f32.mrf.mxu0
        %v2580 = vadd.f32 0.0, %v2579
        %2581 = vmatmul.bf16.gmra.mxu0 %v783
        %v2582 = vpop.f32.mrf.mxu0
        %v2583 = vadd.f32 0.0, %v2582
        %v2584 = vpop.f32.mrf.mxu0
        %v2585 = vadd.f32 0.0, %v2584
        %2586 = vmatmul.bf16.gmra.mxu0 %v786
        %v2587 = vpop.f32.mrf.mxu0
        %v2588 = vadd.f32 0.0, %v2587
        %v2589 = vpop.f32.mrf.mxu0
        %v2590 = vadd.f32 0.0, %v2589
        %2591 = vmatmul.bf16.gmra.mxu0 %v789
        %v2592 = vpop.f32.mrf.mxu0
        %v2593 = vadd.f32 0.0, %v2592
        %v2594 = vpop.f32.mrf.mxu0
        %v2595 = vadd.f32 0.0, %v2594
        %2596 = vmatmul.bf16.gmra.mxu0 %v792
        %v2597 = vpop.f32.mrf.mxu0
        %v2598 = vadd.f32 0.0, %v2597
        %v2599 = vpop.f32.mrf.mxu0
        %v2600 = vadd.f32 0.0, %v2599
        %2601 = vmatmul.bf16.gmra.mxu0 %v795
        %v2602 = vpop.f32.mrf.mxu0
        %v2603 = vadd.f32 0.0, %v2602
        %v2604 = vpop.f32.mrf.mxu0
        %v2605 = vadd.f32 0.0, %v2604
        %2606 = vmatmul.bf16.gmra.mxu0 %v798
        %v2607 = vpop.f32.mrf.mxu0
        %v2608 = vadd.f32 0.0, %v2607
        %v2609 = vpop.f32.mrf.mxu0
        %v2610 = vadd.f32 0.0, %v2609
        %2611 = vmatmul.bf16.gmra.mxu0 %v801
        %v2612 = vpop.f32.mrf.mxu0
        %v2613 = vadd.f32 0.0, %v2612
        %v2614 = vpop.f32.mrf.mxu0
        %v2615 = vadd.f32 0.0, %v2614
        %2616 = vdwg.mxu0
        %2617 = vmatpush.bf16.xpose.msra.mxu0 %v1666
        %2618 = vmatpush.bf16.xpose.msra.mxu0 %v1663
        %2619 = vmatpush.bf16.xpose.msra.mxu0 %v1660
        %2620 = vmatpush.bf16.xpose.msra.mxu0 %v1657
        %2621 = vmatpush.bf16.xpose.msra.mxu0 %v1654
        %2622 = vmatpush.bf16.xpose.msra.mxu0 %v1651
        %2623 = vmatpush.bf16.xpose.msra.mxu0 %v1648
        %2624 = vmatpush.bf16.xpose.msra.mxu0 %v1645
        %2625 = vmatmul.bf16.gmra.mxu0 %v781
        %v2626 = vpop.f32.mrf.mxu0
        %v2627 = vadd.f32 %v2578, %v2626
        %v2628 = vpop.f32.mrf.mxu0
        %v2629 = vadd.f32 %v2580, %v2628
        %2630 = vmatmul.bf16.gmra.mxu0 %v784
        %v2631 = vpop.f32.mrf.mxu0
        %v2632 = vadd.f32 %v2583, %v2631
        %v2633 = vpop.f32.mrf.mxu0
        %v2634 = vadd.f32 %v2585, %v2633
        %2635 = vmatmul.bf16.gmra.mxu0 %v787
        %v2636 = vpop.f32.mrf.mxu0
        %v2637 = vadd.f32 %v2588, %v2636
        %v2638 = vpop.f32.mrf.mxu0
        %v2639 = vadd.f32 %v2590, %v2638
        %2640 = vmatmul.bf16.gmra.mxu0 %v790
        %v2641 = vpop.f32.mrf.mxu0
        %v2642 = vadd.f32 %v2593, %v2641
        %v2643 = vpop.f32.mrf.mxu0
        %v2644 = vadd.f32 %v2595, %v2643
        %2645 = vmatmul.bf16.gmra.mxu0 %v793
        %v2646 = vpop.f32.mrf.mxu0
        %v2647 = vadd.f32 %v2598, %v2646
        %v2648 = vpop.f32.mrf.mxu0
        %v2649 = vadd.f32 %v2600, %v2648
        %2650 = vmatmul.bf16.gmra.mxu0 %v796
        %v2651 = vpop.f32.mrf.mxu0
        %v2652 = vadd.f32 %v2603, %v2651
        %v2653 = vpop.f32.mrf.mxu0
        %v2654 = vadd.f32 %v2605, %v2653
        %2655 = vmatmul.bf16.gmra.mxu0 %v799
        %v2656 = vpop.f32.mrf.mxu0
        %v2657 = vadd.f32 %v2608, %v2656
        %v2658 = vpop.f32.mrf.mxu0
        %v2659 = vadd.f32 %v2610, %v2658
        %2660 = vmatmul.bf16.gmra.mxu0 %v802
        %v2661 = vpop.f32.mrf.mxu0
        %v2662 = vadd.f32 %v2613, %v2661
        %v2663 = vpop.f32.mrf.mxu0
        %v2664 = vadd.f32 %v2615, %v2663
        %2665 = vdwg.mxu0
        %2666 = vmatpush.bf16.xpose.msra.mxu0 %v1667
        %2667 = vmatpush.bf16.xpose.msra.mxu0 %v1664
        %2668 = vmatpush.bf16.xpose.msra.mxu0 %v1661
        %2669 = vmatpush.bf16.xpose.msra.mxu0 %v1658
        %2670 = vmatpush.bf16.xpose.msra.mxu0 %v1655
        %2671 = vmatpush.bf16.xpose.msra.mxu0 %v1652
        %2672 = vmatpush.bf16.xpose.msra.mxu0 %v1649
        %2673 = vmatpush.bf16.xpose.msra.mxu0 %v1646
        %2674 = vmatmul.bf16.gmra.mxu0 %v782
        %v2675 = vpop.f32.mrf.mxu0
        %v2676 = vadd.f32 %v2627, %v2675
        %v2677 = vpop.f32.mrf.mxu0
        %v2678 = vadd.f32 %v2629, %v2677
        %2679 = vmatmul.bf16.gmra.mxu0 %v785
        %v2680 = vpop.f32.mrf.mxu0
        %v2681 = vadd.f32 %v2632, %v2680
        %v2682 = vpop.f32.mrf.mxu0
        %v2683 = vadd.f32 %v2634, %v2682
        %2684 = vmatmul.bf16.gmra.mxu0 %v788
        %v2685 = vpop.f32.mrf.mxu0
        %v2686 = vadd.f32 %v2637, %v2685
        %v2687 = vpop.f32.mrf.mxu0
        %v2688 = vadd.f32 %v2639, %v2687
        %2689 = vmatmul.bf16.gmra.mxu0 %v791
        %v2690 = vpop.f32.mrf.mxu0
        %v2691 = vadd.f32 %v2642, %v2690
        %v2692 = vpop.f32.mrf.mxu0
        %v2693 = vadd.f32 %v2644, %v2692
        %2694 = vmatmul.bf16.gmra.mxu0 %v794
        %v2695 = vpop.f32.mrf.mxu0
        %v2696 = vadd.f32 %v2647, %v2695
        %v2697 = vpop.f32.mrf.mxu0
        %v2698 = vadd.f32 %v2649, %v2697
        %2699 = vmatmul.bf16.gmra.mxu0 %v797
        %v2700 = vpop.f32.mrf.mxu0
        %v2701 = vadd.f32 %v2652, %v2700
        %v2702 = vpop.f32.mrf.mxu0
        %v2703 = vadd.f32 %v2654, %v2702
        %2704 = vmatmul.bf16.gmra.mxu0 %v800
        %v2705 = vpop.f32.mrf.mxu0
        %v2706 = vadd.f32 %v2657, %v2705
        %v2707 = vpop.f32.mrf.mxu0
        %v2708 = vadd.f32 %v2659, %v2707
        %2709 = vmatmul.bf16.gmra.mxu0 %v803
        %v2710 = vpop.f32.mrf.mxu0
        %v2711 = vadd.f32 %v2662, %v2710
        %v2712 = vpop.f32.mrf.mxu0
        %v2713 = vadd.f32 %v2664, %v2712
        %2714 = vdwg.mxu0
        %2715 = vmatpush.bf16.xpose.msra.mxu0 %v1689
        %2716 = vmatpush.bf16.xpose.msra.mxu0 %v1686
        %2717 = vmatpush.bf16.xpose.msra.mxu0 %v1683
        %2718 = vmatpush.bf16.xpose.msra.mxu0 %v1680
        %2719 = vmatpush.bf16.xpose.msra.mxu0 %v1677
        %2720 = vmatpush.bf16.xpose.msra.mxu0 %v1674
        %2721 = vmatpush.bf16.xpose.msra.mxu0 %v1671
        %2722 = vmatpush.bf16.xpose.msra.mxu0 %v1668
        %2723 = vmatmul.bf16.gmra.mxu0 %v780
        %v2724 = vpop.f32.mrf.mxu0
        %v2725 = vadd.f32 0.0, %v2724
        %v2726 = vpop.f32.mrf.mxu0
        %v2727 = vadd.f32 0.0, %v2726
        %2728 = vmatmul.bf16.gmra.mxu0 %v783
        %v2729 = vpop.f32.mrf.mxu0
        %v2730 = vadd.f32 0.0, %v2729
        %v2731 = vpop.f32.mrf.mxu0
        %v2732 = vadd.f32 0.0, %v2731
        %2733 = vmatmul.bf16.gmra.mxu0 %v786
        %v2734 = vpop.f32.mrf.mxu0
        %v2735 = vadd.f32 0.0, %v2734
        %v2736 = vpop.f32.mrf.mxu0
        %v2737 = vadd.f32 0.0, %v2736
        %2738 = vmatmul.bf16.gmra.mxu0 %v789
        %v2739 = vpop.f32.mrf.mxu0
        %v2740 = vadd.f32 0.0, %v2739
        %v2741 = vpop.f32.mrf.mxu0
        %v2742 = vadd.f32 0.0, %v2741
        %2743 = vmatmul.bf16.gmra.mxu0 %v792
        %v2744 = vpop.f32.mrf.mxu0
        %v2745 = vadd.f32 0.0, %v2744
        %v2746 = vpop.f32.mrf.mxu0
        %v2747 = vadd.f32 0.0, %v2746
        %2748 = vmatmul.bf16.gmra.mxu0 %v795
        %v2749 = vpop.f32.mrf.mxu0
        %v2750 = vadd.f32 0.0, %v2749
        %v2751 = vpop.f32.mrf.mxu0
        %v2752 = vadd.f32 0.0, %v2751
        %2753 = vmatmul.bf16.gmra.mxu0 %v798
        %v2754 = vpop.f32.mrf.mxu0
        %v2755 = vadd.f32 0.0, %v2754
        %v2756 = vpop.f32.mrf.mxu0
        %v2757 = vadd.f32 0.0, %v2756
        %2758 = vmatmul.bf16.gmra.mxu0 %v801
        %v2759 = vpop.f32.mrf.mxu0
        %v2760 = vadd.f32 0.0, %v2759
        %v2761 = vpop.f32.mrf.mxu0
        %v2762 = vadd.f32 0.0, %v2761
        %2763 = vdwg.mxu0
        %2764 = vmatpush.bf16.xpose.msra.mxu0 %v1690
        %2765 = vmatpush.bf16.xpose.msra.mxu0 %v1687
        %2766 = vmatpush.bf16.xpose.msra.mxu0 %v1684
        %2767 = vmatpush.bf16.xpose.msra.mxu0 %v1681
        %2768 = vmatpush.bf16.xpose.msra.mxu0 %v1678
        %2769 = vmatpush.bf16.xpose.msra.mxu0 %v1675
        %2770 = vmatpush.bf16.xpose.msra.mxu0 %v1672
        %2771 = vmatpush.bf16.xpose.msra.mxu0 %v1669
        %2772 = vmatmul.bf16.gmra.mxu0 %v781
        %v2773 = vpop.f32.mrf.mxu0
        %v2774 = vadd.f32 %v2725, %v2773
        %v2775 = vpop.f32.mrf.mxu0
        %v2776 = vadd.f32 %v2727, %v2775
        %2777 = vmatmul.bf16.gmra.mxu0 %v784
        %v2778 = vpop.f32.mrf.mxu0
        %v2779 = vadd.f32 %v2730, %v2778
        %v2780 = vpop.f32.mrf.mxu0
        %v2781 = vadd.f32 %v2732, %v2780
        %2782 = vmatmul.bf16.gmra.mxu0 %v787
        %v2783 = vpop.f32.mrf.mxu0
        %v2784 = vadd.f32 %v2735, %v2783
        %v2785 = vpop.f32.mrf.mxu0
        %v2786 = vadd.f32 %v2737, %v2785
        %2787 = vmatmul.bf16.gmra.mxu0 %v790
        %v2788 = vpop.f32.mrf.mxu0
        %v2789 = vadd.f32 %v2740, %v2788
        %v2790 = vpop.f32.mrf.mxu0
        %v2791 = vadd.f32 %v2742, %v2790
        %2792 = vmatmul.bf16.gmra.mxu0 %v793
        %v2793 = vpop.f32.mrf.mxu0
        %v2794 = vadd.f32 %v2745, %v2793
        %v2795 = vpop.f32.mrf.mxu0
        %v2796 = vadd.f32 %v2747, %v2795
        %2797 = vmatmul.bf16.gmra.mxu0 %v796
        %v2798 = vpop.f32.mrf.mxu0
        %v2799 = vadd.f32 %v2750, %v2798
        %v2800 = vpop.f32.mrf.mxu0
        %v2801 = vadd.f32 %v2752, %v2800
        %2802 = vmatmul.bf16.gmra.mxu0 %v799
        %v2803 = vpop.f32.mrf.mxu0
        %v2804 = vadd.f32 %v2755, %v2803
        %v2805 = vpop.f32.mrf.mxu0
        %v2806 = vadd.f32 %v2757, %v2805
        %2807 = vmatmul.bf16.gmra.mxu0 %v802
        %v2808 = vpop.f32.mrf.mxu0
        %v2809 = vadd.f32 %v2760, %v2808
        %v2810 = vpop.f32.mrf.mxu0
        %v2811 = vadd.f32 %v2762, %v2810
        %2812 = vdwg.mxu0
        %2813 = vmatpush.bf16.xpose.msra.mxu0 %v1691
        %2814 = vmatpush.bf16.xpose.msra.mxu0 %v1688
        %2815 = vmatpush.bf16.xpose.msra.mxu0 %v1685
        %2816 = vmatpush.bf16.xpose.msra.mxu0 %v1682
        %2817 = vmatpush.bf16.xpose.msra.mxu0 %v1679
        %2818 = vmatpush.bf16.xpose.msra.mxu0 %v1676
        %2819 = vmatpush.bf16.xpose.msra.mxu0 %v1673
        %2820 = vmatpush.bf16.xpose.msra.mxu0 %v1670
        %2821 = vmatmul.bf16.gmra.mxu0 %v782
        %v2822 = vpop.f32.mrf.mxu0
        %v2823 = vadd.f32 %v2774, %v2822
        %v2824 = vpop.f32.mrf.mxu0
        %v2825 = vadd.f32 %v2776, %v2824
        %2826 = vmatmul.bf16.gmra.mxu0 %v785
        %v2827 = vpop.f32.mrf.mxu0
        %v2828 = vadd.f32 %v2779, %v2827
        %v2829 = vpop.f32.mrf.mxu0
        %v2830 = vadd.f32 %v2781, %v2829
        %2831 = vmatmul.bf16.gmra.mxu0 %v788
        %v2832 = vpop.f32.mrf.mxu0
        %v2833 = vadd.f32 %v2784, %v2832
        %v2834 = vpop.f32.mrf.mxu0
        %v2835 = vadd.f32 %v2786, %v2834
        %2836 = vmatmul.bf16.gmra.mxu0 %v791
        %v2837 = vpop.f32.mrf.mxu0
        %v2838 = vadd.f32 %v2789, %v2837
        %v2839 = vpop.f32.mrf.mxu0
        %v2840 = vadd.f32 %v2791, %v2839
        %2841 = vmatmul.bf16.gmra.mxu0 %v794
        %v2842 = vpop.f32.mrf.mxu0
        %v2843 = vadd.f32 %v2794, %v2842
        %v2844 = vpop.f32.mrf.mxu0
        %v2845 = vadd.f32 %v2796, %v2844
        %2846 = vmatmul.bf16.gmra.mxu0 %v797
        %v2847 = vpop.f32.mrf.mxu0
        %v2848 = vadd.f32 %v2799, %v2847
        %v2849 = vpop.f32.mrf.mxu0
        %v2850 = vadd.f32 %v2801, %v2849
        %2851 = vmatmul.bf16.gmra.mxu0 %v800
        %v2852 = vpop.f32.mrf.mxu0
        %v2853 = vadd.f32 %v2804, %v2852
        %v2854 = vpop.f32.mrf.mxu0
        %v2855 = vadd.f32 %v2806, %v2854
        %2856 = vmatmul.bf16.gmra.mxu0 %v803
        %v2857 = vpop.f32.mrf.mxu0
        %v2858 = vadd.f32 %v2809, %v2857
        %v2859 = vpop.f32.mrf.mxu0
        %v2860 = vadd.f32 %v2811, %v2859
        %2861 = vdwg.mxu0
        %2862 = vmatpush.bf16.xpose.msra.mxu0 %v1713
        %2863 = vmatpush.bf16.xpose.msra.mxu0 %v1710
        %2864 = vmatpush.bf16.xpose.msra.mxu0 %v1707
        %2865 = vmatpush.bf16.xpose.msra.mxu0 %v1704
        %2866 = vmatpush.bf16.xpose.msra.mxu0 %v1701
        %2867 = vmatpush.bf16.xpose.msra.mxu0 %v1698
        %2868 = vmatpush.bf16.xpose.msra.mxu0 %v1695
        %2869 = vmatpush.bf16.xpose.msra.mxu0 %v1692
        %2870 = vmatmul.bf16.gmra.mxu0 %v780
        %v2871 = vpop.f32.mrf.mxu0
        %v2872 = vadd.f32 0.0, %v2871
        %v2873 = vpop.f32.mrf.mxu0
        %v2874 = vadd.f32 0.0, %v2873
        %2875 = vmatmul.bf16.gmra.mxu0 %v783
        %v2876 = vpop.f32.mrf.mxu0
        %v2877 = vadd.f32 0.0, %v2876
        %v2878 = vpop.f32.mrf.mxu0
        %v2879 = vadd.f32 0.0, %v2878
        %2880 = vmatmul.bf16.gmra.mxu0 %v786
        %v2881 = vpop.f32.mrf.mxu0
        %v2882 = vadd.f32 0.0, %v2881
        %v2883 = vpop.f32.mrf.mxu0
        %v2884 = vadd.f32 0.0, %v2883
        %2885 = vmatmul.bf16.gmra.mxu0 %v789
        %v2886 = vpop.f32.mrf.mxu0
        %v2887 = vadd.f32 0.0, %v2886
        %v2888 = vpop.f32.mrf.mxu0
        %v2889 = vadd.f32 0.0, %v2888
        %2890 = vmatmul.bf16.gmra.mxu0 %v792
        %v2891 = vpop.f32.mrf.mxu0
        %v2892 = vadd.f32 0.0, %v2891
        %v2893 = vpop.f32.mrf.mxu0
        %v2894 = vadd.f32 0.0, %v2893
        %2895 = vmatmul.bf16.gmra.mxu0 %v795
        %v2896 = vpop.f32.mrf.mxu0
        %v2897 = vadd.f32 0.0, %v2896
        %v2898 = vpop.f32.mrf.mxu0
        %v2899 = vadd.f32 0.0, %v2898
        %2900 = vmatmul.bf16.gmra.mxu0 %v798
        %v2901 = vpop.f32.mrf.mxu0
        %v2902 = vadd.f32 0.0, %v2901
        %v2903 = vpop.f32.mrf.mxu0
        %v2904 = vadd.f32 0.0, %v2903
        %2905 = vmatmul.bf16.gmra.mxu0 %v801
        %v2906 = vpop.f32.mrf.mxu0
        %v2907 = vadd.f32 0.0, %v2906
        %v2908 = vpop.f32.mrf.mxu0
        %v2909 = vadd.f32 0.0, %v2908
        %2910 = vdwg.mxu0
        %2911 = vmatpush.bf16.xpose.msra.mxu0 %v1714
        %2912 = vmatpush.bf16.xpose.msra.mxu0 %v1711
        %2913 = vmatpush.bf16.xpose.msra.mxu0 %v1708
        %2914 = vmatpush.bf16.xpose.msra.mxu0 %v1705
        %2915 = vmatpush.bf16.xpose.msra.mxu0 %v1702
        %2916 = vmatpush.bf16.xpose.msra.mxu0 %v1699
        %2917 = vmatpush.bf16.xpose.msra.mxu0 %v1696
        %2918 = vmatpush.bf16.xpose.msra.mxu0 %v1693
        %2919 = vmatmul.bf16.gmra.mxu0 %v781
        %v2920 = vpop.f32.mrf.mxu0
        %v2921 = vadd.f32 %v2872, %v2920
        %v2922 = vpop.f32.mrf.mxu0
        %v2923 = vadd.f32 %v2874, %v2922
        %2924 = vmatmul.bf16.gmra.mxu0 %v784
        %v2925 = vpop.f32.mrf.mxu0
        %v2926 = vadd.f32 %v2877, %v2925
        %v2927 = vpop.f32.mrf.mxu0
        %v2928 = vadd.f32 %v2879, %v2927
        %2929 = vmatmul.bf16.gmra.mxu0 %v787
        %v2930 = vpop.f32.mrf.mxu0
        %v2931 = vadd.f32 %v2882, %v2930
        %v2932 = vpop.f32.mrf.mxu0
        %v2933 = vadd.f32 %v2884, %v2932
        %2934 = vmatmul.bf16.gmra.mxu0 %v790
        %v2935 = vpop.f32.mrf.mxu0
        %v2936 = vadd.f32 %v2887, %v2935
        %v2937 = vpop.f32.mrf.mxu0
        %v2938 = vadd.f32 %v2889, %v2937
        %2939 = vmatmul.bf16.gmra.mxu0 %v793
        %v2940 = vpop.f32.mrf.mxu0
        %v2941 = vadd.f32 %v2892, %v2940
        %v2942 = vpop.f32.mrf.mxu0
        %v2943 = vadd.f32 %v2894, %v2942
        %2944 = vmatmul.bf16.gmra.mxu0 %v796
        %v2945 = vpop.f32.mrf.mxu0
        %v2946 = vadd.f32 %v2897, %v2945
        %v2947 = vpop.f32.mrf.mxu0
        %v2948 = vadd.f32 %v2899, %v2947
        %2949 = vmatmul.bf16.gmra.mxu0 %v799
        %v2950 = vpop.f32.mrf.mxu0
        %v2951 = vadd.f32 %v2902, %v2950
        %v2952 = vpop.f32.mrf.mxu0
        %v2953 = vadd.f32 %v2904, %v2952
        %2954 = vmatmul.bf16.gmra.mxu0 %v802
        %v2955 = vpop.f32.mrf.mxu0
        %v2956 = vadd.f32 %v2907, %v2955
        %v2957 = vpop.f32.mrf.mxu0
        %v2958 = vadd.f32 %v2909, %v2957
        %2959 = vdwg.mxu0
        %2960 = vmatpush.bf16.xpose.msra.mxu0 %v1715
        %2961 = vmatpush.bf16.xpose.msra.mxu0 %v1712
        %2962 = vmatpush.bf16.xpose.msra.mxu0 %v1709
        %2963 = vmatpush.bf16.xpose.msra.mxu0 %v1706
        %2964 = vmatpush.bf16.xpose.msra.mxu0 %v1703
        %2965 = vmatpush.bf16.xpose.msra.mxu0 %v1700
        %2966 = vmatpush.bf16.xpose.msra.mxu0 %v1697
        %2967 = vmatpush.bf16.xpose.msra.mxu0 %v1694
        %2968 = vmatmul.bf16.gmra.mxu0 %v782
        %v2969 = vpop.f32.mrf.mxu0
        %v2970 = vadd.f32 %v2921, %v2969
        %v2971 = vpop.f32.mrf.mxu0
        %v2972 = vadd.f32 %v2923, %v2971
        %2973 = vmatmul.bf16.gmra.mxu0 %v785
        %v2974 = vpop.f32.mrf.mxu0
        %v2975 = vadd.f32 %v2926, %v2974
        %v2976 = vpop.f32.mrf.mxu0
        %v2977 = vadd.f32 %v2928, %v2976
        %2978 = vmatmul.bf16.gmra.mxu0 %v788
        %v2979 = vpop.f32.mrf.mxu0
        %v2980 = vadd.f32 %v2931, %v2979
        %v2981 = vpop.f32.mrf.mxu0
        %v2982 = vadd.f32 %v2933, %v2981
        %2983 = vmatmul.bf16.gmra.mxu0 %v791
        %v2984 = vpop.f32.mrf.mxu0
        %v2985 = vadd.f32 %v2936, %v2984
        %v2986 = vpop.f32.mrf.mxu0
        %v2987 = vadd.f32 %v2938, %v2986
        %2988 = vmatmul.bf16.gmra.mxu0 %v794
        %v2989 = vpop.f32.mrf.mxu0
        %v2990 = vadd.f32 %v2941, %v2989
        %v2991 = vpop.f32.mrf.mxu0
        %v2992 = vadd.f32 %v2943, %v2991
        %2993 = vmatmul.bf16.gmra.mxu0 %v797
        %v2994 = vpop.f32.mrf.mxu0
        %v2995 = vadd.f32 %v2946, %v2994
        %v2996 = vpop.f32.mrf.mxu0
        %v2997 = vadd.f32 %v2948, %v2996
        %2998 = vmatmul.bf16.gmra.mxu0 %v800
        %v2999 = vpop.f32.mrf.mxu0
        %v3000 = vadd.f32 %v2951, %v2999
        %v3001 = vpop.f32.mrf.mxu0
        %v3002 = vadd.f32 %v2953, %v3001
        %3003 = vmatmul.bf16.gmra.mxu0 %v803
        %v3004 = vpop.f32.mrf.mxu0
        %v3005 = vadd.f32 %v2956, %v3004
        %v3006 = vpop.f32.mrf.mxu0
        %v3007 = vadd.f32 %v2958, %v3006
        %3008 = vdwg.mxu0
        %3009 = vmatpush.bf16.xpose.msra.mxu0 %v1737
        %3010 = vmatpush.bf16.xpose.msra.mxu0 %v1734
        %3011 = vmatpush.bf16.xpose.msra.mxu0 %v1731
        %3012 = vmatpush.bf16.xpose.msra.mxu0 %v1728
        %3013 = vmatpush.bf16.xpose.msra.mxu0 %v1725
        %3014 = vmatpush.bf16.xpose.msra.mxu0 %v1722
        %3015 = vmatpush.bf16.xpose.msra.mxu0 %v1719
        %3016 = vmatpush.bf16.xpose.msra.mxu0 %v1716
        %3017 = vmatmul.bf16.gmra.mxu0 %v780
        %v3018 = vpop.f32.mrf.mxu0
        %v3019 = vadd.f32 0.0, %v3018
        %v3020 = vpop.f32.mrf.mxu0
        %v3021 = vadd.f32 0.0, %v3020
        %3022 = vmatmul.bf16.gmra.mxu0 %v783
        %v3023 = vpop.f32.mrf.mxu0
        %v3024 = vadd.f32 0.0, %v3023
        %v3025 = vpop.f32.mrf.mxu0
        %v3026 = vadd.f32 0.0, %v3025
        %3027 = vmatmul.bf16.gmra.mxu0 %v786
        %v3028 = vpop.f32.mrf.mxu0
        %v3029 = vadd.f32 0.0, %v3028
        %v3030 = vpop.f32.mrf.mxu0
        %v3031 = vadd.f32 0.0, %v3030
        %3032 = vmatmul.bf16.gmra.mxu0 %v789
        %v3033 = vpop.f32.mrf.mxu0
        %v3034 = vadd.f32 0.0, %v3033
        %v3035 = vpop.f32.mrf.mxu0
        %v3036 = vadd.f32 0.0, %v3035
        %3037 = vmatmul.bf16.gmra.mxu0 %v792
        %v3038 = vpop.f32.mrf.mxu0
        %v3039 = vadd.f32 0.0, %v3038
        %v3040 = vpop.f32.mrf.mxu0
        %v3041 = vadd.f32 0.0, %v3040
        %3042 = vmatmul.bf16.gmra.mxu0 %v795
        %v3043 = vpop.f32.mrf.mxu0
        %v3044 = vadd.f32 0.0, %v3043
        %v3045 = vpop.f32.mrf.mxu0
        %v3046 = vadd.f32 0.0, %v3045
        %3047 = vmatmul.bf16.gmra.mxu0 %v798
        %v3048 = vpop.f32.mrf.mxu0
        %v3049 = vadd.f32 0.0, %v3048
        %v3050 = vpop.f32.mrf.mxu0
        %v3051 = vadd.f32 0.0, %v3050
        %3052 = vmatmul.bf16.gmra.mxu0 %v801
        %v3053 = vpop.f32.mrf.mxu0
        %v3054 = vadd.f32 0.0, %v3053
        %v3055 = vpop.f32.mrf.mxu0
        %v3056 = vadd.f32 0.0, %v3055
        %3057 = vdwg.mxu0
        %3058 = vmatpush.bf16.xpose.msra.mxu0 %v1738
        %3059 = vmatpush.bf16.xpose.msra.mxu0 %v1735
        %3060 = vmatpush.bf16.xpose.msra.mxu0 %v1732
        %3061 = vmatpush.bf16.xpose.msra.mxu0 %v1729
        %3062 = vmatpush.bf16.xpose.msra.mxu0 %v1726
        %3063 = vmatpush.bf16.xpose.msra.mxu0 %v1723
        %3064 = vmatpush.bf16.xpose.msra.mxu0 %v1720
        %3065 = vmatpush.bf16.xpose.msra.mxu0 %v1717
        %3066 = vmatmul.bf16.gmra.mxu0 %v781
        %v3067 = vpop.f32.mrf.mxu0
        %v3068 = vadd.f32 %v3019, %v3067
        %v3069 = vpop.f32.mrf.mxu0
        %v3070 = vadd.f32 %v3021, %v3069
        %3071 = vmatmul.bf16.gmra.mxu0 %v784
        %v3072 = vpop.f32.mrf.mxu0
        %v3073 = vadd.f32 %v3024, %v3072
        %v3074 = vpop.f32.mrf.mxu0
        %v3075 = vadd.f32 %v3026, %v3074
        %3076 = vmatmul.bf16.gmra.mxu0 %v787
        %v3077 = vpop.f32.mrf.mxu0
        %v3078 = vadd.f32 %v3029, %v3077
        %v3079 = vpop.f32.mrf.mxu0
        %v3080 = vadd.f32 %v3031, %v3079
        %3081 = vmatmul.bf16.gmra.mxu0 %v790
        %v3082 = vpop.f32.mrf.mxu0
        %v3083 = vadd.f32 %v3034, %v3082
        %v3084 = vpop.f32.mrf.mxu0
        %v3085 = vadd.f32 %v3036, %v3084
        %3086 = vmatmul.bf16.gmra.mxu0 %v793
        %v3087 = vpop.f32.mrf.mxu0
        %v3088 = vadd.f32 %v3039, %v3087
        %v3089 = vpop.f32.mrf.mxu0
        %v3090 = vadd.f32 %v3041, %v3089
        %3091 = vmatmul.bf16.gmra.mxu0 %v796
        %v3092 = vpop.f32.mrf.mxu0
        %v3093 = vadd.f32 %v3044, %v3092
        %v3094 = vpop.f32.mrf.mxu0
        %v3095 = vadd.f32 %v3046, %v3094
        %3096 = vmatmul.bf16.gmra.mxu0 %v799
        %v3097 = vpop.f32.mrf.mxu0
        %v3098 = vadd.f32 %v3049, %v3097
        %v3099 = vpop.f32.mrf.mxu0
        %v3100 = vadd.f32 %v3051, %v3099
        %3101 = vmatmul.bf16.gmra.mxu0 %v802
        %v3102 = vpop.f32.mrf.mxu0
        %v3103 = vadd.f32 %v3054, %v3102
        %v3104 = vpop.f32.mrf.mxu0
        %v3105 = vadd.f32 %v3056, %v3104
        %3106 = vdwg.mxu0
        %3107 = vmatpush.bf16.xpose.msra.mxu0 %v1739
        %3108 = vmatpush.bf16.xpose.msra.mxu0 %v1736
        %3109 = vmatpush.bf16.xpose.msra.mxu0 %v1733
        %3110 = vmatpush.bf16.xpose.msra.mxu0 %v1730
        %3111 = vmatpush.bf16.xpose.msra.mxu0 %v1727
        %3112 = vmatpush.bf16.xpose.msra.mxu0 %v1724
        %3113 = vmatpush.bf16.xpose.msra.mxu0 %v1721
        %3114 = vmatpush.bf16.xpose.msra.mxu0 %v1718
        %3115 = vmatmul.bf16.gmra.mxu0 %v782
        %v3116 = vpop.f32.mrf.mxu0
        %v3117 = vadd.f32 %v3068, %v3116
        %v3118 = vpop.f32.mrf.mxu0
        %v3119 = vadd.f32 %v3070, %v3118
        %3120 = vmatmul.bf16.gmra.mxu0 %v785
        %v3121 = vpop.f32.mrf.mxu0
        %v3122 = vadd.f32 %v3073, %v3121
        %v3123 = vpop.f32.mrf.mxu0
        %v3124 = vadd.f32 %v3075, %v3123
        %3125 = vmatmul.bf16.gmra.mxu0 %v788
        %v3126 = vpop.f32.mrf.mxu0
        %v3127 = vadd.f32 %v3078, %v3126
        %v3128 = vpop.f32.mrf.mxu0
        %v3129 = vadd.f32 %v3080, %v3128
        %3130 = vmatmul.bf16.gmra.mxu0 %v791
        %v3131 = vpop.f32.mrf.mxu0
        %v3132 = vadd.f32 %v3083, %v3131
        %v3133 = vpop.f32.mrf.mxu0
        %v3134 = vadd.f32 %v3085, %v3133
        %3135 = vmatmul.bf16.gmra.mxu0 %v794
        %v3136 = vpop.f32.mrf.mxu0
        %v3137 = vadd.f32 %v3088, %v3136
        %v3138 = vpop.f32.mrf.mxu0
        %v3139 = vadd.f32 %v3090, %v3138
        %3140 = vmatmul.bf16.gmra.mxu0 %v797
        %v3141 = vpop.f32.mrf.mxu0
        %v3142 = vadd.f32 %v3093, %v3141
        %v3143 = vpop.f32.mrf.mxu0
        %v3144 = vadd.f32 %v3095, %v3143
        %3145 = vmatmul.bf16.gmra.mxu0 %v800
        %v3146 = vpop.f32.mrf.mxu0
        %v3147 = vadd.f32 %v3098, %v3146
        %v3148 = vpop.f32.mrf.mxu0
        %v3149 = vadd.f32 %v3100, %v3148
        %3150 = vmatmul.bf16.gmra.mxu0 %v803
        %v3151 = vpop.f32.mrf.mxu0
        %v3152 = vadd.f32 %v3103, %v3151
        %v3153 = vpop.f32.mrf.mxu0
        %v3154 = vadd.f32 %v3105, %v3153
        %3155 = vdwg.mxu0
        %3156 = vmatpush.bf16.xpose.msra.mxu0 %v1761
        %3157 = vmatpush.bf16.xpose.msra.mxu0 %v1758
        %3158 = vmatpush.bf16.xpose.msra.mxu0 %v1755
        %3159 = vmatpush.bf16.xpose.msra.mxu0 %v1752
        %3160 = vmatpush.bf16.xpose.msra.mxu0 %v1749
        %3161 = vmatpush.bf16.xpose.msra.mxu0 %v1746
        %3162 = vmatpush.bf16.xpose.msra.mxu0 %v1743
        %3163 = vmatpush.bf16.xpose.msra.mxu0 %v1740
        %3164 = vmatmul.bf16.gmra.mxu0 %v780
        %v3165 = vpop.f32.mrf.mxu0
        %v3166 = vadd.f32 0.0, %v3165
        %v3167 = vpop.f32.mrf.mxu0
        %v3168 = vadd.f32 0.0, %v3167
        %3169 = vmatmul.bf16.gmra.mxu0 %v783
        %v3170 = vpop.f32.mrf.mxu0
        %v3171 = vadd.f32 0.0, %v3170
        %v3172 = vpop.f32.mrf.mxu0
        %v3173 = vadd.f32 0.0, %v3172
        %3174 = vmatmul.bf16.gmra.mxu0 %v786
        %v3175 = vpop.f32.mrf.mxu0
        %v3176 = vadd.f32 0.0, %v3175
        %v3177 = vpop.f32.mrf.mxu0
        %v3178 = vadd.f32 0.0, %v3177
        %3179 = vmatmul.bf16.gmra.mxu0 %v789
        %v3180 = vpop.f32.mrf.mxu0
        %v3181 = vadd.f32 0.0, %v3180
        %v3182 = vpop.f32.mrf.mxu0
        %v3183 = vadd.f32 0.0, %v3182
        %3184 = vmatmul.bf16.gmra.mxu0 %v792
        %v3185 = vpop.f32.mrf.mxu0
        %v3186 = vadd.f32 0.0, %v3185
        %v3187 = vpop.f32.mrf.mxu0
        %v3188 = vadd.f32 0.0, %v3187
        %3189 = vmatmul.bf16.gmra.mxu0 %v795
        %v3190 = vpop.f32.mrf.mxu0
        %v3191 = vadd.f32 0.0, %v3190
        %v3192 = vpop.f32.mrf.mxu0
        %v3193 = vadd.f32 0.0, %v3192
        %3194 = vmatmul.bf16.gmra.mxu0 %v798
        %v3195 = vpop.f32.mrf.mxu0
        %v3196 = vadd.f32 0.0, %v3195
        %v3197 = vpop.f32.mrf.mxu0
        %v3198 = vadd.f32 0.0, %v3197
        %3199 = vmatmul.bf16.gmra.mxu0 %v801
        %v3200 = vpop.f32.mrf.mxu0
        %v3201 = vadd.f32 0.0, %v3200
        %v3202 = vpop.f32.mrf.mxu0
        %v3203 = vadd.f32 0.0, %v3202
        %3204 = vdwg.mxu0
        %3205 = vmatpush.bf16.xpose.msra.mxu0 %v1762
        %3206 = vmatpush.bf16.xpose.msra.mxu0 %v1759
        %3207 = vmatpush.bf16.xpose.msra.mxu0 %v1756
        %3208 = vmatpush.bf16.xpose.msra.mxu0 %v1753
        %3209 = vmatpush.bf16.xpose.msra.mxu0 %v1750
        %3210 = vmatpush.bf16.xpose.msra.mxu0 %v1747
        %3211 = vmatpush.bf16.xpose.msra.mxu0 %v1744
        %3212 = vmatpush.bf16.xpose.msra.mxu0 %v1741
        %3213 = vmatmul.bf16.gmra.mxu0 %v781
        %v3214 = vpop.f32.mrf.mxu0
        %v3215 = vadd.f32 %v3166, %v3214
        %v3216 = vpop.f32.mrf.mxu0
        %v3217 = vadd.f32 %v3168, %v3216
        %3218 = vmatmul.bf16.gmra.mxu0 %v784
        %v3219 = vpop.f32.mrf.mxu0
        %v3220 = vadd.f32 %v3171, %v3219
        %v3221 = vpop.f32.mrf.mxu0
        %v3222 = vadd.f32 %v3173, %v3221
        %3223 = vmatmul.bf16.gmra.mxu0 %v787
        %v3224 = vpop.f32.mrf.mxu0
        %v3225 = vadd.f32 %v3176, %v3224
        %v3226 = vpop.f32.mrf.mxu0
        %v3227 = vadd.f32 %v3178, %v3226
        %3228 = vmatmul.bf16.gmra.mxu0 %v790
        %v3229 = vpop.f32.mrf.mxu0
        %v3230 = vadd.f32 %v3181, %v3229
        %v3231 = vpop.f32.mrf.mxu0
        %v3232 = vadd.f32 %v3183, %v3231
        %3233 = vmatmul.bf16.gmra.mxu0 %v793
        %v3234 = vpop.f32.mrf.mxu0
        %v3235 = vadd.f32 %v3186, %v3234
        %v3236 = vpop.f32.mrf.mxu0
        %v3237 = vadd.f32 %v3188, %v3236
        %3238 = vmatmul.bf16.gmra.mxu0 %v796
        %v3239 = vpop.f32.mrf.mxu0
        %v3240 = vadd.f32 %v3191, %v3239
        %v3241 = vpop.f32.mrf.mxu0
        %v3242 = vadd.f32 %v3193, %v3241
        %3243 = vmatmul.bf16.gmra.mxu0 %v799
        %v3244 = vpop.f32.mrf.mxu0
        %v3245 = vadd.f32 %v3196, %v3244
        %v3246 = vpop.f32.mrf.mxu0
        %v3247 = vadd.f32 %v3198, %v3246
        %3248 = vmatmul.bf16.gmra.mxu0 %v802
        %v3249 = vpop.f32.mrf.mxu0
        %v3250 = vadd.f32 %v3201, %v3249
        %v3251 = vpop.f32.mrf.mxu0
        %v3252 = vadd.f32 %v3203, %v3251
        %3253 = vdwg.mxu0
        %3254 = vmatpush.bf16.xpose.msra.mxu0 %v1763
        %3255 = vmatpush.bf16.xpose.msra.mxu0 %v1760
        %3256 = vmatpush.bf16.xpose.msra.mxu0 %v1757
        %3257 = vmatpush.bf16.xpose.msra.mxu0 %v1754
        %3258 = vmatpush.bf16.xpose.msra.mxu0 %v1751
        %3259 = vmatpush.bf16.xpose.msra.mxu0 %v1748
        %3260 = vmatpush.bf16.xpose.msra.mxu0 %v1745
        %3261 = vmatpush.bf16.xpose.msra.mxu0 %v1742
        %3262 = vmatmul.bf16.gmra.mxu0 %v782
        %v3263 = vpop.f32.mrf.mxu0
        %v3264 = vadd.f32 %v3215, %v3263
        %v3265 = vpop.f32.mrf.mxu0
        %v3266 = vadd.f32 %v3217, %v3265
        %3267 = vmatmul.bf16.gmra.mxu0 %v785
        %v3268 = vpop.f32.mrf.mxu0
        %v3269 = vadd.f32 %v3220, %v3268
        %v3270 = vpop.f32.mrf.mxu0
        %v3271 = vadd.f32 %v3222, %v3270
        %3272 = vmatmul.bf16.gmra.mxu0 %v788
        %v3273 = vpop.f32.mrf.mxu0
        %v3274 = vadd.f32 %v3225, %v3273
        %v3275 = vpop.f32.mrf.mxu0
        %v3276 = vadd.f32 %v3227, %v3275
        %3277 = vmatmul.bf16.gmra.mxu0 %v791
        %v3278 = vpop.f32.mrf.mxu0
        %v3279 = vadd.f32 %v3230, %v3278
        %v3280 = vpop.f32.mrf.mxu0
        %v3281 = vadd.f32 %v3232, %v3280
        %3282 = vmatmul.bf16.gmra.mxu0 %v794
        %v3283 = vpop.f32.mrf.mxu0
        %v3284 = vadd.f32 %v3235, %v3283
        %v3285 = vpop.f32.mrf.mxu0
        %v3286 = vadd.f32 %v3237, %v3285
        %3287 = vmatmul.bf16.gmra.mxu0 %v797
        %v3288 = vpop.f32.mrf.mxu0
        %v3289 = vadd.f32 %v3240, %v3288
        %v3290 = vpop.f32.mrf.mxu0
        %v3291 = vadd.f32 %v3242, %v3290
        %3292 = vmatmul.bf16.gmra.mxu0 %v800
        %v3293 = vpop.f32.mrf.mxu0
        %v3294 = vadd.f32 %v3245, %v3293
        %v3295 = vpop.f32.mrf.mxu0
        %v3296 = vadd.f32 %v3247, %v3295
        %3297 = vmatmul.bf16.gmra.mxu0 %v803
        %v3298 = vpop.f32.mrf.mxu0
        %v3299 = vadd.f32 %v3250, %v3298
        %v3300 = vpop.f32.mrf.mxu0
        %v3301 = vadd.f32 %v3252, %v3300
        %3302 = vdwg.mxu0
        %v3303 = vpack.c.bf16 %v2235, %v2088
        %v3304 = vpack.c.bf16 %v2529, %v2382
        %v3305 = vpack.c.bf16 %v2823, %v2676
        %v3306 = vpack.c.bf16 %v3117, %v2970
        %v3307 = vpack.c.bf16 %v3264, %v3264
        %v3308 = vpack.c.bf16 %v2237, %v2090
        %v3309 = vpack.c.bf16 %v2531, %v2384
        %v3310 = vpack.c.bf16 %v2825, %v2678
        %v3311 = vpack.c.bf16 %v3119, %v2972
        %v3312 = vpack.c.bf16 %v3266, %v3266
        %v3313 = vpack.c.bf16 %v2240, %v2093
        %v3314 = vpack.c.bf16 %v2534, %v2387
        %v3315 = vpack.c.bf16 %v2828, %v2681
        %v3316 = vpack.c.bf16 %v3122, %v2975
        %v3317 = vpack.c.bf16 %v3269, %v3269
        %v3318 = vpack.c.bf16 %v2242, %v2095
        %v3319 = vpack.c.bf16 %v2536, %v2389
        %v3320 = vpack.c.bf16 %v2830, %v2683
        %v3321 = vpack.c.bf16 %v3124, %v2977
        %v3322 = vpack.c.bf16 %v3271, %v3271
        %v3323 = vpack.c.bf16 %v2245, %v2098
        %v3324 = vpack.c.bf16 %v2539, %v2392
        %v3325 = vpack.c.bf16 %v2833, %v2686
        %v3326 = vpack.c.bf16 %v3127, %v2980
        %v3327 = vpack.c.bf16 %v3274, %v3274
        %v3328 = vpack.c.bf16 %v2247, %v2100
        %v3329 = vpack.c.bf16 %v2541, %v2394
        %v3330 = vpack.c.bf16 %v2835, %v2688
        %v3331 = vpack.c.bf16 %v3129, %v2982
        %v3332 = vpack.c.bf16 %v3276, %v3276
        %v3333 = vpack.c.bf16 %v2250, %v2103
        %v3334 = vpack.c.bf16 %v2544, %v2397
        %v3335 = vpack.c.bf16 %v2838, %v2691
        %v3336 = vpack.c.bf16 %v3132, %v2985
        %v3337 = vpack.c.bf16 %v3279, %v3279
        %v3338 = vpack.c.bf16 %v2252, %v2105
        %v3339 = vpack.c.bf16 %v2546, %v2399
        %v3340 = vpack.c.bf16 %v2840, %v2693
        %v3341 = vpack.c.bf16 %v3134, %v2987
        %v3342 = vpack.c.bf16 %v3281, %v3281
        %v3343 = vpack.c.bf16 %v2255, %v2108
        %v3344 = vpack.c.bf16 %v2549, %v2402
        %v3345 = vpack.c.bf16 %v2843, %v2696
        %v3346 = vpack.c.bf16 %v3137, %v2990
        %v3347 = vpack.c.bf16 %v3284, %v3284
        %v3348 = vpack.c.bf16 %v2257, %v2110
        %v3349 = vpack.c.bf16 %v2551, %v2404
        %v3350 = vpack.c.bf16 %v2845, %v2698
        %v3351 = vpack.c.bf16 %v3139, %v2992
        %v3352 = vpack.c.bf16 %v3286, %v3286
        %v3353 = vpack.c.bf16 %v2260, %v2113
        %v3354 = vpack.c.bf16 %v2554, %v2407
        %v3355 = vpack.c.bf16 %v2848, %v2701
        %v3356 = vpack.c.bf16 %v3142, %v2995
        %v3357 = vpack.c.bf16 %v3289, %v3289
        %v3358 = vpack.c.bf16 %v2262, %v2115
        %v3359 = vpack.c.bf16 %v2556, %v2409
        %v3360 = vpack.c.bf16 %v2850, %v2703
        %v3361 = vpack.c.bf16 %v3144, %v2997
        %v3362 = vpack.c.bf16 %v3291, %v3291
        %v3363 = vpack.c.bf16 %v2265, %v2118
        %v3364 = vpack.c.bf16 %v2559, %v2412
        %v3365 = vpack.c.bf16 %v2853, %v2706
        %v3366 = vpack.c.bf16 %v3147, %v3000
        %v3367 = vpack.c.bf16 %v3294, %v3294
        %v3368 = vpack.c.bf16 %v2267, %v2120
        %v3369 = vpack.c.bf16 %v2561, %v2414
        %v3370 = vpack.c.bf16 %v2855, %v2708
        %v3371 = vpack.c.bf16 %v3149, %v3002
        %v3372 = vpack.c.bf16 %v3296, %v3296
        %v3373 = vpack.c.bf16 %v2270, %v2123
        %v3374 = vpack.c.bf16 %v2564, %v2417
        %v3375 = vpack.c.bf16 %v2858, %v2711
        %v3376 = vpack.c.bf16 %v3152, %v3005
        %v3377 = vpack.c.bf16 %v3299, %v3299
        %v3378 = vpack.c.bf16 %v2272, %v2125
        %v3379 = vpack.c.bf16 %v2566, %v2419
        %v3380 = vpack.c.bf16 %v2860, %v2713
        %v3381 = vpack.c.bf16 %v3154, %v3007
        %v3382 = vpack.c.bf16 %v3301, %v3301
        %v3399 = vunpack.c.l.b16 %v3303
        %v3400 = vunpack.c.l.b16 %v3308
        %v3401 = vunpack.c.l.b16 %v3313
        %v3402 = vunpack.c.l.b16 %v3318
        %v3403 = vunpack.c.l.b16 %v3323
        %v3404 = vunpack.c.l.b16 %v3328
        %v3405 = vunpack.c.l.b16 %v3333
        %v3406 = vunpack.c.l.b16 %v3338
        %v3407 = vunpack.c.l.b16 %v3343
        %v3408 = vunpack.c.l.b16 %v3348
        %v3409 = vunpack.c.l.b16 %v3353
        %v3410 = vunpack.c.l.b16 %v3358
        %v3411 = vunpack.c.l.b16 %v3363
        %v3412 = vunpack.c.l.b16 %v3368
        %v3413 = vunpack.c.l.b16 %v3373
        %v3414 = vunpack.c.l.b16 %v3378
        %v3415 = vpack.c.b16 %v3400, %v3399
        %v3416 = vpack.c.b16 %v3402, %v3401
        %v3417 = vpack.c.b16 %v3404, %v3403
        %v3418 = vpack.c.b16 %v3406, %v3405
        %v3419 = vpack.c.b16 %v3408, %v3407
        %v3420 = vpack.c.b16 %v3410, %v3409
        %v3421 = vpack.c.b16 %v3412, %v3411
        %v3422 = vpack.c.b16 %v3414, %v3413
        %v3439 = vunpack.c.h.b16 %v3304
        %v3440 = vunpack.c.h.b16 %v3309
        %v3441 = vunpack.c.h.b16 %v3314
        %v3442 = vunpack.c.h.b16 %v3319
        %v3443 = vunpack.c.h.b16 %v3324
        %v3444 = vunpack.c.h.b16 %v3329
        %v3445 = vunpack.c.h.b16 %v3334
        %v3446 = vunpack.c.h.b16 %v3339
        %v3447 = vunpack.c.h.b16 %v3344
        %v3448 = vunpack.c.h.b16 %v3349
        %v3449 = vunpack.c.h.b16 %v3354
        %v3450 = vunpack.c.h.b16 %v3359
        %v3451 = vunpack.c.h.b16 %v3364
        %v3452 = vunpack.c.h.b16 %v3369
        %v3453 = vunpack.c.h.b16 %v3374
        %v3454 = vunpack.c.h.b16 %v3379
        %v3455 = vpack.c.b16 %v3440, %v3439
        %v3456 = vpack.c.b16 %v3442, %v3441
        %v3457 = vpack.c.b16 %v3444, %v3443
        %v3458 = vpack.c.b16 %v3446, %v3445
        %v3459 = vpack.c.b16 %v3448, %v3447
        %v3460 = vpack.c.b16 %v3450, %v3449
        %v3461 = vpack.c.b16 %v3452, %v3451
        %v3462 = vpack.c.b16 %v3454, %v3453
        %vm3463 = vcmask 523264
        %v3465 = vsel %vm3463, %v3415, 0
        %v3468 = vsel %vm3463, %v3416, 0
        %v3471 = vsel %vm3463, %v3417, 0
        %v3474 = vsel %vm3463, %v3418, 0
        %v3477 = vsel %vm3463, %v3419, 0
        %v3480 = vsel %vm3463, %v3420, 0
        %v3483 = vsel %vm3463, %v3421, 0
        %v3486 = vsel %vm3463, %v3422, 0
        %v3489 = vsel %vm3463, %v3455, 0
        %v3492 = vsel %vm3463, %v3456, 0
        %v3495 = vsel %vm3463, %v3457, 0
        %v3498 = vsel %vm3463, %v3458, 0
        %v3501 = vsel %vm3463, %v3459, 0
        %v3504 = vsel %vm3463, %v3460, 0
        %v3507 = vsel %vm3463, %v3461, 0
        %v3510 = vsel %vm3463, %v3462, 0
        %3512 = vmatpush.bf16.xpose.msra.mxu0 %v3510
        %3513 = vmatpush.bf16.xpose.msra.mxu0 %v3507
        %3514 = vmatpush.bf16.xpose.msra.mxu0 %v3504
        %3515 = vmatpush.bf16.xpose.msra.mxu0 %v3501
        %3516 = vmatpush.bf16.xpose.msra.mxu0 %v3498
        %3517 = vmatpush.bf16.xpose.msra.mxu0 %v3495
        %3518 = vmatpush.bf16.xpose.msra.mxu0 %v3492
        %3519 = vmatpush.bf16.xpose.msra.mxu0 %v3489
        %3520 = vmatmul.bf16.gmra.mxu0 %v3465
        %v3521 = vpop.f32.mrf.mxu0
        %v3522 = vadd.f32 %v684, %v3521
        %v3523 = vpop.f32.mrf.mxu0
        %v3524 = vadd.f32 %v685, %v3523
        %3525 = vmatmul.bf16.gmra.mxu0 %v3468
        %v3526 = vpop.f32.mrf.mxu0
        %v3527 = vadd.f32 %v686, %v3526
        %v3528 = vpop.f32.mrf.mxu0
        %v3529 = vadd.f32 %v687, %v3528
        %3530 = vmatmul.bf16.gmra.mxu0 %v3471
        %v3531 = vpop.f32.mrf.mxu0
        %v3532 = vadd.f32 %v688, %v3531
        %v3533 = vpop.f32.mrf.mxu0
        %v3534 = vadd.f32 %v689, %v3533
        %3535 = vmatmul.bf16.gmra.mxu0 %v3474
        %v3536 = vpop.f32.mrf.mxu0
        %v3537 = vadd.f32 %v690, %v3536
        %v3538 = vpop.f32.mrf.mxu0
        %v3539 = vadd.f32 %v691, %v3538
        %3540 = vmatmul.bf16.gmra.mxu0 %v3477
        %v3541 = vpop.f32.mrf.mxu0
        %v3542 = vadd.f32 %v692, %v3541
        %v3543 = vpop.f32.mrf.mxu0
        %v3544 = vadd.f32 %v693, %v3543
        %3545 = vmatmul.bf16.gmra.mxu0 %v3480
        %v3546 = vpop.f32.mrf.mxu0
        %v3547 = vadd.f32 %v694, %v3546
        %v3548 = vpop.f32.mrf.mxu0
        %v3549 = vadd.f32 %v695, %v3548
        %3550 = vmatmul.bf16.gmra.mxu0 %v3483
        %v3551 = vpop.f32.mrf.mxu0
        %v3552 = vadd.f32 %v696, %v3551
        %v3553 = vpop.f32.mrf.mxu0
        %v3554 = vadd.f32 %v697, %v3553
        %3555 = vmatmul.bf16.gmra.mxu0 %v3486
        %v3556 = vpop.f32.mrf.mxu0
        %v3557 = vadd.f32 %v698, %v3556
        %v3558 = vpop.f32.mrf.mxu0
        %v3559 = vadd.f32 %v699, %v3558
        %3560 = vdwg.mxu0
        %3561 = vmax.xlane.f32.xlu0 %v3522
        %v3562 = vpop.xlane.xlu0 %3561
        %3563 = vmax.xlane.f32.xlu0 %v3524
        %v3564 = vpop.xlane.xlu0 %3563
        %3565 = vmax.xlane.f32.xlu0 %v3527
        %v3566 = vpop.xlane.xlu0 %3565
        %3567 = vmax.xlane.f32.xlu0 %v3529
        %v3568 = vpop.xlane.xlu0 %3567
        %3569 = vmax.xlane.f32.xlu0 %v3532
        %v3570 = vpop.xlane.xlu0 %3569
        %3571 = vmax.xlane.f32.xlu0 %v3534
        %v3572 = vpop.xlane.xlu0 %3571
        %3573 = vmax.xlane.f32.xlu0 %v3537
        %v3574 = vpop.xlane.xlu0 %3573
        %3575 = vmax.xlane.f32.xlu0 %v3539
        %v3576 = vpop.xlane.xlu0 %3575
        %3577 = vmax.xlane.f32.xlu0 %v3542
        %v3578 = vpop.xlane.xlu0 %3577
        %3579 = vmax.xlane.f32.xlu0 %v3544
        %v3580 = vpop.xlane.xlu0 %3579
        %3581 = vmax.xlane.f32.xlu0 %v3547
        %v3582 = vpop.xlane.xlu0 %3581
        %3583 = vmax.xlane.f32.xlu0 %v3549
        %v3584 = vpop.xlane.xlu0 %3583
        %3585 = vmax.xlane.f32.xlu0 %v3552
        %v3586 = vpop.xlane.xlu0 %3585
        %3587 = vmax.xlane.f32.xlu0 %v3554
        %v3588 = vpop.xlane.xlu0 %3587
        %3589 = vmax.xlane.f32.xlu0 %v3557
        %v3590 = vpop.xlane.xlu0 %3589
        %3591 = vmax.xlane.f32.xlu0 %v3559
        %v3592 = vpop.xlane.xlu0 %3591
        %v3593 = vsub.f32 %v3522, %v3562
        %v3594 = vsub.f32 %v3524, %v3564
        %v3595 = vsub.f32 %v3527, %v3566
        %v3596 = vsub.f32 %v3529, %v3568
        %v3597 = vsub.f32 %v3532, %v3570
        %v3598 = vsub.f32 %v3534, %v3572
        %v3599 = vsub.f32 %v3537, %v3574
        %v3600 = vsub.f32 %v3539, %v3576
        %v3601 = vsub.f32 %v3542, %v3578
        %v3602 = vsub.f32 %v3544, %v3580
        %v3603 = vsub.f32 %v3547, %v3582
        %v3604 = vsub.f32 %v3549, %v3584
        %v3605 = vsub.f32 %v3552, %v3586
        %v3606 = vsub.f32 %v3554, %v3588
        %v3607 = vsub.f32 %v3557, %v3590
        %v3608 = vsub.f32 %v3559, %v3592
        %v3609 = vmul.f32 %v3593, 1.442695
        %v3610 = vpow.pop %v3609
        %v3611 = vmul.f32 %v3594, 1.442695
        %v3612 = vpow.pop %v3611
        %v3613 = vmul.f32 %v3595, 1.442695
        %v3614 = vpow.pop %v3613
        %v3615 = vmul.f32 %v3596, 1.442695
        %v3616 = vpow.pop %v3615
        %v3617 = vmul.f32 %v3597, 1.442695
        %v3618 = vpow.pop %v3617
        %v3619 = vmul.f32 %v3598, 1.442695
        %v3620 = vpow.pop %v3619
        %v3621 = vmul.f32 %v3599, 1.442695
        %v3622 = vpow.pop %v3621
        %v3623 = vmul.f32 %v3600, 1.442695
        %v3624 = vpow.pop %v3623
        %v3625 = vmul.f32 %v3601, 1.442695
        %v3626 = vpow.pop %v3625
        %v3627 = vmul.f32 %v3602, 1.442695
        %v3628 = vpow.pop %v3627
        %v3629 = vmul.f32 %v3603, 1.442695
        %v3630 = vpow.pop %v3629
        %v3631 = vmul.f32 %v3604, 1.442695
        %v3632 = vpow.pop %v3631
        %v3633 = vmul.f32 %v3605, 1.442695
        %v3634 = vpow.pop %v3633
        %v3635 = vmul.f32 %v3606, 1.442695
        %v3636 = vpow.pop %v3635
        %v3637 = vmul.f32 %v3607, 1.442695
        %v3638 = vpow.pop %v3637
        %v3639 = vmul.f32 %v3608, 1.442695
        %v3640 = vpow.pop %v3639
        %3641 = vadd.xlane.f32.xlu0 %v3610
        %v3642 = vpop.xlane.xlu0 %3641
        %3643 = vadd.xlane.f32.xlu0 %v3612
        %v3644 = vpop.xlane.xlu0 %3643
        %3645 = vadd.xlane.f32.xlu0 %v3614
        %v3646 = vpop.xlane.xlu0 %3645
        %3647 = vadd.xlane.f32.xlu0 %v3616
        %v3648 = vpop.xlane.xlu0 %3647
        %3649 = vadd.xlane.f32.xlu0 %v3618
        %v3650 = vpop.xlane.xlu0 %3649
        %3651 = vadd.xlane.f32.xlu0 %v3620
        %v3652 = vpop.xlane.xlu0 %3651
        %3653 = vadd.xlane.f32.xlu0 %v3622
        %v3654 = vpop.xlane.xlu0 %3653
        %3655 = vadd.xlane.f32.xlu0 %v3624
        %v3656 = vpop.xlane.xlu0 %3655
        %3657 = vadd.xlane.f32.xlu0 %v3626
        %v3658 = vpop.xlane.xlu0 %3657
        %3659 = vadd.xlane.f32.xlu0 %v3628
        %v3660 = vpop.xlane.xlu0 %3659
        %3661 = vadd.xlane.f32.xlu0 %v3630
        %v3662 = vpop.xlane.xlu0 %3661
        %3663 = vadd.xlane.f32.xlu0 %v3632
        %v3664 = vpop.xlane.xlu0 %3663
        %3665 = vadd.xlane.f32.xlu0 %v3634
        %v3666 = vpop.xlane.xlu0 %3665
        %3667 = vadd.xlane.f32.xlu0 %v3636
        %v3668 = vpop.xlane.xlu0 %3667
        %3669 = vadd.xlane.f32.xlu0 %v3638
        %v3670 = vpop.xlane.xlu0 %3669
        %3671 = vadd.xlane.f32.xlu0 %v3640
        %v3672 = vpop.xlane.xlu0 %3671
        %v3673 = vpack.c.bf16 %v3612, %v3610
        %v3674 = vpack.c.bf16 %v3616, %v3614
        %v3675 = vpack.c.bf16 %v3620, %v3618
        %v3676 = vpack.c.bf16 %v3624, %v3622
        %v3677 = vpack.c.bf16 %v3628, %v3626
        %v3678 = vpack.c.bf16 %v3632, %v3630
        %v3679 = vpack.c.bf16 %v3636, %v3634
        %v3680 = vpack.c.bf16 %v3640, %v3638
        %v3697 = vunpack.c.l.b16 %v3306
        %v3698 = vunpack.c.l.b16 %v3311
        %v3699 = vunpack.c.l.b16 %v3316
        %v3700 = vunpack.c.l.b16 %v3321
        %v3701 = vunpack.c.l.b16 %v3326
        %v3702 = vunpack.c.l.b16 %v3331
        %v3703 = vunpack.c.l.b16 %v3336
        %v3704 = vunpack.c.l.b16 %v3341
        %v3705 = vunpack.c.l.b16 %v3346
        %v3706 = vunpack.c.l.b16 %v3351
        %v3707 = vunpack.c.l.b16 %v3356
        %v3708 = vunpack.c.l.b16 %v3361
        %v3709 = vunpack.c.l.b16 %v3366
        %v3710 = vunpack.c.l.b16 %v3371
        %v3711 = vunpack.c.l.b16 %v3376
        %v3712 = vunpack.c.l.b16 %v3381
        %v3713 = vpack.c.b16 %v3698, %v3697
        %v3714 = vpack.c.b16 %v3700, %v3699
        %v3715 = vpack.c.b16 %v3702, %v3701
        %v3716 = vpack.c.b16 %v3704, %v3703
        %v3717 = vpack.c.b16 %v3706, %v3705
        %v3718 = vpack.c.b16 %v3708, %v3707
        %v3719 = vpack.c.b16 %v3710, %v3709
        %v3720 = vpack.c.b16 %v3712, %v3711
        %3729 = vmatpush.bf16.msra.mxu0 %v3720
        %3730 = vmatpush.bf16.msra.mxu0 %v3719
        %3731 = vmatpush.bf16.msra.mxu0 %v3718
        %3732 = vmatpush.bf16.msra.mxu0 %v3717
        %3733 = vmatpush.bf16.msra.mxu0 %v3716
        %3734 = vmatpush.bf16.msra.mxu0 %v3715
        %3735 = vmatpush.bf16.msra.mxu0 %v3714
        %3736 = vmatpush.bf16.msra.mxu0 %v3713
        %3737 = vmatmul.bf16.gmra.mxu0 %v3673
        %v3738 = vpop.f32.mrf.mxu0
        %v3739 = vadd.f32 0.0, %v3738
        %v3740 = vpop.f32.mrf.mxu0
        %v3741 = vadd.f32 0.0, %v3740
        %3742 = vmatmul.bf16.gmra.mxu0 %v3674
        %v3743 = vpop.f32.mrf.mxu0
        %v3744 = vadd.f32 0.0, %v3743
        %v3745 = vpop.f32.mrf.mxu0
        %v3746 = vadd.f32 0.0, %v3745
        %3747 = vmatmul.bf16.gmra.mxu0 %v3675
        %v3748 = vpop.f32.mrf.mxu0
        %v3749 = vadd.f32 0.0, %v3748
        %v3750 = vpop.f32.mrf.mxu0
        %v3751 = vadd.f32 0.0, %v3750
        %3752 = vmatmul.bf16.gmra.mxu0 %v3676
        %v3753 = vpop.f32.mrf.mxu0
        %v3754 = vadd.f32 0.0, %v3753
        %v3755 = vpop.f32.mrf.mxu0
        %v3756 = vadd.f32 0.0, %v3755
        %3757 = vmatmul.bf16.gmra.mxu0 %v3677
        %v3758 = vpop.f32.mrf.mxu0
        %v3759 = vadd.f32 0.0, %v3758
        %v3760 = vpop.f32.mrf.mxu0
        %v3761 = vadd.f32 0.0, %v3760
        %3762 = vmatmul.bf16.gmra.mxu0 %v3678
        %v3763 = vpop.f32.mrf.mxu0
        %v3764 = vadd.f32 0.0, %v3763
        %v3765 = vpop.f32.mrf.mxu0
        %v3766 = vadd.f32 0.0, %v3765
        %3767 = vmatmul.bf16.gmra.mxu0 %v3679
        %v3768 = vpop.f32.mrf.mxu0
        %v3769 = vadd.f32 0.0, %v3768
        %v3770 = vpop.f32.mrf.mxu0
        %v3771 = vadd.f32 0.0, %v3770
        %3772 = vmatmul.bf16.gmra.mxu0 %v3680
        %v3773 = vpop.f32.mrf.mxu0
        %v3774 = vadd.f32 0.0, %v3773
        %v3775 = vpop.f32.mrf.mxu0
        %v3776 = vadd.f32 0.0, %v3775
        %3777 = vdwg.mxu0
        %v3778 = vrcp.pop %v3642
        %v3779 = vrcp.pop %v3644
        %v3780 = vrcp.pop %v3646
        %v3781 = vrcp.pop %v3648
        %v3782 = vrcp.pop %v3650
        %v3783 = vrcp.pop %v3652
        %v3784 = vrcp.pop %v3654
        %v3785 = vrcp.pop %v3656
        %v3786 = vrcp.pop %v3658
        %v3787 = vrcp.pop %v3660
        %v3788 = vrcp.pop %v3662
        %v3789 = vrcp.pop %v3664
        %v3790 = vrcp.pop %v3666
        %v3791 = vrcp.pop %v3668
        %v3792 = vrcp.pop %v3670
        %v3793 = vrcp.pop %v3672
        %v3794 = vmul.f32 %v3739, %v3778
        %v3795 = vmul.f32 %v3741, %v3779
        %v3796 = vmul.f32 %v3744, %v3780
        %v3797 = vmul.f32 %v3746, %v3781
        %v3798 = vmul.f32 %v3749, %v3782
        %v3799 = vmul.f32 %v3751, %v3783
        %v3800 = vmul.f32 %v3754, %v3784
        %v3801 = vmul.f32 %v3756, %v3785
        %v3802 = vmul.f32 %v3759, %v3786
        %v3803 = vmul.f32 %v3761, %v3787
        %v3804 = vmul.f32 %v3764, %v3788
        %v3805 = vmul.f32 %v3766, %v3789
        %v3806 = vmul.f32 %v3769, %v3790
        %v3807 = vmul.f32 %v3771, %v3791
        %v3808 = vmul.f32 %v3774, %v3792
        %v3809 = vmul.f32 %v3776, %v3793
        %v3810 = vpack.c.bf16 %v3794, %v3794
        %v3811 = vpack.c.bf16 %v3795, %v3795
        %v3812 = vpack.c.bf16 %v3796, %v3796
        %v3813 = vpack.c.bf16 %v3797, %v3797
        %v3814 = vpack.c.bf16 %v3798, %v3798
        %v3815 = vpack.c.bf16 %v3799, %v3799
        %v3816 = vpack.c.bf16 %v3800, %v3800
        %v3817 = vpack.c.bf16 %v3801, %v3801
        %v3818 = vpack.c.bf16 %v3802, %v3802
        %v3819 = vpack.c.bf16 %v3803, %v3803
        %v3820 = vpack.c.bf16 %v3804, %v3804
        %v3821 = vpack.c.bf16 %v3805, %v3805
        %v3822 = vpack.c.bf16 %v3806, %v3806
        %v3823 = vpack.c.bf16 %v3807, %v3807
        %v3824 = vpack.c.bf16 %v3808, %v3808
        %v3825 = vpack.c.bf16 %v3809, %v3809
        %vm3826 = vcmask 519168
        %3827 = vst.msk [vmem:[#allocation2] sm:$0xf] %vm3826, %v3810
        %3828 = vst.msk [vmem:[#allocation2 + $0xc] sm:$0xf] %vm3826, %v3811
        %3829 = vst.msk [vmem:[#allocation2 + $0x18] sm:$0xf] %vm3826, %v3812
        %3830 = vst.msk [vmem:[#allocation2 + $0x24] sm:$0xf] %vm3826, %v3813
        %3831 = vst.msk [vmem:[#allocation2 + $0x30] sm:$0xf] %vm3826, %v3814
        %3832 = vst.msk [vmem:[#allocation2 + $0x3c] sm:$0xf] %vm3826, %v3815
        %3833 = vst.msk [vmem:[#allocation2 + $0x48] sm:$0xf] %vm3826, %v3816
        %3834 = vst.msk [vmem:[#allocation2 + $0x54] sm:$0xf] %vm3826, %v3817
        %3835 = vst.msk [vmem:[#allocation2 + $0x60] sm:$0xf] %vm3826, %v3818
        %3836 = vst.msk [vmem:[#allocation2 + $0x6c] sm:$0xf] %vm3826, %v3819
        %3837 = vst.msk [vmem:[#allocation2 + $0x78] sm:$0xf] %vm3826, %v3820
        %3838 = vst.msk [vmem:[#allocation2 + $0x84] sm:$0xf] %vm3826, %v3821
        %3839 = vst.msk [vmem:[#allocation2 + $0x90] sm:$0xf] %vm3826, %v3822
        %3840 = vst.msk [vmem:[#allocation2 + $0x9c] sm:$0xf] %vm3826, %v3823
        %3841 = vst.msk [vmem:[#allocation2 + $0xa8] sm:$0xf] %vm3826, %v3824
        %3842 = vst.msk [vmem:[#allocation2 + $0xb4] sm:$0xf] %vm3826, %v3825
        %3843 = vrot.lane.b32.xlu0 %v3415, 64
        %v3844 = vpop.permute.xlu0 %3843
        %3845 = vrot.lane.b32.xlu0 %v3416, 64
        %v3846 = vpop.permute.xlu0 %3845
        %3847 = vrot.lane.b32.xlu0 %v3417, 64
        %v3848 = vpop.permute.xlu0 %3847
        %3849 = vrot.lane.b32.xlu0 %v3418, 64
        %v3850 = vpop.permute.xlu0 %3849
        %3851 = vrot.lane.b32.xlu0 %v3419, 64
        %v3852 = vpop.permute.xlu0 %3851
        %3853 = vrot.lane.b32.xlu0 %v3420, 64
        %v3854 = vpop.permute.xlu0 %3853
        %3855 = vrot.lane.b32.xlu0 %v3421, 64
        %v3856 = vpop.permute.xlu0 %3855
        %3857 = vrot.lane.b32.xlu0 %v3422, 64
        %v3858 = vpop.permute.xlu0 %3857
        %3859 = vrot.lane.b32.xlu0 %v3455, 64
        %v3860 = vpop.permute.xlu0 %3859
        %3861 = vrot.lane.b32.xlu0 %v3456, 64
        %v3862 = vpop.permute.xlu0 %3861
        %3863 = vrot.lane.b32.xlu0 %v3457, 64
        %v3864 = vpop.permute.xlu0 %3863
        %3865 = vrot.lane.b32.xlu0 %v3458, 64
        %v3866 = vpop.permute.xlu0 %3865
        %3867 = vrot.lane.b32.xlu0 %v3459, 64
        %v3868 = vpop.permute.xlu0 %3867
        %3869 = vrot.lane.b32.xlu0 %v3460, 64
        %v3870 = vpop.permute.xlu0 %3869
        %3871 = vrot.lane.b32.xlu0 %v3461, 64
        %v3872 = vpop.permute.xlu0 %3871
        %3873 = vrot.lane.b32.xlu0 %v3462, 64
        %v3874 = vpop.permute.xlu0 %3873
        %v3876 = vsel %vm3463, %v3844, 0
        %v3879 = vsel %vm3463, %v3846, 0
        %v3882 = vsel %vm3463, %v3848, 0
        %v3885 = vsel %vm3463, %v3850, 0
        %v3888 = vsel %vm3463, %v3852, 0
        %v3891 = vsel %vm3463, %v3854, 0
        %v3894 = vsel %vm3463, %v3856, 0
        %v3897 = vsel %vm3463, %v3858, 0
        %v3900 = vsel %vm3463, %v3860, 0
        %v3903 = vsel %vm3463, %v3862, 0
        %v3906 = vsel %vm3463, %v3864, 0
        %v3909 = vsel %vm3463, %v3866, 0
        %v3912 = vsel %vm3463, %v3868, 0
        %v3915 = vsel %vm3463, %v3870, 0
        %v3918 = vsel %vm3463, %v3872, 0
        %v3921 = vsel %vm3463, %v3874, 0
        %3923 = vmatpush.bf16.xpose.msra.mxu0 %v3921
        %3924 = vmatpush.bf16.xpose.msra.mxu0 %v3918
        %3925 = vmatpush.bf16.xpose.msra.mxu0 %v3915
        %3926 = vmatpush.bf16.xpose.msra.mxu0 %v3912
        %3927 = vmatpush.bf16.xpose.msra.mxu0 %v3909
        %3928 = vmatpush.bf16.xpose.msra.mxu0 %v3906
        %3929 = vmatpush.bf16.xpose.msra.mxu0 %v3903
        %3930 = vmatpush.bf16.xpose.msra.mxu0 %v3900
        %3931 = vmatmul.bf16.gmra.mxu0 %v3876
        %v3932 = vpop.f32.mrf.mxu0
        %v3933 = vadd.f32 %v684, %v3932
        %v3934 = vpop.f32.mrf.mxu0
        %v3935 = vadd.f32 %v685, %v3934
        %3936 = vmatmul.bf16.gmra.mxu0 %v3879
        %v3937 = vpop.f32.mrf.mxu0
        %v3938 = vadd.f32 %v686, %v3937
        %v3939 = vpop.f32.mrf.mxu0
        %v3940 = vadd.f32 %v687, %v3939
        %3941 = vmatmul.bf16.gmra.mxu0 %v3882
        %v3942 = vpop.f32.mrf.mxu0
        %v3943 = vadd.f32 %v688, %v3942
        %v3944 = vpop.f32.mrf.mxu0
        %v3945 = vadd.f32 %v689, %v3944
        %3946 = vmatmul.bf16.gmra.mxu0 %v3885
        %v3947 = vpop.f32.mrf.mxu0
        %v3948 = vadd.f32 %v690, %v3947
        %v3949 = vpop.f32.mrf.mxu0
        %v3950 = vadd.f32 %v691, %v3949
        %3951 = vmatmul.bf16.gmra.mxu0 %v3888
        %v3952 = vpop.f32.mrf.mxu0
        %v3953 = vadd.f32 %v692, %v3952
        %v3954 = vpop.f32.mrf.mxu0
        %v3955 = vadd.f32 %v693, %v3954
        %3956 = vmatmul.bf16.gmra.mxu0 %v3891
        %v3957 = vpop.f32.mrf.mxu0
        %v3958 = vadd.f32 %v694, %v3957
        %v3959 = vpop.f32.mrf.mxu0
        %v3960 = vadd.f32 %v695, %v3959
        %3961 = vmatmul.bf16.gmra.mxu0 %v3894
        %v3962 = vpop.f32.mrf.mxu0
        %v3963 = vadd.f32 %v696, %v3962
        %v3964 = vpop.f32.mrf.mxu0
        %v3965 = vadd.f32 %v697, %v3964
        %3966 = vmatmul.bf16.gmra.mxu0 %v3897
        %v3967 = vpop.f32.mrf.mxu0
        %v3968 = vadd.f32 %v698, %v3967
        %v3969 = vpop.f32.mrf.mxu0
        %v3970 = vadd.f32 %v699, %v3969
        %3971 = vdwg.mxu0
        %3972 = vmax.xlane.f32.xlu0 %v3933
        %v3973 = vpop.xlane.xlu0 %3972
        %3974 = vmax.xlane.f32.xlu0 %v3935
        %v3975 = vpop.xlane.xlu0 %3974
        %3976 = vmax.xlane.f32.xlu0 %v3938
        %v3977 = vpop.xlane.xlu0 %3976
        %3978 = vmax.xlane.f32.xlu0 %v3940
        %v3979 = vpop.xlane.xlu0 %3978
        %3980 = vmax.xlane.f32.xlu0 %v3943
        %v3981 = vpop.xlane.xlu0 %3980
        %3982 = vmax.xlane.f32.xlu0 %v3945
        %v3983 = vpop.xlane.xlu0 %3982
        %3984 = vmax.xlane.f32.xlu0 %v3948
        %v3985 = vpop.xlane.xlu0 %3984
        %3986 = vmax.xlane.f32.xlu0 %v3950
        %v3987 = vpop.xlane.xlu0 %3986
        %3988 = vmax.xlane.f32.xlu0 %v3953
        %v3989 = vpop.xlane.xlu0 %3988
        %3990 = vmax.xlane.f32.xlu0 %v3955
        %v3991 = vpop.xlane.xlu0 %3990
        %3992 = vmax.xlane.f32.xlu0 %v3958
        %v3993 = vpop.xlane.xlu0 %3992
        %3994 = vmax.xlane.f32.xlu0 %v3960
        %v3995 = vpop.xlane.xlu0 %3994
        %3996 = vmax.xlane.f32.xlu0 %v3963
        %v3997 = vpop.xlane.xlu0 %3996
        %3998 = vmax.xlane.f32.xlu0 %v3965
        %v3999 = vpop.xlane.xlu0 %3998
        %4000 = vmax.xlane.f32.xlu0 %v3968
        %v4001 = vpop.xlane.xlu0 %4000
        %4002 = vmax.xlane.f32.xlu0 %v3970
        %v4003 = vpop.xlane.xlu0 %4002
        %v4004 = vsub.f32 %v3933, %v3973
        %v4005 = vsub.f32 %v3935, %v3975
        %v4006 = vsub.f32 %v3938, %v3977
        %v4007 = vsub.f32 %v3940, %v3979
        %v4008 = vsub.f32 %v3943, %v3981
        %v4009 = vsub.f32 %v3945, %v3983
        %v4010 = vsub.f32 %v3948, %v3985
        %v4011 = vsub.f32 %v3950, %v3987
        %v4012 = vsub.f32 %v3953, %v3989
        %v4013 = vsub.f32 %v3955, %v3991
        %v4014 = vsub.f32 %v3958, %v3993
        %v4015 = vsub.f32 %v3960, %v3995
        %v4016 = vsub.f32 %v3963, %v3997
        %v4017 = vsub.f32 %v3965, %v3999
        %v4018 = vsub.f32 %v3968, %v4001
        %v4019 = vsub.f32 %v3970, %v4003
        %v4020 = vmul.f32 %v4004, 1.442695
        %v4021 = vpow.pop %v4020
        %v4022 = vmul.f32 %v4005, 1.442695
        %v4023 = vpow.pop %v4022
        %v4024 = vmul.f32 %v4006, 1.442695
        %v4025 = vpow.pop %v4024
        %v4026 = vmul.f32 %v4007, 1.442695
        %v4027 = vpow.pop %v4026
        %v4028 = vmul.f32 %v4008, 1.442695
        %v4029 = vpow.pop %v4028
        %v4030 = vmul.f32 %v4009, 1.442695
        %v4031 = vpow.pop %v4030
        %v4032 = vmul.f32 %v4010, 1.442695
        %v4033 = vpow.pop %v4032
        %v4034 = vmul.f32 %v4011, 1.442695
        %v4035 = vpow.pop %v4034
        %v4036 = vmul.f32 %v4012, 1.442695
        %v4037 = vpow.pop %v4036
        %v4038 = vmul.f32 %v4013, 1.442695
        %v4039 = vpow.pop %v4038
        %v4040 = vmul.f32 %v4014, 1.442695
        %v4041 = vpow.pop %v4040
        %v4042 = vmul.f32 %v4015, 1.442695
        %v4043 = vpow.pop %v4042
        %v4044 = vmul.f32 %v4016, 1.442695
        %v4045 = vpow.pop %v4044
        %v4046 = vmul.f32 %v4017, 1.442695
        %v4047 = vpow.pop %v4046
        %v4048 = vmul.f32 %v4018, 1.442695
        %v4049 = vpow.pop %v4048
        %v4050 = vmul.f32 %v4019, 1.442695
        %v4051 = vpow.pop %v4050
        %4052 = vadd.xlane.f32.xlu0 %v4021
        %v4053 = vpop.xlane.xlu0 %4052
        %4054 = vadd.xlane.f32.xlu0 %v4023
        %v4055 = vpop.xlane.xlu0 %4054
        %4056 = vadd.xlane.f32.xlu0 %v4025
        %v4057 = vpop.xlane.xlu0 %4056
        %4058 = vadd.xlane.f32.xlu0 %v4027
        %v4059 = vpop.xlane.xlu0 %4058
        %4060 = vadd.xlane.f32.xlu0 %v4029
        %v4061 = vpop.xlane.xlu0 %4060
        %4062 = vadd.xlane.f32.xlu0 %v4031
        %v4063 = vpop.xlane.xlu0 %4062
        %4064 = vadd.xlane.f32.xlu0 %v4033
        %v4065 = vpop.xlane.xlu0 %4064
        %4066 = vadd.xlane.f32.xlu0 %v4035
        %v4067 = vpop.xlane.xlu0 %4066
        %4068 = vadd.xlane.f32.xlu0 %v4037
        %v4069 = vpop.xlane.xlu0 %4068
        %4070 = vadd.xlane.f32.xlu0 %v4039
        %v4071 = vpop.xlane.xlu0 %4070
        %4072 = vadd.xlane.f32.xlu0 %v4041
        %v4073 = vpop.xlane.xlu0 %4072
        %4074 = vadd.xlane.f32.xlu0 %v4043
        %v4075 = vpop.xlane.xlu0 %4074
        %4076 = vadd.xlane.f32.xlu0 %v4045
        %v4077 = vpop.xlane.xlu0 %4076
        %4078 = vadd.xlane.f32.xlu0 %v4047
        %v4079 = vpop.xlane.xlu0 %4078
        %4080 = vadd.xlane.f32.xlu0 %v4049
        %v4081 = vpop.xlane.xlu0 %4080
        %4082 = vadd.xlane.f32.xlu0 %v4051
        %v4083 = vpop.xlane.xlu0 %4082
        %v4084 = vpack.c.bf16 %v4023, %v4021
        %v4085 = vpack.c.bf16 %v4027, %v4025
        %v4086 = vpack.c.bf16 %v4031, %v4029
        %v4087 = vpack.c.bf16 %v4035, %v4033
        %v4088 = vpack.c.bf16 %v4039, %v4037
        %v4089 = vpack.c.bf16 %v4043, %v4041
        %v4090 = vpack.c.bf16 %v4047, %v4045
        %v4091 = vpack.c.bf16 %v4051, %v4049
        %4092 = vrot.lane.b32.xlu0 %v3713, 64
        %v4093 = vpop.permute.xlu0 %4092
        %4094 = vrot.lane.b32.xlu0 %v3714, 64
        %v4095 = vpop.permute.xlu0 %4094
        %4096 = vrot.lane.b32.xlu0 %v3715, 64
        %v4097 = vpop.permute.xlu0 %4096
        %4098 = vrot.lane.b32.xlu0 %v3716, 64
        %v4099 = vpop.permute.xlu0 %4098
        %4100 = vrot.lane.b32.xlu0 %v3717, 64
        %v4101 = vpop.permute.xlu0 %4100
        %4102 = vrot.lane.b32.xlu0 %v3718, 64
        %v4103 = vpop.permute.xlu0 %4102
        %4104 = vrot.lane.b32.xlu0 %v3719, 64
        %v4105 = vpop.permute.xlu0 %4104
        %4106 = vrot.lane.b32.xlu0 %v3720, 64
        %v4107 = vpop.permute.xlu0 %4106
        %4116 = vmatpush.bf16.msra.mxu0 %v4107
        %4117 = vmatpush.bf16.msra.mxu0 %v4105
        %4118 = vmatpush.bf16.msra.mxu0 %v4103
        %4119 = vmatpush.bf16.msra.mxu0 %v4101
        %4120 = vmatpush.bf16.msra.mxu0 %v4099
        %4121 = vmatpush.bf16.msra.mxu0 %v4097
        %4122 = vmatpush.bf16.msra.mxu0 %v4095
        %4123 = vmatpush.bf16.msra.mxu0 %v4093
        %4124 = vmatmul.bf16.gmra.mxu0 %v4084
        %v4125 = vpop.f32.mrf.mxu0
        %v4126 = vadd.f32 0.0, %v4125
        %v4127 = vpop.f32.mrf.mxu0
        %v4128 = vadd.f32 0.0, %v4127
        %4129 = vmatmul.bf16.gmra.mxu0 %v4085
        %v4130 = vpop.f32.mrf.mxu0
        %v4131 = vadd.f32 0.0, %v4130
        %v4132 = vpop.f32.mrf.mxu0
        %v4133 = vadd.f32 0.0, %v4132
        %4134 = vmatmul.bf16.gmra.mxu0 %v4086
        %v4135 = vpop.f32.mrf.mxu0
        %v4136 = vadd.f32 0.0, %v4135
        %v4137 = vpop.f32.mrf.mxu0
        %v4138 = vadd.f32 0.0, %v4137
        %4139 = vmatmul.bf16.gmra.mxu0 %v4087
        %v4140 = vpop.f32.mrf.mxu0
        %v4141 = vadd.f32 0.0, %v4140
        %v4142 = vpop.f32.mrf.mxu0
        %v4143 = vadd.f32 0.0, %v4142
        %4144 = vmatmul.bf16.gmra.mxu0 %v4088
        %v4145 = vpop.f32.mrf.mxu0
        %v4146 = vadd.f32 0.0, %v4145
        %v4147 = vpop.f32.mrf.mxu0
        %v4148 = vadd.f32 0.0, %v4147
        %4149 = vmatmul.bf16.gmra.mxu0 %v4089
        %v4150 = vpop.f32.mrf.mxu0
        %v4151 = vadd.f32 0.0, %v4150
        %v4152 = vpop.f32.mrf.mxu0
        %v4153 = vadd.f32 0.0, %v4152
        %4154 = vmatmul.bf16.gmra.mxu0 %v4090
        %v4155 = vpop.f32.mrf.mxu0
        %v4156 = vadd.f32 0.0, %v4155
        %v4157 = vpop.f32.mrf.mxu0
        %v4158 = vadd.f32 0.0, %v4157
        %4159 = vmatmul.bf16.gmra.mxu0 %v4091
        %v4160 = vpop.f32.mrf.mxu0
        %v4161 = vadd.f32 0.0, %v4160
        %v4162 = vpop.f32.mrf.mxu0
        %v4163 = vadd.f32 0.0, %v4162
        %4164 = vdwg.mxu0
        %v4165 = vrcp.pop %v4053
        %v4166 = vrcp.pop %v4055
        %v4167 = vrcp.pop %v4057
        %v4168 = vrcp.pop %v4059
        %v4169 = vrcp.pop %v4061
        %v4170 = vrcp.pop %v4063
        %v4171 = vrcp.pop %v4065
        %v4172 = vrcp.pop %v4067
        %v4173 = vrcp.pop %v4069
        %v4174 = vrcp.pop %v4071
        %v4175 = vrcp.pop %v4073
        %v4176 = vrcp.pop %v4075
        %v4177 = vrcp.pop %v4077
        %v4178 = vrcp.pop %v4079
        %v4179 = vrcp.pop %v4081
        %v4180 = vrcp.pop %v4083
        %v4181 = vmul.f32 %v4126, %v4165
        %v4182 = vmul.f32 %v4128, %v4166
        %v4183 = vmul.f32 %v4131, %v4167
        %v4184 = vmul.f32 %v4133, %v4168
        %v4185 = vmul.f32 %v4136, %v4169
        %v4186 = vmul.f32 %v4138, %v4170
        %v4187 = vmul.f32 %v4141, %v4171
        %v4188 = vmul.f32 %v4143, %v4172
        %v4189 = vmul.f32 %v4146, %v4173
        %v4190 = vmul.f32 %v4148, %v4174
        %v4191 = vmul.f32 %v4151, %v4175
        %v4192 = vmul.f32 %v4153, %v4176
        %v4193 = vmul.f32 %v4156, %v4177
        %v4194 = vmul.f32 %v4158, %v4178
        %v4195 = vmul.f32 %v4161, %v4179
        %v4196 = vmul.f32 %v4163, %v4180
        %v4197 = vpack.c.bf16 %v4181, %v4181
        %v4198 = vpack.c.bf16 %v4182, %v4182
        %v4199 = vpack.c.bf16 %v4183, %v4183
        %v4200 = vpack.c.bf16 %v4184, %v4184
        %v4201 = vpack.c.bf16 %v4185, %v4185
        %v4202 = vpack.c.bf16 %v4186, %v4186
        %v4203 = vpack.c.bf16 %v4187, %v4187
        %v4204 = vpack.c.bf16 %v4188, %v4188
        %v4205 = vpack.c.bf16 %v4189, %v4189
        %v4206 = vpack.c.bf16 %v4190, %v4190
        %v4207 = vpack.c.bf16 %v4191, %v4191
        %v4208 = vpack.c.bf16 %v4192, %v4192
        %v4209 = vpack.c.bf16 %v4193, %v4193
        %v4210 = vpack.c.bf16 %v4194, %v4194
        %v4211 = vpack.c.bf16 %v4195, %v4195
        %v4212 = vpack.c.bf16 %v4196, %v4196
        %4229 = vrot.lane.b32.xlu0 %v4197, 64
        %v4230 = vpop.permute.xlu0 %4229
        %4231 = vrot.lane.b32.xlu0 %v4198, 64
        %v4232 = vpop.permute.xlu0 %4231
        %4233 = vrot.lane.b32.xlu0 %v4199, 64
        %v4234 = vpop.permute.xlu0 %4233
        %4235 = vrot.lane.b32.xlu0 %v4200, 64
        %v4236 = vpop.permute.xlu0 %4235
        %4237 = vrot.lane.b32.xlu0 %v4201, 64
        %v4238 = vpop.permute.xlu0 %4237
        %4239 = vrot.lane.b32.xlu0 %v4202, 64
        %v4240 = vpop.permute.xlu0 %4239
        %4241 = vrot.lane.b32.xlu0 %v4203, 64
        %v4242 = vpop.permute.xlu0 %4241
        %4243 = vrot.lane.b32.xlu0 %v4204, 64
        %v4244 = vpop.permute.xlu0 %4243
        %4245 = vrot.lane.b32.xlu0 %v4205, 64
        %v4246 = vpop.permute.xlu0 %4245
        %4247 = vrot.lane.b32.xlu0 %v4206, 64
        %v4248 = vpop.permute.xlu0 %4247
        %4249 = vrot.lane.b32.xlu0 %v4207, 64
        %v4250 = vpop.permute.xlu0 %4249
        %4251 = vrot.lane.b32.xlu0 %v4208, 64
        %v4252 = vpop.permute.xlu0 %4251
        %4253 = vrot.lane.b32.xlu0 %v4209, 64
        %v4254 = vpop.permute.xlu0 %4253
        %4255 = vrot.lane.b32.xlu0 %v4210, 64
        %v4256 = vpop.permute.xlu0 %4255
        %4257 = vrot.lane.b32.xlu0 %v4211, 64
        %v4258 = vpop.permute.xlu0 %4257
        %4259 = vrot.lane.b32.xlu0 %v4212, 64
        %v4260 = vpop.permute.xlu0 %4259
        %vm4277 = vcmask 1043968
        %4278 = vst.msk [vmem:[#allocation2] sm:$0xf] %vm4277, %v4230
        %4279 = vst.msk [vmem:[#allocation2 + $0xc] sm:$0xf] %vm4277, %v4232
        %4280 = vst.msk [vmem:[#allocation2 + $0x18] sm:$0xf] %vm4277, %v4234
        %4281 = vst.msk [vmem:[#allocation2 + $0x24] sm:$0xf] %vm4277, %v4236
        %4282 = vst.msk [vmem:[#allocation2 + $0x30] sm:$0xf] %vm4277, %v4238
        %4283 = vst.msk [vmem:[#allocation2 + $0x3c] sm:$0xf] %vm4277, %v4240
        %4284 = vst.msk [vmem:[#allocation2 + $0x48] sm:$0xf] %vm4277, %v4242
        %4285 = vst.msk [vmem:[#allocation2 + $0x54] sm:$0xf] %vm4277, %v4244
        %4286 = vst.msk [vmem:[#allocation2 + $0x60] sm:$0xf] %vm4277, %v4246
        %4287 = vst.msk [vmem:[#allocation2 + $0x6c] sm:$0xf] %vm4277, %v4248
        %4288 = vst.msk [vmem:[#allocation2 + $0x78] sm:$0xf] %vm4277, %v4250
        %4289 = vst.msk [vmem:[#allocation2 + $0x84] sm:$0xf] %vm4277, %v4252
        %4290 = vst.msk [vmem:[#allocation2 + $0x90] sm:$0xf] %vm4277, %v4254
        %4291 = vst.msk [vmem:[#allocation2 + $0x9c] sm:$0xf] %vm4277, %v4256
        %4292 = vst.msk [vmem:[#allocation2 + $0xa8] sm:$0xf] %vm4277, %v4258
        %4293 = vst.msk [vmem:[#allocation2 + $0xb4] sm:$0xf] %vm4277, %v4260
        %v4294 = vunpack.c.h.b16 %v3303
        %v4295 = vunpack.c.h.b16 %v3308
        %v4296 = vunpack.c.h.b16 %v3313
        %v4297 = vunpack.c.h.b16 %v3318
        %v4298 = vunpack.c.h.b16 %v3323
        %v4299 = vunpack.c.h.b16 %v3328
        %v4300 = vunpack.c.h.b16 %v3333
        %v4301 = vunpack.c.h.b16 %v3338
        %v4302 = vunpack.c.h.b16 %v3343
        %v4303 = vunpack.c.h.b16 %v3348
        %v4304 = vunpack.c.h.b16 %v3353
        %v4305 = vunpack.c.h.b16 %v3358
        %v4306 = vunpack.c.h.b16 %v3363
        %v4307 = vunpack.c.h.b16 %v3368
        %v4308 = vunpack.c.h.b16 %v3373
        %v4309 = vunpack.c.h.b16 %v3378
        %v4310 = vpack.c.b16 %v4295, %v4294
        %v4311 = vpack.c.b16 %v4297, %v4296
        %v4312 = vpack.c.b16 %v4299, %v4298
        %v4313 = vpack.c.b16 %v4301, %v4300
        %v4314 = vpack.c.b16 %v4303, %v4302
        %v4315 = vpack.c.b16 %v4305, %v4304
        %v4316 = vpack.c.b16 %v4307, %v4306
        %v4317 = vpack.c.b16 %v4309, %v4308
        %v4334 = vunpack.c.l.b16 %v3305
        %v4335 = vunpack.c.l.b16 %v3310
        %v4336 = vunpack.c.l.b16 %v3315
        %v4337 = vunpack.c.l.b16 %v3320
        %v4338 = vunpack.c.l.b16 %v3325
        %v4339 = vunpack.c.l.b16 %v3330
        %v4340 = vunpack.c.l.b16 %v3335
        %v4341 = vunpack.c.l.b16 %v3340
        %v4342 = vunpack.c.l.b16 %v3345
        %v4343 = vunpack.c.l.b16 %v3350
        %v4344 = vunpack.c.l.b16 %v3355
        %v4345 = vunpack.c.l.b16 %v3360
        %v4346 = vunpack.c.l.b16 %v3365
        %v4347 = vunpack.c.l.b16 %v3370
        %v4348 = vunpack.c.l.b16 %v3375
        %v4349 = vunpack.c.l.b16 %v3380
        %v4350 = vpack.c.b16 %v4335, %v4334
        %v4351 = vpack.c.b16 %v4337, %v4336
        %v4352 = vpack.c.b16 %v4339, %v4338
        %v4353 = vpack.c.b16 %v4341, %v4340
        %v4354 = vpack.c.b16 %v4343, %v4342
        %v4355 = vpack.c.b16 %v4345, %v4344
        %v4356 = vpack.c.b16 %v4347, %v4346
        %v4357 = vpack.c.b16 %v4349, %v4348
        %v4359 = vsel %vm3463, %v4310, 0
        %v4362 = vsel %vm3463, %v4311, 0
        %v4365 = vsel %vm3463, %v4312, 0
        %v4368 = vsel %vm3463, %v4313, 0
        %v4371 = vsel %vm3463, %v4314, 0
        %v4374 = vsel %vm3463, %v4315, 0
        %v4377 = vsel %vm3463, %v4316, 0
        %v4380 = vsel %vm3463, %v4317, 0
        %v4383 = vsel %vm3463, %v4350, 0
        %v4386 = vsel %vm3463, %v4351, 0
        %v4389 = vsel %vm3463, %v4352, 0
        %v4392 = vsel %vm3463, %v4353, 0
        %v4395 = vsel %vm3463, %v4354, 0
        %v4398 = vsel %vm3463, %v4355, 0
        %v4401 = vsel %vm3463, %v4356, 0
        %v4404 = vsel %vm3463, %v4357, 0
        %4406 = vmatpush.bf16.xpose.msra.mxu0 %v4404
        %4407 = vmatpush.bf16.xpose.msra.mxu0 %v4401
        %4408 = vmatpush.bf16.xpose.msra.mxu0 %v4398
        %4409 = vmatpush.bf16.xpose.msra.mxu0 %v4395
        %4410 = vmatpush.bf16.xpose.msra.mxu0 %v4392
        %4411 = vmatpush.bf16.xpose.msra.mxu0 %v4389
        %4412 = vmatpush.bf16.xpose.msra.mxu0 %v4386
        %4413 = vmatpush.bf16.xpose.msra.mxu0 %v4383
        %4414 = vmatmul.bf16.gmra.mxu0 %v4359
        %v4415 = vpop.f32.mrf.mxu0
        %v4416 = vadd.f32 %v684, %v4415
        %v4417 = vpop.f32.mrf.mxu0
        %v4418 = vadd.f32 %v685, %v4417
        %4419 = vmatmul.bf16.gmra.mxu0 %v4362
        %v4420 = vpop.f32.mrf.mxu0
        %v4421 = vadd.f32 %v686, %v4420
        %v4422 = vpop.f32.mrf.mxu0
        %v4423 = vadd.f32 %v687, %v4422
        %4424 = vmatmul.bf16.gmra.mxu0 %v4365
        %v4425 = vpop.f32.mrf.mxu0
        %v4426 = vadd.f32 %v688, %v4425
        %v4427 = vpop.f32.mrf.mxu0
        %v4428 = vadd.f32 %v689, %v4427
        %4429 = vmatmul.bf16.gmra.mxu0 %v4368
        %v4430 = vpop.f32.mrf.mxu0
        %v4431 = vadd.f32 %v690, %v4430
        %v4432 = vpop.f32.mrf.mxu0
        %v4433 = vadd.f32 %v691, %v4432
        %4434 = vmatmul.bf16.gmra.mxu0 %v4371
        %v4435 = vpop.f32.mrf.mxu0
        %v4436 = vadd.f32 %v692, %v4435
        %v4437 = vpop.f32.mrf.mxu0
        %v4438 = vadd.f32 %v693, %v4437
        %4439 = vmatmul.bf16.gmra.mxu0 %v4374
        %v4440 = vpop.f32.mrf.mxu0
        %v4441 = vadd.f32 %v694, %v4440
        %v4442 = vpop.f32.mrf.mxu0
        %v4443 = vadd.f32 %v695, %v4442
        %4444 = vmatmul.bf16.gmra.mxu0 %v4377
        %v4445 = vpop.f32.mrf.mxu0
        %v4446 = vadd.f32 %v696, %v4445
        %v4447 = vpop.f32.mrf.mxu0
        %v4448 = vadd.f32 %v697, %v4447
        %4449 = vmatmul.bf16.gmra.mxu0 %v4380
        %v4450 = vpop.f32.mrf.mxu0
        %v4451 = vadd.f32 %v698, %v4450
        %v4452 = vpop.f32.mrf.mxu0
        %v4453 = vadd.f32 %v699, %v4452
        %4454 = vdwg.mxu0
        %4455 = vmax.xlane.f32.xlu0 %v4416
        %v4456 = vpop.xlane.xlu0 %4455
        %4457 = vmax.xlane.f32.xlu0 %v4418
        %v4458 = vpop.xlane.xlu0 %4457
        %4459 = vmax.xlane.f32.xlu0 %v4421
        %v4460 = vpop.xlane.xlu0 %4459
        %4461 = vmax.xlane.f32.xlu0 %v4423
        %v4462 = vpop.xlane.xlu0 %4461
        %4463 = vmax.xlane.f32.xlu0 %v4426
        %v4464 = vpop.xlane.xlu0 %4463
        %4465 = vmax.xlane.f32.xlu0 %v4428
        %v4466 = vpop.xlane.xlu0 %4465
        %4467 = vmax.xlane.f32.xlu0 %v4431
        %v4468 = vpop.xlane.xlu0 %4467
        %4469 = vmax.xlane.f32.xlu0 %v4433
        %v4470 = vpop.xlane.xlu0 %4469
        %4471 = vmax.xlane.f32.xlu0 %v4436
        %v4472 = vpop.xlane.xlu0 %4471
        %4473 = vmax.xlane.f32.xlu0 %v4438
        %v4474 = vpop.xlane.xlu0 %4473
        %4475 = vmax.xlane.f32.xlu0 %v4441
        %v4476 = vpop.xlane.xlu0 %4475
        %4477 = vmax.xlane.f32.xlu0 %v4443
        %v4478 = vpop.xlane.xlu0 %4477
        %4479 = vmax.xlane.f32.xlu0 %v4446
        %v4480 = vpop.xlane.xlu0 %4479
        %4481 = vmax.xlane.f32.xlu0 %v4448
        %v4482 = vpop.xlane.xlu0 %4481
        %4483 = vmax.xlane.f32.xlu0 %v4451
        %v4484 = vpop.xlane.xlu0 %4483
        %4485 = vmax.xlane.f32.xlu0 %v4453
        %v4486 = vpop.xlane.xlu0 %4485
        %v4487 = vsub.f32 %v4416, %v4456
        %v4488 = vsub.f32 %v4418, %v4458
        %v4489 = vsub.f32 %v4421, %v4460
        %v4490 = vsub.f32 %v4423, %v4462
        %v4491 = vsub.f32 %v4426, %v4464
        %v4492 = vsub.f32 %v4428, %v4466
        %v4493 = vsub.f32 %v4431, %v4468
        %v4494 = vsub.f32 %v4433, %v4470
        %v4495 = vsub.f32 %v4436, %v4472
        %v4496 = vsub.f32 %v4438, %v4474
        %v4497 = vsub.f32 %v4441, %v4476
        %v4498 = vsub.f32 %v4443, %v4478
        %v4499 = vsub.f32 %v4446, %v4480
        %v4500 = vsub.f32 %v4448, %v4482
        %v4501 = vsub.f32 %v4451, %v4484
        %v4502 = vsub.f32 %v4453, %v4486
        %v4503 = vmul.f32 %v4487, 1.442695
        %v4504 = vpow.pop %v4503
        %v4505 = vmul.f32 %v4488, 1.442695
        %v4506 = vpow.pop %v4505
        %v4507 = vmul.f32 %v4489, 1.442695
        %v4508 = vpow.pop %v4507
        %v4509 = vmul.f32 %v4490, 1.442695
        %v4510 = vpow.pop %v4509
        %v4511 = vmul.f32 %v4491, 1.442695
        %v4512 = vpow.pop %v4511
        %v4513 = vmul.f32 %v4492, 1.442695
        %v4514 = vpow.pop %v4513
        %v4515 = vmul.f32 %v4493, 1.442695
        %v4516 = vpow.pop %v4515
        %v4517 = vmul.f32 %v4494, 1.442695
        %v4518 = vpow.pop %v4517
        %v4519 = vmul.f32 %v4495, 1.442695
        %v4520 = vpow.pop %v4519
        %v4521 = vmul.f32 %v4496, 1.442695
        %v4522 = vpow.pop %v4521
        %v4523 = vmul.f32 %v4497, 1.442695
        %v4524 = vpow.pop %v4523
        %v4525 = vmul.f32 %v4498, 1.442695
        %v4526 = vpow.pop %v4525
        %v4527 = vmul.f32 %v4499, 1.442695
        %v4528 = vpow.pop %v4527
        %v4529 = vmul.f32 %v4500, 1.442695
        %v4530 = vpow.pop %v4529
        %v4531 = vmul.f32 %v4501, 1.442695
        %v4532 = vpow.pop %v4531
        %v4533 = vmul.f32 %v4502, 1.442695
        %v4534 = vpow.pop %v4533
        %4535 = vadd.xlane.f32.xlu0 %v4504
        %v4536 = vpop.xlane.xlu0 %4535
        %4537 = vadd.xlane.f32.xlu0 %v4506
        %v4538 = vpop.xlane.xlu0 %4537
        %4539 = vadd.xlane.f32.xlu0 %v4508
        %v4540 = vpop.xlane.xlu0 %4539
        %4541 = vadd.xlane.f32.xlu0 %v4510
        %v4542 = vpop.xlane.xlu0 %4541
        %4543 = vadd.xlane.f32.xlu0 %v4512
        %v4544 = vpop.xlane.xlu0 %4543
        %4545 = vadd.xlane.f32.xlu0 %v4514
        %v4546 = vpop.xlane.xlu0 %4545
        %4547 = vadd.xlane.f32.xlu0 %v4516
        %v4548 = vpop.xlane.xlu0 %4547
        %4549 = vadd.xlane.f32.xlu0 %v4518
        %v4550 = vpop.xlane.xlu0 %4549
        %4551 = vadd.xlane.f32.xlu0 %v4520
        %v4552 = vpop.xlane.xlu0 %4551
        %4553 = vadd.xlane.f32.xlu0 %v4522
        %v4554 = vpop.xlane.xlu0 %4553
        %4555 = vadd.xlane.f32.xlu0 %v4524
        %v4556 = vpop.xlane.xlu0 %4555
        %4557 = vadd.xlane.f32.xlu0 %v4526
        %v4558 = vpop.xlane.xlu0 %4557
        %4559 = vadd.xlane.f32.xlu0 %v4528
        %v4560 = vpop.xlane.xlu0 %4559
        %4561 = vadd.xlane.f32.xlu0 %v4530
        %v4562 = vpop.xlane.xlu0 %4561
        %4563 = vadd.xlane.f32.xlu0 %v4532
        %v4564 = vpop.xlane.xlu0 %4563
        %4565 = vadd.xlane.f32.xlu0 %v4534
        %v4566 = vpop.xlane.xlu0 %4565
        %v4567 = vpack.c.bf16 %v4506, %v4504
        %v4568 = vpack.c.bf16 %v4510, %v4508
        %v4569 = vpack.c.bf16 %v4514, %v4512
        %v4570 = vpack.c.bf16 %v4518, %v4516
        %v4571 = vpack.c.bf16 %v4522, %v4520
        %v4572 = vpack.c.bf16 %v4526, %v4524
        %v4573 = vpack.c.bf16 %v4530, %v4528
        %v4574 = vpack.c.bf16 %v4534, %v4532
        %v4575 = vunpack.c.h.b16 %v3306
        %v4576 = vunpack.c.h.b16 %v3311
        %v4577 = vunpack.c.h.b16 %v3316
        %v4578 = vunpack.c.h.b16 %v3321
        %v4579 = vunpack.c.h.b16 %v3326
        %v4580 = vunpack.c.h.b16 %v3331
        %v4581 = vunpack.c.h.b16 %v3336
        %v4582 = vunpack.c.h.b16 %v3341
        %v4583 = vunpack.c.h.b16 %v3346
        %v4584 = vunpack.c.h.b16 %v3351
        %v4585 = vunpack.c.h.b16 %v3356
        %v4586 = vunpack.c.h.b16 %v3361
        %v4587 = vunpack.c.h.b16 %v3366
        %v4588 = vunpack.c.h.b16 %v3371
        %v4589 = vunpack.c.h.b16 %v3376
        %v4590 = vunpack.c.h.b16 %v3381
        %v4591 = vpack.c.b16 %v4576, %v4575
        %v4592 = vpack.c.b16 %v4578, %v4577
        %v4593 = vpack.c.b16 %v4580, %v4579
        %v4594 = vpack.c.b16 %v4582, %v4581
        %v4595 = vpack.c.b16 %v4584, %v4583
        %v4596 = vpack.c.b16 %v4586, %v4585
        %v4597 = vpack.c.b16 %v4588, %v4587
        %v4598 = vpack.c.b16 %v4590, %v4589
        %4607 = vmatpush.bf16.msra.mxu0 %v4598
        %4608 = vmatpush.bf16.msra.mxu0 %v4597
        %4609 = vmatpush.bf16.msra.mxu0 %v4596
        %4610 = vmatpush.bf16.msra.mxu0 %v4595
        %4611 = vmatpush.bf16.msra.mxu0 %v4594
        %4612 = vmatpush.bf16.msra.mxu0 %v4593
        %4613 = vmatpush.bf16.msra.mxu0 %v4592
        %4614 = vmatpush.bf16.msra.mxu0 %v4591
        %4615 = vmatmul.bf16.gmra.mxu0 %v4567
        %v4616 = vpop.f32.mrf.mxu0
        %v4617 = vadd.f32 0.0, %v4616
        %v4618 = vpop.f32.mrf.mxu0
        %v4619 = vadd.f32 0.0, %v4618
        %4620 = vmatmul.bf16.gmra.mxu0 %v4568
        %v4621 = vpop.f32.mrf.mxu0
        %v4622 = vadd.f32 0.0, %v4621
        %v4623 = vpop.f32.mrf.mxu0
        %v4624 = vadd.f32 0.0, %v4623
        %4625 = vmatmul.bf16.gmra.mxu0 %v4569
        %v4626 = vpop.f32.mrf.mxu0
        %v4627 = vadd.f32 0.0, %v4626
        %v4628 = vpop.f32.mrf.mxu0
        %v4629 = vadd.f32 0.0, %v4628
        %4630 = vmatmul.bf16.gmra.mxu0 %v4570
        %v4631 = vpop.f32.mrf.mxu0
        %v4632 = vadd.f32 0.0, %v4631
        %v4633 = vpop.f32.mrf.mxu0
        %v4634 = vadd.f32 0.0, %v4633
        %4635 = vmatmul.bf16.gmra.mxu0 %v4571
        %v4636 = vpop.f32.mrf.mxu0
        %v4637 = vadd.f32 0.0, %v4636
        %v4638 = vpop.f32.mrf.mxu0
        %v4639 = vadd.f32 0.0, %v4638
        %4640 = vmatmul.bf16.gmra.mxu0 %v4572
        %v4641 = vpop.f32.mrf.mxu0
        %v4642 = vadd.f32 0.0, %v4641
        %v4643 = vpop.f32.mrf.mxu0
        %v4644 = vadd.f32 0.0, %v4643
        %4645 = vmatmul.bf16.gmra.mxu0 %v4573
        %v4646 = vpop.f32.mrf.mxu0
        %v4647 = vadd.f32 0.0, %v4646
        %v4648 = vpop.f32.mrf.mxu0
        %v4649 = vadd.f32 0.0, %v4648
        %4650 = vmatmul.bf16.gmra.mxu0 %v4574
        %v4651 = vpop.f32.mrf.mxu0
        %v4652 = vadd.f32 0.0, %v4651
        %v4653 = vpop.f32.mrf.mxu0
        %v4654 = vadd.f32 0.0, %v4653
        %4655 = vdwg.mxu0
        %v4656 = vrcp.pop %v4536
        %v4657 = vrcp.pop %v4538
        %v4658 = vrcp.pop %v4540
        %v4659 = vrcp.pop %v4542
        %v4660 = vrcp.pop %v4544
        %v4661 = vrcp.pop %v4546
        %v4662 = vrcp.pop %v4548
        %v4663 = vrcp.pop %v4550
        %v4664 = vrcp.pop %v4552
        %v4665 = vrcp.pop %v4554
        %v4666 = vrcp.pop %v4556
        %v4667 = vrcp.pop %v4558
        %v4668 = vrcp.pop %v4560
        %v4669 = vrcp.pop %v4562
        %v4670 = vrcp.pop %v4564
        %v4671 = vrcp.pop %v4566
        %v4672 = vmul.f32 %v4617, %v4656
        %v4673 = vmul.f32 %v4619, %v4657
        %v4674 = vmul.f32 %v4622, %v4658
        %v4675 = vmul.f32 %v4624, %v4659
        %v4676 = vmul.f32 %v4627, %v4660
        %v4677 = vmul.f32 %v4629, %v4661
        %v4678 = vmul.f32 %v4632, %v4662
        %v4679 = vmul.f32 %v4634, %v4663
        %v4680 = vmul.f32 %v4637, %v4664
        %v4681 = vmul.f32 %v4639, %v4665
        %v4682 = vmul.f32 %v4642, %v4666
        %v4683 = vmul.f32 %v4644, %v4667
        %v4684 = vmul.f32 %v4647, %v4668
        %v4685 = vmul.f32 %v4649, %v4669
        %v4686 = vmul.f32 %v4652, %v4670
        %v4687 = vmul.f32 %v4654, %v4671
        %v4688 = vpack.c.bf16 %v4672, %v4672
        %v4689 = vpack.c.bf16 %v4673, %v4673
        %v4690 = vpack.c.bf16 %v4674, %v4674
        %v4691 = vpack.c.bf16 %v4675, %v4675
        %v4692 = vpack.c.bf16 %v4676, %v4676
        %v4693 = vpack.c.bf16 %v4677, %v4677
        %v4694 = vpack.c.bf16 %v4678, %v4678
        %v4695 = vpack.c.bf16 %v4679, %v4679
        %v4696 = vpack.c.bf16 %v4680, %v4680
        %v4697 = vpack.c.bf16 %v4681, %v4681
        %v4698 = vpack.c.bf16 %v4682, %v4682
        %v4699 = vpack.c.bf16 %v4683, %v4683
        %v4700 = vpack.c.bf16 %v4684, %v4684
        %v4701 = vpack.c.bf16 %v4685, %v4685
        %v4702 = vpack.c.bf16 %v4686, %v4686
        %v4703 = vpack.c.bf16 %v4687, %v4687
        %4704 = vst.msk [vmem:[#allocation2 + $0x4] sm:$0xf] %vm3826, %v4688
        %4705 = vst.msk [vmem:[#allocation2 + $0x10] sm:$0xf] %vm3826, %v4689
        %4706 = vst.msk [vmem:[#allocation2 + $0x1c] sm:$0xf] %vm3826, %v4690
        %4707 = vst.msk [vmem:[#allocation2 + $0x28] sm:$0xf] %vm3826, %v4691
        %4708 = vst.msk [vmem:[#allocation2 + $0x34] sm:$0xf] %vm3826, %v4692
        %4709 = vst.msk [vmem:[#allocation2 + $0x40] sm:$0xf] %vm3826, %v4693
        %4710 = vst.msk [vmem:[#allocation2 + $0x4c] sm:$0xf] %vm3826, %v4694
        %4711 = vst.msk [vmem:[#allocation2 + $0x58] sm:$0xf] %vm3826, %v4695
        %4712 = vst.msk [vmem:[#allocation2 + $0x64] sm:$0xf] %vm3826, %v4696
        %4713 = vst.msk [vmem:[#allocation2 + $0x70] sm:$0xf] %vm3826, %v4697
        %4714 = vst.msk [vmem:[#allocation2 + $0x7c] sm:$0xf] %vm3826, %v4698
        %4715 = vst.msk [vmem:[#allocation2 + $0x88] sm:$0xf] %vm3826, %v4699
        %4716 = vst.msk [vmem:[#allocation2 + $0x94] sm:$0xf] %vm3826, %v4700
        %4717 = vst.msk [vmem:[#allocation2 + $0xa0] sm:$0xf] %vm3826, %v4701
        %4718 = vst.msk [vmem:[#allocation2 + $0xac] sm:$0xf] %vm3826, %v4702
        %4719 = vst.msk [vmem:[#allocation2 + $0xb8] sm:$0xf] %vm3826, %v4703
        %4720 = vrot.lane.b32.xlu0 %v4310, 64
        %v4721 = vpop.permute.xlu0 %4720
        %4722 = vrot.lane.b32.xlu0 %v4311, 64
        %v4723 = vpop.permute.xlu0 %4722
        %4724 = vrot.lane.b32.xlu0 %v4312, 64
        %v4725 = vpop.permute.xlu0 %4724
        %4726 = vrot.lane.b32.xlu0 %v4313, 64
        %v4727 = vpop.permute.xlu0 %4726
        %4728 = vrot.lane.b32.xlu0 %v4314, 64
        %v4729 = vpop.permute.xlu0 %4728
        %4730 = vrot.lane.b32.xlu0 %v4315, 64
        %v4731 = vpop.permute.xlu0 %4730
        %4732 = vrot.lane.b32.xlu0 %v4316, 64
        %v4733 = vpop.permute.xlu0 %4732
        %4734 = vrot.lane.b32.xlu0 %v4317, 64
        %v4735 = vpop.permute.xlu0 %4734
        %4736 = vrot.lane.b32.xlu0 %v4350, 64
        %v4737 = vpop.permute.xlu0 %4736
        %4738 = vrot.lane.b32.xlu0 %v4351, 64
        %v4739 = vpop.permute.xlu0 %4738
        %4740 = vrot.lane.b32.xlu0 %v4352, 64
        %v4741 = vpop.permute.xlu0 %4740
        %4742 = vrot.lane.b32.xlu0 %v4353, 64
        %v4743 = vpop.permute.xlu0 %4742
        %4744 = vrot.lane.b32.xlu0 %v4354, 64
        %v4745 = vpop.permute.xlu0 %4744
        %4746 = vrot.lane.b32.xlu0 %v4355, 64
        %v4747 = vpop.permute.xlu0 %4746
        %4748 = vrot.lane.b32.xlu0 %v4356, 64
        %v4749 = vpop.permute.xlu0 %4748
        %4750 = vrot.lane.b32.xlu0 %v4357, 64
        %v4751 = vpop.permute.xlu0 %4750
        %v4753 = vsel %vm3463, %v4721, 0
        %v4756 = vsel %vm3463, %v4723, 0
        %v4759 = vsel %vm3463, %v4725, 0
        %v4762 = vsel %vm3463, %v4727, 0
        %v4765 = vsel %vm3463, %v4729, 0
        %v4768 = vsel %vm3463, %v4731, 0
        %v4771 = vsel %vm3463, %v4733, 0
        %v4774 = vsel %vm3463, %v4735, 0
        %v4777 = vsel %vm3463, %v4737, 0
        %v4780 = vsel %vm3463, %v4739, 0
        %v4783 = vsel %vm3463, %v4741, 0
        %v4786 = vsel %vm3463, %v4743, 0
        %v4789 = vsel %vm3463, %v4745, 0
        %v4792 = vsel %vm3463, %v4747, 0
        %v4795 = vsel %vm3463, %v4749, 0
        %v4798 = vsel %vm3463, %v4751, 0
        %4800 = vmatpush.bf16.xpose.msra.mxu0 %v4798
        %4801 = vmatpush.bf16.xpose.msra.mxu0 %v4795
        %4802 = vmatpush.bf16.xpose.msra.mxu0 %v4792
        %4803 = vmatpush.bf16.xpose.msra.mxu0 %v4789
        %4804 = vmatpush.bf16.xpose.msra.mxu0 %v4786
        %4805 = vmatpush.bf16.xpose.msra.mxu0 %v4783
        %4806 = vmatpush.bf16.xpose.msra.mxu0 %v4780
        %4807 = vmatpush.bf16.xpose.msra.mxu0 %v4777
        %4808 = vmatmul.bf16.gmra.mxu0 %v4753
        %v4809 = vpop.f32.mrf.mxu0
        %v4810 = vadd.f32 %v684, %v4809
        %v4811 = vpop.f32.mrf.mxu0
        %v4812 = vadd.f32 %v685, %v4811
        %4813 = vmatmul.bf16.gmra.mxu0 %v4756
        %v4814 = vpop.f32.mrf.mxu0
        %v4815 = vadd.f32 %v686, %v4814
        %v4816 = vpop.f32.mrf.mxu0
        %v4817 = vadd.f32 %v687, %v4816
        %4818 = vmatmul.bf16.gmra.mxu0 %v4759
        %v4819 = vpop.f32.mrf.mxu0
        %v4820 = vadd.f32 %v688, %v4819
        %v4821 = vpop.f32.mrf.mxu0
        %v4822 = vadd.f32 %v689, %v4821
        %4823 = vmatmul.bf16.gmra.mxu0 %v4762
        %v4824 = vpop.f32.mrf.mxu0
        %v4825 = vadd.f32 %v690, %v4824
        %v4826 = vpop.f32.mrf.mxu0
        %v4827 = vadd.f32 %v691, %v4826
        %4828 = vmatmul.bf16.gmra.mxu0 %v4765
        %v4829 = vpop.f32.mrf.mxu0
        %v4830 = vadd.f32 %v692, %v4829
        %v4831 = vpop.f32.mrf.mxu0
        %v4832 = vadd.f32 %v693, %v4831
        %4833 = vmatmul.bf16.gmra.mxu0 %v4768
        %v4834 = vpop.f32.mrf.mxu0
        %v4835 = vadd.f32 %v694, %v4834
        %v4836 = vpop.f32.mrf.mxu0
        %v4837 = vadd.f32 %v695, %v4836
        %4838 = vmatmul.bf16.gmra.mxu0 %v4771
        %v4839 = vpop.f32.mrf.mxu0
        %v4840 = vadd.f32 %v696, %v4839
        %v4841 = vpop.f32.mrf.mxu0
        %v4842 = vadd.f32 %v697, %v4841
        %4843 = vmatmul.bf16.gmra.mxu0 %v4774
        %v4844 = vpop.f32.mrf.mxu0
        %v4845 = vadd.f32 %v698, %v4844
        %v4846 = vpop.f32.mrf.mxu0
        %v4847 = vadd.f32 %v699, %v4846
        %4848 = vdwg.mxu0
        %4849 = vmax.xlane.f32.xlu0 %v4810
        %v4850 = vpop.xlane.xlu0 %4849
        %4851 = vmax.xlane.f32.xlu0 %v4812
        %v4852 = vpop.xlane.xlu0 %4851
        %4853 = vmax.xlane.f32.xlu0 %v4815
        %v4854 = vpop.xlane.xlu0 %4853
        %4855 = vmax.xlane.f32.xlu0 %v4817
        %v4856 = vpop.xlane.xlu0 %4855
        %4857 = vmax.xlane.f32.xlu0 %v4820
        %v4858 = vpop.xlane.xlu0 %4857
        %4859 = vmax.xlane.f32.xlu0 %v4822
        %v4860 = vpop.xlane.xlu0 %4859
        %4861 = vmax.xlane.f32.xlu0 %v4825
        %v4862 = vpop.xlane.xlu0 %4861
        %4863 = vmax.xlane.f32.xlu0 %v4827
        %v4864 = vpop.xlane.xlu0 %4863
        %4865 = vmax.xlane.f32.xlu0 %v4830
        %v4866 = vpop.xlane.xlu0 %4865
        %4867 = vmax.xlane.f32.xlu0 %v4832
        %v4868 = vpop.xlane.xlu0 %4867
        %4869 = vmax.xlane.f32.xlu0 %v4835
        %v4870 = vpop.xlane.xlu0 %4869
        %4871 = vmax.xlane.f32.xlu0 %v4837
        %v4872 = vpop.xlane.xlu0 %4871
        %4873 = vmax.xlane.f32.xlu0 %v4840
        %v4874 = vpop.xlane.xlu0 %4873
        %4875 = vmax.xlane.f32.xlu0 %v4842
        %v4876 = vpop.xlane.xlu0 %4875
        %4877 = vmax.xlane.f32.xlu0 %v4845
        %v4878 = vpop.xlane.xlu0 %4877
        %4879 = vmax.xlane.f32.xlu0 %v4847
        %v4880 = vpop.xlane.xlu0 %4879
        %v4881 = vsub.f32 %v4810, %v4850
        %v4882 = vsub.f32 %v4812, %v4852
        %v4883 = vsub.f32 %v4815, %v4854
        %v4884 = vsub.f32 %v4817, %v4856
        %v4885 = vsub.f32 %v4820, %v4858
        %v4886 = vsub.f32 %v4822, %v4860
        %v4887 = vsub.f32 %v4825, %v4862
        %v4888 = vsub.f32 %v4827, %v4864
        %v4889 = vsub.f32 %v4830, %v4866
        %v4890 = vsub.f32 %v4832, %v4868
        %v4891 = vsub.f32 %v4835, %v4870
        %v4892 = vsub.f32 %v4837, %v4872
        %v4893 = vsub.f32 %v4840, %v4874
        %v4894 = vsub.f32 %v4842, %v4876
        %v4895 = vsub.f32 %v4845, %v4878
        %v4896 = vsub.f32 %v4847, %v4880
        %v4897 = vmul.f32 %v4881, 1.442695
        %v4898 = vpow.pop %v4897
        %v4899 = vmul.f32 %v4882, 1.442695
        %v4900 = vpow.pop %v4899
        %v4901 = vmul.f32 %v4883, 1.442695
        %v4902 = vpow.pop %v4901
        %v4903 = vmul.f32 %v4884, 1.442695
        %v4904 = vpow.pop %v4903
        %v4905 = vmul.f32 %v4885, 1.442695
        %v4906 = vpow.pop %v4905
        %v4907 = vmul.f32 %v4886, 1.442695
        %v4908 = vpow.pop %v4907
        %v4909 = vmul.f32 %v4887, 1.442695
        %v4910 = vpow.pop %v4909
        %v4911 = vmul.f32 %v4888, 1.442695
        %v4912 = vpow.pop %v4911
        %v4913 = vmul.f32 %v4889, 1.442695
        %v4914 = vpow.pop %v4913
        %v4915 = vmul.f32 %v4890, 1.442695
        %v4916 = vpow.pop %v4915
        %v4917 = vmul.f32 %v4891, 1.442695
        %v4918 = vpow.pop %v4917
        %v4919 = vmul.f32 %v4892, 1.442695
        %v4920 = vpow.pop %v4919
        %v4921 = vmul.f32 %v4893, 1.442695
        %v4922 = vpow.pop %v4921
        %v4923 = vmul.f32 %v4894, 1.442695
        %v4924 = vpow.pop %v4923
        %v4925 = vmul.f32 %v4895, 1.442695
        %v4926 = vpow.pop %v4925
        %v4927 = vmul.f32 %v4896, 1.442695
        %v4928 = vpow.pop %v4927
        %4929 = vadd.xlane.f32.xlu0 %v4898
        %v4930 = vpop.xlane.xlu0 %4929
        %4931 = vadd.xlane.f32.xlu0 %v4900
        %v4932 = vpop.xlane.xlu0 %4931
        %4933 = vadd.xlane.f32.xlu0 %v4902
        %v4934 = vpop.xlane.xlu0 %4933
        %4935 = vadd.xlane.f32.xlu0 %v4904
        %v4936 = vpop.xlane.xlu0 %4935
        %4937 = vadd.xlane.f32.xlu0 %v4906
        %v4938 = vpop.xlane.xlu0 %4937
        %4939 = vadd.xlane.f32.xlu0 %v4908
        %v4940 = vpop.xlane.xlu0 %4939
        %4941 = vadd.xlane.f32.xlu0 %v4910
        %v4942 = vpop.xlane.xlu0 %4941
        %4943 = vadd.xlane.f32.xlu0 %v4912
        %v4944 = vpop.xlane.xlu0 %4943
        %4945 = vadd.xlane.f32.xlu0 %v4914
        %v4946 = vpop.xlane.xlu0 %4945
        %4947 = vadd.xlane.f32.xlu0 %v4916
        %v4948 = vpop.xlane.xlu0 %4947
        %4949 = vadd.xlane.f32.xlu0 %v4918
        %v4950 = vpop.xlane.xlu0 %4949
        %4951 = vadd.xlane.f32.xlu0 %v4920
        %v4952 = vpop.xlane.xlu0 %4951
        %4953 = vadd.xlane.f32.xlu0 %v4922
        %v4954 = vpop.xlane.xlu0 %4953
        %4955 = vadd.xlane.f32.xlu0 %v4924
        %v4956 = vpop.xlane.xlu0 %4955
        %4957 = vadd.xlane.f32.xlu0 %v4926
        %v4958 = vpop.xlane.xlu0 %4957
        %4959 = vadd.xlane.f32.xlu0 %v4928
        %v4960 = vpop.xlane.xlu0 %4959
        %v4961 = vpack.c.bf16 %v4900, %v4898
        %v4962 = vpack.c.bf16 %v4904, %v4902
        %v4963 = vpack.c.bf16 %v4908, %v4906
        %v4964 = vpack.c.bf16 %v4912, %v4910
        %v4965 = vpack.c.bf16 %v4916, %v4914
        %v4966 = vpack.c.bf16 %v4920, %v4918
        %v4967 = vpack.c.bf16 %v4924, %v4922
        %v4968 = vpack.c.bf16 %v4928, %v4926
        %4969 = vrot.lane.b32.xlu0 %v4591, 64
        %v4970 = vpop.permute.xlu0 %4969
        %4971 = vrot.lane.b32.xlu0 %v4592, 64
        %v4972 = vpop.permute.xlu0 %4971
        %4973 = vrot.lane.b32.xlu0 %v4593, 64
        %v4974 = vpop.permute.xlu0 %4973
        %4975 = vrot.lane.b32.xlu0 %v4594, 64
        %v4976 = vpop.permute.xlu0 %4975
        %4977 = vrot.lane.b32.xlu0 %v4595, 64
        %v4978 = vpop.permute.xlu0 %4977
        %4979 = vrot.lane.b32.xlu0 %v4596, 64
        %v4980 = vpop.permute.xlu0 %4979
        %4981 = vrot.lane.b32.xlu0 %v4597, 64
        %v4982 = vpop.permute.xlu0 %4981
        %4983 = vrot.lane.b32.xlu0 %v4598, 64
        %v4984 = vpop.permute.xlu0 %4983
        %4993 = vmatpush.bf16.msra.mxu0 %v4984
        %4994 = vmatpush.bf16.msra.mxu0 %v4982
        %4995 = vmatpush.bf16.msra.mxu0 %v4980
        %4996 = vmatpush.bf16.msra.mxu0 %v4978
        %4997 = vmatpush.bf16.msra.mxu0 %v4976
        %4998 = vmatpush.bf16.msra.mxu0 %v4974
        %4999 = vmatpush.bf16.msra.mxu0 %v4972
        %5000 = vmatpush.bf16.msra.mxu0 %v4970
        %5001 = vmatmul.bf16.gmra.mxu0 %v4961
        %v5002 = vpop.f32.mrf.mxu0
        %v5003 = vadd.f32 0.0, %v5002
        %v5004 = vpop.f32.mrf.mxu0
        %v5005 = vadd.f32 0.0, %v5004
        %5006 = vmatmul.bf16.gmra.mxu0 %v4962
        %v5007 = vpop.f32.mrf.mxu0
        %v5008 = vadd.f32 0.0, %v5007
        %v5009 = vpop.f32.mrf.mxu0
        %v5010 = vadd.f32 0.0, %v5009
        %5011 = vmatmul.bf16.gmra.mxu0 %v4963
        %v5012 = vpop.f32.mrf.mxu0
        %v5013 = vadd.f32 0.0, %v5012
        %v5014 = vpop.f32.mrf.mxu0
        %v5015 = vadd.f32 0.0, %v5014
        %5016 = vmatmul.bf16.gmra.mxu0 %v4964
        %v5017 = vpop.f32.mrf.mxu0
        %v5018 = vadd.f32 0.0, %v5017
        %v5019 = vpop.f32.mrf.mxu0
        %v5020 = vadd.f32 0.0, %v5019
        %5021 = vmatmul.bf16.gmra.mxu0 %v4965
        %v5022 = vpop.f32.mrf.mxu0
        %v5023 = vadd.f32 0.0, %v5022
        %v5024 = vpop.f32.mrf.mxu0
        %v5025 = vadd.f32 0.0, %v5024
        %5026 = vmatmul.bf16.gmra.mxu0 %v4966
        %v5027 = vpop.f32.mrf.mxu0
        %v5028 = vadd.f32 0.0, %v5027
        %v5029 = vpop.f32.mrf.mxu0
        %v5030 = vadd.f32 0.0, %v5029
        %5031 = vmatmul.bf16.gmra.mxu0 %v4967
        %v5032 = vpop.f32.mrf.mxu0
        %v5033 = vadd.f32 0.0, %v5032
        %v5034 = vpop.f32.mrf.mxu0
        %v5035 = vadd.f32 0.0, %v5034
        %5036 = vmatmul.bf16.gmra.mxu0 %v4968
        %v5037 = vpop.f32.mrf.mxu0
        %v5038 = vadd.f32 0.0, %v5037
        %v5039 = vpop.f32.mrf.mxu0
        %v5040 = vadd.f32 0.0, %v5039
        %5041 = vdwg.mxu0
        %v5042 = vrcp.pop %v4930
        %v5043 = vrcp.pop %v4932
        %v5044 = vrcp.pop %v4934
        %v5045 = vrcp.pop %v4936
        %v5046 = vrcp.pop %v4938
        %v5047 = vrcp.pop %v4940
        %v5048 = vrcp.pop %v4942
        %v5049 = vrcp.pop %v4944
        %v5050 = vrcp.pop %v4946
        %v5051 = vrcp.pop %v4948
        %v5052 = vrcp.pop %v4950
        %v5053 = vrcp.pop %v4952
        %v5054 = vrcp.pop %v4954
        %v5055 = vrcp.pop %v4956
        %v5056 = vrcp.pop %v4958
        %v5057 = vrcp.pop %v4960
        %v5058 = vmul.f32 %v5003, %v5042
        %v5059 = vmul.f32 %v5005, %v5043
        %v5060 = vmul.f32 %v5008, %v5044
        %v5061 = vmul.f32 %v5010, %v5045
        %v5062 = vmul.f32 %v5013, %v5046
        %v5063 = vmul.f32 %v5015, %v5047
        %v5064 = vmul.f32 %v5018, %v5048
        %v5065 = vmul.f32 %v5020, %v5049
        %v5066 = vmul.f32 %v5023, %v5050
        %v5067 = vmul.f32 %v5025, %v5051
        %v5068 = vmul.f32 %v5028, %v5052
        %v5069 = vmul.f32 %v5030, %v5053
        %v5070 = vmul.f32 %v5033, %v5054
        %v5071 = vmul.f32 %v5035, %v5055
        %v5072 = vmul.f32 %v5038, %v5056
        %v5073 = vmul.f32 %v5040, %v5057
        %v5074 = vpack.c.bf16 %v5058, %v5058
        %v5075 = vpack.c.bf16 %v5059, %v5059
        %v5076 = vpack.c.bf16 %v5060, %v5060
        %v5077 = vpack.c.bf16 %v5061, %v5061
        %v5078 = vpack.c.bf16 %v5062, %v5062
        %v5079 = vpack.c.bf16 %v5063, %v5063
        %v5080 = vpack.c.bf16 %v5064, %v5064
        %v5081 = vpack.c.bf16 %v5065, %v5065
        %v5082 = vpack.c.bf16 %v5066, %v5066
        %v5083 = vpack.c.bf16 %v5067, %v5067
        %v5084 = vpack.c.bf16 %v5068, %v5068
        %v5085 = vpack.c.bf16 %v5069, %v5069
        %v5086 = vpack.c.bf16 %v5070, %v5070
        %v5087 = vpack.c.bf16 %v5071, %v5071
        %v5088 = vpack.c.bf16 %v5072, %v5072
        %v5089 = vpack.c.bf16 %v5073, %v5073
        %5106 = vrot.lane.b32.xlu0 %v5074, 64
        %v5107 = vpop.permute.xlu0 %5106
        %5108 = vrot.lane.b32.xlu0 %v5075, 64
        %v5109 = vpop.permute.xlu0 %5108
        %5110 = vrot.lane.b32.xlu0 %v5076, 64
        %v5111 = vpop.permute.xlu0 %5110
        %5112 = vrot.lane.b32.xlu0 %v5077, 64
        %v5113 = vpop.permute.xlu0 %5112
        %5114 = vrot.lane.b32.xlu0 %v5078, 64
        %v5115 = vpop.permute.xlu0 %5114
        %5116 = vrot.lane.b32.xlu0 %v5079, 64
        %v5117 = vpop.permute.xlu0 %5116
        %5118 = vrot.lane.b32.xlu0 %v5080, 64
        %v5119 = vpop.permute.xlu0 %5118
        %5120 = vrot.lane.b32.xlu0 %v5081, 64
        %v5121 = vpop.permute.xlu0 %5120
        %5122 = vrot.lane.b32.xlu0 %v5082, 64
        %v5123 = vpop.permute.xlu0 %5122
        %5124 = vrot.lane.b32.xlu0 %v5083, 64
        %v5125 = vpop.permute.xlu0 %5124
        %5126 = vrot.lane.b32.xlu0 %v5084, 64
        %v5127 = vpop.permute.xlu0 %5126
        %5128 = vrot.lane.b32.xlu0 %v5085, 64
        %v5129 = vpop.permute.xlu0 %5128
        %5130 = vrot.lane.b32.xlu0 %v5086, 64
        %v5131 = vpop.permute.xlu0 %5130
        %5132 = vrot.lane.b32.xlu0 %v5087, 64
        %v5133 = vpop.permute.xlu0 %5132
        %5134 = vrot.lane.b32.xlu0 %v5088, 64
        %v5135 = vpop.permute.xlu0 %5134
        %5136 = vrot.lane.b32.xlu0 %v5089, 64
        %v5137 = vpop.permute.xlu0 %5136
        %5154 = vst.msk [vmem:[#allocation2 + $0x4] sm:$0xf] %vm4277, %v5107
        %5155 = vst.msk [vmem:[#allocation2 + $0x10] sm:$0xf] %vm4277, %v5109
        %5156 = vst.msk [vmem:[#allocation2 + $0x1c] sm:$0xf] %vm4277, %v5111
        %5157 = vst.msk [vmem:[#allocation2 + $0x28] sm:$0xf] %vm4277, %v5113
        %5158 = vst.msk [vmem:[#allocation2 + $0x34] sm:$0xf] %vm4277, %v5115
        %5159 = vst.msk [vmem:[#allocation2 + $0x40] sm:$0xf] %vm4277, %v5117
        %5160 = vst.msk [vmem:[#allocation2 + $0x4c] sm:$0xf] %vm4277, %v5119
        %5161 = vst.msk [vmem:[#allocation2 + $0x58] sm:$0xf] %vm4277, %v5121
        %5162 = vst.msk [vmem:[#allocation2 + $0x64] sm:$0xf] %vm4277, %v5123
        %5163 = vst.msk [vmem:[#allocation2 + $0x70] sm:$0xf] %vm4277, %v5125
        %5164 = vst.msk [vmem:[#allocation2 + $0x7c] sm:$0xf] %vm4277, %v5127
        %5165 = vst.msk [vmem:[#allocation2 + $0x88] sm:$0xf] %vm4277, %v5129
        %5166 = vst.msk [vmem:[#allocation2 + $0x94] sm:$0xf] %vm4277, %v5131
        %5167 = vst.msk [vmem:[#allocation2 + $0xa0] sm:$0xf] %vm4277, %v5133
        %5168 = vst.msk [vmem:[#allocation2 + $0xac] sm:$0xf] %vm4277, %v5135
        %5169 = vst.msk [vmem:[#allocation2 + $0xb8] sm:$0xf] %vm4277, %v5137
        %v5170 = vunpack.c.l.b16 %v3304
        %v5171 = vunpack.c.l.b16 %v3309
        %v5172 = vunpack.c.l.b16 %v3314
        %v5173 = vunpack.c.l.b16 %v3319
        %v5174 = vunpack.c.l.b16 %v3324
        %v5175 = vunpack.c.l.b16 %v3329
        %v5176 = vunpack.c.l.b16 %v3334
        %v5177 = vunpack.c.l.b16 %v3339
        %v5178 = vunpack.c.l.b16 %v3344
        %v5179 = vunpack.c.l.b16 %v3349
        %v5180 = vunpack.c.l.b16 %v3354
        %v5181 = vunpack.c.l.b16 %v3359
        %v5182 = vunpack.c.l.b16 %v3364
        %v5183 = vunpack.c.l.b16 %v3369
        %v5184 = vunpack.c.l.b16 %v3374
        %v5185 = vunpack.c.l.b16 %v3379
        %v5186 = vpack.c.b16 %v5171, %v5170
        %v5187 = vpack.c.b16 %v5173, %v5172
        %v5188 = vpack.c.b16 %v5175, %v5174
        %v5189 = vpack.c.b16 %v5177, %v5176
        %v5190 = vpack.c.b16 %v5179, %v5178
        %v5191 = vpack.c.b16 %v5181, %v5180
        %v5192 = vpack.c.b16 %v5183, %v5182
        %v5193 = vpack.c.b16 %v5185, %v5184
        %v5194 = vunpack.c.h.b16 %v3305
        %v5195 = vunpack.c.h.b16 %v3310
        %v5196 = vunpack.c.h.b16 %v3315
        %v5197 = vunpack.c.h.b16 %v3320
        %v5198 = vunpack.c.h.b16 %v3325
        %v5199 = vunpack.c.h.b16 %v3330
        %v5200 = vunpack.c.h.b16 %v3335
        %v5201 = vunpack.c.h.b16 %v3340
        %v5202 = vunpack.c.h.b16 %v3345
        %v5203 = vunpack.c.h.b16 %v3350
        %v5204 = vunpack.c.h.b16 %v3355
        %v5205 = vunpack.c.h.b16 %v3360
        %v5206 = vunpack.c.h.b16 %v3365
        %v5207 = vunpack.c.h.b16 %v3370
        %v5208 = vunpack.c.h.b16 %v3375
        %v5209 = vunpack.c.h.b16 %v3380
        %v5210 = vpack.c.b16 %v5195, %v5194
        %v5211 = vpack.c.b16 %v5197, %v5196
        %v5212 = vpack.c.b16 %v5199, %v5198
        %v5213 = vpack.c.b16 %v5201, %v5200
        %v5214 = vpack.c.b16 %v5203, %v5202
        %v5215 = vpack.c.b16 %v5205, %v5204
        %v5216 = vpack.c.b16 %v5207, %v5206
        %v5217 = vpack.c.b16 %v5209, %v5208
        %v5219 = vsel %vm3463, %v5186, 0
        %v5222 = vsel %vm3463, %v5187, 0
        %v5225 = vsel %vm3463, %v5188, 0
        %v5228 = vsel %vm3463, %v5189, 0
        %v5231 = vsel %vm3463, %v5190, 0
        %v5234 = vsel %vm3463, %v5191, 0
        %v5237 = vsel %vm3463, %v5192, 0
        %v5240 = vsel %vm3463, %v5193, 0
        %v5243 = vsel %vm3463, %v5210, 0
        %v5246 = vsel %vm3463, %v5211, 0
        %v5249 = vsel %vm3463, %v5212, 0
        %v5252 = vsel %vm3463, %v5213, 0
        %v5255 = vsel %vm3463, %v5214, 0
        %v5258 = vsel %vm3463, %v5215, 0
        %v5261 = vsel %vm3463, %v5216, 0
        %v5264 = vsel %vm3463, %v5217, 0
        %5266 = vmatpush.bf16.xpose.msra.mxu0 %v5264
        %5267 = vmatpush.bf16.xpose.msra.mxu0 %v5261
        %5268 = vmatpush.bf16.xpose.msra.mxu0 %v5258
        %5269 = vmatpush.bf16.xpose.msra.mxu0 %v5255
        %5270 = vmatpush.bf16.xpose.msra.mxu0 %v5252
        %5271 = vmatpush.bf16.xpose.msra.mxu0 %v5249
        %5272 = vmatpush.bf16.xpose.msra.mxu0 %v5246
        %5273 = vmatpush.bf16.xpose.msra.mxu0 %v5243
        %5274 = vmatmul.bf16.gmra.mxu0 %v5219
        %v5275 = vpop.f32.mrf.mxu0
        %v5276 = vadd.f32 %v684, %v5275
        %v5277 = vpop.f32.mrf.mxu0
        %v5278 = vadd.f32 %v685, %v5277
        %5279 = vmatmul.bf16.gmra.mxu0 %v5222
        %v5280 = vpop.f32.mrf.mxu0
        %v5281 = vadd.f32 %v686, %v5280
        %v5282 = vpop.f32.mrf.mxu0
        %v5283 = vadd.f32 %v687, %v5282
        %5284 = vmatmul.bf16.gmra.mxu0 %v5225
        %v5285 = vpop.f32.mrf.mxu0
        %v5286 = vadd.f32 %v688, %v5285
        %v5287 = vpop.f32.mrf.mxu0
        %v5288 = vadd.f32 %v689, %v5287
        %5289 = vmatmul.bf16.gmra.mxu0 %v5228
        %v5290 = vpop.f32.mrf.mxu0
        %v5291 = vadd.f32 %v690, %v5290
        %v5292 = vpop.f32.mrf.mxu0
        %v5293 = vadd.f32 %v691, %v5292
        %5294 = vmatmul.bf16.gmra.mxu0 %v5231
        %v5295 = vpop.f32.mrf.mxu0
        %v5296 = vadd.f32 %v692, %v5295
        %v5297 = vpop.f32.mrf.mxu0
        %v5298 = vadd.f32 %v693, %v5297
        %5299 = vmatmul.bf16.gmra.mxu0 %v5234
        %v5300 = vpop.f32.mrf.mxu0
        %v5301 = vadd.f32 %v694, %v5300
        %v5302 = vpop.f32.mrf.mxu0
        %v5303 = vadd.f32 %v695, %v5302
        %5304 = vmatmul.bf16.gmra.mxu0 %v5237
        %v5305 = vpop.f32.mrf.mxu0
        %v5306 = vadd.f32 %v696, %v5305
        %v5307 = vpop.f32.mrf.mxu0
        %v5308 = vadd.f32 %v697, %v5307
        %5309 = vmatmul.bf16.gmra.mxu0 %v5240
        %v5310 = vpop.f32.mrf.mxu0
        %v5311 = vadd.f32 %v698, %v5310
        %v5312 = vpop.f32.mrf.mxu0
        %v5313 = vadd.f32 %v699, %v5312
        %5314 = vdwg.mxu0
        %5315 = vmax.xlane.f32.xlu0 %v5276
        %v5316 = vpop.xlane.xlu0 %5315
        %5317 = vmax.xlane.f32.xlu0 %v5278
        %v5318 = vpop.xlane.xlu0 %5317
        %5319 = vmax.xlane.f32.xlu0 %v5281
        %v5320 = vpop.xlane.xlu0 %5319
        %5321 = vmax.xlane.f32.xlu0 %v5283
        %v5322 = vpop.xlane.xlu0 %5321
        %5323 = vmax.xlane.f32.xlu0 %v5286
        %v5324 = vpop.xlane.xlu0 %5323
        %5325 = vmax.xlane.f32.xlu0 %v5288
        %v5326 = vpop.xlane.xlu0 %5325
        %5327 = vmax.xlane.f32.xlu0 %v5291
        %v5328 = vpop.xlane.xlu0 %5327
        %5329 = vmax.xlane.f32.xlu0 %v5293
        %v5330 = vpop.xlane.xlu0 %5329
        %5331 = vmax.xlane.f32.xlu0 %v5296
        %v5332 = vpop.xlane.xlu0 %5331
        %5333 = vmax.xlane.f32.xlu0 %v5298
        %v5334 = vpop.xlane.xlu0 %5333
        %5335 = vmax.xlane.f32.xlu0 %v5301
        %v5336 = vpop.xlane.xlu0 %5335
        %5337 = vmax.xlane.f32.xlu0 %v5303
        %v5338 = vpop.xlane.xlu0 %5337
        %5339 = vmax.xlane.f32.xlu0 %v5306
        %v5340 = vpop.xlane.xlu0 %5339
        %5341 = vmax.xlane.f32.xlu0 %v5308
        %v5342 = vpop.xlane.xlu0 %5341
        %5343 = vmax.xlane.f32.xlu0 %v5311
        %v5344 = vpop.xlane.xlu0 %5343
        %5345 = vmax.xlane.f32.xlu0 %v5313
        %v5346 = vpop.xlane.xlu0 %5345
        %v5347 = vsub.f32 %v5276, %v5316
        %v5348 = vsub.f32 %v5278, %v5318
        %v5349 = vsub.f32 %v5281, %v5320
        %v5350 = vsub.f32 %v5283, %v5322
        %v5351 = vsub.f32 %v5286, %v5324
        %v5352 = vsub.f32 %v5288, %v5326
        %v5353 = vsub.f32 %v5291, %v5328
        %v5354 = vsub.f32 %v5293, %v5330
        %v5355 = vsub.f32 %v5296, %v5332
        %v5356 = vsub.f32 %v5298, %v5334
        %v5357 = vsub.f32 %v5301, %v5336
        %v5358 = vsub.f32 %v5303, %v5338
        %v5359 = vsub.f32 %v5306, %v5340
        %v5360 = vsub.f32 %v5308, %v5342
        %v5361 = vsub.f32 %v5311, %v5344
        %v5362 = vsub.f32 %v5313, %v5346
        %v5363 = vmul.f32 %v5347, 1.442695
        %v5364 = vpow.pop %v5363
        %v5365 = vmul.f32 %v5348, 1.442695
        %v5366 = vpow.pop %v5365
        %v5367 = vmul.f32 %v5349, 1.442695
        %v5368 = vpow.pop %v5367
        %v5369 = vmul.f32 %v5350, 1.442695
        %v5370 = vpow.pop %v5369
        %v5371 = vmul.f32 %v5351, 1.442695
        %v5372 = vpow.pop %v5371
        %v5373 = vmul.f32 %v5352, 1.442695
        %v5374 = vpow.pop %v5373
        %v5375 = vmul.f32 %v5353, 1.442695
        %v5376 = vpow.pop %v5375
        %v5377 = vmul.f32 %v5354, 1.442695
        %v5378 = vpow.pop %v5377
        %v5379 = vmul.f32 %v5355, 1.442695
        %v5380 = vpow.pop %v5379
        %v5381 = vmul.f32 %v5356, 1.442695
        %v5382 = vpow.pop %v5381
        %v5383 = vmul.f32 %v5357, 1.442695
        %v5384 = vpow.pop %v5383
        %v5385 = vmul.f32 %v5358, 1.442695
        %v5386 = vpow.pop %v5385
        %v5387 = vmul.f32 %v5359, 1.442695
        %v5388 = vpow.pop %v5387
        %v5389 = vmul.f32 %v5360, 1.442695
        %v5390 = vpow.pop %v5389
        %v5391 = vmul.f32 %v5361, 1.442695
        %v5392 = vpow.pop %v5391
        %v5393 = vmul.f32 %v5362, 1.442695
        %v5394 = vpow.pop %v5393
        %5395 = vadd.xlane.f32.xlu0 %v5364
        %v5396 = vpop.xlane.xlu0 %5395
        %5397 = vadd.xlane.f32.xlu0 %v5366
        %v5398 = vpop.xlane.xlu0 %5397
        %5399 = vadd.xlane.f32.xlu0 %v5368
        %v5400 = vpop.xlane.xlu0 %5399
        %5401 = vadd.xlane.f32.xlu0 %v5370
        %v5402 = vpop.xlane.xlu0 %5401
        %5403 = vadd.xlane.f32.xlu0 %v5372
        %v5404 = vpop.xlane.xlu0 %5403
        %5405 = vadd.xlane.f32.xlu0 %v5374
        %v5406 = vpop.xlane.xlu0 %5405
        %5407 = vadd.xlane.f32.xlu0 %v5376
        %v5408 = vpop.xlane.xlu0 %5407
        %5409 = vadd.xlane.f32.xlu0 %v5378
        %v5410 = vpop.xlane.xlu0 %5409
        %5411 = vadd.xlane.f32.xlu0 %v5380
        %v5412 = vpop.xlane.xlu0 %5411
        %5413 = vadd.xlane.f32.xlu0 %v5382
        %v5414 = vpop.xlane.xlu0 %5413
        %5415 = vadd.xlane.f32.xlu0 %v5384
        %v5416 = vpop.xlane.xlu0 %5415
        %5417 = vadd.xlane.f32.xlu0 %v5386
        %v5418 = vpop.xlane.xlu0 %5417
        %5419 = vadd.xlane.f32.xlu0 %v5388
        %v5420 = vpop.xlane.xlu0 %5419
        %5421 = vadd.xlane.f32.xlu0 %v5390
        %v5422 = vpop.xlane.xlu0 %5421
        %5423 = vadd.xlane.f32.xlu0 %v5392
        %v5424 = vpop.xlane.xlu0 %5423
        %5425 = vadd.xlane.f32.xlu0 %v5394
        %v5426 = vpop.xlane.xlu0 %5425
        %v5427 = vpack.c.bf16 %v5366, %v5364
        %v5428 = vpack.c.bf16 %v5370, %v5368
        %v5429 = vpack.c.bf16 %v5374, %v5372
        %v5430 = vpack.c.bf16 %v5378, %v5376
        %v5431 = vpack.c.bf16 %v5382, %v5380
        %v5432 = vpack.c.bf16 %v5386, %v5384
        %v5433 = vpack.c.bf16 %v5390, %v5388
        %v5434 = vpack.c.bf16 %v5394, %v5392
        %v5451 = vunpack.c.l.b16 %v3307
        %v5452 = vunpack.c.l.b16 %v3312
        %v5453 = vunpack.c.l.b16 %v3317
        %v5454 = vunpack.c.l.b16 %v3322
        %v5455 = vunpack.c.l.b16 %v3327
        %v5456 = vunpack.c.l.b16 %v3332
        %v5457 = vunpack.c.l.b16 %v3337
        %v5458 = vunpack.c.l.b16 %v3342
        %v5459 = vunpack.c.l.b16 %v3347
        %v5460 = vunpack.c.l.b16 %v3352
        %v5461 = vunpack.c.l.b16 %v3357
        %v5462 = vunpack.c.l.b16 %v3362
        %v5463 = vunpack.c.l.b16 %v3367
        %v5464 = vunpack.c.l.b16 %v3372
        %v5465 = vunpack.c.l.b16 %v3377
        %v5466 = vunpack.c.l.b16 %v3382
        %v5467 = vpack.c.b16 %v5452, %v5451
        %v5468 = vpack.c.b16 %v5454, %v5453
        %v5469 = vpack.c.b16 %v5456, %v5455
        %v5470 = vpack.c.b16 %v5458, %v5457
        %v5471 = vpack.c.b16 %v5460, %v5459
        %v5472 = vpack.c.b16 %v5462, %v5461
        %v5473 = vpack.c.b16 %v5464, %v5463
        %v5474 = vpack.c.b16 %v5466, %v5465
        %5483 = vmatpush.bf16.msra.mxu0 %v5474
        %5484 = vmatpush.bf16.msra.mxu0 %v5473
        %5485 = vmatpush.bf16.msra.mxu0 %v5472
        %5486 = vmatpush.bf16.msra.mxu0 %v5471
        %5487 = vmatpush.bf16.msra.mxu0 %v5470
        %5488 = vmatpush.bf16.msra.mxu0 %v5469
        %5489 = vmatpush.bf16.msra.mxu0 %v5468
        %5490 = vmatpush.bf16.msra.mxu0 %v5467
        %5491 = vmatmul.bf16.gmra.mxu0 %v5427
        %v5492 = vpop.f32.mrf.mxu0
        %v5493 = vadd.f32 0.0, %v5492
        %v5494 = vpop.f32.mrf.mxu0
        %v5495 = vadd.f32 0.0, %v5494
        %5496 = vmatmul.bf16.gmra.mxu0 %v5428
        %v5497 = vpop.f32.mrf.mxu0
        %v5498 = vadd.f32 0.0, %v5497
        %v5499 = vpop.f32.mrf.mxu0
        %v5500 = vadd.f32 0.0, %v5499
        %5501 = vmatmul.bf16.gmra.mxu0 %v5429
        %v5502 = vpop.f32.mrf.mxu0
        %v5503 = vadd.f32 0.0, %v5502
        %v5504 = vpop.f32.mrf.mxu0
        %v5505 = vadd.f32 0.0, %v5504
        %5506 = vmatmul.bf16.gmra.mxu0 %v5430
        %v5507 = vpop.f32.mrf.mxu0
        %v5508 = vadd.f32 0.0, %v5507
        %v5509 = vpop.f32.mrf.mxu0
        %v5510 = vadd.f32 0.0, %v5509
        %5511 = vmatmul.bf16.gmra.mxu0 %v5431
        %v5512 = vpop.f32.mrf.mxu0
        %v5513 = vadd.f32 0.0, %v5512
        %v5514 = vpop.f32.mrf.mxu0
        %v5515 = vadd.f32 0.0, %v5514
        %5516 = vmatmul.bf16.gmra.mxu0 %v5432
        %v5517 = vpop.f32.mrf.mxu0
        %v5518 = vadd.f32 0.0, %v5517
        %v5519 = vpop.f32.mrf.mxu0
        %v5520 = vadd.f32 0.0, %v5519
        %5521 = vmatmul.bf16.gmra.mxu0 %v5433
        %v5522 = vpop.f32.mrf.mxu0
        %v5523 = vadd.f32 0.0, %v5522
        %v5524 = vpop.f32.mrf.mxu0
        %v5525 = vadd.f32 0.0, %v5524
        %5526 = vmatmul.bf16.gmra.mxu0 %v5434
        %v5527 = vpop.f32.mrf.mxu0
        %v5528 = vadd.f32 0.0, %v5527
        %v5529 = vpop.f32.mrf.mxu0
        %v5530 = vadd.f32 0.0, %v5529
        %5531 = vdwg.mxu0
        %v5532 = vrcp.pop %v5396
        %v5533 = vrcp.pop %v5398
        %v5534 = vrcp.pop %v5400
        %v5535 = vrcp.pop %v5402
        %v5536 = vrcp.pop %v5404
        %v5537 = vrcp.pop %v5406
        %v5538 = vrcp.pop %v5408
        %v5539 = vrcp.pop %v5410
        %v5540 = vrcp.pop %v5412
        %v5541 = vrcp.pop %v5414
        %v5542 = vrcp.pop %v5416
        %v5543 = vrcp.pop %v5418
        %v5544 = vrcp.pop %v5420
        %v5545 = vrcp.pop %v5422
        %v5546 = vrcp.pop %v5424
        %v5547 = vrcp.pop %v5426
        %v5548 = vmul.f32 %v5493, %v5532
        %v5549 = vmul.f32 %v5495, %v5533
        %v5550 = vmul.f32 %v5498, %v5534
        %v5551 = vmul.f32 %v5500, %v5535
        %v5552 = vmul.f32 %v5503, %v5536
        %v5553 = vmul.f32 %v5505, %v5537
        %v5554 = vmul.f32 %v5508, %v5538
        %v5555 = vmul.f32 %v5510, %v5539
        %v5556 = vmul.f32 %v5513, %v5540
        %v5557 = vmul.f32 %v5515, %v5541
        %v5558 = vmul.f32 %v5518, %v5542
        %v5559 = vmul.f32 %v5520, %v5543
        %v5560 = vmul.f32 %v5523, %v5544
        %v5561 = vmul.f32 %v5525, %v5545
        %v5562 = vmul.f32 %v5528, %v5546
        %v5563 = vmul.f32 %v5530, %v5547
        %v5564 = vpack.c.bf16 %v5548, %v5548
        %v5565 = vpack.c.bf16 %v5549, %v5549
        %v5566 = vpack.c.bf16 %v5550, %v5550
        %v5567 = vpack.c.bf16 %v5551, %v5551
        %v5568 = vpack.c.bf16 %v5552, %v5552
        %v5569 = vpack.c.bf16 %v5553, %v5553
        %v5570 = vpack.c.bf16 %v5554, %v5554
        %v5571 = vpack.c.bf16 %v5555, %v5555
        %v5572 = vpack.c.bf16 %v5556, %v5556
        %v5573 = vpack.c.bf16 %v5557, %v5557
        %v5574 = vpack.c.bf16 %v5558, %v5558
        %v5575 = vpack.c.bf16 %v5559, %v5559
        %v5576 = vpack.c.bf16 %v5560, %v5560
        %v5577 = vpack.c.bf16 %v5561, %v5561
        %v5578 = vpack.c.bf16 %v5562, %v5562
        %v5579 = vpack.c.bf16 %v5563, %v5563
        %5580 = vst.msk [vmem:[#allocation2 + $0x8] sm:$0xf] %vm3826, %v5564
        %5581 = vst.msk [vmem:[#allocation2 + $0x14] sm:$0xf] %vm3826, %v5565
        %5582 = vst.msk [vmem:[#allocation2 + $0x20] sm:$0xf] %vm3826, %v5566
        %5583 = vst.msk [vmem:[#allocation2 + $0x2c] sm:$0xf] %vm3826, %v5567
        %5584 = vst.msk [vmem:[#allocation2 + $0x38] sm:$0xf] %vm3826, %v5568
        %5585 = vst.msk [vmem:[#allocation2 + $0x44] sm:$0xf] %vm3826, %v5569
        %5586 = vst.msk [vmem:[#allocation2 + $0x50] sm:$0xf] %vm3826, %v5570
        %5587 = vst.msk [vmem:[#allocation2 + $0x5c] sm:$0xf] %vm3826, %v5571
        %5588 = vst.msk [vmem:[#allocation2 + $0x68] sm:$0xf] %vm3826, %v5572
        %5589 = vst.msk [vmem:[#allocation2 + $0x74] sm:$0xf] %vm3826, %v5573
        %5590 = vst.msk [vmem:[#allocation2 + $0x80] sm:$0xf] %vm3826, %v5574
        %5591 = vst.msk [vmem:[#allocation2 + $0x8c] sm:$0xf] %vm3826, %v5575
        %5592 = vst.msk [vmem:[#allocation2 + $0x98] sm:$0xf] %vm3826, %v5576
        %5593 = vst.msk [vmem:[#allocation2 + $0xa4] sm:$0xf] %vm3826, %v5577
        %5594 = vst.msk [vmem:[#allocation2 + $0xb0] sm:$0xf] %vm3826, %v5578
        %5595 = vst.msk [vmem:[#allocation2 + $0xbc] sm:$0xf] %vm3826, %v5579
        %5596 = vrot.lane.b32.xlu0 %v5186, 64
        %v5597 = vpop.permute.xlu0 %5596
        %5598 = vrot.lane.b32.xlu0 %v5187, 64
        %v5599 = vpop.permute.xlu0 %5598
        %5600 = vrot.lane.b32.xlu0 %v5188, 64
        %v5601 = vpop.permute.xlu0 %5600
        %5602 = vrot.lane.b32.xlu0 %v5189, 64
        %v5603 = vpop.permute.xlu0 %5602
        %5604 = vrot.lane.b32.xlu0 %v5190, 64
        %v5605 = vpop.permute.xlu0 %5604
        %5606 = vrot.lane.b32.xlu0 %v5191, 64
        %v5607 = vpop.permute.xlu0 %5606
        %5608 = vrot.lane.b32.xlu0 %v5192, 64
        %v5609 = vpop.permute.xlu0 %5608
        %5610 = vrot.lane.b32.xlu0 %v5193, 64
        %v5611 = vpop.permute.xlu0 %5610
        %5612 = vrot.lane.b32.xlu0 %v5210, 64
        %v5613 = vpop.permute.xlu0 %5612
        %5614 = vrot.lane.b32.xlu0 %v5211, 64
        %v5615 = vpop.permute.xlu0 %5614
        %5616 = vrot.lane.b32.xlu0 %v5212, 64
        %v5617 = vpop.permute.xlu0 %5616
        %5618 = vrot.lane.b32.xlu0 %v5213, 64
        %v5619 = vpop.permute.xlu0 %5618
        %5620 = vrot.lane.b32.xlu0 %v5214, 64
        %v5621 = vpop.permute.xlu0 %5620
        %5622 = vrot.lane.b32.xlu0 %v5215, 64
        %v5623 = vpop.permute.xlu0 %5622
        %5624 = vrot.lane.b32.xlu0 %v5216, 64
        %v5625 = vpop.permute.xlu0 %5624
        %5626 = vrot.lane.b32.xlu0 %v5217, 64
        %v5627 = vpop.permute.xlu0 %5626
        %v5629 = vsel %vm3463, %v5597, 0
        %v5632 = vsel %vm3463, %v5599, 0
        %v5635 = vsel %vm3463, %v5601, 0
        %v5638 = vsel %vm3463, %v5603, 0
        %v5641 = vsel %vm3463, %v5605, 0
        %v5644 = vsel %vm3463, %v5607, 0
        %v5647 = vsel %vm3463, %v5609, 0
        %v5650 = vsel %vm3463, %v5611, 0
        %v5653 = vsel %vm3463, %v5613, 0
        %v5656 = vsel %vm3463, %v5615, 0
        %v5659 = vsel %vm3463, %v5617, 0
        %v5662 = vsel %vm3463, %v5619, 0
        %v5665 = vsel %vm3463, %v5621, 0
        %v5668 = vsel %vm3463, %v5623, 0
        %v5671 = vsel %vm3463, %v5625, 0
        %v5674 = vsel %vm3463, %v5627, 0
        %5676 = vmatpush.bf16.xpose.msra.mxu0 %v5674
        %5677 = vmatpush.bf16.xpose.msra.mxu0 %v5671
        %5678 = vmatpush.bf16.xpose.msra.mxu0 %v5668
        %5679 = vmatpush.bf16.xpose.msra.mxu0 %v5665
        %5680 = vmatpush.bf16.xpose.msra.mxu0 %v5662
        %5681 = vmatpush.bf16.xpose.msra.mxu0 %v5659
        %5682 = vmatpush.bf16.xpose.msra.mxu0 %v5656
        %5683 = vmatpush.bf16.xpose.msra.mxu0 %v5653
        %5684 = vmatmul.bf16.gmra.mxu0 %v5629
        %v5685 = vpop.f32.mrf.mxu0
        %v5686 = vadd.f32 %v684, %v5685
        %v5687 = vpop.f32.mrf.mxu0
        %v5688 = vadd.f32 %v685, %v5687
        %5689 = vmatmul.bf16.gmra.mxu0 %v5632
        %v5690 = vpop.f32.mrf.mxu0
        %v5691 = vadd.f32 %v686, %v5690
        %v5692 = vpop.f32.mrf.mxu0
        %v5693 = vadd.f32 %v687, %v5692
        %5694 = vmatmul.bf16.gmra.mxu0 %v5635
        %v5695 = vpop.f32.mrf.mxu0
        %v5696 = vadd.f32 %v688, %v5695
        %v5697 = vpop.f32.mrf.mxu0
        %v5698 = vadd.f32 %v689, %v5697
        %5699 = vmatmul.bf16.gmra.mxu0 %v5638
        %v5700 = vpop.f32.mrf.mxu0
        %v5701 = vadd.f32 %v690, %v5700
        %v5702 = vpop.f32.mrf.mxu0
        %v5703 = vadd.f32 %v691, %v5702
        %5704 = vmatmul.bf16.gmra.mxu0 %v5641
        %v5705 = vpop.f32.mrf.mxu0
        %v5706 = vadd.f32 %v692, %v5705
        %v5707 = vpop.f32.mrf.mxu0
        %v5708 = vadd.f32 %v693, %v5707
        %5709 = vmatmul.bf16.gmra.mxu0 %v5644
        %v5710 = vpop.f32.mrf.mxu0
        %v5711 = vadd.f32 %v694, %v5710
        %v5712 = vpop.f32.mrf.mxu0
        %v5713 = vadd.f32 %v695, %v5712
        %5714 = vmatmul.bf16.gmra.mxu0 %v5647
        %v5715 = vpop.f32.mrf.mxu0
        %v5716 = vadd.f32 %v696, %v5715
        %v5717 = vpop.f32.mrf.mxu0
        %v5718 = vadd.f32 %v697, %v5717
        %5719 = vmatmul.bf16.gmra.mxu0 %v5650
        %v5720 = vpop.f32.mrf.mxu0
        %v5721 = vadd.f32 %v698, %v5720
        %v5722 = vpop.f32.mrf.mxu0
        %v5723 = vadd.f32 %v699, %v5722
        %5724 = vdwg.mxu0
        %5725 = vmax.xlane.f32.xlu0 %v5686
        %v5726 = vpop.xlane.xlu0 %5725
        %5727 = vmax.xlane.f32.xlu0 %v5688
        %v5728 = vpop.xlane.xlu0 %5727
        %5729 = vmax.xlane.f32.xlu0 %v5691
        %v5730 = vpop.xlane.xlu0 %5729
        %5731 = vmax.xlane.f32.xlu0 %v5693
        %v5732 = vpop.xlane.xlu0 %5731
        %5733 = vmax.xlane.f32.xlu0 %v5696
        %v5734 = vpop.xlane.xlu0 %5733
        %5735 = vmax.xlane.f32.xlu0 %v5698
        %v5736 = vpop.xlane.xlu0 %5735
        %5737 = vmax.xlane.f32.xlu0 %v5701
        %v5738 = vpop.xlane.xlu0 %5737
        %5739 = vmax.xlane.f32.xlu0 %v5703
        %v5740 = vpop.xlane.xlu0 %5739
        %5741 = vmax.xlane.f32.xlu0 %v5706
        %v5742 = vpop.xlane.xlu0 %5741
        %5743 = vmax.xlane.f32.xlu0 %v5708
        %v5744 = vpop.xlane.xlu0 %5743
        %5745 = vmax.xlane.f32.xlu0 %v5711
        %v5746 = vpop.xlane.xlu0 %5745
        %5747 = vmax.xlane.f32.xlu0 %v5713
        %v5748 = vpop.xlane.xlu0 %5747
        %5749 = vmax.xlane.f32.xlu0 %v5716
        %v5750 = vpop.xlane.xlu0 %5749
        %5751 = vmax.xlane.f32.xlu0 %v5718
        %v5752 = vpop.xlane.xlu0 %5751
        %5753 = vmax.xlane.f32.xlu0 %v5721
        %v5754 = vpop.xlane.xlu0 %5753
        %5755 = vmax.xlane.f32.xlu0 %v5723
        %v5756 = vpop.xlane.xlu0 %5755
        %v5757 = vsub.f32 %v5686, %v5726
        %v5758 = vsub.f32 %v5688, %v5728
        %v5759 = vsub.f32 %v5691, %v5730
        %v5760 = vsub.f32 %v5693, %v5732
        %v5761 = vsub.f32 %v5696, %v5734
        %v5762 = vsub.f32 %v5698, %v5736
        %v5763 = vsub.f32 %v5701, %v5738
        %v5764 = vsub.f32 %v5703, %v5740
        %v5765 = vsub.f32 %v5706, %v5742
        %v5766 = vsub.f32 %v5708, %v5744
        %v5767 = vsub.f32 %v5711, %v5746
        %v5768 = vsub.f32 %v5713, %v5748
        %v5769 = vsub.f32 %v5716, %v5750
        %v5770 = vsub.f32 %v5718, %v5752
        %v5771 = vsub.f32 %v5721, %v5754
        %v5772 = vsub.f32 %v5723, %v5756
        %v5773 = vmul.f32 %v5757, 1.442695
        %v5774 = vpow.pop %v5773
        %v5775 = vmul.f32 %v5758, 1.442695
        %v5776 = vpow.pop %v5775
        %v5777 = vmul.f32 %v5759, 1.442695
        %v5778 = vpow.pop %v5777
        %v5779 = vmul.f32 %v5760, 1.442695
        %v5780 = vpow.pop %v5779
        %v5781 = vmul.f32 %v5761, 1.442695
        %v5782 = vpow.pop %v5781
        %v5783 = vmul.f32 %v5762, 1.442695
        %v5784 = vpow.pop %v5783
        %v5785 = vmul.f32 %v5763, 1.442695
        %v5786 = vpow.pop %v5785
        %v5787 = vmul.f32 %v5764, 1.442695
        %v5788 = vpow.pop %v5787
        %v5789 = vmul.f32 %v5765, 1.442695
        %v5790 = vpow.pop %v5789
        %v5791 = vmul.f32 %v5766, 1.442695
        %v5792 = vpow.pop %v5791
        %v5793 = vmul.f32 %v5767, 1.442695
        %v5794 = vpow.pop %v5793
        %v5795 = vmul.f32 %v5768, 1.442695
        %v5796 = vpow.pop %v5795
        %v5797 = vmul.f32 %v5769, 1.442695
        %v5798 = vpow.pop %v5797
        %v5799 = vmul.f32 %v5770, 1.442695
        %v5800 = vpow.pop %v5799
        %v5801 = vmul.f32 %v5771, 1.442695
        %v5802 = vpow.pop %v5801
        %v5803 = vmul.f32 %v5772, 1.442695
        %v5804 = vpow.pop %v5803
        %5805 = vadd.xlane.f32.xlu0 %v5774
        %v5806 = vpop.xlane.xlu0 %5805
        %5807 = vadd.xlane.f32.xlu0 %v5776
        %v5808 = vpop.xlane.xlu0 %5807
        %5809 = vadd.xlane.f32.xlu0 %v5778
        %v5810 = vpop.xlane.xlu0 %5809
        %5811 = vadd.xlane.f32.xlu0 %v5780
        %v5812 = vpop.xlane.xlu0 %5811
        %5813 = vadd.xlane.f32.xlu0 %v5782
        %v5814 = vpop.xlane.xlu0 %5813
        %5815 = vadd.xlane.f32.xlu0 %v5784
        %v5816 = vpop.xlane.xlu0 %5815
        %5817 = vadd.xlane.f32.xlu0 %v5786
        %v5818 = vpop.xlane.xlu0 %5817
        %5819 = vadd.xlane.f32.xlu0 %v5788
        %v5820 = vpop.xlane.xlu0 %5819
        %5821 = vadd.xlane.f32.xlu0 %v5790
        %v5822 = vpop.xlane.xlu0 %5821
        %5823 = vadd.xlane.f32.xlu0 %v5792
        %v5824 = vpop.xlane.xlu0 %5823
        %5825 = vadd.xlane.f32.xlu0 %v5794
        %v5826 = vpop.xlane.xlu0 %5825
        %5827 = vadd.xlane.f32.xlu0 %v5796
        %v5828 = vpop.xlane.xlu0 %5827
        %5829 = vadd.xlane.f32.xlu0 %v5798
        %v5830 = vpop.xlane.xlu0 %5829
        %5831 = vadd.xlane.f32.xlu0 %v5800
        %v5832 = vpop.xlane.xlu0 %5831
        %5833 = vadd.xlane.f32.xlu0 %v5802
        %v5834 = vpop.xlane.xlu0 %5833
        %5835 = vadd.xlane.f32.xlu0 %v5804
        %v5836 = vpop.xlane.xlu0 %5835
        %v5837 = vpack.c.bf16 %v5776, %v5774
        %v5838 = vpack.c.bf16 %v5780, %v5778
        %v5839 = vpack.c.bf16 %v5784, %v5782
        %v5840 = vpack.c.bf16 %v5788, %v5786
        %v5841 = vpack.c.bf16 %v5792, %v5790
        %v5842 = vpack.c.bf16 %v5796, %v5794
        %v5843 = vpack.c.bf16 %v5800, %v5798
        %v5844 = vpack.c.bf16 %v5804, %v5802
        %5845 = vrot.lane.b32.xlu0 %v5467, 64
        %v5846 = vpop.permute.xlu0 %5845
        %5847 = vrot.lane.b32.xlu0 %v5468, 64
        %v5848 = vpop.permute.xlu0 %5847
        %5849 = vrot.lane.b32.xlu0 %v5469, 64
        %v5850 = vpop.permute.xlu0 %5849
        %5851 = vrot.lane.b32.xlu0 %v5470, 64
        %v5852 = vpop.permute.xlu0 %5851
        %5853 = vrot.lane.b32.xlu0 %v5471, 64
        %v5854 = vpop.permute.xlu0 %5853
        %5855 = vrot.lane.b32.xlu0 %v5472, 64
        %v5856 = vpop.permute.xlu0 %5855
        %5857 = vrot.lane.b32.xlu0 %v5473, 64
        %v5858 = vpop.permute.xlu0 %5857
        %5859 = vrot.lane.b32.xlu0 %v5474, 64
        %v5860 = vpop.permute.xlu0 %5859
        %5869 = vmatpush.bf16.msra.mxu0 %v5860
        %5870 = vmatpush.bf16.msra.mxu0 %v5858
        %5871 = vmatpush.bf16.msra.mxu0 %v5856
        %5872 = vmatpush.bf16.msra.mxu0 %v5854
        %5873 = vmatpush.bf16.msra.mxu0 %v5852
        %5874 = vmatpush.bf16.msra.mxu0 %v5850
        %5875 = vmatpush.bf16.msra.mxu0 %v5848
        %5876 = vmatpush.bf16.msra.mxu0 %v5846
        %5877 = vmatmul.bf16.gmra.mxu0 %v5837
        %v5878 = vpop.f32.mrf.mxu0
        %v5879 = vadd.f32 0.0, %v5878
        %v5880 = vpop.f32.mrf.mxu0
        %v5881 = vadd.f32 0.0, %v5880
        %5882 = vmatmul.bf16.gmra.mxu0 %v5838
        %v5883 = vpop.f32.mrf.mxu0
        %v5884 = vadd.f32 0.0, %v5883
        %v5885 = vpop.f32.mrf.mxu0
        %v5886 = vadd.f32 0.0, %v5885
        %5887 = vmatmul.bf16.gmra.mxu0 %v5839
        %v5888 = vpop.f32.mrf.mxu0
        %v5889 = vadd.f32 0.0, %v5888
        %v5890 = vpop.f32.mrf.mxu0
        %v5891 = vadd.f32 0.0, %v5890
        %5892 = vmatmul.bf16.gmra.mxu0 %v5840
        %v5893 = vpop.f32.mrf.mxu0
        %v5894 = vadd.f32 0.0, %v5893
        %v5895 = vpop.f32.mrf.mxu0
        %v5896 = vadd.f32 0.0, %v5895
        %5897 = vmatmul.bf16.gmra.mxu0 %v5841
        %v5898 = vpop.f32.mrf.mxu0
        %v5899 = vadd.f32 0.0, %v5898
        %v5900 = vpop.f32.mrf.mxu0
        %v5901 = vadd.f32 0.0, %v5900
        %5902 = vmatmul.bf16.gmra.mxu0 %v5842
        %v5903 = vpop.f32.mrf.mxu0
        %v5904 = vadd.f32 0.0, %v5903
        %v5905 = vpop.f32.mrf.mxu0
        %v5906 = vadd.f32 0.0, %v5905
        %5907 = vmatmul.bf16.gmra.mxu0 %v5843
        %v5908 = vpop.f32.mrf.mxu0
        %v5909 = vadd.f32 0.0, %v5908
        %v5910 = vpop.f32.mrf.mxu0
        %v5911 = vadd.f32 0.0, %v5910
        %5912 = vmatmul.bf16.gmra.mxu0 %v5844
        %v5913 = vpop.f32.mrf.mxu0
        %v5914 = vadd.f32 0.0, %v5913
        %v5915 = vpop.f32.mrf.mxu0
        %v5916 = vadd.f32 0.0, %v5915
        %5917 = vdwg.mxu0
        %v5918 = vrcp.pop %v5806
        %v5919 = vrcp.pop %v5808
        %v5920 = vrcp.pop %v5810
        %v5921 = vrcp.pop %v5812
        %v5922 = vrcp.pop %v5814
        %v5923 = vrcp.pop %v5816
        %v5924 = vrcp.pop %v5818
        %v5925 = vrcp.pop %v5820
        %v5926 = vrcp.pop %v5822
        %v5927 = vrcp.pop %v5824
        %v5928 = vrcp.pop %v5826
        %v5929 = vrcp.pop %v5828
        %v5930 = vrcp.pop %v5830
        %v5931 = vrcp.pop %v5832
        %v5932 = vrcp.pop %v5834
        %v5933 = vrcp.pop %v5836
        %v5934 = vmul.f32 %v5879, %v5918
        %v5935 = vmul.f32 %v5881, %v5919
        %v5936 = vmul.f32 %v5884, %v5920
        %v5937 = vmul.f32 %v5886, %v5921
        %v5938 = vmul.f32 %v5889, %v5922
        %v5939 = vmul.f32 %v5891, %v5923
        %v5940 = vmul.f32 %v5894, %v5924
        %v5941 = vmul.f32 %v5896, %v5925
        %v5942 = vmul.f32 %v5899, %v5926
        %v5943 = vmul.f32 %v5901, %v5927
        %v5944 = vmul.f32 %v5904, %v5928
        %v5945 = vmul.f32 %v5906, %v5929
        %v5946 = vmul.f32 %v5909, %v5930
        %v5947 = vmul.f32 %v5911, %v5931
        %v5948 = vmul.f32 %v5914, %v5932
        %v5949 = vmul.f32 %v5916, %v5933
        %v5950 = vpack.c.bf16 %v5934, %v5934
        %v5951 = vpack.c.bf16 %v5935, %v5935
        %v5952 = vpack.c.bf16 %v5936, %v5936
        %v5953 = vpack.c.bf16 %v5937, %v5937
        %v5954 = vpack.c.bf16 %v5938, %v5938
        %v5955 = vpack.c.bf16 %v5939, %v5939
        %v5956 = vpack.c.bf16 %v5940, %v5940
        %v5957 = vpack.c.bf16 %v5941, %v5941
        %v5958 = vpack.c.bf16 %v5942, %v5942
        %v5959 = vpack.c.bf16 %v5943, %v5943
        %v5960 = vpack.c.bf16 %v5944, %v5944
        %v5961 = vpack.c.bf16 %v5945, %v5945
        %v5962 = vpack.c.bf16 %v5946, %v5946
        %v5963 = vpack.c.bf16 %v5947, %v5947
        %v5964 = vpack.c.bf16 %v5948, %v5948
        %v5965 = vpack.c.bf16 %v5949, %v5949
        %5982 = vrot.lane.b32.xlu0 %v5950, 64
        %v5983 = vpop.permute.xlu0 %5982
        %5984 = vrot.lane.b32.xlu0 %v5951, 64
        %v5985 = vpop.permute.xlu0 %5984
        %5986 = vrot.lane.b32.xlu0 %v5952, 64
        %v5987 = vpop.permute.xlu0 %5986
        %5988 = vrot.lane.b32.xlu0 %v5953, 64
        %v5989 = vpop.permute.xlu0 %5988
        %5990 = vrot.lane.b32.xlu0 %v5954, 64
        %v5991 = vpop.permute.xlu0 %5990
        %5992 = vrot.lane.b32.xlu0 %v5955, 64
        %v5993 = vpop.permute.xlu0 %5992
        %5994 = vrot.lane.b32.xlu0 %v5956, 64
        %v5995 = vpop.permute.xlu0 %5994
        %5996 = vrot.lane.b32.xlu0 %v5957, 64
        %v5997 = vpop.permute.xlu0 %5996
        %5998 = vrot.lane.b32.xlu0 %v5958, 64
        %v5999 = vpop.permute.xlu0 %5998
        %6000 = vrot.lane.b32.xlu0 %v5959, 64
        %v6001 = vpop.permute.xlu0 %6000
        %6002 = vrot.lane.b32.xlu0 %v5960, 64
        %v6003 = vpop.permute.xlu0 %6002
        %6004 = vrot.lane.b32.xlu0 %v5961, 64
        %v6005 = vpop.permute.xlu0 %6004
        %6006 = vrot.lane.b32.xlu0 %v5962, 64
        %v6007 = vpop.permute.xlu0 %6006
        %6008 = vrot.lane.b32.xlu0 %v5963, 64
        %v6009 = vpop.permute.xlu0 %6008
        %6010 = vrot.lane.b32.xlu0 %v5964, 64
        %v6011 = vpop.permute.xlu0 %6010
        %6012 = vrot.lane.b32.xlu0 %v5965, 64
        %v6013 = vpop.permute.xlu0 %6012
        %6030 = vst.msk [vmem:[#allocation2 + $0x8] sm:$0xf] %vm4277, %v5983
        %6031 = vst.msk [vmem:[#allocation2 + $0x14] sm:$0xf] %vm4277, %v5985
        %6032 = vst.msk [vmem:[#allocation2 + $0x20] sm:$0xf] %vm4277, %v5987
        %6033 = vst.msk [vmem:[#allocation2 + $0x2c] sm:$0xf] %vm4277, %v5989
        %6034 = vst.msk [vmem:[#allocation2 + $0x38] sm:$0xf] %vm4277, %v5991
        %6035 = vst.msk [vmem:[#allocation2 + $0x44] sm:$0xf] %vm4277, %v5993
        %6036 = vst.msk [vmem:[#allocation2 + $0x50] sm:$0xf] %vm4277, %v5995
        %6037 = vst.msk [vmem:[#allocation2 + $0x5c] sm:$0xf] %vm4277, %v5997
        %6038 = vst.msk [vmem:[#allocation2 + $0x68] sm:$0xf] %vm4277, %v5999
        %6039 = vst.msk [vmem:[#allocation2 + $0x74] sm:$0xf] %vm4277, %v6001
        %6040 = vst.msk [vmem:[#allocation2 + $0x80] sm:$0xf] %vm4277, %v6003
        %6041 = vst.msk [vmem:[#allocation2 + $0x8c] sm:$0xf] %vm4277, %v6005
        %6042 = vst.msk [vmem:[#allocation2 + $0x98] sm:$0xf] %vm4277, %v6007
        %6043 = vst.msk [vmem:[#allocation2 + $0xa4] sm:$0xf] %vm4277, %v6009
        %6044 = vst.msk [vmem:[#allocation2 + $0xb0] sm:$0xf] %vm4277, %v6011
        %6045 = vst.msk [vmem:[#allocation2 + $0xbc] sm:$0xf] %vm4277, %v6013
        %v6046 = vld [vmem:[#allocation2] sm:$0xff]
        %v6047 = vld [vmem:[#allocation2 + $0x8] sm:$0xf]
        %v6048 = vld [vmem:[#allocation2 + $0xc] sm:$0xff]
        %v6049 = vld [vmem:[#allocation2 + $0x14] sm:$0xf]
        %v6050 = vld [vmem:[#allocation2 + $0x18] sm:$0xff]
        %v6051 = vld [vmem:[#allocation2 + $0x20] sm:$0xf]
        %v6052 = vld [vmem:[#allocation2 + $0x24] sm:$0xff]
        %v6053 = vld [vmem:[#allocation2 + $0x2c] sm:$0xf]
        %v6054 = vld [vmem:[#allocation2 + $0x30] sm:$0xff]
        %v6055 = vld [vmem:[#allocation2 + $0x38] sm:$0xf]
        %v6056 = vld [vmem:[#allocation2 + $0x3c] sm:$0xff]
        %v6057 = vld [vmem:[#allocation2 + $0x44] sm:$0xf]
        %v6058 = vld [vmem:[#allocation2 + $0x48] sm:$0xff]
        %v6059 = vld [vmem:[#allocation2 + $0x50] sm:$0xf]
        %v6060 = vld [vmem:[#allocation2 + $0x54] sm:$0xff]
        %v6061 = vld [vmem:[#allocation2 + $0x5c] sm:$0xf]
        %v6062 = vld [vmem:[#allocation2 + $0x60] sm:$0xff]
        %v6063 = vld [vmem:[#allocation2 + $0x68] sm:$0xf]
        %v6064 = vld [vmem:[#allocation2 + $0x6c] sm:$0xff]
        %v6065 = vld [vmem:[#allocation2 + $0x74] sm:$0xf]
        %v6066 = vld [vmem:[#allocation2 + $0x78] sm:$0xff]
        %v6067 = vld [vmem:[#allocation2 + $0x80] sm:$0xf]
        %v6068 = vld [vmem:[#allocation2 + $0x84] sm:$0xff]
        %v6069 = vld [vmem:[#allocation2 + $0x8c] sm:$0xf]
        %v6070 = vld [vmem:[#allocation2 + $0x90] sm:$0xff]
        %v6071 = vld [vmem:[#allocation2 + $0x98] sm:$0xf]
        %v6072 = vld [vmem:[#allocation2 + $0x9c] sm:$0xff]
        %v6073 = vld [vmem:[#allocation2 + $0xa4] sm:$0xf]
        %v6074 = vld [vmem:[#allocation2 + $0xa8] sm:$0xff]
        %v6075 = vld [vmem:[#allocation2 + $0xb0] sm:$0xf]
        %v6076 = vld [vmem:[#allocation2 + $0xb4] sm:$0xff]
        %v6077 = vld [vmem:[#allocation2 + $0xbc] sm:$0xf]
        %v6110 = vunpack.c.l.b16 %v6046
        %v6111 = vunpack.c.h.b16 %v6046
        %v6112 = vunpack.c.l.b16 %v6047
        %v6113 = vunpack.c.l.b16 %v6048
        %v6114 = vunpack.c.h.b16 %v6048
        %v6115 = vunpack.c.l.b16 %v6049
        %v6116 = vunpack.c.l.b16 %v6050
        %v6117 = vunpack.c.h.b16 %v6050
        %v6118 = vunpack.c.l.b16 %v6051
        %v6119 = vunpack.c.l.b16 %v6052
        %v6120 = vunpack.c.h.b16 %v6052
        %v6121 = vunpack.c.l.b16 %v6053
        %v6122 = vunpack.c.l.b16 %v6054
        %v6123 = vunpack.c.h.b16 %v6054
        %v6124 = vunpack.c.l.b16 %v6055
        %v6125 = vunpack.c.l.b16 %v6056
        %v6126 = vunpack.c.h.b16 %v6056
        %v6127 = vunpack.c.l.b16 %v6057
        %v6128 = vunpack.c.l.b16 %v6058
        %v6129 = vunpack.c.h.b16 %v6058
        %v6130 = vunpack.c.l.b16 %v6059
        %v6131 = vunpack.c.l.b16 %v6060
        %v6132 = vunpack.c.h.b16 %v6060
        %v6133 = vunpack.c.l.b16 %v6061
        %v6134 = vunpack.c.l.b16 %v6062
        %v6135 = vunpack.c.h.b16 %v6062
        %v6136 = vunpack.c.l.b16 %v6063
        %v6137 = vunpack.c.l.b16 %v6064
        %v6138 = vunpack.c.h.b16 %v6064
        %v6139 = vunpack.c.l.b16 %v6065
        %v6140 = vunpack.c.l.b16 %v6066
        %v6141 = vunpack.c.h.b16 %v6066
        %v6142 = vunpack.c.l.b16 %v6067
        %v6143 = vunpack.c.l.b16 %v6068
        %v6144 = vunpack.c.h.b16 %v6068
        %v6145 = vunpack.c.l.b16 %v6069
        %v6146 = vunpack.c.l.b16 %v6070
        %v6147 = vunpack.c.h.b16 %v6070
        %v6148 = vunpack.c.l.b16 %v6071
        %v6149 = vunpack.c.l.b16 %v6072
        %v6150 = vunpack.c.h.b16 %v6072
        %v6151 = vunpack.c.l.b16 %v6073
        %v6152 = vunpack.c.l.b16 %v6074
        %v6153 = vunpack.c.h.b16 %v6074
        %v6154 = vunpack.c.l.b16 %v6075
        %v6155 = vunpack.c.l.b16 %v6076
        %v6156 = vunpack.c.h.b16 %v6076
        %v6157 = vunpack.c.l.b16 %v6077
        %v6158 = vpack.c.b16 %v6113, %v6110
        %v6159 = vpack.c.b16 %v6114, %v6111
        %v6160 = vpack.c.b16 %v6115, %v6112
        %v6161 = vpack.c.b16 %v6119, %v6116
        %v6162 = vpack.c.b16 %v6120, %v6117
        %v6163 = vpack.c.b16 %v6121, %v6118
        %v6164 = vpack.c.b16 %v6125, %v6122
        %v6165 = vpack.c.b16 %v6126, %v6123
        %v6166 = vpack.c.b16 %v6127, %v6124
        %v6167 = vpack.c.b16 %v6131, %v6128
        %v6168 = vpack.c.b16 %v6132, %v6129
        %v6169 = vpack.c.b16 %v6133, %v6130
        %v6170 = vpack.c.b16 %v6137, %v6134
        %v6171 = vpack.c.b16 %v6138, %v6135
        %v6172 = vpack.c.b16 %v6139, %v6136
        %v6173 = vpack.c.b16 %v6143, %v6140
        %v6174 = vpack.c.b16 %v6144, %v6141
        %v6175 = vpack.c.b16 %v6145, %v6142
        %v6176 = vpack.c.b16 %v6149, %v6146
        %v6177 = vpack.c.b16 %v6150, %v6147
        %v6178 = vpack.c.b16 %v6151, %v6148
        %v6179 = vpack.c.b16 %v6155, %v6152
        %v6180 = vpack.c.b16 %v6156, %v6153
        %v6181 = vpack.c.b16 %v6157, %v6154
        %v6302 = vunpack.c.l.b16 %v588
        %v6303 = vunpack.c.h.b16 %v588
        %v6304 = vunpack.c.l.b16 %v589
        %v6305 = vunpack.c.l.b16 %v590
        %v6306 = vunpack.c.h.b16 %v590
        %v6307 = vunpack.c.l.b16 %v591
        %v6308 = vunpack.c.l.b16 %v592
        %v6309 = vunpack.c.h.b16 %v592
        %v6310 = vunpack.c.l.b16 %v593
        %v6311 = vunpack.c.l.b16 %v594
        %v6312 = vunpack.c.h.b16 %v594
        %v6313 = vunpack.c.l.b16 %v595
        %v6314 = vunpack.c.l.b16 %v596
        %v6315 = vunpack.c.h.b16 %v596
        %v6316 = vunpack.c.l.b16 %v597
        %v6317 = vunpack.c.l.b16 %v598
        %v6318 = vunpack.c.h.b16 %v598
        %v6319 = vunpack.c.l.b16 %v599
        %v6320 = vunpack.c.l.b16 %v600
        %v6321 = vunpack.c.h.b16 %v600
        %v6322 = vunpack.c.l.b16 %v601
        %v6323 = vunpack.c.l.b16 %v602
        %v6324 = vunpack.c.h.b16 %v602
        %v6325 = vunpack.c.l.b16 %v603
        %v6326 = vunpack.c.l.b16 %v604
        %v6327 = vunpack.c.h.b16 %v604
        %v6328 = vunpack.c.l.b16 %v605
        %v6329 = vunpack.c.l.b16 %v606
        %v6330 = vunpack.c.h.b16 %v606
        %v6331 = vunpack.c.l.b16 %v607
        %v6332 = vunpack.c.l.b16 %v608
        %v6333 = vunpack.c.h.b16 %v608
        %v6334 = vunpack.c.l.b16 %v609
        %v6335 = vunpack.c.l.b16 %v610
        %v6336 = vunpack.c.h.b16 %v610
        %v6337 = vunpack.c.l.b16 %v611
        %v6338 = vunpack.c.l.b16 %v612
        %v6339 = vunpack.c.h.b16 %v612
        %v6340 = vunpack.c.l.b16 %v613
        %v6341 = vunpack.c.l.b16 %v614
        %v6342 = vunpack.c.h.b16 %v614
        %v6343 = vunpack.c.l.b16 %v615
        %v6344 = vunpack.c.l.b16 %v616
        %v6345 = vunpack.c.h.b16 %v616
        %v6346 = vunpack.c.l.b16 %v617
        %v6347 = vunpack.c.l.b16 %v618
        %v6348 = vunpack.c.h.b16 %v618
        %v6349 = vunpack.c.l.b16 %v619
        %v6350 = vunpack.c.l.b16 %v620
        %v6351 = vunpack.c.h.b16 %v620
        %v6352 = vunpack.c.l.b16 %v621
        %v6353 = vunpack.c.l.b16 %v622
        %v6354 = vunpack.c.h.b16 %v622
        %v6355 = vunpack.c.l.b16 %v623
        %v6356 = vunpack.c.l.b16 %v624
        %v6357 = vunpack.c.h.b16 %v624
        %v6358 = vunpack.c.l.b16 %v625
        %v6359 = vunpack.c.l.b16 %v626
        %v6360 = vunpack.c.h.b16 %v626
        %v6361 = vunpack.c.l.b16 %v627
        %v6362 = vunpack.c.l.b16 %v628
        %v6363 = vunpack.c.h.b16 %v628
        %v6364 = vunpack.c.l.b16 %v629
        %v6365 = vunpack.c.l.b16 %v630
        %v6366 = vunpack.c.h.b16 %v630
        %v6367 = vunpack.c.l.b16 %v631
        %v6368 = vunpack.c.l.b16 %v632
        %v6369 = vunpack.c.h.b16 %v632
        %v6370 = vunpack.c.l.b16 %v633
        %v6371 = vunpack.c.l.b16 %v634
        %v6372 = vunpack.c.h.b16 %v634
        %v6373 = vunpack.c.l.b16 %v635
        %v6374 = vunpack.c.l.b16 %v636
        %v6375 = vunpack.c.h.b16 %v636
        %v6376 = vunpack.c.l.b16 %v637
        %v6377 = vunpack.c.l.b16 %v638
        %v6378 = vunpack.c.h.b16 %v638
        %v6379 = vunpack.c.l.b16 %v639
        %v6380 = vunpack.c.l.b16 %v640
        %v6381 = vunpack.c.h.b16 %v640
        %v6382 = vunpack.c.l.b16 %v641
        %v6383 = vunpack.c.l.b16 %v642
        %v6384 = vunpack.c.h.b16 %v642
        %v6385 = vunpack.c.l.b16 %v643
        %v6386 = vunpack.c.l.b16 %v644
        %v6387 = vunpack.c.h.b16 %v644
        %v6388 = vunpack.c.l.b16 %v645
        %v6389 = vunpack.c.l.b16 %v646
        %v6390 = vunpack.c.h.b16 %v646
        %v6391 = vunpack.c.l.b16 %v647
        %v6392 = vunpack.c.l.b16 %v648
        %v6393 = vunpack.c.h.b16 %v648
        %v6394 = vunpack.c.l.b16 %v649
        %v6395 = vunpack.c.l.b16 %v650
        %v6396 = vunpack.c.h.b16 %v650
        %v6397 = vunpack.c.l.b16 %v651
        %v6398 = vunpack.c.l.b16 %v652
        %v6399 = vunpack.c.h.b16 %v652
        %v6400 = vunpack.c.l.b16 %v653
        %v6401 = vunpack.c.l.b16 %v654
        %v6402 = vunpack.c.h.b16 %v654
        %v6403 = vunpack.c.l.b16 %v655
        %v6404 = vunpack.c.l.b16 %v656
        %v6405 = vunpack.c.h.b16 %v656
        %v6406 = vunpack.c.l.b16 %v657
        %v6407 = vunpack.c.l.b16 %v658
        %v6408 = vunpack.c.h.b16 %v658
        %v6409 = vunpack.c.l.b16 %v659
        %v6410 = vunpack.c.l.b16 %v660
        %v6411 = vunpack.c.h.b16 %v660
        %v6412 = vunpack.c.l.b16 %v661
        %v6413 = vunpack.c.l.b16 %v662
        %v6414 = vunpack.c.h.b16 %v662
        %v6415 = vunpack.c.l.b16 %v663
        %v6416 = vunpack.c.l.b16 %v664
        %v6417 = vunpack.c.h.b16 %v664
        %v6418 = vunpack.c.l.b16 %v665
        %v6419 = vunpack.c.l.b16 %v666
        %v6420 = vunpack.c.h.b16 %v666
        %v6421 = vunpack.c.l.b16 %v667
        %v6422 = vunpack.c.l.b16 %v668
        %v6423 = vunpack.c.h.b16 %v668
        %v6424 = vunpack.c.l.b16 %v669
        %v6425 = vunpack.c.l.b16 %v670
        %v6426 = vunpack.c.h.b16 %v670
        %v6427 = vunpack.c.l.b16 %v671
        %v6428 = vunpack.c.l.b16 %v672
        %v6429 = vunpack.c.h.b16 %v672
        %v6430 = vunpack.c.l.b16 %v673
        %v6431 = vunpack.c.l.b16 %v674
        %v6432 = vunpack.c.h.b16 %v674
        %v6433 = vunpack.c.l.b16 %v675
        %v6434 = vunpack.c.l.b16 %v676
        %v6435 = vunpack.c.h.b16 %v676
        %v6436 = vunpack.c.l.b16 %v677
        %v6437 = vunpack.c.l.b16 %v678
        %v6438 = vunpack.c.h.b16 %v678
        %v6439 = vunpack.c.l.b16 %v679
        %v6440 = vunpack.c.l.b16 %v680
        %v6441 = vunpack.c.h.b16 %v680
        %v6442 = vunpack.c.l.b16 %v681
        %v6443 = vunpack.c.l.b16 %v682
        %v6444 = vunpack.c.h.b16 %v682
        %v6445 = vunpack.c.l.b16 %v683
        %v6446 = vpack.c.b16 %v6305, %v6302
        %v6447 = vpack.c.b16 %v6306, %v6303
        %v6448 = vpack.c.b16 %v6307, %v6304
        %v6449 = vpack.c.b16 %v6311, %v6308
        %v6450 = vpack.c.b16 %v6312, %v6309
        %v6451 = vpack.c.b16 %v6313, %v6310
        %v6452 = vpack.c.b16 %v6317, %v6314
        %v6453 = vpack.c.b16 %v6318, %v6315
        %v6454 = vpack.c.b16 %v6319, %v6316
        %v6455 = vpack.c.b16 %v6323, %v6320
        %v6456 = vpack.c.b16 %v6324, %v6321
        %v6457 = vpack.c.b16 %v6325, %v6322
        %v6458 = vpack.c.b16 %v6329, %v6326
        %v6459 = vpack.c.b16 %v6330, %v6327
        %v6460 = vpack.c.b16 %v6331, %v6328
        %v6461 = vpack.c.b16 %v6335, %v6332
        %v6462 = vpack.c.b16 %v6336, %v6333
        %v6463 = vpack.c.b16 %v6337, %v6334
        %v6464 = vpack.c.b16 %v6341, %v6338
        %v6465 = vpack.c.b16 %v6342, %v6339
        %v6466 = vpack.c.b16 %v6343, %v6340
        %v6467 = vpack.c.b16 %v6347, %v6344
        %v6468 = vpack.c.b16 %v6348, %v6345
        %v6469 = vpack.c.b16 %v6349, %v6346
        %v6470 = vpack.c.b16 %v6353, %v6350
        %v6471 = vpack.c.b16 %v6354, %v6351
        %v6472 = vpack.c.b16 %v6355, %v6352
        %v6473 = vpack.c.b16 %v6359, %v6356
        %v6474 = vpack.c.b16 %v6360, %v6357
        %v6475 = vpack.c.b16 %v6361, %v6358
        %v6476 = vpack.c.b16 %v6365, %v6362
        %v6477 = vpack.c.b16 %v6366, %v6363
        %v6478 = vpack.c.b16 %v6367, %v6364
        %v6479 = vpack.c.b16 %v6371, %v6368
        %v6480 = vpack.c.b16 %v6372, %v6369
        %v6481 = vpack.c.b16 %v6373, %v6370
        %v6482 = vpack.c.b16 %v6377, %v6374
        %v6483 = vpack.c.b16 %v6378, %v6375
        %v6484 = vpack.c.b16 %v6379, %v6376
        %v6485 = vpack.c.b16 %v6383, %v6380
        %v6486 = vpack.c.b16 %v6384, %v6381
        %v6487 = vpack.c.b16 %v6385, %v6382
        %v6488 = vpack.c.b16 %v6389, %v6386
        %v6489 = vpack.c.b16 %v6390, %v6387
        %v6490 = vpack.c.b16 %v6391, %v6388
        %v6491 = vpack.c.b16 %v6395, %v6392
        %v6492 = vpack.c.b16 %v6396, %v6393
        %v6493 = vpack.c.b16 %v6397, %v6394
        %v6494 = vpack.c.b16 %v6401, %v6398
        %v6495 = vpack.c.b16 %v6402, %v6399
        %v6496 = vpack.c.b16 %v6403, %v6400
        %v6497 = vpack.c.b16 %v6407, %v6404
        %v6498 = vpack.c.b16 %v6408, %v6405
        %v6499 = vpack.c.b16 %v6409, %v6406
        %v6500 = vpack.c.b16 %v6413, %v6410
        %v6501 = vpack.c.b16 %v6414, %v6411
        %v6502 = vpack.c.b16 %v6415, %v6412
        %v6503 = vpack.c.b16 %v6419, %v6416
        %v6504 = vpack.c.b16 %v6420, %v6417
        %v6505 = vpack.c.b16 %v6421, %v6418
        %v6506 = vpack.c.b16 %v6425, %v6422
        %v6507 = vpack.c.b16 %v6426, %v6423
        %v6508 = vpack.c.b16 %v6427, %v6424
        %v6509 = vpack.c.b16 %v6431, %v6428
        %v6510 = vpack.c.b16 %v6432, %v6429
        %v6511 = vpack.c.b16 %v6433, %v6430
        %v6512 = vpack.c.b16 %v6437, %v6434
        %v6513 = vpack.c.b16 %v6438, %v6435
        %v6514 = vpack.c.b16 %v6439, %v6436
        %v6515 = vpack.c.b16 %v6443, %v6440
        %v6516 = vpack.c.b16 %v6444, %v6441
        %v6517 = vpack.c.b16 %v6445, %v6442
        %6590 = vmatpush.bf16.xpose.msra.mxu0 %v6467
        %6591 = vmatpush.bf16.xpose.msra.mxu0 %v6464
        %6592 = vmatpush.bf16.xpose.msra.mxu0 %v6461
        %6593 = vmatpush.bf16.xpose.msra.mxu0 %v6458
        %6594 = vmatpush.bf16.xpose.msra.mxu0 %v6455
        %6595 = vmatpush.bf16.xpose.msra.mxu0 %v6452
        %6596 = vmatpush.bf16.xpose.msra.mxu0 %v6449
        %6597 = vmatpush.bf16.xpose.msra.mxu0 %v6446
        %6598 = vmatmul.bf16.gmra.mxu0 %v6158
        %v6599 = vpop.f32.mrf.mxu0
        %v6600 = vadd.f32 0.0, %v6599
        %v6601 = vpop.f32.mrf.mxu0
        %v6602 = vadd.f32 0.0, %v6601
        %6603 = vmatmul.bf16.gmra.mxu0 %v6161
        %v6604 = vpop.f32.mrf.mxu0
        %v6605 = vadd.f32 0.0, %v6604
        %v6606 = vpop.f32.mrf.mxu0
        %v6607 = vadd.f32 0.0, %v6606
        %6608 = vmatmul.bf16.gmra.mxu0 %v6164
        %v6609 = vpop.f32.mrf.mxu0
        %v6610 = vadd.f32 0.0, %v6609
        %v6611 = vpop.f32.mrf.mxu0
        %v6612 = vadd.f32 0.0, %v6611
        %6613 = vmatmul.bf16.gmra.mxu0 %v6167
        %v6614 = vpop.f32.mrf.mxu0
        %v6615 = vadd.f32 0.0, %v6614
        %v6616 = vpop.f32.mrf.mxu0
        %v6617 = vadd.f32 0.0, %v6616
        %6618 = vmatmul.bf16.gmra.mxu0 %v6170
        %v6619 = vpop.f32.mrf.mxu0
        %v6620 = vadd.f32 0.0, %v6619
        %v6621 = vpop.f32.mrf.mxu0
        %v6622 = vadd.f32 0.0, %v6621
        %6623 = vmatmul.bf16.gmra.mxu0 %v6173
        %v6624 = vpop.f32.mrf.mxu0
        %v6625 = vadd.f32 0.0, %v6624
        %v6626 = vpop.f32.mrf.mxu0
        %v6627 = vadd.f32 0.0, %v6626
        %6628 = vmatmul.bf16.gmra.mxu0 %v6176
        %v6629 = vpop.f32.mrf.mxu0
        %v6630 = vadd.f32 0.0, %v6629
        %v6631 = vpop.f32.mrf.mxu0
        %v6632 = vadd.f32 0.0, %v6631
        %6633 = vmatmul.bf16.gmra.mxu0 %v6179
        %v6634 = vpop.f32.mrf.mxu0
        %v6635 = vadd.f32 0.0, %v6634
        %v6636 = vpop.f32.mrf.mxu0
        %v6637 = vadd.f32 0.0, %v6636
        %6638 = vdwg.mxu0
        %6639 = vmatpush.bf16.xpose.msra.mxu0 %v6468
        %6640 = vmatpush.bf16.xpose.msra.mxu0 %v6465
        %6641 = vmatpush.bf16.xpose.msra.mxu0 %v6462
        %6642 = vmatpush.bf16.xpose.msra.mxu0 %v6459
        %6643 = vmatpush.bf16.xpose.msra.mxu0 %v6456
        %6644 = vmatpush.bf16.xpose.msra.mxu0 %v6453
        %6645 = vmatpush.bf16.xpose.msra.mxu0 %v6450
        %6646 = vmatpush.bf16.xpose.msra.mxu0 %v6447
        %6647 = vmatmul.bf16.gmra.mxu0 %v6159
        %v6648 = vpop.f32.mrf.mxu0
        %v6649 = vadd.f32 %v6600, %v6648
        %v6650 = vpop.f32.mrf.mxu0
        %v6651 = vadd.f32 %v6602, %v6650
        %6652 = vmatmul.bf16.gmra.mxu0 %v6162
        %v6653 = vpop.f32.mrf.mxu0
        %v6654 = vadd.f32 %v6605, %v6653
        %v6655 = vpop.f32.mrf.mxu0
        %v6656 = vadd.f32 %v6607, %v6655
        %6657 = vmatmul.bf16.gmra.mxu0 %v6165
        %v6658 = vpop.f32.mrf.mxu0
        %v6659 = vadd.f32 %v6610, %v6658
        %v6660 = vpop.f32.mrf.mxu0
        %v6661 = vadd.f32 %v6612, %v6660
        %6662 = vmatmul.bf16.gmra.mxu0 %v6168
        %v6663 = vpop.f32.mrf.mxu0
        %v6664 = vadd.f32 %v6615, %v6663
        %v6665 = vpop.f32.mrf.mxu0
        %v6666 = vadd.f32 %v6617, %v6665
        %6667 = vmatmul.bf16.gmra.mxu0 %v6171
        %v6668 = vpop.f32.mrf.mxu0
        %v6669 = vadd.f32 %v6620, %v6668
        %v6670 = vpop.f32.mrf.mxu0
        %v6671 = vadd.f32 %v6622, %v6670
        %6672 = vmatmul.bf16.gmra.mxu0 %v6174
        %v6673 = vpop.f32.mrf.mxu0
        %v6674 = vadd.f32 %v6625, %v6673
        %v6675 = vpop.f32.mrf.mxu0
        %v6676 = vadd.f32 %v6627, %v6675
        %6677 = vmatmul.bf16.gmra.mxu0 %v6177
        %v6678 = vpop.f32.mrf.mxu0
        %v6679 = vadd.f32 %v6630, %v6678
        %v6680 = vpop.f32.mrf.mxu0
        %v6681 = vadd.f32 %v6632, %v6680
        %6682 = vmatmul.bf16.gmra.mxu0 %v6180
        %v6683 = vpop.f32.mrf.mxu0
        %v6684 = vadd.f32 %v6635, %v6683
        %v6685 = vpop.f32.mrf.mxu0
        %v6686 = vadd.f32 %v6637, %v6685
        %6687 = vdwg.mxu0
        %6688 = vmatpush.bf16.xpose.msra.mxu0 %v6469
        %6689 = vmatpush.bf16.xpose.msra.mxu0 %v6466
        %6690 = vmatpush.bf16.xpose.msra.mxu0 %v6463
        %6691 = vmatpush.bf16.xpose.msra.mxu0 %v6460
        %6692 = vmatpush.bf16.xpose.msra.mxu0 %v6457
        %6693 = vmatpush.bf16.xpose.msra.mxu0 %v6454
        %6694 = vmatpush.bf16.xpose.msra.mxu0 %v6451
        %6695 = vmatpush.bf16.xpose.msra.mxu0 %v6448
        %6696 = vmatmul.bf16.gmra.mxu0 %v6160
        %v6697 = vpop.f32.mrf.mxu0
        %v6698 = vadd.f32 %v6649, %v6697
        %v6699 = vpop.f32.mrf.mxu0
        %v6700 = vadd.f32 %v6651, %v6699
        %6701 = vmatmul.bf16.gmra.mxu0 %v6163
        %v6702 = vpop.f32.mrf.mxu0
        %v6703 = vadd.f32 %v6654, %v6702
        %v6704 = vpop.f32.mrf.mxu0
        %v6705 = vadd.f32 %v6656, %v6704
        %6706 = vmatmul.bf16.gmra.mxu0 %v6166
        %v6707 = vpop.f32.mrf.mxu0
        %v6708 = vadd.f32 %v6659, %v6707
        %v6709 = vpop.f32.mrf.mxu0
        %v6710 = vadd.f32 %v6661, %v6709
        %6711 = vmatmul.bf16.gmra.mxu0 %v6169
        %v6712 = vpop.f32.mrf.mxu0
        %v6713 = vadd.f32 %v6664, %v6712
        %v6714 = vpop.f32.mrf.mxu0
        %v6715 = vadd.f32 %v6666, %v6714
        %6716 = vmatmul.bf16.gmra.mxu0 %v6172
        %v6717 = vpop.f32.mrf.mxu0
        %v6718 = vadd.f32 %v6669, %v6717
        %v6719 = vpop.f32.mrf.mxu0
        %v6720 = vadd.f32 %v6671, %v6719
        %6721 = vmatmul.bf16.gmra.mxu0 %v6175
        %v6722 = vpop.f32.mrf.mxu0
        %v6723 = vadd.f32 %v6674, %v6722
        %v6724 = vpop.f32.mrf.mxu0
        %v6725 = vadd.f32 %v6676, %v6724
        %6726 = vmatmul.bf16.gmra.mxu0 %v6178
        %v6727 = vpop.f32.mrf.mxu0
        %v6728 = vadd.f32 %v6679, %v6727
        %v6729 = vpop.f32.mrf.mxu0
        %v6730 = vadd.f32 %v6681, %v6729
        %6731 = vmatmul.bf16.gmra.mxu0 %v6181
        %v6732 = vpop.f32.mrf.mxu0
        %v6733 = vadd.f32 %v6684, %v6732
        %v6734 = vpop.f32.mrf.mxu0
        %v6735 = vadd.f32 %v6686, %v6734
        %6736 = vdwg.mxu0
        %6737 = vmatpush.bf16.xpose.msra.mxu0 %v6491
        %6738 = vmatpush.bf16.xpose.msra.mxu0 %v6488
        %6739 = vmatpush.bf16.xpose.msra.mxu0 %v6485
        %6740 = vmatpush.bf16.xpose.msra.mxu0 %v6482
        %6741 = vmatpush.bf16.xpose.msra.mxu0 %v6479
        %6742 = vmatpush.bf16.xpose.msra.mxu0 %v6476
        %6743 = vmatpush.bf16.xpose.msra.mxu0 %v6473
        %6744 = vmatpush.bf16.xpose.msra.mxu0 %v6470
        %6745 = vmatmul.bf16.gmra.mxu0 %v6158
        %v6746 = vpop.f32.mrf.mxu0
        %v6747 = vadd.f32 0.0, %v6746
        %v6748 = vpop.f32.mrf.mxu0
        %v6749 = vadd.f32 0.0, %v6748
        %6750 = vmatmul.bf16.gmra.mxu0 %v6161
        %v6751 = vpop.f32.mrf.mxu0
        %v6752 = vadd.f32 0.0, %v6751
        %v6753 = vpop.f32.mrf.mxu0
        %v6754 = vadd.f32 0.0, %v6753
        %6755 = vmatmul.bf16.gmra.mxu0 %v6164
        %v6756 = vpop.f32.mrf.mxu0
        %v6757 = vadd.f32 0.0, %v6756
        %v6758 = vpop.f32.mrf.mxu0
        %v6759 = vadd.f32 0.0, %v6758
        %6760 = vmatmul.bf16.gmra.mxu0 %v6167
        %v6761 = vpop.f32.mrf.mxu0
        %v6762 = vadd.f32 0.0, %v6761
        %v6763 = vpop.f32.mrf.mxu0
        %v6764 = vadd.f32 0.0, %v6763
        %6765 = vmatmul.bf16.gmra.mxu0 %v6170
        %v6766 = vpop.f32.mrf.mxu0
        %v6767 = vadd.f32 0.0, %v6766
        %v6768 = vpop.f32.mrf.mxu0
        %v6769 = vadd.f32 0.0, %v6768
        %6770 = vmatmul.bf16.gmra.mxu0 %v6173
        %v6771 = vpop.f32.mrf.mxu0
        %v6772 = vadd.f32 0.0, %v6771
        %v6773 = vpop.f32.mrf.mxu0
        %v6774 = vadd.f32 0.0, %v6773
        %6775 = vmatmul.bf16.gmra.mxu0 %v6176
        %v6776 = vpop.f32.mrf.mxu0
        %v6777 = vadd.f32 0.0, %v6776
        %v6778 = vpop.f32.mrf.mxu0
        %v6779 = vadd.f32 0.0, %v6778
        %6780 = vmatmul.bf16.gmra.mxu0 %v6179
        %v6781 = vpop.f32.mrf.mxu0
        %v6782 = vadd.f32 0.0, %v6781
        %v6783 = vpop.f32.mrf.mxu0
        %v6784 = vadd.f32 0.0, %v6783
        %6785 = vdwg.mxu0
        %6786 = vmatpush.bf16.xpose.msra.mxu0 %v6492
        %6787 = vmatpush.bf16.xpose.msra.mxu0 %v6489
        %6788 = vmatpush.bf16.xpose.msra.mxu0 %v6486
        %6789 = vmatpush.bf16.xpose.msra.mxu0 %v6483
        %6790 = vmatpush.bf16.xpose.msra.mxu0 %v6480
        %6791 = vmatpush.bf16.xpose.msra.mxu0 %v6477
        %6792 = vmatpush.bf16.xpose.msra.mxu0 %v6474
        %6793 = vmatpush.bf16.xpose.msra.mxu0 %v6471
        %6794 = vmatmul.bf16.gmra.mxu0 %v6159
        %v6795 = vpop.f32.mrf.mxu0
        %v6796 = vadd.f32 %v6747, %v6795
        %v6797 = vpop.f32.mrf.mxu0
        %v6798 = vadd.f32 %v6749, %v6797
        %6799 = vmatmul.bf16.gmra.mxu0 %v6162
        %v6800 = vpop.f32.mrf.mxu0
        %v6801 = vadd.f32 %v6752, %v6800
        %v6802 = vpop.f32.mrf.mxu0
        %v6803 = vadd.f32 %v6754, %v6802
        %6804 = vmatmul.bf16.gmra.mxu0 %v6165
        %v6805 = vpop.f32.mrf.mxu0
        %v6806 = vadd.f32 %v6757, %v6805
        %v6807 = vpop.f32.mrf.mxu0
        %v6808 = vadd.f32 %v6759, %v6807
        %6809 = vmatmul.bf16.gmra.mxu0 %v6168
        %v6810 = vpop.f32.mrf.mxu0
        %v6811 = vadd.f32 %v6762, %v6810
        %v6812 = vpop.f32.mrf.mxu0
        %v6813 = vadd.f32 %v6764, %v6812
        %6814 = vmatmul.bf16.gmra.mxu0 %v6171
        %v6815 = vpop.f32.mrf.mxu0
        %v6816 = vadd.f32 %v6767, %v6815
        %v6817 = vpop.f32.mrf.mxu0
        %v6818 = vadd.f32 %v6769, %v6817
        %6819 = vmatmul.bf16.gmra.mxu0 %v6174
        %v6820 = vpop.f32.mrf.mxu0
        %v6821 = vadd.f32 %v6772, %v6820
        %v6822 = vpop.f32.mrf.mxu0
        %v6823 = vadd.f32 %v6774, %v6822
        %6824 = vmatmul.bf16.gmra.mxu0 %v6177
        %v6825 = vpop.f32.mrf.mxu0
        %v6826 = vadd.f32 %v6777, %v6825
        %v6827 = vpop.f32.mrf.mxu0
        %v6828 = vadd.f32 %v6779, %v6827
        %6829 = vmatmul.bf16.gmra.mxu0 %v6180
        %v6830 = vpop.f32.mrf.mxu0
        %v6831 = vadd.f32 %v6782, %v6830
        %v6832 = vpop.f32.mrf.mxu0
        %v6833 = vadd.f32 %v6784, %v6832
        %6834 = vdwg.mxu0
        %6835 = vmatpush.bf16.xpose.msra.mxu0 %v6493
        %6836 = vmatpush.bf16.xpose.msra.mxu0 %v6490
        %6837 = vmatpush.bf16.xpose.msra.mxu0 %v6487
        %6838 = vmatpush.bf16.xpose.msra.mxu0 %v6484
        %6839 = vmatpush.bf16.xpose.msra.mxu0 %v6481
        %6840 = vmatpush.bf16.xpose.msra.mxu0 %v6478
        %6841 = vmatpush.bf16.xpose.msra.mxu0 %v6475
        %6842 = vmatpush.bf16.xpose.msra.mxu0 %v6472
        %6843 = vmatmul.bf16.gmra.mxu0 %v6160
        %v6844 = vpop.f32.mrf.mxu0
        %v6845 = vadd.f32 %v6796, %v6844
        %v6846 = vpop.f32.mrf.mxu0
        %v6847 = vadd.f32 %v6798, %v6846
        %6848 = vmatmul.bf16.gmra.mxu0 %v6163
        %v6849 = vpop.f32.mrf.mxu0
        %v6850 = vadd.f32 %v6801, %v6849
        %v6851 = vpop.f32.mrf.mxu0
        %v6852 = vadd.f32 %v6803, %v6851
        %6853 = vmatmul.bf16.gmra.mxu0 %v6166
        %v6854 = vpop.f32.mrf.mxu0
        %v6855 = vadd.f32 %v6806, %v6854
        %v6856 = vpop.f32.mrf.mxu0
        %v6857 = vadd.f32 %v6808, %v6856
        %6858 = vmatmul.bf16.gmra.mxu0 %v6169
        %v6859 = vpop.f32.mrf.mxu0
        %v6860 = vadd.f32 %v6811, %v6859
        %v6861 = vpop.f32.mrf.mxu0
        %v6862 = vadd.f32 %v6813, %v6861
        %6863 = vmatmul.bf16.gmra.mxu0 %v6172
        %v6864 = vpop.f32.mrf.mxu0
        %v6865 = vadd.f32 %v6816, %v6864
        %v6866 = vpop.f32.mrf.mxu0
        %v6867 = vadd.f32 %v6818, %v6866
        %6868 = vmatmul.bf16.gmra.mxu0 %v6175
        %v6869 = vpop.f32.mrf.mxu0
        %v6870 = vadd.f32 %v6821, %v6869
        %v6871 = vpop.f32.mrf.mxu0
        %v6872 = vadd.f32 %v6823, %v6871
        %6873 = vmatmul.bf16.gmra.mxu0 %v6178
        %v6874 = vpop.f32.mrf.mxu0
        %v6875 = vadd.f32 %v6826, %v6874
        %v6876 = vpop.f32.mrf.mxu0
        %v6877 = vadd.f32 %v6828, %v6876
        %6878 = vmatmul.bf16.gmra.mxu0 %v6181
        %v6879 = vpop.f32.mrf.mxu0
        %v6880 = vadd.f32 %v6831, %v6879
        %v6881 = vpop.f32.mrf.mxu0
        %v6882 = vadd.f32 %v6833, %v6881
        %6883 = vdwg.mxu0
        %6884 = vmatpush.bf16.xpose.msra.mxu0 %v6515
        %6885 = vmatpush.bf16.xpose.msra.mxu0 %v6512
        %6886 = vmatpush.bf16.xpose.msra.mxu0 %v6509
        %6887 = vmatpush.bf16.xpose.msra.mxu0 %v6506
        %6888 = vmatpush.bf16.xpose.msra.mxu0 %v6503
        %6889 = vmatpush.bf16.xpose.msra.mxu0 %v6500
        %6890 = vmatpush.bf16.xpose.msra.mxu0 %v6497
        %6891 = vmatpush.bf16.xpose.msra.mxu0 %v6494
        %6892 = vmatmul.bf16.gmra.mxu0 %v6158
        %v6893 = vpop.f32.mrf.mxu0
        %v6894 = vadd.f32 0.0, %v6893
        %v6895 = vpop.f32.mrf.mxu0
        %v6896 = vadd.f32 0.0, %v6895
        %6897 = vmatmul.bf16.gmra.mxu0 %v6161
        %v6898 = vpop.f32.mrf.mxu0
        %v6899 = vadd.f32 0.0, %v6898
        %v6900 = vpop.f32.mrf.mxu0
        %v6901 = vadd.f32 0.0, %v6900
        %6902 = vmatmul.bf16.gmra.mxu0 %v6164
        %v6903 = vpop.f32.mrf.mxu0
        %v6904 = vadd.f32 0.0, %v6903
        %v6905 = vpop.f32.mrf.mxu0
        %v6906 = vadd.f32 0.0, %v6905
        %6907 = vmatmul.bf16.gmra.mxu0 %v6167
        %v6908 = vpop.f32.mrf.mxu0
        %v6909 = vadd.f32 0.0, %v6908
        %v6910 = vpop.f32.mrf.mxu0
        %v6911 = vadd.f32 0.0, %v6910
        %6912 = vmatmul.bf16.gmra.mxu0 %v6170
        %v6913 = vpop.f32.mrf.mxu0
        %v6914 = vadd.f32 0.0, %v6913
        %v6915 = vpop.f32.mrf.mxu0
        %v6916 = vadd.f32 0.0, %v6915
        %6917 = vmatmul.bf16.gmra.mxu0 %v6173
        %v6918 = vpop.f32.mrf.mxu0
        %v6919 = vadd.f32 0.0, %v6918
        %v6920 = vpop.f32.mrf.mxu0
        %v6921 = vadd.f32 0.0, %v6920
        %6922 = vmatmul.bf16.gmra.mxu0 %v6176
        %v6923 = vpop.f32.mrf.mxu0
        %v6924 = vadd.f32 0.0, %v6923
        %v6925 = vpop.f32.mrf.mxu0
        %v6926 = vadd.f32 0.0, %v6925
        %6927 = vmatmul.bf16.gmra.mxu0 %v6179
        %v6928 = vpop.f32.mrf.mxu0
        %v6929 = vadd.f32 0.0, %v6928
        %v6930 = vpop.f32.mrf.mxu0
        %v6931 = vadd.f32 0.0, %v6930
        %6932 = vdwg.mxu0
        %6933 = vmatpush.bf16.xpose.msra.mxu0 %v6516
        %6934 = vmatpush.bf16.xpose.msra.mxu0 %v6513
        %6935 = vmatpush.bf16.xpose.msra.mxu0 %v6510
        %6936 = vmatpush.bf16.xpose.msra.mxu0 %v6507
        %6937 = vmatpush.bf16.xpose.msra.mxu0 %v6504
        %6938 = vmatpush.bf16.xpose.msra.mxu0 %v6501
        %6939 = vmatpush.bf16.xpose.msra.mxu0 %v6498
        %6940 = vmatpush.bf16.xpose.msra.mxu0 %v6495
        %6941 = vmatmul.bf16.gmra.mxu0 %v6159
        %v6942 = vpop.f32.mrf.mxu0
        %v6943 = vadd.f32 %v6894, %v6942
        %v6944 = vpop.f32.mrf.mxu0
        %v6945 = vadd.f32 %v6896, %v6944
        %6946 = vmatmul.bf16.gmra.mxu0 %v6162
        %v6947 = vpop.f32.mrf.mxu0
        %v6948 = vadd.f32 %v6899, %v6947
        %v6949 = vpop.f32.mrf.mxu0
        %v6950 = vadd.f32 %v6901, %v6949
        %6951 = vmatmul.bf16.gmra.mxu0 %v6165
        %v6952 = vpop.f32.mrf.mxu0
        %v6953 = vadd.f32 %v6904, %v6952
        %v6954 = vpop.f32.mrf.mxu0
        %v6955 = vadd.f32 %v6906, %v6954
        %6956 = vmatmul.bf16.gmra.mxu0 %v6168
        %v6957 = vpop.f32.mrf.mxu0
        %v6958 = vadd.f32 %v6909, %v6957
        %v6959 = vpop.f32.mrf.mxu0
        %v6960 = vadd.f32 %v6911, %v6959
        %6961 = vmatmul.bf16.gmra.mxu0 %v6171
        %v6962 = vpop.f32.mrf.mxu0
        %v6963 = vadd.f32 %v6914, %v6962
        %v6964 = vpop.f32.mrf.mxu0
        %v6965 = vadd.f32 %v6916, %v6964
        %6966 = vmatmul.bf16.gmra.mxu0 %v6174
        %v6967 = vpop.f32.mrf.mxu0
        %v6968 = vadd.f32 %v6919, %v6967
        %v6969 = vpop.f32.mrf.mxu0
        %v6970 = vadd.f32 %v6921, %v6969
        %6971 = vmatmul.bf16.gmra.mxu0 %v6177
        %v6972 = vpop.f32.mrf.mxu0
        %v6973 = vadd.f32 %v6924, %v6972
        %v6974 = vpop.f32.mrf.mxu0
        %v6975 = vadd.f32 %v6926, %v6974
        %6976 = vmatmul.bf16.gmra.mxu0 %v6180
        %v6977 = vpop.f32.mrf.mxu0
        %v6978 = vadd.f32 %v6929, %v6977
        %v6979 = vpop.f32.mrf.mxu0
        %v6980 = vadd.f32 %v6931, %v6979
        %6981 = vdwg.mxu0
        %6982 = vmatpush.bf16.xpose.msra.mxu0 %v6517
        %6983 = vmatpush.bf16.xpose.msra.mxu0 %v6514
        %6984 = vmatpush.bf16.xpose.msra.mxu0 %v6511
        %6985 = vmatpush.bf16.xpose.msra.mxu0 %v6508
        %6986 = vmatpush.bf16.xpose.msra.mxu0 %v6505
        %6987 = vmatpush.bf16.xpose.msra.mxu0 %v6502
        %6988 = vmatpush.bf16.xpose.msra.mxu0 %v6499
        %6989 = vmatpush.bf16.xpose.msra.mxu0 %v6496
        %6990 = vmatmul.bf16.gmra.mxu0 %v6160
        %v6991 = vpop.f32.mrf.mxu0
        %v6992 = vadd.f32 %v6943, %v6991
        %v6993 = vpop.f32.mrf.mxu0
        %v6994 = vadd.f32 %v6945, %v6993
        %6995 = vmatmul.bf16.gmra.mxu0 %v6163
        %v6996 = vpop.f32.mrf.mxu0
        %v6997 = vadd.f32 %v6948, %v6996
        %v6998 = vpop.f32.mrf.mxu0
        %v6999 = vadd.f32 %v6950, %v6998
        %7000 = vmatmul.bf16.gmra.mxu0 %v6166
        %v7001 = vpop.f32.mrf.mxu0
        %v7002 = vadd.f32 %v6953, %v7001
        %v7003 = vpop.f32.mrf.mxu0
        %v7004 = vadd.f32 %v6955, %v7003
        %7005 = vmatmul.bf16.gmra.mxu0 %v6169
        %v7006 = vpop.f32.mrf.mxu0
        %v7007 = vadd.f32 %v6958, %v7006
        %v7008 = vpop.f32.mrf.mxu0
        %v7009 = vadd.f32 %v6960, %v7008
        %7010 = vmatmul.bf16.gmra.mxu0 %v6172
        %v7011 = vpop.f32.mrf.mxu0
        %v7012 = vadd.f32 %v6963, %v7011
        %v7013 = vpop.f32.mrf.mxu0
        %v7014 = vadd.f32 %v6965, %v7013
        %7015 = vmatmul.bf16.gmra.mxu0 %v6175
        %v7016 = vpop.f32.mrf.mxu0
        %v7017 = vadd.f32 %v6968, %v7016
        %v7018 = vpop.f32.mrf.mxu0
        %v7019 = vadd.f32 %v6970, %v7018
        %7020 = vmatmul.bf16.gmra.mxu0 %v6178
        %v7021 = vpop.f32.mrf.mxu0
        %v7022 = vadd.f32 %v6973, %v7021
        %v7023 = vpop.f32.mrf.mxu0
        %v7024 = vadd.f32 %v6975, %v7023
        %7025 = vmatmul.bf16.gmra.mxu0 %v6181
        %v7026 = vpop.f32.mrf.mxu0
        %v7027 = vadd.f32 %v6978, %v7026
        %v7028 = vpop.f32.mrf.mxu0
        %v7029 = vadd.f32 %v6980, %v7028
        %7030 = vdwg.mxu0
        %7031 = vst [vmem:[%s267] sm:$0xff] %v6698
        %7032 = vst [vmem:[%s267 + $0x8] sm:$0xff] %v6845
        %7033 = vst [vmem:[%s267 + $0x10] sm:$0xff] %v6992
        %7034 = vst [vmem:[%s267 + $0x18] sm:$0xff] %v6700
        %7035 = vst [vmem:[%s267 + $0x20] sm:$0xff] %v6847
        %7036 = vst [vmem:[%s267 + $0x28] sm:$0xff] %v6994
        %7037 = vst [vmem:[%s267 + $0x30] sm:$0xff] %v6703
        %7038 = vst [vmem:[%s267 + $0x38] sm:$0xff] %v6850
        %7039 = vst [vmem:[%s267 + $0x40] sm:$0xff] %v6997
        %7040 = vst [vmem:[%s267 + $0x48] sm:$0xff] %v6705
        %7041 = vst [vmem:[%s267 + $0x50] sm:$0xff] %v6852
        %7042 = vst [vmem:[%s267 + $0x58] sm:$0xff] %v6999
        %7043 = vst [vmem:[%s267 + $0x60] sm:$0xff] %v6708
        %7044 = vst [vmem:[%s267 + $0x68] sm:$0xff] %v6855
        %7045 = vst [vmem:[%s267 + $0x70] sm:$0xff] %v7002
        %7046 = vst [vmem:[%s267 + $0x78] sm:$0xff] %v6710
        %7047 = vst [vmem:[%s267 + $0x80] sm:$0xff] %v6857
        %7048 = vst [vmem:[%s267 + $0x88] sm:$0xff] %v7004
        %7049 = vst [vmem:[%s267 + $0x90] sm:$0xff] %v6713
        %7050 = vst [vmem:[%s267 + $0x98] sm:$0xff] %v6860
        %7051 = vst [vmem:[%s267 + $0xa0] sm:$0xff] %v7007
        %7052 = vst [vmem:[%s267 + $0xa8] sm:$0xff] %v6715
        %7053 = vst [vmem:[%s267 + $0xb0] sm:$0xff] %v6862
        %7054 = vst [vmem:[%s267 + $0xb8] sm:$0xff] %v7009
        %7055 = vst [vmem:[%s267 + $0xc0] sm:$0xff] %v6718
        %7056 = vst [vmem:[%s267 + $0xc8] sm:$0xff] %v6865
        %7057 = vst [vmem:[%s267 + $0xd0] sm:$0xff] %v7012
        %7058 = vst [vmem:[%s267 + $0xd8] sm:$0xff] %v6720
        %7059 = vst [vmem:[%s267 + $0xe0] sm:$0xff] %v6867
        %7060 = vst [vmem:[%s267 + $0xe8] sm:$0xff] %v7014
        %7061 = vst [vmem:[%s267 + $0xf0] sm:$0xff] %v6723
        %7062 = vst [vmem:[%s267 + $0xf8] sm:$0xff] %v6870
        %7063 = vst [vmem:[%s267 + $0x100] sm:$0xff] %v7017
        %7064 = vst [vmem:[%s267 + $0x108] sm:$0xff] %v6725
        %7065 = vst [vmem:[%s267 + $0x110] sm:$0xff] %v6872
        %7066 = vst [vmem:[%s267 + $0x118] sm:$0xff] %v7019
        %7067 = vst [vmem:[%s267 + $0x120] sm:$0xff] %v6728
        %7068 = vst [vmem:[%s267 + $0x128] sm:$0xff] %v6875
        %7069 = vst [vmem:[%s267 + $0x130] sm:$0xff] %v7022
        %7070 = vst [vmem:[%s267 + $0x138] sm:$0xff] %v6730
        %7071 = vst [vmem:[%s267 + $0x140] sm:$0xff] %v6877
        %7072 = vst [vmem:[%s267 + $0x148] sm:$0xff] %v7024
        %7073 = vst [vmem:[%s267 + $0x150] sm:$0xff] %v6733
        %7074 = vst [vmem:[%s267 + $0x158] sm:$0xff] %v6880
        %7075 = vst [vmem:[%s267 + $0x160] sm:$0xff] %v7027
        %7076 = vst [vmem:[%s267 + $0x168] sm:$0xff] %v6735
        %7077 = vst [vmem:[%s267 + $0x170] sm:$0xff] %v6882
        %7078 = vst [vmem:[%s267 + $0x178] sm:$0xff] %v7029
        %s7079 = sand.u32 %s120, 1
        %s7080 = scalar_lea.sflag [#allocation5], %s7079
        %s7081 = sand.u32 %s120, 1
        %s7082 = smul.addr %s7081, 384
        %s7083 = scalar_lea.vmem [#allocation11], %s7082
        // Predicated region
        $region53: #{tpu_custom_call.1} parent=35 // pred_check
          %p7084 = pneg %p130
        $region54: #{tpu_custom_call.1} parent=35 // pred_check_branch
          %7086 = sbr.rel (%p7084) target = $region56
        $region55: #{tpu_custom_call.1} parent=35 // pred_region
          %7088 = vsyncadd %s7080, 0
          %s7089 = smul.addr %s23, 48
          %s7090 = smul.addr %s7089, 8
          %s7091 = scalar_lea.hbm %s4, %s7090
          %s7092 = sshll.u32 %s7083, 4
          %s7093 = int_to_ptr.vmem [resolvable:$true] %s7092
          %s7094 = sshll.u32 %s7091, 4
          %s7095 = int_to_ptr.hbm [resolvable:$true] %s7094
          %7100 = dma.vmem_to_hbm [thread:$0]  %s7093, 6144, %s7095, %s7080, 384, 384, 24
        $region56: #{tpu_custom_call.1} parent=35 // pred_fallthru
          _
      $region36: #{tpu_custom_call.1} parent=5 // pred_fallthru
        _
      %p7101 = scmp.le.s32.totalorder 2, %s18
      // Predicated region
      $region57: #{tpu_custom_call.1} parent=5 // pred_check
        %p7102 = pneg %p7101
      $region58: #{tpu_custom_call.1} parent=5 // pred_check_branch
        %7104 = sbr.rel (%p7102) target = $region60
      $region59: #{tpu_custom_call.1} parent=5 // pred_region
        %s7105 = ssub.s32 %s18, 2
        // Predicated region
        $region61: #{tpu_custom_call.1} parent=59 // pred_check
          %p7106 = pneg %p136
        $region62: #{tpu_custom_call.1} parent=59 // pred_check_branch
          %7108 = sbr.rel (%p7106) target = $region64
        $region63: #{tpu_custom_call.1} parent=59 // pred_region
          %s7109 = sand.u32 %s121, 1
          %s7110 = scalar_lea.sflag [#allocation5], %s7109
          %s7111 = sand.u32 %s121, 1
          %s7112 = smul.addr %s7111, 384
          %s7113 = scalar_lea.vmem [#allocation11], %s7112
          %7115 = dma.done %s7110, 6144
        $region64: #{tpu_custom_call.1} parent=59 // pred_fallthru
          _
      $region60: #{tpu_custom_call.1} parent=5 // pred_fallthru
        _
    $region6: #{tpu_custom_call.1} parent=1 // loop_footer
      %s22 = sadd.s32 1, %s18
    $region7: #{tpu_custom_call.1} parent=1 // loop_footer_branch
      %17 = sbr.rel target = $region3
    $region8: #{tpu_custom_call.1} parent=1 // loop_exit
      _
    %7116 = vsyncpa [#allocation4], 1
    %s7117 = scalar_lea.sflag [#allocation4], 1
    %7118 = vsyncpa %s7117, 1
    %7119 = vsyncpa [#allocation7], 1
    %7120 = vsyncpa [#allocation10], 1
    %7121 = vsyncpa [#allocation5], 1
    %s7122 = scalar_lea.sflag [#allocation5], 1
    %7123 = vsyncpa %s7122, 1

</llo_original>
